<compile_context>
chip_gen: v6e
topology: v6e:2x2x1
jax: 0.10.0
libtpu: 0.0.40
codegen_flags: <defaults>
</compile_context>

<pallas_src>
import math
import functools

import jax
import jax.numpy as jnp
from jax import lax
from jax.experimental import pallas as pl
from jax.experimental.pallas import tpu as pltpu


LN_EPS = 1e-5
_INV_SQRT2 = 1.0 / math.sqrt(2.0)


# ---------------------------------------------------------------------------
# helpers (used inside kernels, all f32 math)
# ---------------------------------------------------------------------------

def _gelu_exact(x_f32):
    # exact (erf-based) GELU, matching torch.nn.GELU() default
    return 0.5 * x_f32 * (1.0 + lax.erf(x_f32 * _INV_SQRT2))


def _layernorm_affine(y_f32, gamma_f32, beta_f32, eps):
    mean = jnp.mean(y_f32, axis=-1, keepdims=True)
    cen = y_f32 - mean
    var = jnp.mean(cen * cen, axis=-1, keepdims=True)
    return cen * lax.rsqrt(var + eps) * gamma_f32 + beta_f32


def _pick_tile(dim, cap, align):
    """Largest tile <= cap that divides dim and is `align`-aligned; else the full dim.
    TODO(synk): pad-to-multiple instead of full-dim fallback for awkward M."""
    if dim <= cap:
        return dim
    t = (cap // align) * align
    while t >= align:
        if dim % t == 0:
            return t
        t -= align
    return dim


# ---------------------------------------------------------------------------
# Kernel 1: tiled linear  o = x @ w + b   (embedding projection)
# ---------------------------------------------------------------------------

def _matmul_bias_kernel(x_ref, w_ref, b_ref, o_ref, acc_ref):
    @pl.when(pl.program_id(2) == 0)
    def _():
        acc_ref[...] = jnp.zeros_like(acc_ref)

    acc_ref[...] += jnp.dot(x_ref[...], w_ref[...],
                            preferred_element_type=jnp.float32)

    @pl.when(pl.program_id(2) == pl.num_programs(2) - 1)
    def _():
        o_ref[...] = (acc_ref[...] + b_ref[...].astype(jnp.float32)).astype(o_ref.dtype)


def linear(x, w, b2d, *, out_dtype=None, tm_cap=256, tn_cap=512, tk_cap=512):
    M, K = x.shape
    N = w.shape[1]
    out_dtype = out_dtype or x.dtype
    tm = _pick_tile(M, tm_cap, 16)    # bf16 rows pack 16 sublanes / vreg
    tn = _pick_tile(N, tn_cap, 128)
    tk = _pick_tile(K, tk_cap, 128)
    grid = (M // tm, N // tn, K // tk)   # reduction axis (K) last
    return pl.pallas_call(
        _matmul_bias_kernel,
        out_shape=jax.ShapeDtypeStruct((M, N), out_dtype),
        grid_spec=pltpu.PrefetchScalarGridSpec(
            num_scalar_prefetch=0,
            grid=grid,
            in_specs=[
                pl.BlockSpec((tm, tk), lambda i, j, k: (i, k)),
                pl.BlockSpec((tk, tn), lambda i, j, k: (k, j)),
                pl.BlockSpec((1, tn), lambda i, j, k: (0, j)),
            ],
            out_specs=pl.BlockSpec((tm, tn), lambda i, j, k: (i, j)),
            scratch_shapes=[pltpu.VMEM((tm, tn), jnp.float32)],
        ),
        compiler_params=pltpu.CompilerParams(
            dimension_semantics=("parallel", "parallel", "arbitrary")),
    )(x, w, b2d)


# ---------------------------------------------------------------------------
# Kernel 2: fused multi-head-attention block (QKV proj folded into weights)
#   per head h:   t_h = x_q @ Aqk_h + ck_h            (Aqk_h = scale * Wq_h Wk_h^T)
#                 s_h = t_h @ x_kv^T ; p_h = softmax(s_h)
#                 acc += p_h @ (x_kv @ Wvo_h)          (Wvo_h = Wv_h Wo_h)
#   out = LayerNorm1( x_q + acc + b_out )              (b_out = bv @ Wo + bo)
# Grid: (batch, q-tiles).  All matmuls are full-lane (K=128 or K=S, N multiple of 128);
# per-head slices of t / vo are 128-lane aligned.
# ---------------------------------------------------------------------------

def _mha_fused_kernel(xq_ref, xkv_ref, aqk_ref, ck_ref, wvo_ref, bout_ref,
                      g_ref, beta_ref, o_ref, *, num_heads, d_model, eps):
    D = d_model
    xq = xq_ref[0]                      # (tq, D)  bf16
    xkv = xkv_ref[0]                    # (S,  D)  bf16

    # folded Q/K projection: (tq, H*D), wide-N full-lane matmul
    t = (jnp.dot(xq, aqk_ref[...], preferred_element_type=jnp.float32)
         + ck_ref[...].astype(jnp.float32)).astype(xq.dtype)
    # folded V + out-proj: (S, H*D)
    vo = jnp.dot(xkv, wvo_ref[...],
                 preferred_element_type=jnp.float32).astype(xq.dtype)

    acc = jnp.zeros((xq.shape[0], D), jnp.float32)
    for h in range(num_heads):
        t_h = t[:, h * D:(h + 1) * D]                        # lane-aligned slice
        # contract the feature dim of both operands (no explicit transpose)
        s = lax.dot_general(t_h, xkv, (((1,), (1,)), ((), ())),
                            preferred_element_type=jnp.float32)          # (tq, S)
        m = jnp.max(s, axis=-1, keepdims=True)
        p = jnp.exp(s - m)
        # approx reciprocal (EUP slot); ~1e-3 rel. error vs exact divide
        p = p * pl.reciprocal(jnp.sum(p, axis=-1, keepdims=True), approx=True)
        acc = acc + jnp.dot(p.astype(vo.dtype), vo[:, h * D:(h + 1) * D],
                            preferred_element_type=jnp.float32)

    y = acc + bout_ref[...].astype(jnp.float32) + xq.astype(jnp.float32)
    o_ref[0] = _layernorm_affine(
        y, g_ref[...].astype(jnp.float32), beta_ref[...].astype(jnp.float32), eps
    ).astype(o_ref.dtype)


def mha_block(x, aqk, ck, wvo, b_out, gamma, beta, num_heads, eps=LN_EPS, tq_cap=256):
    # TODO(synk): for very long S add a kv-tile grid axis with flash-style online softmax and
    #             single-buffer the constant weight operands (pl.Buffered(1)) to save v7x VMEM.
    B, S, D = x.shape
    HD = aqk.shape[1]
    tq = _pick_tile(S, tq_cap, 16)
    kern = functools.partial(_mha_fused_kernel, num_heads=num_heads,
                             d_model=D, eps=eps)
    return pl.pallas_call(
        kern,
        out_shape=jax.ShapeDtypeStruct((B, S, D), x.dtype),
        grid_spec=pltpu.PrefetchScalarGridSpec(
            num_scalar_prefetch=0,
            grid=(B, S // tq),
            in_specs=[
                pl.BlockSpec((1, tq, D), lambda b, q: (b, q, 0)),   # queries / residual
                pl.BlockSpec((1, S, D), lambda b, q: (b, 0, 0)),    # keys/values (full seq)
                pl.BlockSpec((D, HD), lambda b, q: (0, 0)),         # Aqk (folded Q/K)
                pl.BlockSpec((1, HD), lambda b, q: (0, 0)),         # ck
                pl.BlockSpec((D, HD), lambda b, q: (0, 0)),         # Wvo (folded V/out-proj)
                pl.BlockSpec((1, D), lambda b, q: (0, 0)),          # b_out
                pl.BlockSpec((1, D), lambda b, q: (0, 0)),          # ln1 gamma
                pl.BlockSpec((1, D), lambda b, q: (0, 0)),          # ln1 beta
            ],
            out_specs=pl.BlockSpec((1, tq, D), lambda b, q: (b, q, 0)),
        ),
        compiler_params=pltpu.CompilerParams(
            dimension_semantics=("parallel", "parallel")),
    )(x, x, aqk, ck, wvo, b_out, gamma, beta)


# ---------------------------------------------------------------------------
# Kernel 3: fused feed-forward block
#   out = LayerNorm2( x + GELU(x @ W1 + b1) @ W2 + b2 )
# Grid over M row-tiles; the (tm, dim_feedforward) intermediate stays in VMEM (bf16 after GELU).
# ---------------------------------------------------------------------------

def _ffn_block_kernel(x_ref, w1_ref, b1_ref, w2_ref, b2_ref, g_ref, beta_ref,
                      o_ref, *, eps):
    x = x_ref[...]                                                   # (tm, D) bf16
    h1 = jnp.dot(x, w1_ref[...], preferred_element_type=jnp.float32)
    # cast back to bf16 immediately so the (tm, F) intermediate is not held in f32
    h1 = _gelu_exact(h1 + b1_ref[...].astype(jnp.float32)).astype(w2_ref.dtype)
    h2 = jnp.dot(h1, w2_ref[...], preferred_element_type=jnp.float32)
    y = h2 + b2_ref[...].astype(jnp.float32) + x.astype(jnp.float32)
    o_ref[...] = _layernorm_affine(
        y, g_ref[...].astype(jnp.float32), beta_ref[...].astype(jnp.float32), eps
    ).astype(o_ref.dtype)


def ffn_block(x, w1, b1, w2, b2, gamma, beta, eps=LN_EPS, tm_cap=256):
    M, D = x.shape
    F = w1.shape[1]
    tm = _pick_tile(M, tm_cap, 16)
    return pl.pallas_call(
        functools.partial(_ffn_block_kernel, eps=eps),
        out_shape=jax.ShapeDtypeStruct((M, D), x.dtype),
        grid_spec=pltpu.PrefetchScalarGridSpec(
            num_scalar_prefetch=0,
            grid=(M // tm,),
            in_specs=[
                pl.BlockSpec((tm, D), lambda i: (i, 0)),
                pl.BlockSpec((D, F), lambda i: (0, 0)),
                pl.BlockSpec((1, F), lambda i: (0, 0)),
                pl.BlockSpec((F, D), lambda i: (0, 0)),
                pl.BlockSpec((1, D), lambda i: (0, 0)),
                pl.BlockSpec((1, D), lambda i: (0, 0)),
                pl.BlockSpec((1, D), lambda i: (0, 0)),
            ],
            out_specs=pl.BlockSpec((tm, D), lambda i: (i, 0)),
        ),
        compiler_params=pltpu.CompilerParams(dimension_semantics=("parallel",)),
    )(x, w1, b1, w2, b2, gamma, beta)


# ---------------------------------------------------------------------------
# Kernel 4: fused trailing LayerNorm + final fc (fc pre-padded to 128 lanes)
# ---------------------------------------------------------------------------

def _ln_fc_kernel(x_ref, g_ref, b_ref, w_ref, wb_ref, o_ref, *, eps):
    n = _layernorm_affine(x_ref[...].astype(jnp.float32),
                          g_ref[...].astype(jnp.float32),
                          b_ref[...].astype(jnp.float32), eps)
    out = jnp.dot(n.astype(w_ref.dtype), w_ref[...],
                  preferred_element_type=jnp.float32) + wb_ref[...].astype(jnp.float32)
    o_ref[...] = out.astype(o_ref.dtype)


def ln_fc(x, gamma, beta, fc_w, fc_b, eps=LN_EPS, tm_cap=256, out_dtype=jnp.float32):
    M, D = x.shape
    N = fc_w.shape[1]
    tm = _pick_tile(M, tm_cap, 16)
    return pl.pallas_call(
        functools.partial(_ln_fc_kernel, eps=eps),
        out_shape=jax.ShapeDtypeStruct((M, N), out_dtype),
        grid_spec=pltpu.PrefetchScalarGridSpec(
            num_scalar_prefetch=0,
            grid=(M // tm,),
            in_specs=[
                pl.BlockSpec((tm, D), lambda i: (i, 0)),
                pl.BlockSpec((1, D), lambda i: (0, 0)),
                pl.BlockSpec((1, D), lambda i: (0, 0)),
                pl.BlockSpec((D, N), lambda i: (0, 0)),
                pl.BlockSpec((1, N), lambda i: (0, 0)),
            ],
            out_specs=pl.BlockSpec((tm, N), lambda i: (i, 0)),
        ),
        compiler_params=pltpu.CompilerParams(dimension_semantics=("parallel",)),
    )(x, gamma, beta, fc_w, fc_b)


# ---------------------------------------------------------------------------
# Parameters: raw init + one-time folding / padding / dtype casting
# ---------------------------------------------------------------------------

def init_params(key, num_features, num_labels, d_model, num_heads, num_layers,
                dim_feedforward=2048):
    def nrm(k, shape, scale=0.02):
        return scale * jax.random.normal(k, shape, dtype=jnp.float32)

    keys = jax.random.split(key, 4 + num_layers)
    params = {
        "emb_w": nrm(keys[0], (num_features, d_model)),
        "emb_b": nrm(keys[1], (d_model,)),
        "norm_g": jnp.ones((d_model,), jnp.float32),
        "norm_b": jnp.zeros((d_model,), jnp.float32),
        "fc_w": nrm(keys[2], (d_model, num_labels)),
        "fc_b": nrm(keys[3], (num_labels,)),
        "layers": [],
    }
    for l in range(num_layers):
        lk = jax.random.split(keys[4 + l], 8)
        params["layers"].append({
            "in_w":  nrm(lk[0], (d_model, 3 * d_model)),   # packed q|k|v projection (in, out)
            "in_b":  nrm(lk[1], (3 * d_model,)),
            "out_w": nrm(lk[2], (d_model, d_model)),
            "out_b": nrm(lk[3], (d_model,)),
            "ff1_w": nrm(lk[4], (d_model, dim_feedforward)),
            "ff1_b": nrm(lk[5], (dim_feedforward,)),
            "ff2_w": nrm(lk[6], (dim_feedforward, d_model)),
            "ff2_b": nrm(lk[7], (d_model,)),
            "ln1_g": jnp.ones((d_model,), jnp.float32),
            "ln1_b": jnp.zeros((d_model,), jnp.float32),
            "ln2_g": jnp.ones((d_model,), jnp.float32),
            "ln2_b": jnp.zeros((d_model,), jnp.float32),
        })
    return params


def prepare_params(params, num_heads, compute_dtype=jnp.bfloat16):
    """One-time weight folding (Q/K -> Aqk, V/out-proj -> Wvo), fc padding to 128 lanes, and
    bf16 casting.  Runs once, outside the jitted forward (all math in f32)."""
    D = params["emb_w"].shape[1]
    hd = D // num_heads
    scale = 1.0 / math.sqrt(hd)
    num_labels = params["fc_w"].shape[1]
    n_pad = max(128, ((num_labels + 127) // 128) * 128)

    prepped = {
        "emb_w": params["emb_w"].astype(compute_dtype),
        "emb_b": params["emb_b"].reshape(1, D).astype(jnp.float32),
        "norm_g": params["norm_g"].reshape(1, D).astype(jnp.float32),
        "norm_b": params["norm_b"].reshape(1, D).astype(jnp.float32),
        "fc_w": jnp.pad(params["fc_w"],
                        ((0, 0), (0, n_pad - num_labels))).astype(compute_dtype),
        "fc_b": jnp.pad(params["fc_b"],
                        ((0, n_pad - num_labels),)).reshape(1, n_pad).astype(jnp.float32),
        "layers": [],
    }

    for lp in params["layers"]:
        in_w = lp["in_w"].astype(jnp.float32)
        in_b = lp["in_b"].astype(jnp.float32)
        wq, wk, wv = in_w[:, :D], in_w[:, D:2 * D], in_w[:, 2 * D:]
        bq, bv = in_b[:D], in_b[2 * D:]
        wo = lp["out_w"].astype(jnp.float32)
        bo = lp["out_b"].astype(jnp.float32)

        aqk, ck, wvo = [], [], []
        for h in range(num_heads):
            sl = slice(h * hd, (h + 1) * hd)
            aqk.append(scale * (wq[:, sl] @ wk[:, sl].T))     # (D, D)
            ck.append(scale * (wk[:, sl] @ bq[sl]))           # (D,)  surviving key-bias term
            wvo.append(wv[:, sl] @ wo[sl, :])                 # (D, D)
        # (query-bias terms are constant per softmax row and cancel exactly)

        prepped["layers"].append({
            "aqk": jnp.concatenate(aqk, axis=1).astype(compute_dtype),          # (D, H*D)
            "ck": jnp.concatenate(ck, axis=0).reshape(1, num_heads * D).astype(jnp.float32),
            "wvo": jnp.concatenate(wvo, axis=1).astype(compute_dtype),          # (D, H*D)
            "b_out": (bv @ wo + bo).reshape(1, D).astype(jnp.float32),          # bv@Wo + bo
            "ln1_g": lp["ln1_g"].reshape(1, D).astype(jnp.float32),
            "ln1_b": lp["ln1_b"].reshape(1, D).astype(jnp.float32),
            "ff1_w": lp["ff1_w"].astype(compute_dtype),
            "ff1_b": lp["ff1_b"].reshape(1, -1).astype(jnp.float32),
            "ff2_w": lp["ff2_w"].astype(compute_dtype),
            "ff2_b": lp["ff2_b"].reshape(1, D).astype(jnp.float32),
            "ln2_g": lp["ln2_g"].reshape(1, D).astype(jnp.float32),
            "ln2_b": lp["ln2_b"].reshape(1, D).astype(jnp.float32),
        })
    return prepped


# ---------------------------------------------------------------------------
# Forward pass (glue in plain JAX, compute in Pallas)
# ---------------------------------------------------------------------------

def custom_transformer_forward(x, p, num_heads, num_labels):
    # x: (B, S, num_features) — eval mode (dropout p=0.3 is identity at inference)
    B, S, F_in = x.shape
    M = B * S
    D = p["emb_w"].shape[1]
    compute_dtype = p["emb_w"].dtype

    h = linear(x.reshape(M, F_in).astype(compute_dtype),
               p["emb_w"], p["emb_b"])                                  # (M, D) bf16

    for lp in p["layers"]:
        # --- multi-head self-attention block (post-norm), fully fused incl. QKV projection ---
        h = mha_block(h.reshape(B, S, D), lp["aqk"], lp["ck"], lp["wvo"],
                      lp["b_out"], lp["ln1_g"], lp["ln1_b"],
                      num_heads).reshape(M, D)

        # --- feed-forward block (post-norm), single fused kernel ---
        h = ffn_block(h, lp["ff1_w"], lp["ff1_b"], lp["ff2_w"], lp["ff2_b"],
                      lp["ln2_g"], lp["ln2_b"])

    # trailing self.norm fused with self.fc (fc pre-padded to 128 lanes; slice here)
    out = ln_fc(h, p["norm_g"], p["norm_b"], p["fc_w"], p["fc_b"])      # (M, n_pad) f32
    return out[:, :num_labels].reshape(B, S, num_labels)


# ---------------------------------------------------------------------------
# Main
# ---------------------------------------------------------------------------

if __name__ == "__main__":
    # small, module-consistent shapes
    B, S = 2, 8
    num_features = 16
    num_labels = 8
    d_model = 128
    num_heads = 8
    num_layers = 2          # (module default is 6; kept small for the demo)
    dim_feedforward = 2048  # PyTorch TransformerEncoderLayer default

    key = jax.random.PRNGKey(0)
    k_in, k_par = jax.random.split(key)
    x = jax.random.normal(k_in, (B, S, num_features), dtype=jnp.float32)

    params = init_params(k_par, num_features, num_labels, d_model,
                         num_heads, num_layers, dim_feedforward)
    prepped = prepare_params(params, num_heads)   # one-time folding/padding, outside jit

    fwd = jax.jit(functools.partial(custom_transformer_forward,
                                    num_heads=num_heads, num_labels=num_labels))
    out = fwd(x, prepped)
    out = jax.block_until_ready(out)
    assert out.shape == (B, S, num_labels)
    print("KERNEL_OK")
</pallas_src>

<mosaic_0001>
module attributes {stable_mosaic.version = 11 : i64} {
  func.func @_matmul_bias_kernel(%arg0: i32, %arg1: i32, %arg2: i32, %arg3: memref<16x16xbf16, #tpu.memory_space<vmem>>, %arg4: memref<16x128xbf16, #tpu.memory_space<vmem>>, %arg5: memref<1x128xf32, #tpu.memory_space<vmem>>, %arg6: memref<16x128xbf16, #tpu.memory_space<vmem>>, %arg7: memref<16x128xf32, #tpu.memory_space<vmem>>) attributes {dimension_semantics = [#tpu.dimension_semantics<parallel>, #tpu.dimension_semantics<parallel>, #tpu.dimension_semantics<arbitrary>], iteration_bounds = array<i64: 1, 1, 1>, scalar_prefetch = 0 : i64, scratch_operands = 1 : i64, tpu.core_type = #tpu.core_type<tc>, window_params = [{transform_indices = @transform_0, window_bounds = array<i64: 16, 16>}, {transform_indices = @transform_1, window_bounds = array<i64: 16, 128>}, {transform_indices = @transform_2, window_bounds = array<i64: 1, 128>}, {transform_indices = @transform_3, window_bounds = array<i64: 16, 128>}]} {
    %c0_i32 = arith.constant 0 : i32
    %0 = arith.cmpi eq, %arg2, %c0_i32 : i32
    %1 = arith.extui %0 : i1 to i32
    %c0_i32_0 = arith.constant 0 : i32
    %2 = arith.cmpi ne, %1, %c0_i32_0 : i32
    scf.if %2 {
      %cst_10 = arith.constant 0.000000e+00 : f32
      %12 = vector.broadcast %cst_10 : f32 to vector<16x128xf32>
      %c0_11 = arith.constant 0 : index
      %c0_12 = arith.constant 0 : index
      %13 = vector.load %arg7[%c0_11, %c0_12] : memref<16x128xf32, #tpu.memory_space<vmem>>, vector<16x128xf32>
      tpu.vector_store %arg7[%c0_11, %c0_12], %12 {strides = array<i32>} : memref<16x128xf32, #tpu.memory_space<vmem>>, vector<16x128xf32>,
    } else {
    }
    %c0 = arith.constant 0 : index
    %c0_1 = arith.constant 0 : index
    %3 = vector.load %arg7[%c0, %c0_1] : memref<16x128xf32, #tpu.memory_space<vmem>>, vector<16x128xf32>
    %c0_2 = arith.constant 0 : index
    %c0_3 = arith.constant 0 : index
    %4 = vector.load %arg3[%c0_2, %c0_3] : memref<16x16xbf16, #tpu.memory_space<vmem>>, vector<16x16xbf16>
    %c0_4 = arith.constant 0 : index
    %c0_5 = arith.constant 0 : index
    %5 = vector.load %arg4[%c0_4, %c0_5] : memref<16x128xbf16, #tpu.memory_space<vmem>>, vector<16x128xbf16>
    %cst = arith.constant dense<0.000000e+00> : vector<16x128xf32>
    %6 = tpu.matmul %4, %5, %cst {dimension_numbers = #tpu.dot_dimension_numbers<[1], [0], [0], [1], [0, 0, 1, 1], [], []>} : vector<16x16xbf16>, vector<16x128xbf16>, vector<16x128xf32> -> vector<16x128xf32>
    %7 = arith.addf %3, %6 : vector<16x128xf32>
    %c0_6 = arith.constant 0 : index
    %c0_7 = arith.constant 0 : index
    %8 = vector.load %arg7[%c0_6, %c0_7] : memref<16x128xf32, #tpu.memory_space<vmem>>, vector<16x128xf32>
    tpu.vector_store %arg7[%c0_6, %c0_7], %7 {strides = array<i32>} : memref<16x128xf32, #tpu.memory_space<vmem>>, vector<16x128xf32>,
    %c0_i32_8 = arith.constant 0 : i32
    %9 = arith.cmpi eq, %arg2, %c0_i32_8 : i32
    %10 = arith.extui %9 : i1 to i32
    %c0_i32_9 = arith.constant 0 : i32
    %11 = arith.cmpi ne, %10, %c0_i32_9 : i32
    scf.if %11 {
      %c0_10 = arith.constant 0 : index
      %c0_11 = arith.constant 0 : index
      %12 = vector.load %arg7[%c0_10, %c0_11] : memref<16x128xf32, #tpu.memory_space<vmem>>, vector<16x128xf32>
      %c0_12 = arith.constant 0 : index
      %c0_13 = arith.constant 0 : index
      %13 = vector.load %arg5[%c0_12, %c0_13] : memref<1x128xf32, #tpu.memory_space<vmem>>, vector<1x128xf32>
      %14 = vector.broadcast %13 : vector<1x128xf32> to vector<16x128xf32>
      %15 = arith.addf %12, %14 : vector<16x128xf32>
      %16 = arith.truncf %15 : vector<16x128xf32> to vector<16x128xbf16>
      %c0_14 = arith.constant 0 : index
      %c0_15 = arith.constant 0 : index
      %17 = vector.load %arg6[%c0_14, %c0_15] : memref<16x128xbf16, #tpu.memory_space<vmem>>, vector<16x128xbf16>
      tpu.vector_store %arg6[%c0_14, %c0_15], %16 {strides = array<i32>} : memref<16x128xbf16, #tpu.memory_space<vmem>>, vector<16x128xbf16>,
    } else {
    }
    return
  }
  func.func @transform_0(%arg0: i32, %arg1: i32, %arg2: i32) -> (i32, i32) {
    %c0_i32 = arith.constant 0 : i32
    return %arg0, %arg2 : i32, i32
  }
  func.func @transform_1(%arg0: i32, %arg1: i32, %arg2: i32) -> (i32, i32) {
    %c0_i32 = arith.constant 0 : i32
    return %arg2, %arg1 : i32, i32
  }
  func.func @transform_2(%arg0: i32, %arg1: i32, %arg2: i32) -> (i32, i32) {
    %c0_i32 = arith.constant 0 : i32
    %c0_i32_0 = arith.constant 0 : i32
    return %c0_i32, %arg1 : i32, i32
  }
  func.func @transform_3(%arg0: i32, %arg1: i32, %arg2: i32) -> (i32, i32) {
    %c0_i32 = arith.constant 0 : i32
    return %arg0, %arg1 : i32, i32
  }
}

module attributes {stable_mosaic.version = 11 : i64} {
  func.func @_mha_fused_kernel(%arg0: i32, %arg1: i32, %arg2: memref<1x8x128xbf16, #tpu.memory_space<vmem>>, %arg3: memref<1x8x128xbf16, #tpu.memory_space<vmem>>, %arg4: memref<128x1024xbf16, #tpu.memory_space<vmem>>, %arg5: memref<1x1024xf32, #tpu.memory_space<vmem>>, %arg6: memref<128x1024xbf16, #tpu.memory_space<vmem>>, %arg7: memref<1x128xf32, #tpu.memory_space<vmem>>, %arg8: memref<1x128xf32, #tpu.memory_space<vmem>>, %arg9: memref<1x128xf32, #tpu.memory_space<vmem>>, %arg10: memref<1x8x128xbf16, #tpu.memory_space<vmem>>) attributes {dimension_semantics = [#tpu.dimension_semantics<parallel>, #tpu.dimension_semantics<parallel>], iteration_bounds = array<i64: 2, 1>, scalar_prefetch = 0 : i64, scratch_operands = 0 : i64, tpu.core_type = #tpu.core_type<tc>, window_params = [{transform_indices = @transform_0, window_bounds = array<i64: 1, 8, 128>}, {transform_indices = @transform_1, window_bounds = array<i64: 1, 8, 128>}, {pipeline_mode = #tpu.pipeline_mode<synchronous>, transform_indices = @transform_2, window_bounds = array<i64: 128, 1024>}, {pipeline_mode = #tpu.pipeline_mode<synchronous>, transform_indices = @transform_3, window_bounds = array<i64: 1, 1024>}, {pipeline_mode = #tpu.pipeline_mode<synchronous>, transform_indices = @transform_4, window_bounds = array<i64: 128, 1024>}, {pipeline_mode = #tpu.pipeline_mode<synchronous>, transform_indices = @transform_5, window_bounds = array<i64: 1, 128>}, {pipeline_mode = #tpu.pipeline_mode<synchronous>, transform_indices = @transform_6, window_bounds = array<i64: 1, 128>}, {pipeline_mode = #tpu.pipeline_mode<synchronous>, transform_indices = @transform_7, window_bounds = array<i64: 1, 128>}, {transform_indices = @transform_8, window_bounds = array<i64: 1, 8, 128>}]} {
    %c0 = arith.constant 0 : index
    %c0_0 = arith.constant 0 : index
    %c0_1 = arith.constant 0 : index
    %0 = vector.load %arg2[%c0, %c0_0, %c0_1] : memref<1x8x128xbf16, #tpu.memory_space<vmem>>, vector<1x8x128xbf16>
    %1 = vector.shape_cast %0 : vector<1x8x128xbf16> to vector<8x128xbf16>
    %c0_2 = arith.constant 0 : index
    %c0_3 = arith.constant 0 : index
    %c0_4 = arith.constant 0 : index
    %2 = vector.load %arg3[%c0_2, %c0_3, %c0_4] : memref<1x8x128xbf16, #tpu.memory_space<vmem>>, vector<1x8x128xbf16>
    %3 = vector.shape_cast %2 : vector<1x8x128xbf16> to vector<8x128xbf16>
    %c0_5 = arith.constant 0 : index
    %c0_6 = arith.constant 0 : index
    %4 = vector.load %arg4[%c0_5, %c0_6] : memref<128x1024xbf16, #tpu.memory_space<vmem>>, vector<128x1024xbf16>
    %cst = arith.constant dense<0.000000e+00> : vector<8x1024xf32>
    %5 = tpu.matmul %1, %4, %cst {dimension_numbers = #tpu.dot_dimension_numbers<[1], [0], [0], [1], [0, 0, 1, 1], [], []>} : vector<8x128xbf16>, vector<128x1024xbf16>, vector<8x1024xf32> -> vector<8x1024xf32>
    %c0_7 = arith.constant 0 : index
    %c0_8 = arith.constant 0 : index
    %6 = vector.load %arg5[%c0_7, %c0_8] : memref<1x1024xf32, #tpu.memory_space<vmem>>, vector<1x1024xf32>
    %7 = vector.broadcast %6 : vector<1x1024xf32> to vector<8x1024xf32>
    %8 = arith.addf %5, %7 : vector<8x1024xf32>
    %9 = arith.truncf %8 : vector<8x1024xf32> to vector<8x1024xbf16>
    %c0_9 = arith.constant 0 : index
    %c0_10 = arith.constant 0 : index
    %10 = vector.load %arg6[%c0_9, %c0_10] : memref<128x1024xbf16, #tpu.memory_space<vmem>>, vector<128x1024xbf16>
    %cst_11 = arith.constant dense<0.000000e+00> : vector<8x1024xf32>
    %11 = tpu.matmul %3, %10, %cst_11 {dimension_numbers = #tpu.dot_dimension_numbers<[1], [0], [0], [1], [0, 0, 1, 1], [], []>} : vector<8x128xbf16>, vector<128x1024xbf16>, vector<8x1024xf32> -> vector<8x1024xf32>
    %12 = arith.truncf %11 : vector<8x1024xf32> to vector<8x1024xbf16>
    %cst_12 = arith.constant 0.000000e+00 : f32
    %13 = vector.broadcast %cst_12 : f32 to vector<8x128xf32>
    %14 = vector.extract_strided_slice %9 {offsets = [0, 0], sizes = [8, 128], strides = [1, 1]} : vector<8x1024xbf16> to vector<8x128xbf16>
    %cst_13 = arith.constant dense<0.000000e+00> : vector<8x8xf32>
    %15 = tpu.matmul %14, %3, %cst_13 {dimension_numbers = #tpu.dot_dimension_numbers<[1], [1], [0], [0], [0, 0, 1, 0], [], []>} : vector<8x128xbf16>, vector<8x128xbf16>, vector<8x8xf32> -> vector<8x8xf32>
    %cst_14 = arith.constant dense<0xFF800000> : vector<8xf32>
    %16 = vector.multi_reduction <maximumf>, %15, %cst_14 [1] : vector<8x8xf32> to vector<8xf32>
    %17 = vector.shape_cast %16 : vector<8xf32> to vector<8x1xf32>
    %18 = vector.broadcast %17 : vector<8x1xf32> to vector<8x8xf32>
    %19 = arith.subf %15, %18 : vector<8x8xf32>
    %20 = math.exp %19 : vector<8x8xf32>
    %cst_15 = arith.constant dense<0.000000e+00> : vector<8xf32>
    %21 = vector.multi_reduction <add>, %20, %cst_15 [1] : vector<8x8xf32> to vector<8xf32>
    %22 = vector.shape_cast %21 : vector<8xf32> to vector<8x1xf32>
    %23 = tpu.reciprocal %22 {approx = true} : vector<8x1xf32> -> vector<8x1xf32>
    %24 = vector.broadcast %23 : vector<8x1xf32> to vector<8x8xf32>
    %25 = arith.mulf %20, %24 : vector<8x8xf32>
    %26 = arith.truncf %25 : vector<8x8xf32> to vector<8x8xbf16>
    %27 = vector.extract_strided_slice %12 {offsets = [0, 0], sizes = [8, 128], strides = [1, 1]} : vector<8x1024xbf16> to vector<8x128xbf16>
    %cst_16 = arith.constant dense<0.000000e+00> : vector<8x128xf32>
    %28 = tpu.matmul %26, %27, %cst_16 {dimension_numbers = #tpu.dot_dimension_numbers<[1], [0], [0], [1], [0, 0, 1, 1], [], []>} : vector<8x8xbf16>, vector<8x128xbf16>, vector<8x128xf32> -> vector<8x128xf32>
    %29 = arith.addf %13, %28 : vector<8x128xf32>
    %30 = vector.extract_strided_slice %9 {offsets = [0, 128], sizes = [8, 128], strides = [1, 1]} : vector<8x1024xbf16> to vector<8x128xbf16>
    %cst_17 = arith.constant dense<0.000000e+00> : vector<8x8xf32>
    %31 = tpu.matmul %30, %3, %cst_17 {dimension_numbers = #tpu.dot_dimension_numbers<[1], [1], [0], [0], [0, 0, 1, 0], [], []>} : vector<8x128xbf16>, vector<8x128xbf16>, vector<8x8xf32> -> vector<8x8xf32>
    %cst_18 = arith.constant dense<0xFF800000> : vector<8xf32>
    %32 = vector.multi_reduction <maximumf>, %31, %cst_18 [1] : vector<8x8xf32> to vector<8xf32>
    %33 = vector.shape_cast %32 : vector<8xf32> to vector<8x1xf32>
    %34 = vector.broadcast %33 : vector<8x1xf32> to vector<8x8xf32>
    %35 = arith.subf %31, %34 : vector<8x8xf32>
    %36 = math.exp %35 : vector<8x8xf32>
    %cst_19 = arith.constant dense<0.000000e+00> : vector<8xf32>
    %37 = vector.multi_reduction <add>, %36, %cst_19 [1] : vector<8x8xf32> to vector<8xf32>
    %38 = vector.shape_cast %37 : vector<8xf32> to vector<8x1xf32>
    %39 = tpu.reciprocal %38 {approx = true} : vector<8x1xf32> -> vector<8x1xf32>
    %40 = vector.broadcast %39 : vector<8x1xf32> to vector<8x8xf32>
    %41 = arith.mulf %36, %40 : vector<8x8xf32>
    %42 = arith.truncf %41 : vector<8x8xf32> to vector<8x8xbf16>
    %43 = vector.extract_strided_slice %12 {offsets = [0, 128], sizes = [8, 128], strides = [1, 1]} : vector<8x1024xbf16> to vector<8x128xbf16>
    %cst_20 = arith.constant dense<0.000000e+00> : vector<8x128xf32>
    %44 = tpu.matmul %42, %43, %cst_20 {dimension_numbers = #tpu.dot_dimension_numbers<[1], [0], [0], [1], [0, 0, 1, 1], [], []>} : vector<8x8xbf16>, vector<8x128xbf16>, vector<8x128xf32> -> vector<8x128xf32>
    %45 = arith.addf %29, %44 : vector<8x128xf32>
    %46 = vector.extract_strided_slice %9 {offsets = [0, 256], sizes = [8, 128], strides = [1, 1]} : vector<8x1024xbf16> to vector<8x128xbf16>
    %cst_21 = arith.constant dense<0.000000e+00> : vector<8x8xf32>
    %47 = tpu.matmul %46, %3, %cst_21 {dimension_numbers = #tpu.dot_dimension_numbers<[1], [1], [0], [0], [0, 0, 1, 0], [], []>} : vector<8x128xbf16>, vector<8x128xbf16>, vector<8x8xf32> -> vector<8x8xf32>
    %cst_22 = arith.constant dense<0xFF800000> : vector<8xf32>
    %48 = vector.multi_reduction <maximumf>, %47, %cst_22 [1] : vector<8x8xf32> to vector<8xf32>
    %49 = vector.shape_cast %48 : vector<8xf32> to vector<8x1xf32>
    %50 = vector.broadcast %49 : vector<8x1xf32> to vector<8x8xf32>
    %51 = arith.subf %47, %50 : vector<8x8xf32>
    %52 = math.exp %51 : vector<8x8xf32>
    %cst_23 = arith.constant dense<0.000000e+00> : vector<8xf32>
    %53 = vector.multi_reduction <add>, %52, %cst_23 [1] : vector<8x8xf32> to vector<8xf32>
    %54 = vector.shape_cast %53 : vector<8xf32> to vector<8x1xf32>
    %55 = tpu.reciprocal %54 {approx = true} : vector<8x1xf32> -> vector<8x1xf32>
    %56 = vector.broadcast %55 : vector<8x1xf32> to vector<8x8xf32>
    %57 = arith.mulf %52, %56 : vector<8x8xf32>
    %58 = arith.truncf %57 : vector<8x8xf32> to vector<8x8xbf16>
    %59 = vector.extract_strided_slice %12 {offsets = [0, 256], sizes = [8, 128], strides = [1, 1]} : vector<8x1024xbf16> to vector<8x128xbf16>
    %cst_24 = arith.constant dense<0.000000e+00> : vector<8x128xf32>
    %60 = tpu.matmul %58, %59, %cst_24 {dimension_numbers = #tpu.dot_dimension_numbers<[1], [0], [0], [1], [0, 0, 1, 1], [], []>} : vector<8x8xbf16>, vector<8x128xbf16>, vector<8x128xf32> -> vector<8x128xf32>
    %61 = arith.addf %45, %60 : vector<8x128xf32>
    %62 = vector.extract_strided_slice %9 {offsets = [0, 384], sizes = [8, 128], strides = [1, 1]} : vector<8x1024xbf16> to vector<8x128xbf16>
    %cst_25 = arith.constant dense<0.000000e+00> : vector<8x8xf32>
    %63 = tpu.matmul %62, %3, %cst_25 {dimension_numbers = #tpu.dot_dimension_numbers<[1], [1], [0], [0], [0, 0, 1, 0], [], []>} : vector<8x128xbf16>, vector<8x128xbf16>, vector<8x8xf32> -> vector<8x8xf32>
    %cst_26 = arith.constant dense<0xFF800000> : vector<8xf32>
    %64 = vector.multi_reduction <maximumf>, %63, %cst_26 [1] : vector<8x8xf32> to vector<8xf32>
    %65 = vector.shape_cast %64 : vector<8xf32> to vector<8x1xf32>
    %66 = vector.broadcast %65 : vector<8x1xf32> to vector<8x8xf32>
    %67 = arith.subf %63, %66 : vector<8x8xf32>
    %68 = math.exp %67 : vector<8x8xf32>
    %cst_27 = arith.constant dense<0.000000e+00> : vector<8xf32>
    %69 = vector.multi_reduction <add>, %68, %cst_27 [1] : vector<8x8xf32> to vector<8xf32>
    %70 = vector.shape_cast %69 : vector<8xf32> to vector<8x1xf32>
    %71 = tpu.reciprocal %70 {approx = true} : vector<8x1xf32> -> vector<8x1xf32>
    %72 = vector.broadcast %71 : vector<8x1xf32> to vector<8x8xf32>
    %73 = arith.mulf %68, %72 : vector<8x8xf32>
    %74 = arith.truncf %73 : vector<8x8xf32> to vector<8x8xbf16>
    %75 = vector.extract_strided_slice %12 {offsets = [0, 384], sizes = [8, 128], strides = [1, 1]} : vector<8x1024xbf16> to vector<8x128xbf16>
    %cst_28 = arith.constant dense<0.000000e+00> : vector<8x128xf32>
    %76 = tpu.matmul %74, %75, %cst_28 {dimension_numbers = #tpu.dot_dimension_numbers<[1], [0], [0], [1], [0, 0, 1, 1], [], []>} : vector<8x8xbf16>, vector<8x128xbf16>, vector<8x128xf32> -> vector<8x128xf32>
    %77 = arith.addf %61, %76 : vector<8x128xf32>
    %78 = vector.extract_strided_slice %9 {offsets = [0, 512], sizes = [8, 128], strides = [1, 1]} : vector<8x1024xbf16> to vector<8x128xbf16>
    %cst_29 = arith.constant dense<0.000000e+00> : vector<8x8xf32>
    %79 = tpu.matmul %78, %3, %cst_29 {dimension_numbers = #tpu.dot_dimension_numbers<[1], [1], [0], [0], [0, 0, 1, 0], [], []>} : vector<8x128xbf16>, vector<8x128xbf16>, vector<8x8xf32> -> vector<8x8xf32>
    %cst_30 = arith.constant dense<0xFF800000> : vector<8xf32>
    %80 = vector.multi_reduction <maximumf>, %79, %cst_30 [1] : vector<8x8xf32> to vector<8xf32>
    %81 = vector.shape_cast %80 : vector<8xf32> to vector<8x1xf32>
    %82 = vector.broadcast %81 : vector<8x1xf32> to vector<8x8xf32>
    %83 = arith.subf %79, %82 : vector<8x8xf32>
    %84 = math.exp %83 : vector<8x8xf32>
    %cst_31 = arith.constant dense<0.000000e+00> : vector<8xf32>
    %85 = vector.multi_reduction <add>, %84, %cst_31 [1] : vector<8x8xf32> to vector<8xf32>
    %86 = vector.shape_cast %85 : vector<8xf32> to vector<8x1xf32>
    %87 = tpu.reciprocal %86 {approx = true} : vector<8x1xf32> -> vector<8x1xf32>
    %88 = vector.broadcast %87 : vector<8x1xf32> to vector<8x8xf32>
    %89 = arith.mulf %84, %88 : vector<8x8xf32>
    %90 = arith.truncf %89 : vector<8x8xf32> to vector<8x8xbf16>
    %91 = vector.extract_strided_slice %12 {offsets = [0, 512], sizes = [8, 128], strides = [1, 1]} : vector<8x1024xbf16> to vector<8x128xbf16>
    %cst_32 = arith.constant dense<0.000000e+00> : vector<8x128xf32>
    %92 = tpu.matmul %90, %91, %cst_32 {dimension_numbers = #tpu.dot_dimension_numbers<[1], [0], [0], [1], [0, 0, 1, 1], [], []>} : vector<8x8xbf16>, vector<8x128xbf16>, vector<8x128xf32> -> vector<8x128xf32>
    %93 = arith.addf %77, %92 : vector<8x128xf32>
    %94 = vector.extract_strided_slice %9 {offsets = [0, 640], sizes = [8, 128], strides = [1, 1]} : vector<8x1024xbf16> to vector<8x128xbf16>
    %cst_33 = arith.constant dense<0.000000e+00> : vector<8x8xf32>
    %95 = tpu.matmul %94, %3, %cst_33 {dimension_numbers = #tpu.dot_dimension_numbers<[1], [1], [0], [0], [0, 0, 1, 0], [], []>} : vector<8x128xbf16>, vector<8x128xbf16>, vector<8x8xf32> -> vector<8x8xf32>
    %cst_34 = arith.constant dense<0xFF800000> : vector<8xf32>
    %96 = vector.multi_reduction <maximumf>, %95, %cst_34 [1] : vector<8x8xf32> to vector<8xf32>
    %97 = vector.shape_cast %96 : vector<8xf32> to vector<8x1xf32>
    %98 = vector.broadcast %97 : vector<8x1xf32> to vector<8x8xf32>
    %99 = arith.subf %95, %98 : vector<8x8xf32>
    %100 = math.exp %99 : vector<8x8xf32>
    %cst_35 = arith.constant dense<0.000000e+00> : vector<8xf32>
    %101 = vector.multi_reduction <add>, %100, %cst_35 [1] : vector<8x8xf32> to vector<8xf32>
    %102 = vector.shape_cast %101 : vector<8xf32> to vector<8x1xf32>
    %103 = tpu.reciprocal %102 {approx = true} : vector<8x1xf32> -> vector<8x1xf32>
    %104 = vector.broadcast %103 : vector<8x1xf32> to vector<8x8xf32>
    %105 = arith.mulf %100, %104 : vector<8x8xf32>
    %106 = arith.truncf %105 : vector<8x8xf32> to vector<8x8xbf16>
    %107 = vector.extract_strided_slice %12 {offsets = [0, 640], sizes = [8, 128], strides = [1, 1]} : vector<8x1024xbf16> to vector<8x128xbf16>
    %cst_36 = arith.constant dense<0.000000e+00> : vector<8x128xf32>
    %108 = tpu.matmul %106, %107, %cst_36 {dimension_numbers = #tpu.dot_dimension_numbers<[1], [0], [0], [1], [0, 0, 1, 1], [], []>} : vector<8x8xbf16>, vector<8x128xbf16>, vector<8x128xf32> -> vector<8x128xf32>
    %109 = arith.addf %93, %108 : vector<8x128xf32>
    %110 = vector.extract_strided_slice %9 {offsets = [0, 768], sizes = [8, 128], strides = [1, 1]} : vector<8x1024xbf16> to vector<8x128xbf16>
    %cst_37 = arith.constant dense<0.000000e+00> : vector<8x8xf32>
    %111 = tpu.matmul %110, %3, %cst_37 {dimension_numbers = #tpu.dot_dimension_numbers<[1], [1], [0], [0], [0, 0, 1, 0], [], []>} : vector<8x128xbf16>, vector<8x128xbf16>, vector<8x8xf32> -> vector<8x8xf32>
    %cst_38 = arith.constant dense<0xFF800000> : vector<8xf32>
    %112 = vector.multi_reduction <maximumf>, %111, %cst_38 [1] : vector<8x8xf32> to vector<8xf32>
    %113 = vector.shape_cast %112 : vector<8xf32> to vector<8x1xf32>
    %114 = vector.broadcast %113 : vector<8x1xf32> to vector<8x8xf32>
    %115 = arith.subf %111, %114 : vector<8x8xf32>
    %116 = math.exp %115 : vector<8x8xf32>
    %cst_39 = arith.constant dense<0.000000e+00> : vector<8xf32>
    %117 = vector.multi_reduction <add>, %116, %cst_39 [1] : vector<8x8xf32> to vector<8xf32>
    %118 = vector.shape_cast %117 : vector<8xf32> to vector<8x1xf32>
    %119 = tpu.reciprocal %118 {approx = true} : vector<8x1xf32> -> vector<8x1xf32>
    %120 = vector.broadcast %119 : vector<8x1xf32> to vector<8x8xf32>
    %121 = arith.mulf %116, %120 : vector<8x8xf32>
    %122 = arith.truncf %121 : vector<8x8xf32> to vector<8x8xbf16>
    %123 = vector.extract_strided_slice %12 {offsets = [0, 768], sizes = [8, 128], strides = [1, 1]} : vector<8x1024xbf16> to vector<8x128xbf16>
    %cst_40 = arith.constant dense<0.000000e+00> : vector<8x128xf32>
    %124 = tpu.matmul %122, %123, %cst_40 {dimension_numbers = #tpu.dot_dimension_numbers<[1], [0], [0], [1], [0, 0, 1, 1], [], []>} : vector<8x8xbf16>, vector<8x128xbf16>, vector<8x128xf32> -> vector<8x128xf32>
    %125 = arith.addf %109, %124 : vector<8x128xf32>
    %126 = vector.extract_strided_slice %9 {offsets = [0, 896], sizes = [8, 128], strides = [1, 1]} : vector<8x1024xbf16> to vector<8x128xbf16>
    %cst_41 = arith.constant dense<0.000000e+00> : vector<8x8xf32>
    %127 = tpu.matmul %126, %3, %cst_41 {dimension_numbers = #tpu.dot_dimension_numbers<[1], [1], [0], [0], [0, 0, 1, 0], [], []>} : vector<8x128xbf16>, vector<8x128xbf16>, vector<8x8xf32> -> vector<8x8xf32>
    %cst_42 = arith.constant dense<0xFF800000> : vector<8xf32>
    %128 = vector.multi_reduction <maximumf>, %127, %cst_42 [1] : vector<8x8xf32> to vector<8xf32>
    %129 = vector.shape_cast %128 : vector<8xf32> to vector<8x1xf32>
    %130 = vector.broadcast %129 : vector<8x1xf32> to vector<8x8xf32>
    %131 = arith.subf %127, %130 : vector<8x8xf32>
    %132 = math.exp %131 : vector<8x8xf32>
    %cst_43 = arith.constant dense<0.000000e+00> : vector<8xf32>
    %133 = vector.multi_reduction <add>, %132, %cst_43 [1] : vector<8x8xf32> to vector<8xf32>
    %134 = vector.shape_cast %133 : vector<8xf32> to vector<8x1xf32>
    %135 = tpu.reciprocal %134 {approx = true} : vector<8x1xf32> -> vector<8x1xf32>
    %136 = vector.broadcast %135 : vector<8x1xf32> to vector<8x8xf32>
    %137 = arith.mulf %132, %136 : vector<8x8xf32>
    %138 = arith.truncf %137 : vector<8x8xf32> to vector<8x8xbf16>
    %139 = vector.extract_strided_slice %12 {offsets = [0, 896], sizes = [8, 128], strides = [1, 1]} : vector<8x1024xbf16> to vector<8x128xbf16>
    %cst_44 = arith.constant dense<0.000000e+00> : vector<8x128xf32>
    %140 = tpu.matmul %138, %139, %cst_44 {dimension_numbers = #tpu.dot_dimension_numbers<[1], [0], [0], [1], [0, 0, 1, 1], [], []>} : vector<8x8xbf16>, vector<8x128xbf16>, vector<8x128xf32> -> vector<8x128xf32>
    %141 = arith.addf %125, %140 : vector<8x128xf32>
    %c0_45 = arith.constant 0 : index
    %c0_46 = arith.constant 0 : index
    %142 = vector.load %arg7[%c0_45, %c0_46] : memref<1x128xf32, #tpu.memory_space<vmem>>, vector<1x128xf32>
    %143 = vector.broadcast %142 : vector<1x128xf32> to vector<8x128xf32>
    %144 = arith.addf %141, %143 : vector<8x128xf32>
    %145 = arith.extf %1 : vector<8x128xbf16> to vector<8x128xf32>
    %146 = arith.addf %144, %145 : vector<8x128xf32>
    %c0_47 = arith.constant 0 : index
    %c0_48 = arith.constant 0 : index
    %147 = vector.load %arg8[%c0_47, %c0_48] : memref<1x128xf32, #tpu.memory_space<vmem>>, vector<1x128xf32>
    %c0_49 = arith.constant 0 : index
    %c0_50 = arith.constant 0 : index
    %148 = vector.load %arg9[%c0_49, %c0_50] : memref<1x128xf32, #tpu.memory_space<vmem>>, vector<1x128xf32>
    %cst_51 = arith.constant dense<0.000000e+00> : vector<8xf32>
    %149 = vector.multi_reduction <add>, %146, %cst_51 [1] : vector<8x128xf32> to vector<8xf32>
    %150 = vector.shape_cast %149 : vector<8xf32> to vector<8x1xf32>
    %cst_52 = arith.constant 1.280000e+02 : f32
    %151 = vector.broadcast %cst_52 : f32 to vector<8x1xf32>
    %152 = arith.divf %150, %151 : vector<8x1xf32>
    %153 = vector.broadcast %152 : vector<8x1xf32> to vector<8x128xf32>
    %154 = arith.subf %146, %153 : vector<8x128xf32>
    %155 = arith.mulf %154, %154 : vector<8x128xf32>
    %cst_53 = arith.constant dense<0.000000e+00> : vector<8xf32>
    %156 = vector.multi_reduction <add>, %155, %cst_53 [1] : vector<8x128xf32> to vector<8xf32>
    %157 = vector.shape_cast %156 : vector<8xf32> to vector<8x1xf32>
    %cst_54 = arith.constant 1.280000e+02 : f32
    %158 = vector.broadcast %cst_54 : f32 to vector<8x1xf32>
    %159 = arith.divf %157, %158 : vector<8x1xf32>
    %cst_55 = arith.constant 9.99999974E-6 : f32
    %160 = vector.broadcast %cst_55 : f32 to vector<8x1xf32>
    %161 = arith.addf %159, %160 : vector<8x1xf32>
    %162 = math.rsqrt %161 : vector<8x1xf32>
    %163 = vector.broadcast %162 : vector<8x1xf32> to vector<8x128xf32>
    %164 = arith.mulf %154, %163 : vector<8x128xf32>
    %165 = vector.broadcast %147 : vector<1x128xf32> to vector<8x128xf32>
    %166 = arith.mulf %164, %165 : vector<8x128xf32>
    %167 = vector.broadcast %148 : vector<1x128xf32> to vector<8x128xf32>
    %168 = arith.addf %166, %167 : vector<8x128xf32>
    %169 = arith.truncf %168 : vector<8x128xf32> to vector<8x128xbf16>
    %c0_56 = arith.constant 0 : index
    %c0_57 = arith.constant 0 : index
    %c0_58 = arith.constant 0 : index
    %170 = vector.load %arg10[%c0_56, %c0_57, %c0_58] : memref<1x8x128xbf16, #tpu.memory_space<vmem>>, vector<1x8x128xbf16>
    %171 = vector.shape_cast %170 : vector<1x8x128xbf16> to vector<8x128xbf16>
    %172 = vector.shape_cast %169 : vector<8x128xbf16> to vector<1x8x128xbf16>
    tpu.vector_store %arg10[%c0_56, %c0_57, %c0_58], %172 {strides = array<i32>} : memref<1x8x128xbf16, #tpu.memory_space<vmem>>, vector<1x8x128xbf16>,
    return
  }
  func.func @transform_0(%arg0: i32, %arg1: i32) -> (i32, i32, i32) {
    %c0_i32 = arith.constant 0 : i32
    %c0_i32_0 = arith.constant 0 : i32
    return %arg0, %arg1, %c0_i32 : i32, i32, i32
  }
  func.func @transform_1(%arg0: i32, %arg1: i32) -> (i32, i32, i32) {
    %c0_i32 = arith.constant 0 : i32
    %c0_i32_0 = arith.constant 0 : i32
    %c0_i32_1 = arith.constant 0 : i32
    return %arg0, %c0_i32, %c0_i32_0 : i32, i32, i32
  }
  func.func @transform_2(%arg0: i32, %arg1: i32) -> (i32, i32) {
    %c0_i32 = arith.constant 0 : i32
    %c0_i32_0 = arith.constant 0 : i32
    %c0_i32_1 = arith.constant 0 : i32
    return %c0_i32, %c0_i32_0 : i32, i32
  }
  func.func @transform_3(%arg0: i32, %arg1: i32) -> (i32, i32) {
    %c0_i32 = arith.constant 0 : i32
    %c0_i32_0 = arith.constant 0 : i32
    %c0_i32_1 = arith.constant 0 : i32
    return %c0_i32, %c0_i32_0 : i32, i32
  }
  func.func @transform_4(%arg0: i32, %arg1: i32) -> (i32, i32) {
    %c0_i32 = arith.constant 0 : i32
    %c0_i32_0 = arith.constant 0 : i32
    %c0_i32_1 = arith.constant 0 : i32
    return %c0_i32, %c0_i32_0 : i32, i32
  }
  func.func @transform_5(%arg0: i32, %arg1: i32) -> (i32, i32) {
    %c0_i32 = arith.constant 0 : i32
    %c0_i32_0 = arith.constant 0 : i32
    %c0_i32_1 = arith.constant 0 : i32
    return %c0_i32, %c0_i32_0 : i32, i32
  }
  func.func @transform_6(%arg0: i32, %arg1: i32) -> (i32, i32) {
    %c0_i32 = arith.constant 0 : i32
    %c0_i32_0 = arith.constant 0 : i32
    %c0_i32_1 = arith.constant 0 : i32
    return %c0_i32, %c0_i32_0 : i32, i32
  }
  func.func @transform_7(%arg0: i32, %arg1: i32) -> (i32, i32) {
    %c0_i32 = arith.constant 0 : i32
    %c0_i32_0 = arith.constant 0 : i32
    %c0_i32_1 = arith.constant 0 : i32
    return %c0_i32, %c0_i32_0 : i32, i32
  }
  func.func @transform_8(%arg0: i32, %arg1: i32) -> (i32, i32, i32) {
    %c0_i32 = arith.constant 0 : i32
    %c0_i32_0 = arith.constant 0 : i32
    return %arg0, %arg1, %c0_i32 : i32, i32, i32
  }
}

module attributes {stable_mosaic.version = 11 : i64} {
  func.func @_ffn_block_kernel(%arg0: i32, %arg1: memref<16x128xbf16, #tpu.memory_space<vmem>>, %arg2: memref<128x2048xbf16, #tpu.memory_space<vmem>>, %arg3: memref<1x2048xf32, #tpu.memory_space<vmem>>, %arg4: memref<2048x128xbf16, #tpu.memory_space<vmem>>, %arg5: memref<1x128xf32, #tpu.memory_space<vmem>>, %arg6: memref<1x128xf32, #tpu.memory_space<vmem>>, %arg7: memref<1x128xf32, #tpu.memory_space<vmem>>, %arg8: memref<16x128xbf16, #tpu.memory_space<vmem>>) attributes {dimension_semantics = [#tpu.dimension_semantics<parallel>], iteration_bounds = array<i64: 1>, scalar_prefetch = 0 : i64, scratch_operands = 0 : i64, tpu.core_type = #tpu.core_type<tc>, window_params = [{transform_indices = @transform_0, window_bounds = array<i64: 16, 128>}, {pipeline_mode = #tpu.pipeline_mode<synchronous>, transform_indices = @transform_1, window_bounds = array<i64: 128, 2048>}, {pipeline_mode = #tpu.pipeline_mode<synchronous>, transform_indices = @transform_2, window_bounds = array<i64: 1, 2048>}, {pipeline_mode = #tpu.pipeline_mode<synchronous>, transform_indices = @transform_3, window_bounds = array<i64: 2048, 128>}, {pipeline_mode = #tpu.pipeline_mode<synchronous>, transform_indices = @transform_4, window_bounds = array<i64: 1, 128>}, {pipeline_mode = #tpu.pipeline_mode<synchronous>, transform_indices = @transform_5, window_bounds = array<i64: 1, 128>}, {pipeline_mode = #tpu.pipeline_mode<synchronous>, transform_indices = @transform_6, window_bounds = array<i64: 1, 128>}, {transform_indices = @transform_7, window_bounds = array<i64: 16, 128>}]} {
    %c0 = arith.constant 0 : index
    %c0_0 = arith.constant 0 : index
    %0 = vector.load %arg1[%c0, %c0_0] : memref<16x128xbf16, #tpu.memory_space<vmem>>, vector<16x128xbf16>
    %c0_1 = arith.constant 0 : index
    %c0_2 = arith.constant 0 : index
    %1 = vector.load %arg2[%c0_1, %c0_2] : memref<128x2048xbf16, #tpu.memory_space<vmem>>, vector<128x2048xbf16>
    %cst = arith.constant dense<0.000000e+00> : vector<16x2048xf32>
    %2 = tpu.matmul %0, %1, %cst {dimension_numbers = #tpu.dot_dimension_numbers<[1], [0], [0], [1], [0, 0, 1, 1], [], []>} : vector<16x128xbf16>, vector<128x2048xbf16>, vector<16x2048xf32> -> vector<16x2048xf32>
    %c0_3 = arith.constant 0 : index
    %c0_4 = arith.constant 0 : index
    %3 = vector.load %arg3[%c0_3, %c0_4] : memref<1x2048xf32, #tpu.memory_space<vmem>>, vector<1x2048xf32>
    %4 = vector.broadcast %3 : vector<1x2048xf32> to vector<16x2048xf32>
    %5 = arith.addf %2, %4 : vector<16x2048xf32>
    %cst_5 = arith.constant 5.000000e-01 : f32
    %6 = vector.broadcast %cst_5 : f32 to vector<16x2048xf32>
    %7 = arith.mulf %6, %5 : vector<16x2048xf32>
    %cst_6 = arith.constant 0.707106769 : f32
    %8 = vector.broadcast %cst_6 : f32 to vector<16x2048xf32>
    %9 = arith.mulf %5, %8 : vector<16x2048xf32>
    %10 = math.erf %9 : vector<16x2048xf32>
    %cst_7 = arith.constant 1.000000e+00 : f32
    %11 = vector.broadcast %cst_7 : f32 to vector<16x2048xf32>
    %12 = arith.addf %11, %10 : vector<16x2048xf32>
    %13 = arith.mulf %7, %12 : vector<16x2048xf32>
    %14 = arith.truncf %13 : vector<16x2048xf32> to vector<16x2048xbf16>
    %c0_8 = arith.constant 0 : index
    %c0_9 = arith.constant 0 : index
    %15 = vector.load %arg4[%c0_8, %c0_9] : memref<2048x128xbf16, #tpu.memory_space<vmem>>, vector<2048x128xbf16>
    %cst_10 = arith.constant dense<0.000000e+00> : vector<16x128xf32>
    %16 = tpu.matmul %14, %15, %cst_10 {dimension_numbers = #tpu.dot_dimension_numbers<[1], [0], [0], [1], [0, 0, 1, 1], [], []>} : vector<16x2048xbf16>, vector<2048x128xbf16>, vector<16x128xf32> -> vector<16x128xf32>
    %c0_11 = arith.constant 0 : index
    %c0_12 = arith.constant 0 : index
    %17 = vector.load %arg5[%c0_11, %c0_12] : memref<1x128xf32, #tpu.memory_space<vmem>>, vector<1x128xf32>
    %18 = vector.broadcast %17 : vector<1x128xf32> to vector<16x128xf32>
    %19 = arith.addf %16, %18 : vector<16x128xf32>
    %20 = arith.extf %0 : vector<16x128xbf16> to vector<16x128xf32>
    %21 = arith.addf %19, %20 : vector<16x128xf32>
    %c0_13 = arith.constant 0 : index
    %c0_14 = arith.constant 0 : index
    %22 = vector.load %arg6[%c0_13, %c0_14] : memref<1x128xf32, #tpu.memory_space<vmem>>, vector<1x128xf32>
    %c0_15 = arith.constant 0 : index
    %c0_16 = arith.constant 0 : index
    %23 = vector.load %arg7[%c0_15, %c0_16] : memref<1x128xf32, #tpu.memory_space<vmem>>, vector<1x128xf32>
    %cst_17 = arith.constant dense<0.000000e+00> : vector<16xf32>
    %24 = vector.multi_reduction <add>, %21, %cst_17 [1] : vector<16x128xf32> to vector<16xf32>
    %25 = vector.shape_cast %24 : vector<16xf32> to vector<16x1xf32>
    %cst_18 = arith.constant 1.280000e+02 : f32
    %26 = vector.broadcast %cst_18 : f32 to vector<16x1xf32>
    %27 = arith.divf %25, %26 : vector<16x1xf32>
    %28 = vector.broadcast %27 : vector<16x1xf32> to vector<16x128xf32>
    %29 = arith.subf %21, %28 : vector<16x128xf32>
    %30 = arith.mulf %29, %29 : vector<16x128xf32>
    %cst_19 = arith.constant dense<0.000000e+00> : vector<16xf32>
    %31 = vector.multi_reduction <add>, %30, %cst_19 [1] : vector<16x128xf32> to vector<16xf32>
    %32 = vector.shape_cast %31 : vector<16xf32> to vector<16x1xf32>
    %cst_20 = arith.constant 1.280000e+02 : f32
    %33 = vector.broadcast %cst_20 : f32 to vector<16x1xf32>
    %34 = arith.divf %32, %33 : vector<16x1xf32>
    %cst_21 = arith.constant 9.99999974E-6 : f32
    %35 = vector.broadcast %cst_21 : f32 to vector<16x1xf32>
    %36 = arith.addf %34, %35 : vector<16x1xf32>
    %37 = math.rsqrt %36 : vector<16x1xf32>
    %38 = vector.broadcast %37 : vector<16x1xf32> to vector<16x128xf32>
    %39 = arith.mulf %29, %38 : vector<16x128xf32>
    %40 = vector.broadcast %22 : vector<1x128xf32> to vector<16x128xf32>
    %41 = arith.mulf %39, %40 : vector<16x128xf32>
    %42 = vector.broadcast %23 : vector<1x128xf32> to vector<16x128xf32>
    %43 = arith.addf %41, %42 : vector<16x128xf32>
    %44 = arith.truncf %43 : vector<16x128xf32> to vector<16x128xbf16>
    %c0_22 = arith.constant 0 : index
    %c0_23 = arith.constant 0 : index
    %45 = vector.load %arg8[%c0_22, %c0_23] : memref<16x128xbf16, #tpu.memory_space<vmem>>, vector<16x128xbf16>
    tpu.vector_store %arg8[%c0_22, %c0_23], %44 {strides = array<i32>} : memref<16x128xbf16, #tpu.memory_space<vmem>>, vector<16x128xbf16>,
    return
  }
  func.func @transform_0(%arg0: i32) -> (i32, i32) {
    %c0_i32 = arith.constant 0 : i32
    %c0_i32_0 = arith.constant 0 : i32
    return %arg0, %c0_i32 : i32, i32
  }
  func.func @transform_1(%arg0: i32) -> (i32, i32) {
    %c0_i32 = arith.constant 0 : i32
    %c0_i32_0 = arith.constant 0 : i32
    %c0_i32_1 = arith.constant 0 : i32
    return %c0_i32, %c0_i32_0 : i32, i32
  }
  func.func @transform_2(%arg0: i32) -> (i32, i32) {
    %c0_i32 = arith.constant 0 : i32
    %c0_i32_0 = arith.constant 0 : i32
    %c0_i32_1 = arith.constant 0 : i32
    return %c0_i32, %c0_i32_0 : i32, i32
  }
  func.func @transform_3(%arg0: i32) -> (i32, i32) {
    %c0_i32 = arith.constant 0 : i32
    %c0_i32_0 = arith.constant 0 : i32
    %c0_i32_1 = arith.constant 0 : i32
    return %c0_i32, %c0_i32_0 : i32, i32
  }
  func.func @transform_4(%arg0: i32) -> (i32, i32) {
    %c0_i32 = arith.constant 0 : i32
    %c0_i32_0 = arith.constant 0 : i32
    %c0_i32_1 = arith.constant 0 : i32
    return %c0_i32, %c0_i32_0 : i32, i32
  }
  func.func @transform_5(%arg0: i32) -> (i32, i32) {
    %c0_i32 = arith.constant 0 : i32
    %c0_i32_0 = arith.constant 0 : i32
    %c0_i32_1 = arith.constant 0 : i32
    return %c0_i32, %c0_i32_0 : i32, i32
  }
  func.func @transform_6(%arg0: i32) -> (i32, i32) {
    %c0_i32 = arith.constant 0 : i32
    %c0_i32_0 = arith.constant 0 : i32
    %c0_i32_1 = arith.constant 0 : i32
    return %c0_i32, %c0_i32_0 : i32, i32
  }
  func.func @transform_7(%arg0: i32) -> (i32, i32) {
    %c0_i32 = arith.constant 0 : i32
    %c0_i32_0 = arith.constant 0 : i32
    return %arg0, %c0_i32 : i32, i32
  }
}

module attributes {stable_mosaic.version = 11 : i64} {
  func.func @_ffn_block_kernel(%arg0: i32, %arg1: memref<16x128xbf16, #tpu.memory_space<vmem>>, %arg2: memref<128x2048xbf16, #tpu.memory_space<vmem>>, %arg3: memref<1x2048xf32, #tpu.memory_space<vmem>>, %arg4: memref<2048x128xbf16, #tpu.memory_space<vmem>>, %arg5: memref<1x128xf32, #tpu.memory_space<vmem>>, %arg6: memref<1x128xf32, #tpu.memory_space<vmem>>, %arg7: memref<1x128xf32, #tpu.memory_space<vmem>>, %arg8: memref<16x128xbf16, #tpu.memory_space<vmem>>) attributes {dimension_semantics = [#tpu.dimension_semantics<parallel>], iteration_bounds = array<i64: 1>, scalar_prefetch = 0 : i64, scratch_operands = 0 : i64, tpu.core_type = #tpu.core_type<tc>, window_params = [{transform_indices = @transform_0, window_bounds = array<i64: 16, 128>}, {pipeline_mode = #tpu.pipeline_mode<synchronous>, transform_indices = @transform_1, window_bounds = array<i64: 128, 2048>}, {pipeline_mode = #tpu.pipeline_mode<synchronous>, transform_indices = @transform_2, window_bounds = array<i64: 1, 2048>}, {pipeline_mode = #tpu.pipeline_mode<synchronous>, transform_indices = @transform_3, window_bounds = array<i64: 2048, 128>}, {pipeline_mode = #tpu.pipeline_mode<synchronous>, transform_indices = @transform_4, window_bounds = array<i64: 1, 128>}, {pipeline_mode = #tpu.pipeline_mode<synchronous>, transform_indices = @transform_5, window_bounds = array<i64: 1, 128>}, {pipeline_mode = #tpu.pipeline_mode<synchronous>, transform_indices = @transform_6, window_bounds = array<i64: 1, 128>}, {transform_indices = @transform_7, window_bounds = array<i64: 16, 128>}]} {
    %c0 = arith.constant 0 : index
    %c0_0 = arith.constant 0 : index
    %0 = vector.load %arg1[%c0, %c0_0] : memref<16x128xbf16, #tpu.memory_space<vmem>>, vector<16x128xbf16>
    %c0_1 = arith.constant 0 : index
    %c0_2 = arith.constant 0 : index
    %1 = vector.load %arg2[%c0_1, %c0_2] : memref<128x2048xbf16, #tpu.memory_space<vmem>>, vector<128x2048xbf16>
    %cst = arith.constant dense<0.000000e+00> : vector<16x2048xf32>
    %2 = tpu.matmul %0, %1, %cst {dimension_numbers = #tpu.dot_dimension_numbers<[1], [0], [0], [1], [0, 0, 1, 1], [], []>} : vector<16x128xbf16>, vector<128x2048xbf16>, vector<16x2048xf32> -> vector<16x2048xf32>
    %c0_3 = arith.constant 0 : index
    %c0_4 = arith.constant 0 : index
    %3 = vector.load %arg3[%c0_3, %c0_4] : memref<1x2048xf32, #tpu.memory_space<vmem>>, vector<1x2048xf32>
    %4 = vector.broadcast %3 : vector<1x2048xf32> to vector<16x2048xf32>
    %5 = arith.addf %2, %4 : vector<16x2048xf32>
    %cst_5 = arith.constant 5.000000e-01 : f32
    %6 = vector.broadcast %cst_5 : f32 to vector<16x2048xf32>
    %7 = arith.mulf %6, %5 : vector<16x2048xf32>
    %cst_6 = arith.constant 0.707106769 : f32
    %8 = vector.broadcast %cst_6 : f32 to vector<16x2048xf32>
    %9 = arith.mulf %5, %8 : vector<16x2048xf32>
    %10 = math.erf %9 : vector<16x2048xf32>
    %cst_7 = arith.constant 1.000000e+00 : f32
    %11 = vector.broadcast %cst_7 : f32 to vector<16x2048xf32>
    %12 = arith.addf %11, %10 : vector<16x2048xf32>
    %13 = arith.mulf %7, %12 : vector<16x2048xf32>
    %14 = arith.truncf %13 : vector<16x2048xf32> to vector<16x2048xbf16>
    %c0_8 = arith.constant 0 : index
    %c0_9 = arith.constant 0 : index
    %15 = vector.load %arg4[%c0_8, %c0_9] : memref<2048x128xbf16, #tpu.memory_space<vmem>>, vector<2048x128xbf16>
    %cst_10 = arith.constant dense<0.000000e+00> : vector<16x128xf32>
    %16 = tpu.matmul %14, %15, %cst_10 {dimension_numbers = #tpu.dot_dimension_numbers<[1], [0], [0], [1], [0, 0, 1, 1], [], []>} : vector<16x2048xbf16>, vector<2048x128xbf16>, vector<16x128xf32> -> vector<16x128xf32>
    %c0_11 = arith.constant 0 : index
    %c0_12 = arith.constant 0 : index
    %17 = vector.load %arg5[%c0_11, %c0_12] : memref<1x128xf32, #tpu.memory_space<vmem>>, vector<1x128xf32>
    %18 = vector.broadcast %17 : vector<1x128xf32> to vector<16x128xf32>
    %19 = arith.addf %16, %18 : vector<16x128xf32>
    %20 = arith.extf %0 : vector<16x128xbf16> to vector<16x128xf32>
    %21 = arith.addf %19, %20 : vector<16x128xf32>
    %c0_13 = arith.constant 0 : index
    %c0_14 = arith.constant 0 : index
    %22 = vector.load %arg6[%c0_13, %c0_14] : memref<1x128xf32, #tpu.memory_space<vmem>>, vector<1x128xf32>
    %c0_15 = arith.constant 0 : index
    %c0_16 = arith.constant 0 : index
    %23 = vector.load %arg7[%c0_15, %c0_16] : memref<1x128xf32, #tpu.memory_space<vmem>>, vector<1x128xf32>
    %cst_17 = arith.constant dense<0.000000e+00> : vector<16xf32>
    %24 = vector.multi_reduction <add>, %21, %cst_17 [1] : vector<16x128xf32> to vector<16xf32>
    %25 = vector.shape_cast %24 : vector<16xf32> to vector<16x1xf32>
    %cst_18 = arith.constant 1.280000e+02 : f32
    %26 = vector.broadcast %cst_18 : f32 to vector<16x1xf32>
    %27 = arith.divf %25, %26 : vector<16x1xf32>
    %28 = vector.broadcast %27 : vector<16x1xf32> to vector<16x128xf32>
    %29 = arith.subf %21, %28 : vector<16x128xf32>
    %30 = arith.mulf %29, %29 : vector<16x128xf32>
    %cst_19 = arith.constant dense<0.000000e+00> : vector<16xf32>
    %31 = vector.multi_reduction <add>, %30, %cst_19 [1] : vector<16x128xf32> to vector<16xf32>
    %32 = vector.shape_cast %31 : vector<16xf32> to vector<16x1xf32>
    %cst_20 = arith.constant 1.280000e+02 : f32
    %33 = vector.broadcast %cst_20 : f32 to vector<16x1xf32>
    %34 = arith.divf %32, %33 : vector<16x1xf32>
    %cst_21 = arith.constant 9.99999974E-6 : f32
    %35 = vector.broadcast %cst_21 : f32 to vector<16x1xf32>
    %36 = arith.addf %34, %35 : vector<16x1xf32>
    %37 = math.rsqrt %36 : vector<16x1xf32>
    %38 = vector.broadcast %37 : vector<16x1xf32> to vector<16x128xf32>
    %39 = arith.mulf %29, %38 : vector<16x128xf32>
    %40 = vector.broadcast %22 : vector<1x128xf32> to vector<16x128xf32>
    %41 = arith.mulf %39, %40 : vector<16x128xf32>
    %42 = vector.broadcast %23 : vector<1x128xf32> to vector<16x128xf32>
    %43 = arith.addf %41, %42 : vector<16x128xf32>
    %44 = arith.truncf %43 : vector<16x128xf32> to vector<16x128xbf16>
    %c0_22 = arith.constant 0 : index
    %c0_23 = arith.constant 0 : index
    %45 = vector.load %arg8[%c0_22, %c0_23] : memref<16x128xbf16, #tpu.memory_space<vmem>>, vector<16x128xbf16>
    tpu.vector_store %arg8[%c0_22, %c0_23], %44 {strides = array<i32>} : memref<16x128xbf16, #tpu.memory_space<vmem>>, vector<16x128xbf16>,
    return
  }
  func.func @transform_0(%arg0: i32) -> (i32, i32) {
    %c0_i32 = arith.constant 0 : i32
    %c0_i32_0 = arith.constant 0 : i32
    return %arg0, %c0_i32 : i32, i32
  }
  func.func @transform_1(%arg0: i32) -> (i32, i32) {
    %c0_i32 = arith.constant 0 : i32
    %c0_i32_0 = arith.constant 0 : i32
    %c0_i32_1 = arith.constant 0 : i32
    return %c0_i32, %c0_i32_0 : i32, i32
  }
  func.func @transform_2(%arg0: i32) -> (i32, i32) {
    %c0_i32 = arith.constant 0 : i32
    %c0_i32_0 = arith.constant 0 : i32
    %c0_i32_1 = arith.constant 0 : i32
    return %c0_i32, %c0_i32_0 : i32, i32
  }
  func.func @transform_3(%arg0: i32) -> (i32, i32) {
    %c0_i32 = arith.constant 0 : i32
    %c0_i32_0 = arith.constant 0 : i32
    %c0_i32_1 = arith.constant 0 : i32
    return %c0_i32, %c0_i32_0 : i32, i32
  }
  func.func @transform_4(%arg0: i32) -> (i32, i32) {
    %c0_i32 = arith.constant 0 : i32
    %c0_i32_0 = arith.constant 0 : i32
    %c0_i32_1 = arith.constant 0 : i32
    return %c0_i32, %c0_i32_0 : i32, i32
  }
  func.func @transform_5(%arg0: i32) -> (i32, i32) {
    %c0_i32 = arith.constant 0 : i32
    %c0_i32_0 = arith.constant 0 : i32
    %c0_i32_1 = arith.constant 0 : i32
    return %c0_i32, %c0_i32_0 : i32, i32
  }
  func.func @transform_6(%arg0: i32) -> (i32, i32) {
    %c0_i32 = arith.constant 0 : i32
    %c0_i32_0 = arith.constant 0 : i32
    %c0_i32_1 = arith.constant 0 : i32
    return %c0_i32, %c0_i32_0 : i32, i32
  }
  func.func @transform_7(%arg0: i32) -> (i32, i32) {
    %c0_i32 = arith.constant 0 : i32
    %c0_i32_0 = arith.constant 0 : i32
    return %arg0, %c0_i32 : i32, i32
  }
}

module attributes {stable_mosaic.version = 11 : i64} {
  func.func @_mha_fused_kernel(%arg0: i32, %arg1: i32, %arg2: memref<1x8x128xbf16, #tpu.memory_space<vmem>>, %arg3: memref<1x8x128xbf16, #tpu.memory_space<vmem>>, %arg4: memref<128x1024xbf16, #tpu.memory_space<vmem>>, %arg5: memref<1x1024xf32, #tpu.memory_space<vmem>>, %arg6: memref<128x1024xbf16, #tpu.memory_space<vmem>>, %arg7: memref<1x128xf32, #tpu.memory_space<vmem>>, %arg8: memref<1x128xf32, #tpu.memory_space<vmem>>, %arg9: memref<1x128xf32, #tpu.memory_space<vmem>>, %arg10: memref<1x8x128xbf16, #tpu.memory_space<vmem>>) attributes {dimension_semantics = [#tpu.dimension_semantics<parallel>, #tpu.dimension_semantics<parallel>], iteration_bounds = array<i64: 2, 1>, scalar_prefetch = 0 : i64, scratch_operands = 0 : i64, tpu.core_type = #tpu.core_type<tc>, window_params = [{transform_indices = @transform_0, window_bounds = array<i64: 1, 8, 128>}, {transform_indices = @transform_1, window_bounds = array<i64: 1, 8, 128>}, {pipeline_mode = #tpu.pipeline_mode<synchronous>, transform_indices = @transform_2, window_bounds = array<i64: 128, 1024>}, {pipeline_mode = #tpu.pipeline_mode<synchronous>, transform_indices = @transform_3, window_bounds = array<i64: 1, 1024>}, {pipeline_mode = #tpu.pipeline_mode<synchronous>, transform_indices = @transform_4, window_bounds = array<i64: 128, 1024>}, {pipeline_mode = #tpu.pipeline_mode<synchronous>, transform_indices = @transform_5, window_bounds = array<i64: 1, 128>}, {pipeline_mode = #tpu.pipeline_mode<synchronous>, transform_indices = @transform_6, window_bounds = array<i64: 1, 128>}, {pipeline_mode = #tpu.pipeline_mode<synchronous>, transform_indices = @transform_7, window_bounds = array<i64: 1, 128>}, {transform_indices = @transform_8, window_bounds = array<i64: 1, 8, 128>}]} {
    %c0 = arith.constant 0 : index
    %c0_0 = arith.constant 0 : index
    %c0_1 = arith.constant 0 : index
    %0 = vector.load %arg2[%c0, %c0_0, %c0_1] : memref<1x8x128xbf16, #tpu.memory_space<vmem>>, vector<1x8x128xbf16>
    %1 = vector.shape_cast %0 : vector<1x8x128xbf16> to vector<8x128xbf16>
    %c0_2 = arith.constant 0 : index
    %c0_3 = arith.constant 0 : index
    %c0_4 = arith.constant 0 : index
    %2 = vector.load %arg3[%c0_2, %c0_3, %c0_4] : memref<1x8x128xbf16, #tpu.memory_space<vmem>>, vector<1x8x128xbf16>
    %3 = vector.shape_cast %2 : vector<1x8x128xbf16> to vector<8x128xbf16>
    %c0_5 = arith.constant 0 : index
    %c0_6 = arith.constant 0 : index
    %4 = vector.load %arg4[%c0_5, %c0_6] : memref<128x1024xbf16, #tpu.memory_space<vmem>>, vector<128x1024xbf16>
    %cst = arith.constant dense<0.000000e+00> : vector<8x1024xf32>
    %5 = tpu.matmul %1, %4, %cst {dimension_numbers = #tpu.dot_dimension_numbers<[1], [0], [0], [1], [0, 0, 1, 1], [], []>} : vector<8x128xbf16>, vector<128x1024xbf16>, vector<8x1024xf32> -> vector<8x1024xf32>
    %c0_7 = arith.constant 0 : index
    %c0_8 = arith.constant 0 : index
    %6 = vector.load %arg5[%c0_7, %c0_8] : memref<1x1024xf32, #tpu.memory_space<vmem>>, vector<1x1024xf32>
    %7 = vector.broadcast %6 : vector<1x1024xf32> to vector<8x1024xf32>
    %8 = arith.addf %5, %7 : vector<8x1024xf32>
    %9 = arith.truncf %8 : vector<8x1024xf32> to vector<8x1024xbf16>
    %c0_9 = arith.constant 0 : index
    %c0_10 = arith.constant 0 : index
    %10 = vector.load %arg6[%c0_9, %c0_10] : memref<128x1024xbf16, #tpu.memory_space<vmem>>, vector<128x1024xbf16>
    %cst_11 = arith.constant dense<0.000000e+00> : vector<8x1024xf32>
    %11 = tpu.matmul %3, %10, %cst_11 {dimension_numbers = #tpu.dot_dimension_numbers<[1], [0], [0], [1], [0, 0, 1, 1], [], []>} : vector<8x128xbf16>, vector<128x1024xbf16>, vector<8x1024xf32> -> vector<8x1024xf32>
    %12 = arith.truncf %11 : vector<8x1024xf32> to vector<8x1024xbf16>
    %cst_12 = arith.constant 0.000000e+00 : f32
    %13 = vector.broadcast %cst_12 : f32 to vector<8x128xf32>
    %14 = vector.extract_strided_slice %9 {offsets = [0, 0], sizes = [8, 128], strides = [1, 1]} : vector<8x1024xbf16> to vector<8x128xbf16>
    %cst_13 = arith.constant dense<0.000000e+00> : vector<8x8xf32>
    %15 = tpu.matmul %14, %3, %cst_13 {dimension_numbers = #tpu.dot_dimension_numbers<[1], [1], [0], [0], [0, 0, 1, 0], [], []>} : vector<8x128xbf16>, vector<8x128xbf16>, vector<8x8xf32> -> vector<8x8xf32>
    %cst_14 = arith.constant dense<0xFF800000> : vector<8xf32>
    %16 = vector.multi_reduction <maximumf>, %15, %cst_14 [1] : vector<8x8xf32> to vector<8xf32>
    %17 = vector.shape_cast %16 : vector<8xf32> to vector<8x1xf32>
    %18 = vector.broadcast %17 : vector<8x1xf32> to vector<8x8xf32>
    %19 = arith.subf %15, %18 : vector<8x8xf32>
    %20 = math.exp %19 : vector<8x8xf32>
    %cst_15 = arith.constant dense<0.000000e+00> : vector<8xf32>
    %21 = vector.multi_reduction <add>, %20, %cst_15 [1] : vector<8x8xf32> to vector<8xf32>
    %22 = vector.shape_cast %21 : vector<8xf32> to vector<8x1xf32>
    %23 = tpu.reciprocal %22 {approx = true} : vector<8x1xf32> -> vector<8x1xf32>
    %24 = vector.broadcast %23 : vector<8x1xf32> to vector<8x8xf32>
    %25 = arith.mulf %20, %24 : vector<8x8xf32>
    %26 = arith.truncf %25 : vector<8x8xf32> to vector<8x8xbf16>
    %27 = vector.extract_strided_slice %12 {offsets = [0, 0], sizes = [8, 128], strides = [1, 1]} : vector<8x1024xbf16> to vector<8x128xbf16>
    %cst_16 = arith.constant dense<0.000000e+00> : vector<8x128xf32>
    %28 = tpu.matmul %26, %27, %cst_16 {dimension_numbers = #tpu.dot_dimension_numbers<[1], [0], [0], [1], [0, 0, 1, 1], [], []>} : vector<8x8xbf16>, vector<8x128xbf16>, vector<8x128xf32> -> vector<8x128xf32>
    %29 = arith.addf %13, %28 : vector<8x128xf32>
    %30 = vector.extract_strided_slice %9 {offsets = [0, 128], sizes = [8, 128], strides = [1, 1]} : vector<8x1024xbf16> to vector<8x128xbf16>
    %cst_17 = arith.constant dense<0.000000e+00> : vector<8x8xf32>
    %31 = tpu.matmul %30, %3, %cst_17 {dimension_numbers = #tpu.dot_dimension_numbers<[1], [1], [0], [0], [0, 0, 1, 0], [], []>} : vector<8x128xbf16>, vector<8x128xbf16>, vector<8x8xf32> -> vector<8x8xf32>
    %cst_18 = arith.constant dense<0xFF800000> : vector<8xf32>
    %32 = vector.multi_reduction <maximumf>, %31, %cst_18 [1] : vector<8x8xf32> to vector<8xf32>
    %33 = vector.shape_cast %32 : vector<8xf32> to vector<8x1xf32>
    %34 = vector.broadcast %33 : vector<8x1xf32> to vector<8x8xf32>
    %35 = arith.subf %31, %34 : vector<8x8xf32>
    %36 = math.exp %35 : vector<8x8xf32>
    %cst_19 = arith.constant dense<0.000000e+00> : vector<8xf32>
    %37 = vector.multi_reduction <add>, %36, %cst_19 [1] : vector<8x8xf32> to vector<8xf32>
    %38 = vector.shape_cast %37 : vector<8xf32> to vector<8x1xf32>
    %39 = tpu.reciprocal %38 {approx = true} : vector<8x1xf32> -> vector<8x1xf32>
    %40 = vector.broadcast %39 : vector<8x1xf32> to vector<8x8xf32>
    %41 = arith.mulf %36, %40 : vector<8x8xf32>
    %42 = arith.truncf %41 : vector<8x8xf32> to vector<8x8xbf16>
    %43 = vector.extract_strided_slice %12 {offsets = [0, 128], sizes = [8, 128], strides = [1, 1]} : vector<8x1024xbf16> to vector<8x128xbf16>
    %cst_20 = arith.constant dense<0.000000e+00> : vector<8x128xf32>
    %44 = tpu.matmul %42, %43, %cst_20 {dimension_numbers = #tpu.dot_dimension_numbers<[1], [0], [0], [1], [0, 0, 1, 1], [], []>} : vector<8x8xbf16>, vector<8x128xbf16>, vector<8x128xf32> -> vector<8x128xf32>
    %45 = arith.addf %29, %44 : vector<8x128xf32>
    %46 = vector.extract_strided_slice %9 {offsets = [0, 256], sizes = [8, 128], strides = [1, 1]} : vector<8x1024xbf16> to vector<8x128xbf16>
    %cst_21 = arith.constant dense<0.000000e+00> : vector<8x8xf32>
    %47 = tpu.matmul %46, %3, %cst_21 {dimension_numbers = #tpu.dot_dimension_numbers<[1], [1], [0], [0], [0, 0, 1, 0], [], []>} : vector<8x128xbf16>, vector<8x128xbf16>, vector<8x8xf32> -> vector<8x8xf32>
    %cst_22 = arith.constant dense<0xFF800000> : vector<8xf32>
    %48 = vector.multi_reduction <maximumf>, %47, %cst_22 [1] : vector<8x8xf32> to vector<8xf32>
    %49 = vector.shape_cast %48 : vector<8xf32> to vector<8x1xf32>
    %50 = vector.broadcast %49 : vector<8x1xf32> to vector<8x8xf32>
    %51 = arith.subf %47, %50 : vector<8x8xf32>
    %52 = math.exp %51 : vector<8x8xf32>
    %cst_23 = arith.constant dense<0.000000e+00> : vector<8xf32>
    %53 = vector.multi_reduction <add>, %52, %cst_23 [1] : vector<8x8xf32> to vector<8xf32>
    %54 = vector.shape_cast %53 : vector<8xf32> to vector<8x1xf32>
    %55 = tpu.reciprocal %54 {approx = true} : vector<8x1xf32> -> vector<8x1xf32>
    %56 = vector.broadcast %55 : vector<8x1xf32> to vector<8x8xf32>
    %57 = arith.mulf %52, %56 : vector<8x8xf32>
    %58 = arith.truncf %57 : vector<8x8xf32> to vector<8x8xbf16>
    %59 = vector.extract_strided_slice %12 {offsets = [0, 256], sizes = [8, 128], strides = [1, 1]} : vector<8x1024xbf16> to vector<8x128xbf16>
    %cst_24 = arith.constant dense<0.000000e+00> : vector<8x128xf32>
    %60 = tpu.matmul %58, %59, %cst_24 {dimension_numbers = #tpu.dot_dimension_numbers<[1], [0], [0], [1], [0, 0, 1, 1], [], []>} : vector<8x8xbf16>, vector<8x128xbf16>, vector<8x128xf32> -> vector<8x128xf32>
    %61 = arith.addf %45, %60 : vector<8x128xf32>
    %62 = vector.extract_strided_slice %9 {offsets = [0, 384], sizes = [8, 128], strides = [1, 1]} : vector<8x1024xbf16> to vector<8x128xbf16>
    %cst_25 = arith.constant dense<0.000000e+00> : vector<8x8xf32>
    %63 = tpu.matmul %62, %3, %cst_25 {dimension_numbers = #tpu.dot_dimension_numbers<[1], [1], [0], [0], [0, 0, 1, 0], [], []>} : vector<8x128xbf16>, vector<8x128xbf16>, vector<8x8xf32> -> vector<8x8xf32>
    %cst_26 = arith.constant dense<0xFF800000> : vector<8xf32>
    %64 = vector.multi_reduction <maximumf>, %63, %cst_26 [1] : vector<8x8xf32> to vector<8xf32>
    %65 = vector.shape_cast %64 : vector<8xf32> to vector<8x1xf32>
    %66 = vector.broadcast %65 : vector<8x1xf32> to vector<8x8xf32>
    %67 = arith.subf %63, %66 : vector<8x8xf32>
    %68 = math.exp %67 : vector<8x8xf32>
    %cst_27 = arith.constant dense<0.000000e+00> : vector<8xf32>
    %69 = vector.multi_reduction <add>, %68, %cst_27 [1] : vector<8x8xf32> to vector<8xf32>
    %70 = vector.shape_cast %69 : vector<8xf32> to vector<8x1xf32>
    %71 = tpu.reciprocal %70 {approx = true} : vector<8x1xf32> -> vector<8x1xf32>
    %72 = vector.broadcast %71 : vector<8x1xf32> to vector<8x8xf32>
    %73 = arith.mulf %68, %72 : vector<8x8xf32>
    %74 = arith.truncf %73 : vector<8x8xf32> to vector<8x8xbf16>
    %75 = vector.extract_strided_slice %12 {offsets = [0, 384], sizes = [8, 128], strides = [1, 1]} : vector<8x1024xbf16> to vector<8x128xbf16>
    %cst_28 = arith.constant dense<0.000000e+00> : vector<8x128xf32>
    %76 = tpu.matmul %74, %75, %cst_28 {dimension_numbers = #tpu.dot_dimension_numbers<[1], [0], [0], [1], [0, 0, 1, 1], [], []>} : vector<8x8xbf16>, vector<8x128xbf16>, vector<8x128xf32> -> vector<8x128xf32>
    %77 = arith.addf %61, %76 : vector<8x128xf32>
    %78 = vector.extract_strided_slice %9 {offsets = [0, 512], sizes = [8, 128], strides = [1, 1]} : vector<8x1024xbf16> to vector<8x128xbf16>
    %cst_29 = arith.constant dense<0.000000e+00> : vector<8x8xf32>
    %79 = tpu.matmul %78, %3, %cst_29 {dimension_numbers = #tpu.dot_dimension_numbers<[1], [1], [0], [0], [0, 0, 1, 0], [], []>} : vector<8x128xbf16>, vector<8x128xbf16>, vector<8x8xf32> -> vector<8x8xf32>
    %cst_30 = arith.constant dense<0xFF800000> : vector<8xf32>
    %80 = vector.multi_reduction <maximumf>, %79, %cst_30 [1] : vector<8x8xf32> to vector<8xf32>
    %81 = vector.shape_cast %80 : vector<8xf32> to vector<8x1xf32>
    %82 = vector.broadcast %81 : vector<8x1xf32> to vector<8x8xf32>
    %83 = arith.subf %79, %82 : vector<8x8xf32>
    %84 = math.exp %83 : vector<8x8xf32>
    %cst_31 = arith.constant dense<0.000000e+00> : vector<8xf32>
    %85 = vector.multi_reduction <add>, %84, %cst_31 [1] : vector<8x8xf32> to vector<8xf32>
    %86 = vector.shape_cast %85 : vector<8xf32> to vector<8x1xf32>
    %87 = tpu.reciprocal %86 {approx = true} : vector<8x1xf32> -> vector<8x1xf32>
    %88 = vector.broadcast %87 : vector<8x1xf32> to vector<8x8xf32>
    %89 = arith.mulf %84, %88 : vector<8x8xf32>
    %90 = arith.truncf %89 : vector<8x8xf32> to vector<8x8xbf16>
    %91 = vector.extract_strided_slice %12 {offsets = [0, 512], sizes = [8, 128], strides = [1, 1]} : vector<8x1024xbf16> to vector<8x128xbf16>
    %cst_32 = arith.constant dense<0.000000e+00> : vector<8x128xf32>
    %92 = tpu.matmul %90, %91, %cst_32 {dimension_numbers = #tpu.dot_dimension_numbers<[1], [0], [0], [1], [0, 0, 1, 1], [], []>} : vector<8x8xbf16>, vector<8x128xbf16>, vector<8x128xf32> -> vector<8x128xf32>
    %93 = arith.addf %77, %92 : vector<8x128xf32>
    %94 = vector.extract_strided_slice %9 {offsets = [0, 640], sizes = [8, 128], strides = [1, 1]} : vector<8x1024xbf16> to vector<8x128xbf16>
    %cst_33 = arith.constant dense<0.000000e+00> : vector<8x8xf32>
    %95 = tpu.matmul %94, %3, %cst_33 {dimension_numbers = #tpu.dot_dimension_numbers<[1], [1], [0], [0], [0, 0, 1, 0], [], []>} : vector<8x128xbf16>, vector<8x128xbf16>, vector<8x8xf32> -> vector<8x8xf32>
    %cst_34 = arith.constant dense<0xFF800000> : vector<8xf32>
    %96 = vector.multi_reduction <maximumf>, %95, %cst_34 [1] : vector<8x8xf32> to vector<8xf32>
    %97 = vector.shape_cast %96 : vector<8xf32> to vector<8x1xf32>
    %98 = vector.broadcast %97 : vector<8x1xf32> to vector<8x8xf32>
    %99 = arith.subf %95, %98 : vector<8x8xf32>
    %100 = math.exp %99 : vector<8x8xf32>
    %cst_35 = arith.constant dense<0.000000e+00> : vector<8xf32>
    %101 = vector.multi_reduction <add>, %100, %cst_35 [1] : vector<8x8xf32> to vector<8xf32>
    %102 = vector.shape_cast %101 : vector<8xf32> to vector<8x1xf32>
    %103 = tpu.reciprocal %102 {approx = true} : vector<8x1xf32> -> vector<8x1xf32>
    %104 = vector.broadcast %103 : vector<8x1xf32> to vector<8x8xf32>
    %105 = arith.mulf %100, %104 : vector<8x8xf32>
    %106 = arith.truncf %105 : vector<8x8xf32> to vector<8x8xbf16>
    %107 = vector.extract_strided_slice %12 {offsets = [0, 640], sizes = [8, 128], strides = [1, 1]} : vector<8x1024xbf16> to vector<8x128xbf16>
    %cst_36 = arith.constant dense<0.000000e+00> : vector<8x128xf32>
    %108 = tpu.matmul %106, %107, %cst_36 {dimension_numbers = #tpu.dot_dimension_numbers<[1], [0], [0], [1], [0, 0, 1, 1], [], []>} : vector<8x8xbf16>, vector<8x128xbf16>, vector<8x128xf32> -> vector<8x128xf32>
    %109 = arith.addf %93, %108 : vector<8x128xf32>
    %110 = vector.extract_strided_slice %9 {offsets = [0, 768], sizes = [8, 128], strides = [1, 1]} : vector<8x1024xbf16> to vector<8x128xbf16>
    %cst_37 = arith.constant dense<0.000000e+00> : vector<8x8xf32>
    %111 = tpu.matmul %110, %3, %cst_37 {dimension_numbers = #tpu.dot_dimension_numbers<[1], [1], [0], [0], [0, 0, 1, 0], [], []>} : vector<8x128xbf16>, vector<8x128xbf16>, vector<8x8xf32> -> vector<8x8xf32>
    %cst_38 = arith.constant dense<0xFF800000> : vector<8xf32>
    %112 = vector.multi_reduction <maximumf>, %111, %cst_38 [1] : vector<8x8xf32> to vector<8xf32>
    %113 = vector.shape_cast %112 : vector<8xf32> to vector<8x1xf32>
    %114 = vector.broadcast %113 : vector<8x1xf32> to vector<8x8xf32>
    %115 = arith.subf %111, %114 : vector<8x8xf32>
    %116 = math.exp %115 : vector<8x8xf32>
    %cst_39 = arith.constant dense<0.000000e+00> : vector<8xf32>
    %117 = vector.multi_reduction <add>, %116, %cst_39 [1] : vector<8x8xf32> to vector<8xf32>
    %118 = vector.shape_cast %117 : vector<8xf32> to vector<8x1xf32>
    %119 = tpu.reciprocal %118 {approx = true} : vector<8x1xf32> -> vector<8x1xf32>
    %120 = vector.broadcast %119 : vector<8x1xf32> to vector<8x8xf32>
    %121 = arith.mulf %116, %120 : vector<8x8xf32>
    %122 = arith.truncf %121 : vector<8x8xf32> to vector<8x8xbf16>
    %123 = vector.extract_strided_slice %12 {offsets = [0, 768], sizes = [8, 128], strides = [1, 1]} : vector<8x1024xbf16> to vector<8x128xbf16>
    %cst_40 = arith.constant dense<0.000000e+00> : vector<8x128xf32>
    %124 = tpu.matmul %122, %123, %cst_40 {dimension_numbers = #tpu.dot_dimension_numbers<[1], [0], [0], [1], [0, 0, 1, 1], [], []>} : vector<8x8xbf16>, vector<8x128xbf16>, vector<8x128xf32> -> vector<8x128xf32>
    %125 = arith.addf %109, %124 : vector<8x128xf32>
    %126 = vector.extract_strided_slice %9 {offsets = [0, 896], sizes = [8, 128], strides = [1, 1]} : vector<8x1024xbf16> to vector<8x128xbf16>
    %cst_41 = arith.constant dense<0.000000e+00> : vector<8x8xf32>
    %127 = tpu.matmul %126, %3, %cst_41 {dimension_numbers = #tpu.dot_dimension_numbers<[1], [1], [0], [0], [0, 0, 1, 0], [], []>} : vector<8x128xbf16>, vector<8x128xbf16>, vector<8x8xf32> -> vector<8x8xf32>
    %cst_42 = arith.constant dense<0xFF800000> : vector<8xf32>
    %128 = vector.multi_reduction <maximumf>, %127, %cst_42 [1] : vector<8x8xf32> to vector<8xf32>
    %129 = vector.shape_cast %128 : vector<8xf32> to vector<8x1xf32>
    %130 = vector.broadcast %129 : vector<8x1xf32> to vector<8x8xf32>
    %131 = arith.subf %127, %130 : vector<8x8xf32>
    %132 = math.exp %131 : vector<8x8xf32>
    %cst_43 = arith.constant dense<0.000000e+00> : vector<8xf32>
    %133 = vector.multi_reduction <add>, %132, %cst_43 [1] : vector<8x8xf32> to vector<8xf32>
    %134 = vector.shape_cast %133 : vector<8xf32> to vector<8x1xf32>
    %135 = tpu.reciprocal %134 {approx = true} : vector<8x1xf32> -> vector<8x1xf32>
    %136 = vector.broadcast %135 : vector<8x1xf32> to vector<8x8xf32>
    %137 = arith.mulf %132, %136 : vector<8x8xf32>
    %138 = arith.truncf %137 : vector<8x8xf32> to vector<8x8xbf16>
    %139 = vector.extract_strided_slice %12 {offsets = [0, 896], sizes = [8, 128], strides = [1, 1]} : vector<8x1024xbf16> to vector<8x128xbf16>
    %cst_44 = arith.constant dense<0.000000e+00> : vector<8x128xf32>
    %140 = tpu.matmul %138, %139, %cst_44 {dimension_numbers = #tpu.dot_dimension_numbers<[1], [0], [0], [1], [0, 0, 1, 1], [], []>} : vector<8x8xbf16>, vector<8x128xbf16>, vector<8x128xf32> -> vector<8x128xf32>
    %141 = arith.addf %125, %140 : vector<8x128xf32>
    %c0_45 = arith.constant 0 : index
    %c0_46 = arith.constant 0 : index
    %142 = vector.load %arg7[%c0_45, %c0_46] : memref<1x128xf32, #tpu.memory_space<vmem>>, vector<1x128xf32>
    %143 = vector.broadcast %142 : vector<1x128xf32> to vector<8x128xf32>
    %144 = arith.addf %141, %143 : vector<8x128xf32>
    %145 = arith.extf %1 : vector<8x128xbf16> to vector<8x128xf32>
    %146 = arith.addf %144, %145 : vector<8x128xf32>
    %c0_47 = arith.constant 0 : index
    %c0_48 = arith.constant 0 : index
    %147 = vector.load %arg8[%c0_47, %c0_48] : memref<1x128xf32, #tpu.memory_space<vmem>>, vector<1x128xf32>
    %c0_49 = arith.constant 0 : index
    %c0_50 = arith.constant 0 : index
    %148 = vector.load %arg9[%c0_49, %c0_50] : memref<1x128xf32, #tpu.memory_space<vmem>>, vector<1x128xf32>
    %cst_51 = arith.constant dense<0.000000e+00> : vector<8xf32>
    %149 = vector.multi_reduction <add>, %146, %cst_51 [1] : vector<8x128xf32> to vector<8xf32>
    %150 = vector.shape_cast %149 : vector<8xf32> to vector<8x1xf32>
    %cst_52 = arith.constant 1.280000e+02 : f32
    %151 = vector.broadcast %cst_52 : f32 to vector<8x1xf32>
    %152 = arith.divf %150, %151 : vector<8x1xf32>
    %153 = vector.broadcast %152 : vector<8x1xf32> to vector<8x128xf32>
    %154 = arith.subf %146, %153 : vector<8x128xf32>
    %155 = arith.mulf %154, %154 : vector<8x128xf32>
    %cst_53 = arith.constant dense<0.000000e+00> : vector<8xf32>
    %156 = vector.multi_reduction <add>, %155, %cst_53 [1] : vector<8x128xf32> to vector<8xf32>
    %157 = vector.shape_cast %156 : vector<8xf32> to vector<8x1xf32>
    %cst_54 = arith.constant 1.280000e+02 : f32
    %158 = vector.broadcast %cst_54 : f32 to vector<8x1xf32>
    %159 = arith.divf %157, %158 : vector<8x1xf32>
    %cst_55 = arith.constant 9.99999974E-6 : f32
    %160 = vector.broadcast %cst_55 : f32 to vector<8x1xf32>
    %161 = arith.addf %159, %160 : vector<8x1xf32>
    %162 = math.rsqrt %161 : vector<8x1xf32>
    %163 = vector.broadcast %162 : vector<8x1xf32> to vector<8x128xf32>
    %164 = arith.mulf %154, %163 : vector<8x128xf32>
    %165 = vector.broadcast %147 : vector<1x128xf32> to vector<8x128xf32>
    %166 = arith.mulf %164, %165 : vector<8x128xf32>
    %167 = vector.broadcast %148 : vector<1x128xf32> to vector<8x128xf32>
    %168 = arith.addf %166, %167 : vector<8x128xf32>
    %169 = arith.truncf %168 : vector<8x128xf32> to vector<8x128xbf16>
    %c0_56 = arith.constant 0 : index
    %c0_57 = arith.constant 0 : index
    %c0_58 = arith.constant 0 : index
    %170 = vector.load %arg10[%c0_56, %c0_57, %c0_58] : memref<1x8x128xbf16, #tpu.memory_space<vmem>>, vector<1x8x128xbf16>
    %171 = vector.shape_cast %170 : vector<1x8x128xbf16> to vector<8x128xbf16>
    %172 = vector.shape_cast %169 : vector<8x128xbf16> to vector<1x8x128xbf16>
    tpu.vector_store %arg10[%c0_56, %c0_57, %c0_58], %172 {strides = array<i32>} : memref<1x8x128xbf16, #tpu.memory_space<vmem>>, vector<1x8x128xbf16>,
    return
  }
  func.func @transform_0(%arg0: i32, %arg1: i32) -> (i32, i32, i32) {
    %c0_i32 = arith.constant 0 : i32
    %c0_i32_0 = arith.constant 0 : i32
    return %arg0, %arg1, %c0_i32 : i32, i32, i32
  }
  func.func @transform_1(%arg0: i32, %arg1: i32) -> (i32, i32, i32) {
    %c0_i32 = arith.constant 0 : i32
    %c0_i32_0 = arith.constant 0 : i32
    %c0_i32_1 = arith.constant 0 : i32
    return %arg0, %c0_i32, %c0_i32_0 : i32, i32, i32
  }
  func.func @transform_2(%arg0: i32, %arg1: i32) -> (i32, i32) {
    %c0_i32 = arith.constant 0 : i32
    %c0_i32_0 = arith.constant 0 : i32
    %c0_i32_1 = arith.constant 0 : i32
    return %c0_i32, %c0_i32_0 : i32, i32
  }
  func.func @transform_3(%arg0: i32, %arg1: i32) -> (i32, i32) {
    %c0_i32 = arith.constant 0 : i32
    %c0_i32_0 = arith.constant 0 : i32
    %c0_i32_1 = arith.constant 0 : i32
    return %c0_i32, %c0_i32_0 : i32, i32
  }
  func.func @transform_4(%arg0: i32, %arg1: i32) -> (i32, i32) {
    %c0_i32 = arith.constant 0 : i32
    %c0_i32_0 = arith.constant 0 : i32
    %c0_i32_1 = arith.constant 0 : i32
    return %c0_i32, %c0_i32_0 : i32, i32
  }
  func.func @transform_5(%arg0: i32, %arg1: i32) -> (i32, i32) {
    %c0_i32 = arith.constant 0 : i32
    %c0_i32_0 = arith.constant 0 : i32
    %c0_i32_1 = arith.constant 0 : i32
    return %c0_i32, %c0_i32_0 : i32, i32
  }
  func.func @transform_6(%arg0: i32, %arg1: i32) -> (i32, i32) {
    %c0_i32 = arith.constant 0 : i32
    %c0_i32_0 = arith.constant 0 : i32
    %c0_i32_1 = arith.constant 0 : i32
    return %c0_i32, %c0_i32_0 : i32, i32
  }
  func.func @transform_7(%arg0: i32, %arg1: i32) -> (i32, i32) {
    %c0_i32 = arith.constant 0 : i32
    %c0_i32_0 = arith.constant 0 : i32
    %c0_i32_1 = arith.constant 0 : i32
    return %c0_i32, %c0_i32_0 : i32, i32
  }
  func.func @transform_8(%arg0: i32, %arg1: i32) -> (i32, i32, i32) {
    %c0_i32 = arith.constant 0 : i32
    %c0_i32_0 = arith.constant 0 : i32
    return %arg0, %arg1, %c0_i32 : i32, i32, i32
  }
}

module attributes {stable_mosaic.version = 11 : i64} {
  func.func @_ln_fc_kernel(%arg0: i32, %arg1: memref<16x128xbf16, #tpu.memory_space<vmem>>, %arg2: memref<1x128xf32, #tpu.memory_space<vmem>>, %arg3: memref<1x128xf32, #tpu.memory_space<vmem>>, %arg4: memref<128x128xbf16, #tpu.memory_space<vmem>>, %arg5: memref<1x128xf32, #tpu.memory_space<vmem>>, %arg6: memref<16x128xf32, #tpu.memory_space<vmem>>) attributes {dimension_semantics = [#tpu.dimension_semantics<parallel>], iteration_bounds = array<i64: 1>, scalar_prefetch = 0 : i64, scratch_operands = 0 : i64, tpu.core_type = #tpu.core_type<tc>, window_params = [{transform_indices = @transform_0, window_bounds = array<i64: 16, 128>}, {pipeline_mode = #tpu.pipeline_mode<synchronous>, transform_indices = @transform_1, window_bounds = array<i64: 1, 128>}, {pipeline_mode = #tpu.pipeline_mode<synchronous>, transform_indices = @transform_2, window_bounds = array<i64: 1, 128>}, {pipeline_mode = #tpu.pipeline_mode<synchronous>, transform_indices = @transform_3, window_bounds = array<i64: 128, 128>}, {pipeline_mode = #tpu.pipeline_mode<synchronous>, transform_indices = @transform_4, window_bounds = array<i64: 1, 128>}, {transform_indices = @transform_5, window_bounds = array<i64: 16, 128>}]} {
    %c0 = arith.constant 0 : index
    %c0_0 = arith.constant 0 : index
    %0 = vector.load %arg1[%c0, %c0_0] : memref<16x128xbf16, #tpu.memory_space<vmem>>, vector<16x128xbf16>
    %1 = arith.extf %0 : vector<16x128xbf16> to vector<16x128xf32>
    %c0_1 = arith.constant 0 : index
    %c0_2 = arith.constant 0 : index
    %2 = vector.load %arg2[%c0_1, %c0_2] : memref<1x128xf32, #tpu.memory_space<vmem>>, vector<1x128xf32>
    %c0_3 = arith.constant 0 : index
    %c0_4 = arith.constant 0 : index
    %3 = vector.load %arg3[%c0_3, %c0_4] : memref<1x128xf32, #tpu.memory_space<vmem>>, vector<1x128xf32>
    %cst = arith.constant dense<0.000000e+00> : vector<16xf32>
    %4 = vector.multi_reduction <add>, %1, %cst [1] : vector<16x128xf32> to vector<16xf32>
    %5 = vector.shape_cast %4 : vector<16xf32> to vector<16x1xf32>
    %cst_5 = arith.constant 1.280000e+02 : f32
    %6 = vector.broadcast %cst_5 : f32 to vector<16x1xf32>
    %7 = arith.divf %5, %6 : vector<16x1xf32>
    %8 = vector.broadcast %7 : vector<16x1xf32> to vector<16x128xf32>
    %9 = arith.subf %1, %8 : vector<16x128xf32>
    %10 = arith.mulf %9, %9 : vector<16x128xf32>
    %cst_6 = arith.constant dense<0.000000e+00> : vector<16xf32>
    %11 = vector.multi_reduction <add>, %10, %cst_6 [1] : vector<16x128xf32> to vector<16xf32>
    %12 = vector.shape_cast %11 : vector<16xf32> to vector<16x1xf32>
    %cst_7 = arith.constant 1.280000e+02 : f32
    %13 = vector.broadcast %cst_7 : f32 to vector<16x1xf32>
    %14 = arith.divf %12, %13 : vector<16x1xf32>
    %cst_8 = arith.constant 9.99999974E-6 : f32
    %15 = vector.broadcast %cst_8 : f32 to vector<16x1xf32>
    %16 = arith.addf %14, %15 : vector<16x1xf32>
    %17 = math.rsqrt %16 : vector<16x1xf32>
    %18 = vector.broadcast %17 : vector<16x1xf32> to vector<16x128xf32>
    %19 = arith.mulf %9, %18 : vector<16x128xf32>
    %20 = vector.broadcast %2 : vector<1x128xf32> to vector<16x128xf32>
    %21 = arith.mulf %19, %20 : vector<16x128xf32>
    %22 = vector.broadcast %3 : vector<1x128xf32> to vector<16x128xf32>
    %23 = arith.addf %21, %22 : vector<16x128xf32>
    %24 = arith.truncf %23 : vector<16x128xf32> to vector<16x128xbf16>
    %c0_9 = arith.constant 0 : index
    %c0_10 = arith.constant 0 : index
    %25 = vector.load %arg4[%c0_9, %c0_10] : memref<128x128xbf16, #tpu.memory_space<vmem>>, vector<128x128xbf16>
    %cst_11 = arith.constant dense<0.000000e+00> : vector<16x128xf32>
    %26 = tpu.matmul %24, %25, %cst_11 {dimension_numbers = #tpu.dot_dimension_numbers<[1], [0], [0], [1], [0, 0, 1, 1], [], []>} : vector<16x128xbf16>, vector<128x128xbf16>, vector<16x128xf32> -> vector<16x128xf32>
    %c0_12 = arith.constant 0 : index
    %c0_13 = arith.constant 0 : index
    %27 = vector.load %arg5[%c0_12, %c0_13] : memref<1x128xf32, #tpu.memory_space<vmem>>, vector<1x128xf32>
    %28 = vector.broadcast %27 : vector<1x128xf32> to vector<16x128xf32>
    %29 = arith.addf %26, %28 : vector<16x128xf32>
    %c0_14 = arith.constant 0 : index
    %c0_15 = arith.constant 0 : index
    %30 = vector.load %arg6[%c0_14, %c0_15] : memref<16x128xf32, #tpu.memory_space<vmem>>, vector<16x128xf32>
    tpu.vector_store %arg6[%c0_14, %c0_15], %29 {strides = array<i32>} : memref<16x128xf32, #tpu.memory_space<vmem>>, vector<16x128xf32>,
    return
  }
  func.func @transform_0(%arg0: i32) -> (i32, i32) {
    %c0_i32 = arith.constant 0 : i32
    %c0_i32_0 = arith.constant 0 : i32
    return %arg0, %c0_i32 : i32, i32
  }
  func.func @transform_1(%arg0: i32) -> (i32, i32) {
    %c0_i32 = arith.constant 0 : i32
    %c0_i32_0 = arith.constant 0 : i32
    %c0_i32_1 = arith.constant 0 : i32
    return %c0_i32, %c0_i32_0 : i32, i32
  }
  func.func @transform_2(%arg0: i32) -> (i32, i32) {
    %c0_i32 = arith.constant 0 : i32
    %c0_i32_0 = arith.constant 0 : i32
    %c0_i32_1 = arith.constant 0 : i32
    return %c0_i32, %c0_i32_0 : i32, i32
  }
  func.func @transform_3(%arg0: i32) -> (i32, i32) {
    %c0_i32 = arith.constant 0 : i32
    %c0_i32_0 = arith.constant 0 : i32
    %c0_i32_1 = arith.constant 0 : i32
    return %c0_i32, %c0_i32_0 : i32, i32
  }
  func.func @transform_4(%arg0: i32) -> (i32, i32) {
    %c0_i32 = arith.constant 0 : i32
    %c0_i32_0 = arith.constant 0 : i32
    %c0_i32_1 = arith.constant 0 : i32
    return %c0_i32, %c0_i32_0 : i32, i32
  }
  func.func @transform_5(%arg0: i32) -> (i32, i32) {
    %c0_i32 = arith.constant 0 : i32
    %c0_i32_0 = arith.constant 0 : i32
    return %arg0, %c0_i32 : i32, i32
  }
}

</mosaic_0001>

<llo_original>
// kernel: custom_transformer_forward.6
$region0: #{custom_transformer_forward.6}
  #allocation0 [shape = 'u32[]', space=smem, size = 0x4, offset = 0x4, fixed_abs, tag = 'smem constant byte address 0x4 - core index']
  #allocation1 [shape = 'u32[144,128]{1,0:T(1,128)}', space=vmem, size = 0x12000, scoped, tag = 'internal scratch']
  #allocation2 [shape = 'f32[16,128]{1,0:T(8,128)}', space=vmem, size = 0x2000, scoped, tag = 'scratch operand']
  %s0 = inlined_call_operand.vmem [shape: bf16[16,16], index: 0, kind: input, shape index: {}]
  %s1 = inlined_call_operand.hbm [shape: bf16[16,128], index: 1, kind: input, shape index: {}]
  %s2 = inlined_call_operand.hbm [shape: f32[1,128], index: 2, kind: input, shape index: {}]
  %s3 = inlined_call_operand.vmem [shape: bf16[16,128], index: 3, kind: output, shape index: {}]
  %s4 = sld [smem:[#allocation0]]
  $region38: #{custom_transformer_forward.6} parent=0
    _
  %s6 = ssub.s32 1, %s4
  %s7 = scalar_select 0, %s6, %s4
  $region1: #{custom_transformer_forward.6} parent=0
    #allocation3 [shape = 'u8[4096]{0}', space=vmem, size = 0x1000, scoped, tag = 'input window, operand 1, single buffered']
    #allocation4 [shape = 's32[1]{0}', space=sflag, size = 0x4, scoped, tag = 'scoped memory for custom_transformer_forward.6']
    #allocation5 [shape = 'u8[512]{0}', space=vmem, size = 0x400, scoped, tag = 'input window, operand 2, single buffered']
    #allocation6 [shape = 's32[1]{0}', space=sflag, size = 0x4, scoped, tag = 'scoped memory for custom_transformer_forward.6']
    %8 = vsyncpa [#allocation4], 0
    %9 = vsyncpa [#allocation6], 0
    // Predicated region
    $region2: #{custom_transformer_forward.6} parent=1 // pred_check
      _
    $region3: #{custom_transformer_forward.6} parent=1 // pred_check_branch
      %11 = sbr.rel (0) target = $region5
    $region4: #{custom_transformer_forward.6} parent=1 // pred_region
      _
    $region5: #{custom_transformer_forward.6} parent=1 // pred_fallthru
      _
    // Predicated region
    $region6: #{custom_transformer_forward.6} parent=1 // pred_check
      _
    $region7: #{custom_transformer_forward.6} parent=1 // pred_check_branch
      %13 = sbr.rel (0) target = $region9
    $region8: #{custom_transformer_forward.6} parent=1 // pred_region
      %s15 = ssub.s32 128, 128
      %16 = vsyncadd [#allocation4], %s15
      %s17 = sshll.u32 [#allocation3], 4
      %s18 = int_to_ptr.vmem [resolvable:$true] %s17
      %23 = dma.hbm_to_vmem [thread:$0]  %s1, 128, %s18, [#allocation4], 64, 64, 4
    $region9: #{custom_transformer_forward.6} parent=1 // pred_fallthru
      _
    // Predicated region
    $region10: #{custom_transformer_forward.6} parent=1 // pred_check
      _
    $region11: #{custom_transformer_forward.6} parent=1 // pred_check_branch
      %25 = sbr.rel (0) target = $region13
    $region12: #{custom_transformer_forward.6} parent=1 // pred_region
      %s27 = ssub.s32 16, 16
      %28 = vsyncadd [#allocation6], %s27
      %s30 = sshll.u32 [#allocation5], 4
      %s31 = int_to_ptr.vmem [resolvable:$true] %s30
      %33 = dma.hbm_to_vmem [thread:$0]  %s2, 16, %s31, [#allocation6]
    $region13: #{custom_transformer_forward.6} parent=1 // pred_fallthru
      _
    // Predicated region
    $region14: #{custom_transformer_forward.6} parent=1 // pred_check
      _
    $region15: #{custom_transformer_forward.6} parent=1 // pred_check_branch
      %35 = sbr.rel (0) target = $region17
    $region16: #{custom_transformer_forward.6} parent=1 // pred_region
      %36 = dma.done [#allocation4], 128
    $region17: #{custom_transformer_forward.6} parent=1 // pred_fallthru
      _
    // Predicated region
    $region18: #{custom_transformer_forward.6} parent=1 // pred_check
      _
    $region19: #{custom_transformer_forward.6} parent=1 // pred_check_branch
      %38 = sbr.rel (0) target = $region21
    $region20: #{custom_transformer_forward.6} parent=1 // pred_region
      %39 = dma.done [#allocation6], 16
    $region21: #{custom_transformer_forward.6} parent=1 // pred_fallthru
      _
    %p41 = scmp.eq.s32.totalorder 0, 0
    // Predicated region
    $region22: #{custom_transformer_forward.6} parent=1 // pred_check
      %p42 = pneg %p41
    $region23: #{custom_transformer_forward.6} parent=1 // pred_check_branch
      %44 = sbr.rel (%p42) target = $region25
    $region24: #{custom_transformer_forward.6} parent=1 // pred_region
      %45 = vst [vmem:[#allocation2] sm:$0xff] 0.0
      %46 = vst [vmem:[#allocation2 + $0x8] sm:$0xff] 0.0
    $region25: #{custom_transformer_forward.6} parent=1 // pred_fallthru
      _
    %v47 = vld [vmem:[#allocation2] sm:$0xff]
    %v48 = vld [vmem:[#allocation2 + $0x8] sm:$0xff]
    %v49 = vld [vmem:[%s0] sm:$0xf]
    %v50 = vld [vmem:[%s0 + $0x4] sm:$0xf]
    %v51 = vld [vmem:[#allocation3] sm:$0xf]
    %v52 = vld [vmem:[#allocation3 + $0x4] sm:$0xf]
    %v55 = vunpack.c.l.b16 %v49
    %v56 = vunpack.c.l.b16 %v50
    %v57 = vpack.c.b16 %v56, %v55
    %v60 = vunpack.c.l.b16 %v51
    %v61 = vunpack.c.l.b16 %v52
    %v62 = vpack.c.b16 %v61, %v60
    %vm64 = vcmask 130048
    %v66 = vsel %vm64, %v57, 0
    %68 = vmatprep.subr.bf16.mxu0 0
    %69 = vmatpush1.bf16.msra.mxu0 0
    %70 = vmatprep.subr.bf16.mxu0 0
    %71 = vmatpush1.bf16.msra.mxu0 0
    %72 = vmatprep.subr.bf16.mxu0 0
    %73 = vmatpush1.bf16.msra.mxu0 0
    %74 = vmatprep.subr.bf16.mxu0 0
    %75 = vmatpush1.bf16.msra.mxu0 0
    %76 = vmatprep.subr.bf16.mxu0 0
    %77 = vmatpush1.bf16.msra.mxu0 0
    %78 = vmatprep.subr.bf16.mxu0 0
    %79 = vmatpush1.bf16.msra.mxu0 0
    %80 = vmatprep.subr.bf16.mxu0 0
    %81 = vmatpush1.bf16.msra.mxu0 0
    %82 = vmatprep.subr.bf16.mxu0 0
    %83 = vmatpush1.bf16.msra.mxu0 %v62
    %84 = vmatprep.subr.bf16.mxu0 0
    %85 = vmatpush2.bf16.msra.mxu0 0
    %86 = vmatprep.subr.bf16.mxu0 0
    %87 = vmatpush2.bf16.msra.mxu0 0
    %88 = vmatprep.subr.bf16.mxu0 0
    %89 = vmatpush2.bf16.msra.mxu0 0
    %90 = vmatprep.subr.bf16.mxu0 0
    %91 = vmatpush2.bf16.msra.mxu0 0
    %92 = vmatprep.subr.bf16.mxu0 0
    %93 = vmatpush2.bf16.msra.mxu0 0
    %94 = vmatprep.subr.bf16.mxu0 0
    %95 = vmatpush2.bf16.msra.mxu0 0
    %96 = vmatprep.subr.bf16.mxu0 0
    %97 = vmatpush2.bf16.msra.mxu0 0
    %98 = vmatprep.subr.bf16.mxu0 0
    %99 = vmatpush2.bf16.msra.mxu0 0
    %100 = vmatprep.mubr.bf16.mxu0 0
    %101 = vmatmul.mubr.bf16.gmra.mxu0 %v66
    %v102 = vpop.f32.mrf.mxu0
    %v103 = vadd.f32 0.0, %v102
    %v104 = vpop.f32.mrf.mxu0
    %v105 = vpop.f32.mrf.mxu0
    %v106 = vadd.f32 0.0, %v105
    %v107 = vpop.f32.mrf.mxu0
    %108 = vdwg.mxu0
    %v109 = vadd.f32 %v47, %v103
    %v110 = vadd.f32 %v48, %v106
    %111 = vst [vmem:[#allocation2] sm:$0xff] %v109
    %112 = vst [vmem:[#allocation2 + $0x8] sm:$0xff] %v110
    // Predicated region
    $region26: #{custom_transformer_forward.6} parent=1 // pred_check
      %p113 = pneg %p41
    $region27: #{custom_transformer_forward.6} parent=1 // pred_check_branch
      %115 = sbr.rel (%p113) target = $region29
    $region28: #{custom_transformer_forward.6} parent=1 // pred_region
      %v116 = vld [vmem:[#allocation2] sm:$0xff]
      %v117 = vld [vmem:[#allocation2 + $0x8] sm:$0xff]
      %v118 = vld [vmem:[#allocation5] sm:$0x1]
      %v120 = vlaneseq
      %v121 = vshrl.u32 %v120, 7
      %v122 = vsub.s32 0, %v121
      %v123 = vrot.slane %v118, %v122
      %v125 = vadd.f32 %v116, %v123
      %v126 = vadd.f32 %v117, %v123
      %v127 = vpack.c.bf16 %v126, %v125
      %v129 = vunpack.c.l.b16 %v127
      %v130 = vunpack.c.h.b16 %v127
      %v131 = vpack.c.b16 %v129, %v129
      %v132 = vpack.c.b16 %v130, %v130
      %135 = vst [vmem:[%s3] sm:$0xf] %v131
      %136 = vst [vmem:[%s3 + $0x4] sm:$0xf] %v132
    $region29: #{custom_transformer_forward.6} parent=1 // pred_fallthru
      _
    // Predicated region
    $region30: #{custom_transformer_forward.6} parent=1 // pred_check
      _
    $region31: #{custom_transformer_forward.6} parent=1 // pred_check_branch
      %138 = sbr.rel (0) target = $region33
    $region32: #{custom_transformer_forward.6} parent=1 // pred_region
      _
    $region33: #{custom_transformer_forward.6} parent=1 // pred_fallthru
      _
    // Predicated region
    $region34: #{custom_transformer_forward.6} parent=1 // pred_check
      _
    $region35: #{custom_transformer_forward.6} parent=1 // pred_check_branch
      %140 = sbr.rel (0) target = $region37
    $region36: #{custom_transformer_forward.6} parent=1 // pred_region
      _
    $region37: #{custom_transformer_forward.6} parent=1 // pred_fallthru
      _
    %141 = vsyncpa [#allocation4], 1
    %142 = vsyncpa [#allocation6], 1

// kernel: custom_transformer_forward.7
$region0: #{custom_transformer_forward.7}
  #allocation0 [shape = 'u32[]', space=smem, size = 0x4, offset = 0x4, fixed_abs, tag = 'smem constant byte address 0x4 - core index']
  #allocation1 [shape = 'u32[144,128]{1,0:T(1,128)}', space=vmem, size = 0x12000, scoped, tag = 'internal scratch']
  %s0 = inlined_call_operand.vmem [shape: bf16[2,8,128], index: 0, kind: input, shape index: {}, may-alias: {0,1}]
  %s1 = inlined_call_operand.vmem [shape: bf16[2,8,128], index: 1, kind: input, shape index: {}, may-alias: {0,1}]
  %s2 = inlined_call_operand.hbm [shape: bf16[128,1024], index: 2, kind: input, shape index: {}]
  %s3 = inlined_call_operand.hbm [shape: f32[1,1024], index: 3, kind: input, shape index: {}]
  %s4 = inlined_call_operand.hbm [shape: bf16[128,1024], index: 4, kind: input, shape index: {}]
  %s5 = inlined_call_operand.hbm [shape: f32[1,128], index: 5, kind: input, shape index: {}]
  %s6 = inlined_call_operand.vmem [shape: f32[1,128], index: 6, kind: input, shape index: {}]
  %s7 = inlined_call_operand.vmem [shape: f32[1,128], index: 7, kind: input, shape index: {}]
  %s8 = inlined_call_operand.vmem [shape: bf16[2,8,128], index: 8, kind: output, shape index: {}]
  %s9 = sld [smem:[#allocation0]]
  $region81: #{custom_transformer_forward.7} parent=0
    _
  %s11 = ssub.s32 1, %s9
  %s12 = scalar_select 0, %s11, %s9
  $region1: #{custom_transformer_forward.7} parent=0
    #allocation2 [shape = 'u8[262144]{0}', space=vmem, size = 0x40000, scoped, tag = 'input window, operand 2, single buffered']
    #allocation3 [shape = 's32[2]{0}', space=sflag, size = 0x8, scoped, tag = 'scoped memory for custom_transformer_forward.7']
    #allocation4 [shape = 'u8[4096]{0}', space=vmem, size = 0x1000, scoped, tag = 'input window, operand 3, single buffered']
    #allocation5 [shape = 's32[1]{0}', space=sflag, size = 0x4, scoped, tag = 'scoped memory for custom_transformer_forward.7']
    #allocation6 [shape = 'u8[262144]{0}', space=vmem, size = 0x40000, scoped, tag = 'input window, operand 4, single buffered']
    #allocation7 [shape = 'u8[512]{0}', space=vmem, size = 0x400, scoped, tag = 'input window, operand 5, single buffered']
    #allocation8 [shape = 's32[1]{0}', space=sflag, size = 0x4, scoped, tag = 'scoped memory for custom_transformer_forward.7']
    %13 = vsyncpa [#allocation3], 0
    %14 = vsyncpa [#allocation5], 0
    %15 = vsyncpa [#allocation8], 0
    loop: start=0, step=1, limit=4
    $region2: #{custom_transformer_forward.7} parent=1 // loop_pre_header
      _
    $region3: #{custom_transformer_forward.7} parent=1 // loop_header
      %s17 = sphi 0, %s21
      %p18 = scmp.ge.s32.totalorder %s17, 4
      %s24 = sphi 0, %s36
      %s25 = sphi 0, %s32
      %s26 = sphi 0, %s24
      %s27 = sphi 0, %s25
      %s28 = sphi 0, %s26
      %s29 = sphi 0, %s27
      %s41 = sphi 0, %s43
      %s44 = sphi 0, %s41
      %s45 = sphi 0, %s44
      %s61 = sphi 0, %s45
      %s67 = sphi 0, %s69
      %s70 = sphi 0, %s67
      %s71 = sphi 0, %s70
      %s87 = sphi 0, %s71
      %s91 = sphi 0, %s91
      %s93 = sphi 0, %s91
      %s94 = sphi 0, %s93
      %s108 = sphi 0, %s94
      %s112 = sphi 0, %s112
      %s114 = sphi 0, %s112
      %s115 = sphi 0, %s114
      %s129 = sphi 0, %s115
      %s133 = sphi 0, %s133
      %s135 = sphi 0, %s133
      %s136 = sphi 0, %s135
      %s150 = sphi 0, %s136
      %s154 = sphi 0, %s154
      %s156 = sphi 0, %s154
      %s157 = sphi 0, %s156
      %s171 = sphi 0, %s157
      %s175 = sphi 0, %s175
      %s177 = sphi 0, %s175
      %s178 = sphi 0, %s177
      %s192 = sphi 0, %s178
      %s196 = sphi 0, %s196
      %s198 = sphi 0, %s196
      %s199 = sphi 0, %s198
      %s213 = sphi 0, %s199
      %s221 = sphi 0, %s223
      %s224 = sphi 0, %s221
      %s225 = sphi 0, %s224
      %s241 = sphi 0, %s225
    $region4: #{custom_transformer_forward.7} parent=1 // loop_header_branch
      %20 = sbr.rel (%p18) target = $region8
    $region5: #{custom_transformer_forward.7} parent=1 // loop_body
      %s22 = ssub.s32 %s17, 1
      %s23 = ssub.s32 %s17, 2
      %s30 = sadd.s32 1, %s25
      %p31 = scmp.ge.s32.totalorder %s30, 1
      %s32 = scalar_select %p31, 0, %s30
      %s33 = sadd.s32 1, %s24
      %s34 = scalar_select %p31, %s33, %s24
      %p35 = scmp.ge.s32.totalorder %s34, 2
      %s36 = scalar_select %p35, 0, %s34
      %s37 = ssub.s32 %s24, %s36
      %s38 = ssub.s32 %s25, %s32
      %s39 = sor.u32 %s37, %s38
      %p40 = scmp.eq.s32.totalorder %s39, 0
      %s42 = sadd.s32 %s41, 1
      %s43 = scalar_select %p40, %s41, %s42
      %p46 = pneg %p40
      %p47 = scmp.eq.s32.totalorder %s17, 1
      %p48 = por %p46, %p47
      %p49 = scmp.ne.s32.totalorder %s41, %s44
      %p50 = scmp.eq.s32.totalorder %s17, 0
      %p51 = por %p49, %p50
      %p52 = scmp.ne.s32.totalorder %s41, %s44
      %p53 = scmp.eq.s32.totalorder %s22, 1
      %p54 = por %p52, %p53
      %p55 = scmp.ne.s32.totalorder %s44, %s45
      %p56 = scmp.eq.s32.totalorder %s22, 0
      %p57 = por %p55, %p56
      %p58 = scmp.ne.s32.totalorder %s44, %s45
      %p59 = scmp.eq.s32.totalorder %s23, 1
      %p60 = por %p58, %p59
      %p62 = scmp.ne.s32.totalorder %s45, %s61
      %p63 = scmp.eq.s32.totalorder %s23, 0
      %p64 = por %p62, %p63
      %s65 = ssub.s32 %s24, %s36
      %p66 = scmp.eq.s32.totalorder %s65, 0
      %s68 = sadd.s32 %s67, 1
      %s69 = scalar_select %p66, %s67, %s68
      %p72 = pneg %p66
      %p73 = scmp.eq.s32.totalorder %s17, 1
      %p74 = por %p72, %p73
      %p75 = scmp.ne.s32.totalorder %s67, %s70
      %p76 = scmp.eq.s32.totalorder %s17, 0
      %p77 = por %p75, %p76
      %p78 = scmp.ne.s32.totalorder %s67, %s70
      %p79 = scmp.eq.s32.totalorder %s22, 1
      %p80 = por %p78, %p79
      %p81 = scmp.ne.s32.totalorder %s70, %s71
      %p82 = scmp.eq.s32.totalorder %s22, 0
      %p83 = por %p81, %p82
      %p84 = scmp.ne.s32.totalorder %s70, %s71
      %p85 = scmp.eq.s32.totalorder %s23, 1
      %p86 = por %p84, %p85
      %p88 = scmp.ne.s32.totalorder %s71, %s87
      %p89 = scmp.eq.s32.totalorder %s23, 0
      %p90 = por %p88, %p89
      %s92 = sadd.s32 %s91, 1
      %p95 = scmp.eq.s32.totalorder %s17, 1
      %p96 = scmp.ne.s32.totalorder %s91, %s93
      %p97 = scmp.eq.s32.totalorder %s17, 0
      %p98 = por %p96, %p97
      %p99 = scmp.ne.s32.totalorder %s91, %s93
      %p100 = scmp.eq.s32.totalorder %s22, 1
      %p101 = por %p99, %p100
      %p102 = scmp.ne.s32.totalorder %s93, %s94
      %p103 = scmp.eq.s32.totalorder %s22, 0
      %p104 = por %p102, %p103
      %p105 = scmp.ne.s32.totalorder %s93, %s94
      %p106 = scmp.eq.s32.totalorder %s23, 1
      %p107 = por %p105, %p106
      %p109 = scmp.ne.s32.totalorder %s94, %s108
      %p110 = scmp.eq.s32.totalorder %s23, 0
      %p111 = por %p109, %p110
      %s113 = sadd.s32 %s112, 1
      %p116 = scmp.eq.s32.totalorder %s17, 1
      %p117 = scmp.ne.s32.totalorder %s112, %s114
      %p118 = scmp.eq.s32.totalorder %s17, 0
      %p119 = por %p117, %p118
      %p120 = scmp.ne.s32.totalorder %s112, %s114
      %p121 = scmp.eq.s32.totalorder %s22, 1
      %p122 = por %p120, %p121
      %p123 = scmp.ne.s32.totalorder %s114, %s115
      %p124 = scmp.eq.s32.totalorder %s22, 0
      %p125 = por %p123, %p124
      %p126 = scmp.ne.s32.totalorder %s114, %s115
      %p127 = scmp.eq.s32.totalorder %s23, 1
      %p128 = por %p126, %p127
      %p130 = scmp.ne.s32.totalorder %s115, %s129
      %p131 = scmp.eq.s32.totalorder %s23, 0
      %p132 = por %p130, %p131
      %s134 = sadd.s32 %s133, 1
      %p137 = scmp.eq.s32.totalorder %s17, 1
      %p138 = scmp.ne.s32.totalorder %s133, %s135
      %p139 = scmp.eq.s32.totalorder %s17, 0
      %p140 = por %p138, %p139
      %p141 = scmp.ne.s32.totalorder %s133, %s135
      %p142 = scmp.eq.s32.totalorder %s22, 1
      %p143 = por %p141, %p142
      %p144 = scmp.ne.s32.totalorder %s135, %s136
      %p145 = scmp.eq.s32.totalorder %s22, 0
      %p146 = por %p144, %p145
      %p147 = scmp.ne.s32.totalorder %s135, %s136
      %p148 = scmp.eq.s32.totalorder %s23, 1
      %p149 = por %p147, %p148
      %p151 = scmp.ne.s32.totalorder %s136, %s150
      %p152 = scmp.eq.s32.totalorder %s23, 0
      %p153 = por %p151, %p152
      %s155 = sadd.s32 %s154, 1
      %p158 = scmp.eq.s32.totalorder %s17, 1
      %p159 = scmp.ne.s32.totalorder %s154, %s156
      %p160 = scmp.eq.s32.totalorder %s17, 0
      %p161 = por %p159, %p160
      %p162 = scmp.ne.s32.totalorder %s154, %s156
      %p163 = scmp.eq.s32.totalorder %s22, 1
      %p164 = por %p162, %p163
      %p165 = scmp.ne.s32.totalorder %s156, %s157
      %p166 = scmp.eq.s32.totalorder %s22, 0
      %p167 = por %p165, %p166
      %p168 = scmp.ne.s32.totalorder %s156, %s157
      %p169 = scmp.eq.s32.totalorder %s23, 1
      %p170 = por %p168, %p169
      %p172 = scmp.ne.s32.totalorder %s157, %s171
      %p173 = scmp.eq.s32.totalorder %s23, 0
      %p174 = por %p172, %p173
      %s176 = sadd.s32 %s175, 1
      %p179 = scmp.eq.s32.totalorder %s17, 1
      %p180 = scmp.ne.s32.totalorder %s175, %s177
      %p181 = scmp.eq.s32.totalorder %s17, 0
      %p182 = por %p180, %p181
      %p183 = scmp.ne.s32.totalorder %s175, %s177
      %p184 = scmp.eq.s32.totalorder %s22, 1
      %p185 = por %p183, %p184
      %p186 = scmp.ne.s32.totalorder %s177, %s178
      %p187 = scmp.eq.s32.totalorder %s22, 0
      %p188 = por %p186, %p187
      %p189 = scmp.ne.s32.totalorder %s177, %s178
      %p190 = scmp.eq.s32.totalorder %s23, 1
      %p191 = por %p189, %p190
      %p193 = scmp.ne.s32.totalorder %s178, %s192
      %p194 = scmp.eq.s32.totalorder %s23, 0
      %p195 = por %p193, %p194
      %s197 = sadd.s32 %s196, 1
      %p200 = scmp.eq.s32.totalorder %s17, 1
      %p201 = scmp.ne.s32.totalorder %s196, %s198
      %p202 = scmp.eq.s32.totalorder %s17, 0
      %p203 = por %p201, %p202
      %p204 = scmp.ne.s32.totalorder %s196, %s198
      %p205 = scmp.eq.s32.totalorder %s22, 1
      %p206 = por %p204, %p205
      %p207 = scmp.ne.s32.totalorder %s198, %s199
      %p208 = scmp.eq.s32.totalorder %s22, 0
      %p209 = por %p207, %p208
      %p210 = scmp.ne.s32.totalorder %s198, %s199
      %p211 = scmp.eq.s32.totalorder %s23, 1
      %p212 = por %p210, %p211
      %p214 = scmp.ne.s32.totalorder %s199, %s213
      %p215 = scmp.eq.s32.totalorder %s23, 0
      %p216 = por %p214, %p215
      %s217 = ssub.s32 %s24, %s36
      %s218 = ssub.s32 %s25, %s32
      %s219 = sor.u32 %s217, %s218
      %p220 = scmp.eq.s32.totalorder %s219, 0
      %s222 = sadd.s32 %s221, 1
      %s223 = scalar_select %p220, %s221, %s222
      %p226 = pneg %p220
      %p227 = scmp.eq.s32.totalorder %s17, 1
      %p228 = por %p226, %p227
      %p229 = scmp.ne.s32.totalorder %s221, %s224
      %p230 = scmp.eq.s32.totalorder %s17, 0
      %p231 = por %p229, %p230
      %p232 = scmp.ne.s32.totalorder %s221, %s224
      %p233 = scmp.eq.s32.totalorder %s22, 1
      %p234 = por %p232, %p233
      %p235 = scmp.ne.s32.totalorder %s224, %s225
      %p236 = scmp.eq.s32.totalorder %s22, 0
      %p237 = por %p235, %p236
      %p238 = scmp.ne.s32.totalorder %s224, %s225
      %p239 = scmp.eq.s32.totalorder %s23, 1
      %p240 = por %p238, %p239
      %p242 = scmp.ne.s32.totalorder %s225, %s241
      %p243 = scmp.eq.s32.totalorder %s23, 0
      %p244 = por %p242, %p243
      %p245 = scmp.le.s32.totalorder 1, %s17
      %p246 = scmp.lt.s32.totalorder %s17, 3
      %p247 = pnand %p245, %p246
      %p248 = pneg %p247
      // Predicated region
      $region9: #{custom_transformer_forward.7} parent=5 // pred_check
        _
      $region10: #{custom_transformer_forward.7} parent=5 // pred_check_branch
        %250 = sbr.rel (%p247) target = $region12
      $region11: #{custom_transformer_forward.7} parent=5 // pred_region
        %s251 = ssub.s32 %s17, 1
        // Predicated region
        $region13: #{custom_transformer_forward.7} parent=11 // pred_check
          %p252 = pneg %p104
        $region14: #{custom_transformer_forward.7} parent=11 // pred_check_branch
          %254 = sbr.rel (%p252) target = $region16
        $region15: #{custom_transformer_forward.7} parent=11 // pred_region
          %s256 = ssub.s32 8192, 8192
          %257 = vsyncadd [#allocation3], %s256
          %s258 = sshll.u32 [#allocation2], 4
          %s259 = int_to_ptr.vmem [resolvable:$true] %s258
          %264 = dma.hbm_to_vmem [thread:$0]  %s2, 8192, %s259, [#allocation3], 512, 512, 32
        $region16: #{custom_transformer_forward.7} parent=11 // pred_fallthru
          _
        // Predicated region
        $region17: #{custom_transformer_forward.7} parent=11 // pred_check
          %p265 = pneg %p125
        $region18: #{custom_transformer_forward.7} parent=11 // pred_check_branch
          %267 = sbr.rel (%p265) target = $region20
        $region19: #{custom_transformer_forward.7} parent=11 // pred_region
          %s269 = ssub.s32 128, 128
          %270 = vsyncadd [#allocation5], %s269
          %s272 = sshll.u32 [#allocation4], 4
          %s273 = int_to_ptr.vmem [resolvable:$true] %s272
          %275 = dma.hbm_to_vmem [thread:$0]  %s3, 128, %s273, [#allocation5]
        $region20: #{custom_transformer_forward.7} parent=11 // pred_fallthru
          _
        // Predicated region
        $region21: #{custom_transformer_forward.7} parent=11 // pred_check
          %p276 = pneg %p146
        $region22: #{custom_transformer_forward.7} parent=11 // pred_check_branch
          %278 = sbr.rel (%p276) target = $region24
        $region23: #{custom_transformer_forward.7} parent=11 // pred_region
          %s280 = ssub.s32 8192, 8192
          %281 = vsyncadd [#allocation5], %s280
          %s282 = sshll.u32 [#allocation6], 4
          %s283 = int_to_ptr.vmem [resolvable:$true] %s282
          %288 = dma.hbm_to_vmem [thread:$0]  %s4, 8192, %s283, [#allocation5], 512, 512, 32
        $region24: #{custom_transformer_forward.7} parent=11 // pred_fallthru
          _
        // Predicated region
        $region25: #{custom_transformer_forward.7} parent=11 // pred_check
          %p289 = pneg %p167
        $region26: #{custom_transformer_forward.7} parent=11 // pred_check_branch
          %291 = sbr.rel (%p289) target = $region28
        $region27: #{custom_transformer_forward.7} parent=11 // pred_region
          %s293 = ssub.s32 16, 16
          %294 = vsyncadd [#allocation8], %s293
          %s296 = sshll.u32 [#allocation7], 4
          %s297 = int_to_ptr.vmem [resolvable:$true] %s296
          %299 = dma.hbm_to_vmem [thread:$0]  %s5, 16, %s297, [#allocation8]
        $region28: #{custom_transformer_forward.7} parent=11 // pred_fallthru
          _
        // Predicated region
        $region29: #{custom_transformer_forward.7} parent=11 // pred_check
          %p300 = pneg %p188
        $region30: #{custom_transformer_forward.7} parent=11 // pred_check_branch
          %302 = sbr.rel (%p300) target = $region32
        $region31: #{custom_transformer_forward.7} parent=11 // pred_region
          _
        $region32: #{custom_transformer_forward.7} parent=11 // pred_fallthru
          _
        // Predicated region
        $region33: #{custom_transformer_forward.7} parent=11 // pred_check
          %p303 = pneg %p209
        $region34: #{custom_transformer_forward.7} parent=11 // pred_check_branch
          %305 = sbr.rel (%p303) target = $region36
        $region35: #{custom_transformer_forward.7} parent=11 // pred_region
          _
        $region36: #{custom_transformer_forward.7} parent=11 // pred_fallthru
          _
      $region12: #{custom_transformer_forward.7} parent=5 // pred_fallthru
        _
      %p306 = scmp.lt.s32.totalorder %s17, 2
      // Predicated region
      $region37: #{custom_transformer_forward.7} parent=5 // pred_check
        %p307 = pneg %p306
      $region38: #{custom_transformer_forward.7} parent=5 // pred_check_branch
        %309 = sbr.rel (%p307) target = $region40
      $region39: #{custom_transformer_forward.7} parent=5 // pred_region
        // Predicated region
        $region41: #{custom_transformer_forward.7} parent=39 // pred_check
          %p310 = pneg %p51
        $region42: #{custom_transformer_forward.7} parent=39 // pred_check_branch
          %312 = sbr.rel (%p310) target = $region44
        $region43: #{custom_transformer_forward.7} parent=39 // pred_region
          %p313 = scmp.lt.s32.totalorder %s24, 1
          %s314 = scalar_select %p313, %s24, 1
          %p315 = scmp.lt.s32.totalorder %s25, 0
          %s316 = scalar_select %p315, %s25, 0
          %s317 = sadd.s32 %s316, %s314
          %s318 = smul.addr %s317, 4
          %s319 = scalar_lea.vmem %s0, %s318
        $region44: #{custom_transformer_forward.7} parent=39 // pred_fallthru
          _
        // Predicated region
        $region45: #{custom_transformer_forward.7} parent=39 // pred_check
          %p320 = pneg %p77
        $region46: #{custom_transformer_forward.7} parent=39 // pred_check_branch
          %322 = sbr.rel (%p320) target = $region48
        $region47: #{custom_transformer_forward.7} parent=39 // pred_region
          %p323 = scmp.lt.s32.totalorder %s24, 1
          %s324 = scalar_select %p323, %s24, 1
          %s325 = smul.addr %s324, 4
          %s326 = scalar_lea.vmem %s1, %s325
        $region48: #{custom_transformer_forward.7} parent=39 // pred_fallthru
          _
      $region40: #{custom_transformer_forward.7} parent=5 // pred_fallthru
        _
      %p327 = scmp.le.s32.totalorder 1, %s17
      %p328 = scmp.lt.s32.totalorder %s17, 3
      %p329 = pnand %p327, %p328
      %p330 = pneg %p329
      // Predicated region
      $region49: #{custom_transformer_forward.7} parent=5 // pred_check
        _
      $region50: #{custom_transformer_forward.7} parent=5 // pred_check_branch
        %332 = sbr.rel (%p329) target = $region52
      $region51: #{custom_transformer_forward.7} parent=5 // pred_region
        %s333 = ssub.s32 %s17, 1
        // Predicated region
        $region53: #{custom_transformer_forward.7} parent=51 // pred_check
          %p334 = pneg %p104
        $region54: #{custom_transformer_forward.7} parent=51 // pred_check_branch
          %336 = sbr.rel (%p334) target = $region56
        $region55: #{custom_transformer_forward.7} parent=51 // pred_region
          %337 = dma.done [#allocation3], 8192
        $region56: #{custom_transformer_forward.7} parent=51 // pred_fallthru
          _
        // Predicated region
        $region57: #{custom_transformer_forward.7} parent=51 // pred_check
          %p338 = pneg %p125
        $region58: #{custom_transformer_forward.7} parent=51 // pred_check_branch
          %340 = sbr.rel (%p338) target = $region60
        $region59: #{custom_transformer_forward.7} parent=51 // pred_region
          %341 = dma.done [#allocation5], 128
        $region60: #{custom_transformer_forward.7} parent=51 // pred_fallthru
          _
        // Predicated region
        $region61: #{custom_transformer_forward.7} parent=51 // pred_check
          %p342 = pneg %p146
        $region62: #{custom_transformer_forward.7} parent=51 // pred_check_branch
          %344 = sbr.rel (%p342) target = $region64
        $region63: #{custom_transformer_forward.7} parent=51 // pred_region
          %345 = dma.done [#allocation5], 8192
        $region64: #{custom_transformer_forward.7} parent=51 // pred_fallthru
          _
        // Predicated region
        $region65: #{custom_transformer_forward.7} parent=51 // pred_check
          %p346 = pneg %p167
        $region66: #{custom_transformer_forward.7} parent=51 // pred_check_branch
          %348 = sbr.rel (%p346) target = $region68
        $region67: #{custom_transformer_forward.7} parent=51 // pred_region
          %349 = dma.done [#allocation8], 16
        $region68: #{custom_transformer_forward.7} parent=51 // pred_fallthru
          _
        %p350 = scmp.lt.s32.totalorder %s26, 1
        %s351 = scalar_select %p350, %s26, 1
        %p352 = scmp.lt.s32.totalorder %s27, 0
        %s353 = scalar_select %p352, %s27, 0
        %s354 = sadd.s32 %s353, %s351
        %s355 = smul.addr %s354, 4
        %s356 = scalar_lea.vmem %s0, %s355
        %p357 = pneg %p57
        %p358 = pneg %p54
        %p359 = scmp.lt.s32.totalorder %s26, 1
        %s360 = scalar_select %p359, %s26, 1
        %s361 = smul.addr %s360, 4
        %s362 = scalar_lea.vmem %s1, %s361
        %p363 = pneg %p83
        %p364 = pneg %p80
        %p365 = pneg %p104
        %p366 = pneg %p101
        %p367 = pneg %p125
        %p368 = pneg %p122
        %p369 = pneg %p146
        %p370 = pneg %p143
        %p371 = pneg %p167
        %p372 = pneg %p164
        %p373 = pneg %p188
        %p374 = pneg %p185
        %p375 = pneg %p209
        %p376 = pneg %p206
        %p377 = pneg %p237
        %p378 = pneg %p234
        %p379 = scmp.lt.s32.totalorder %s26, 1
        %s380 = scalar_select %p379, %s26, 1
        %p381 = scmp.lt.s32.totalorder %s27, 0
        %s382 = scalar_select %p381, %s27, 0
        %s383 = sadd.s32 %s382, %s380
        %s384 = smul.addr %s383, 4
        %s385 = scalar_lea.vmem %s8, %s384
        %p386 = scmp.lt.s32.totalorder %s26, 1
        %s387 = scalar_select %p386, %s26, 1
        %p388 = scmp.lt.s32.totalorder %s27, 0
        %s389 = scalar_select %p388, %s27, 0
        %s390 = sadd.s32 %s389, %s387
        %s391 = smul.addr %s390, 4
        %s392 = scalar_lea.vmem %s0, %s391
        %p393 = scmp.lt.s32.totalorder %s26, 1
        %s394 = scalar_select %p393, %s26, 1
        %s395 = smul.addr %s394, 4
        %s396 = scalar_lea.vmem %s1, %s395
        %p397 = scmp.lt.s32.totalorder %s26, 1
        %s398 = scalar_select %p397, %s26, 1
        %p399 = scmp.lt.s32.totalorder %s27, 0
        %s400 = scalar_select %p399, %s27, 0
        %s401 = sadd.s32 %s400, %s398
        %s402 = smul.addr %s401, 4
        %s403 = scalar_lea.vmem %s8, %s402
        %v405 = vld [vmem:[%s392] sm:$0xf]
        %v406 = vld [vmem:[%s396] sm:$0xf]
        %v407 = vld [vmem:[#allocation2] sm:$0xff]
        %v408 = vld [vmem:[#allocation2 + $0x8] sm:$0xff]
        %v409 = vld [vmem:[#allocation2 + $0x10] sm:$0xff]
        %v410 = vld [vmem:[#allocation2 + $0x18] sm:$0xff]
        %v411 = vld [vmem:[#allocation2 + $0x20] sm:$0xff]
        %v412 = vld [vmem:[#allocation2 + $0x28] sm:$0xff]
        %v413 = vld [vmem:[#allocation2 + $0x30] sm:$0xff]
        %v414 = vld [vmem:[#allocation2 + $0x38] sm:$0xff]
        %v415 = vld [vmem:[#allocation2 + $0x40] sm:$0xff]
        %v416 = vld [vmem:[#allocation2 + $0x48] sm:$0xff]
        %v417 = vld [vmem:[#allocation2 + $0x50] sm:$0xff]
        %v418 = vld [vmem:[#allocation2 + $0x58] sm:$0xff]
        %v419 = vld [vmem:[#allocation2 + $0x60] sm:$0xff]
        %v420 = vld [vmem:[#allocation2 + $0x68] sm:$0xff]
        %v421 = vld [vmem:[#allocation2 + $0x70] sm:$0xff]
        %v422 = vld [vmem:[#allocation2 + $0x78] sm:$0xff]
        %v423 = vld [vmem:[#allocation2 + $0x80] sm:$0xff]
        %v424 = vld [vmem:[#allocation2 + $0x88] sm:$0xff]
        %v425 = vld [vmem:[#allocation2 + $0x90] sm:$0xff]
        %v426 = vld [vmem:[#allocation2 + $0x98] sm:$0xff]
        %v427 = vld [vmem:[#allocation2 + $0xa0] sm:$0xff]
        %v428 = vld [vmem:[#allocation2 + $0xa8] sm:$0xff]
        %v429 = vld [vmem:[#allocation2 + $0xb0] sm:$0xff]
        %v430 = vld [vmem:[#allocation2 + $0xb8] sm:$0xff]
        %v431 = vld [vmem:[#allocation2 + $0xc0] sm:$0xff]
        %v432 = vld [vmem:[#allocation2 + $0xc8] sm:$0xff]
        %v433 = vld [vmem:[#allocation2 + $0xd0] sm:$0xff]
        %v434 = vld [vmem:[#allocation2 + $0xd8] sm:$0xff]
        %v435 = vld [vmem:[#allocation2 + $0xe0] sm:$0xff]
        %v436 = vld [vmem:[#allocation2 + $0xe8] sm:$0xff]
        %v437 = vld [vmem:[#allocation2 + $0xf0] sm:$0xff]
        %v438 = vld [vmem:[#allocation2 + $0xf8] sm:$0xff]
        %v439 = vld [vmem:[#allocation2 + $0x100] sm:$0xff]
        %v440 = vld [vmem:[#allocation2 + $0x108] sm:$0xff]
        %v441 = vld [vmem:[#allocation2 + $0x110] sm:$0xff]
        %v442 = vld [vmem:[#allocation2 + $0x118] sm:$0xff]
        %v443 = vld [vmem:[#allocation2 + $0x120] sm:$0xff]
        %v444 = vld [vmem:[#allocation2 + $0x128] sm:$0xff]
        %v445 = vld [vmem:[#allocation2 + $0x130] sm:$0xff]
        %v446 = vld [vmem:[#allocation2 + $0x138] sm:$0xff]
        %v447 = vld [vmem:[#allocation2 + $0x140] sm:$0xff]
        %v448 = vld [vmem:[#allocation2 + $0x148] sm:$0xff]
        %v449 = vld [vmem:[#allocation2 + $0x150] sm:$0xff]
        %v450 = vld [vmem:[#allocation2 + $0x158] sm:$0xff]
        %v451 = vld [vmem:[#allocation2 + $0x160] sm:$0xff]
        %v452 = vld [vmem:[#allocation2 + $0x168] sm:$0xff]
        %v453 = vld [vmem:[#allocation2 + $0x170] sm:$0xff]
        %v454 = vld [vmem:[#allocation2 + $0x178] sm:$0xff]
        %v455 = vld [vmem:[#allocation2 + $0x180] sm:$0xff]
        %v456 = vld [vmem:[#allocation2 + $0x188] sm:$0xff]
        %v457 = vld [vmem:[#allocation2 + $0x190] sm:$0xff]
        %v458 = vld [vmem:[#allocation2 + $0x198] sm:$0xff]
        %v459 = vld [vmem:[#allocation2 + $0x1a0] sm:$0xff]
        %v460 = vld [vmem:[#allocation2 + $0x1a8] sm:$0xff]
        %v461 = vld [vmem:[#allocation2 + $0x1b0] sm:$0xff]
        %v462 = vld [vmem:[#allocation2 + $0x1b8] sm:$0xff]
        %v463 = vld [vmem:[#allocation2 + $0x1c0] sm:$0xff]
        %v464 = vld [vmem:[#allocation2 + $0x1c8] sm:$0xff]
        %v465 = vld [vmem:[#allocation2 + $0x1d0] sm:$0xff]
        %v466 = vld [vmem:[#allocation2 + $0x1d8] sm:$0xff]
        %v467 = vld [vmem:[#allocation2 + $0x1e0] sm:$0xff]
        %v468 = vld [vmem:[#allocation2 + $0x1e8] sm:$0xff]
        %v469 = vld [vmem:[#allocation2 + $0x1f0] sm:$0xff]
        %v470 = vld [vmem:[#allocation2 + $0x1f8] sm:$0xff]
        %v471 = vld [vmem:[#allocation4] sm:$0xff]
        %v473 = vlaneseq
        %v474 = vshrl.u32 %v473, 7
        %v475 = vsub.s32 0, %v474
        %v476 = vrot.slane %v471, %v475
        %v477 = vlaneseq
        %v478 = vshrl.u32 %v477, 7
        %v479 = vsub.s32 1, %v478
        %v480 = vrot.slane %v471, %v479
        %v481 = vlaneseq
        %v482 = vshrl.u32 %v481, 7
        %v483 = vsub.s32 2, %v482
        %v484 = vrot.slane %v471, %v483
        %v485 = vlaneseq
        %v486 = vshrl.u32 %v485, 7
        %v487 = vsub.s32 3, %v486
        %v488 = vrot.slane %v471, %v487
        %v489 = vlaneseq
        %v490 = vshrl.u32 %v489, 7
        %v491 = vsub.s32 4, %v490
        %v492 = vrot.slane %v471, %v491
        %v493 = vlaneseq
        %v494 = vshrl.u32 %v493, 7
        %v495 = vsub.s32 5, %v494
        %v496 = vrot.slane %v471, %v495
        %v497 = vlaneseq
        %v498 = vshrl.u32 %v497, 7
        %v499 = vsub.s32 6, %v498
        %v500 = vrot.slane %v471, %v499
        %v501 = vlaneseq
        %v502 = vshrl.u32 %v501, 7
        %v503 = vsub.s32 7, %v502
        %v504 = vrot.slane %v471, %v503
        %v577 = vunpack.c.l.b16 %v407
        %v578 = vunpack.c.h.b16 %v407
        %v579 = vunpack.c.l.b16 %v408
        %v580 = vunpack.c.h.b16 %v408
        %v581 = vunpack.c.l.b16 %v409
        %v582 = vunpack.c.h.b16 %v409
        %v583 = vunpack.c.l.b16 %v410
        %v584 = vunpack.c.h.b16 %v410
        %v585 = vunpack.c.l.b16 %v411
        %v586 = vunpack.c.h.b16 %v411
        %v587 = vunpack.c.l.b16 %v412
        %v588 = vunpack.c.h.b16 %v412
        %v589 = vunpack.c.l.b16 %v413
        %v590 = vunpack.c.h.b16 %v413
        %v591 = vunpack.c.l.b16 %v414
        %v592 = vunpack.c.h.b16 %v414
        %v593 = vunpack.c.l.b16 %v415
        %v594 = vunpack.c.h.b16 %v415
        %v595 = vunpack.c.l.b16 %v416
        %v596 = vunpack.c.h.b16 %v416
        %v597 = vunpack.c.l.b16 %v417
        %v598 = vunpack.c.h.b16 %v417
        %v599 = vunpack.c.l.b16 %v418
        %v600 = vunpack.c.h.b16 %v418
        %v601 = vunpack.c.l.b16 %v419
        %v602 = vunpack.c.h.b16 %v419
        %v603 = vunpack.c.l.b16 %v420
        %v604 = vunpack.c.h.b16 %v420
        %v605 = vunpack.c.l.b16 %v421
        %v606 = vunpack.c.h.b16 %v421
        %v607 = vunpack.c.l.b16 %v422
        %v608 = vunpack.c.h.b16 %v422
        %v609 = vunpack.c.l.b16 %v423
        %v610 = vunpack.c.h.b16 %v423
        %v611 = vunpack.c.l.b16 %v424
        %v612 = vunpack.c.h.b16 %v424
        %v613 = vunpack.c.l.b16 %v425
        %v614 = vunpack.c.h.b16 %v425
        %v615 = vunpack.c.l.b16 %v426
        %v616 = vunpack.c.h.b16 %v426
        %v617 = vunpack.c.l.b16 %v427
        %v618 = vunpack.c.h.b16 %v427
        %v619 = vunpack.c.l.b16 %v428
        %v620 = vunpack.c.h.b16 %v428
        %v621 = vunpack.c.l.b16 %v429
        %v622 = vunpack.c.h.b16 %v429
        %v623 = vunpack.c.l.b16 %v430
        %v624 = vunpack.c.h.b16 %v430
        %v625 = vunpack.c.l.b16 %v431
        %v626 = vunpack.c.h.b16 %v431
        %v627 = vunpack.c.l.b16 %v432
        %v628 = vunpack.c.h.b16 %v432
        %v629 = vunpack.c.l.b16 %v433
        %v630 = vunpack.c.h.b16 %v433
        %v631 = vunpack.c.l.b16 %v434
        %v632 = vunpack.c.h.b16 %v434
        %v633 = vunpack.c.l.b16 %v435
        %v634 = vunpack.c.h.b16 %v435
        %v635 = vunpack.c.l.b16 %v436
        %v636 = vunpack.c.h.b16 %v436
        %v637 = vunpack.c.l.b16 %v437
        %v638 = vunpack.c.h.b16 %v437
        %v639 = vunpack.c.l.b16 %v438
        %v640 = vunpack.c.h.b16 %v438
        %v641 = vunpack.c.l.b16 %v439
        %v642 = vunpack.c.h.b16 %v439
        %v643 = vunpack.c.l.b16 %v440
        %v644 = vunpack.c.h.b16 %v440
        %v645 = vunpack.c.l.b16 %v441
        %v646 = vunpack.c.h.b16 %v441
        %v647 = vunpack.c.l.b16 %v442
        %v648 = vunpack.c.h.b16 %v442
        %v649 = vunpack.c.l.b16 %v443
        %v650 = vunpack.c.h.b16 %v443
        %v651 = vunpack.c.l.b16 %v444
        %v652 = vunpack.c.h.b16 %v444
        %v653 = vunpack.c.l.b16 %v445
        %v654 = vunpack.c.h.b16 %v445
        %v655 = vunpack.c.l.b16 %v446
        %v656 = vunpack.c.h.b16 %v446
        %v657 = vunpack.c.l.b16 %v447
        %v658 = vunpack.c.h.b16 %v447
        %v659 = vunpack.c.l.b16 %v448
        %v660 = vunpack.c.h.b16 %v448
        %v661 = vunpack.c.l.b16 %v449
        %v662 = vunpack.c.h.b16 %v449
        %v663 = vunpack.c.l.b16 %v450
        %v664 = vunpack.c.h.b16 %v450
        %v665 = vunpack.c.l.b16 %v451
        %v666 = vunpack.c.h.b16 %v451
        %v667 = vunpack.c.l.b16 %v452
        %v668 = vunpack.c.h.b16 %v452
        %v669 = vunpack.c.l.b16 %v453
        %v670 = vunpack.c.h.b16 %v453
        %v671 = vunpack.c.l.b16 %v454
        %v672 = vunpack.c.h.b16 %v454
        %v673 = vunpack.c.l.b16 %v455
        %v674 = vunpack.c.h.b16 %v455
        %v675 = vunpack.c.l.b16 %v456
        %v676 = vunpack.c.h.b16 %v456
        %v677 = vunpack.c.l.b16 %v457
        %v678 = vunpack.c.h.b16 %v457
        %v679 = vunpack.c.l.b16 %v458
        %v680 = vunpack.c.h.b16 %v458
        %v681 = vunpack.c.l.b16 %v459
        %v682 = vunpack.c.h.b16 %v459
        %v683 = vunpack.c.l.b16 %v460
        %v684 = vunpack.c.h.b16 %v460
        %v685 = vunpack.c.l.b16 %v461
        %v686 = vunpack.c.h.b16 %v461
        %v687 = vunpack.c.l.b16 %v462
        %v688 = vunpack.c.h.b16 %v462
        %v689 = vunpack.c.l.b16 %v463
        %v690 = vunpack.c.h.b16 %v463
        %v691 = vunpack.c.l.b16 %v464
        %v692 = vunpack.c.h.b16 %v464
        %v693 = vunpack.c.l.b16 %v465
        %v694 = vunpack.c.h.b16 %v465
        %v695 = vunpack.c.l.b16 %v466
        %v696 = vunpack.c.h.b16 %v466
        %v697 = vunpack.c.l.b16 %v467
        %v698 = vunpack.c.h.b16 %v467
        %v699 = vunpack.c.l.b16 %v468
        %v700 = vunpack.c.h.b16 %v468
        %v701 = vunpack.c.l.b16 %v469
        %v702 = vunpack.c.h.b16 %v469
        %v703 = vunpack.c.l.b16 %v470
        %v704 = vunpack.c.h.b16 %v470
        %v705 = vpack.c.b16 %v585, %v577
        %v706 = vpack.c.b16 %v586, %v578
        %v707 = vpack.c.b16 %v587, %v579
        %v708 = vpack.c.b16 %v588, %v580
        %v709 = vpack.c.b16 %v589, %v581
        %v710 = vpack.c.b16 %v590, %v582
        %v711 = vpack.c.b16 %v591, %v583
        %v712 = vpack.c.b16 %v592, %v584
        %v713 = vpack.c.b16 %v601, %v593
        %v714 = vpack.c.b16 %v602, %v594
        %v715 = vpack.c.b16 %v603, %v595
        %v716 = vpack.c.b16 %v604, %v596
        %v717 = vpack.c.b16 %v605, %v597
        %v718 = vpack.c.b16 %v606, %v598
        %v719 = vpack.c.b16 %v607, %v599
        %v720 = vpack.c.b16 %v608, %v600
        %v721 = vpack.c.b16 %v617, %v609
        %v722 = vpack.c.b16 %v618, %v610
        %v723 = vpack.c.b16 %v619, %v611
        %v724 = vpack.c.b16 %v620, %v612
        %v725 = vpack.c.b16 %v621, %v613
        %v726 = vpack.c.b16 %v622, %v614
        %v727 = vpack.c.b16 %v623, %v615
        %v728 = vpack.c.b16 %v624, %v616
        %v729 = vpack.c.b16 %v633, %v625
        %v730 = vpack.c.b16 %v634, %v626
        %v731 = vpack.c.b16 %v635, %v627
        %v732 = vpack.c.b16 %v636, %v628
        %v733 = vpack.c.b16 %v637, %v629
        %v734 = vpack.c.b16 %v638, %v630
        %v735 = vpack.c.b16 %v639, %v631
        %v736 = vpack.c.b16 %v640, %v632
        %v737 = vpack.c.b16 %v649, %v641
        %v738 = vpack.c.b16 %v650, %v642
        %v739 = vpack.c.b16 %v651, %v643
        %v740 = vpack.c.b16 %v652, %v644
        %v741 = vpack.c.b16 %v653, %v645
        %v742 = vpack.c.b16 %v654, %v646
        %v743 = vpack.c.b16 %v655, %v647
        %v744 = vpack.c.b16 %v656, %v648
        %v745 = vpack.c.b16 %v665, %v657
        %v746 = vpack.c.b16 %v666, %v658
        %v747 = vpack.c.b16 %v667, %v659
        %v748 = vpack.c.b16 %v668, %v660
        %v749 = vpack.c.b16 %v669, %v661
        %v750 = vpack.c.b16 %v670, %v662
        %v751 = vpack.c.b16 %v671, %v663
        %v752 = vpack.c.b16 %v672, %v664
        %v753 = vpack.c.b16 %v681, %v673
        %v754 = vpack.c.b16 %v682, %v674
        %v755 = vpack.c.b16 %v683, %v675
        %v756 = vpack.c.b16 %v684, %v676
        %v757 = vpack.c.b16 %v685, %v677
        %v758 = vpack.c.b16 %v686, %v678
        %v759 = vpack.c.b16 %v687, %v679
        %v760 = vpack.c.b16 %v688, %v680
        %v761 = vpack.c.b16 %v697, %v689
        %v762 = vpack.c.b16 %v698, %v690
        %v763 = vpack.c.b16 %v699, %v691
        %v764 = vpack.c.b16 %v700, %v692
        %v765 = vpack.c.b16 %v701, %v693
        %v766 = vpack.c.b16 %v702, %v694
        %v767 = vpack.c.b16 %v703, %v695
        %v768 = vpack.c.b16 %v704, %v696
        %833 = vmatprep.subr.bf16.mxu0 %v762
        %834 = vmatpush1.bf16.msra.mxu0 %v761
        %835 = vmatprep.subr.bf16.mxu0 %v754
        %836 = vmatpush1.bf16.msra.mxu0 %v753
        %837 = vmatprep.subr.bf16.mxu0 %v746
        %838 = vmatpush1.bf16.msra.mxu0 %v745
        %839 = vmatprep.subr.bf16.mxu0 %v738
        %840 = vmatpush1.bf16.msra.mxu0 %v737
        %841 = vmatprep.subr.bf16.mxu0 %v730
        %842 = vmatpush1.bf16.msra.mxu0 %v729
        %843 = vmatprep.subr.bf16.mxu0 %v722
        %844 = vmatpush1.bf16.msra.mxu0 %v721
        %845 = vmatprep.subr.bf16.mxu0 %v714
        %846 = vmatpush1.bf16.msra.mxu0 %v713
        %847 = vmatprep.subr.bf16.mxu0 %v706
        %848 = vmatpush1.bf16.msra.mxu0 %v705
        %849 = vmatprep.subr.bf16.mxu0 0
        %850 = vmatpush2.bf16.msra.mxu0 0
        %851 = vmatprep.subr.bf16.mxu0 0
        %852 = vmatpush2.bf16.msra.mxu0 0
        %853 = vmatprep.subr.bf16.mxu0 0
        %854 = vmatpush2.bf16.msra.mxu0 0
        %855 = vmatprep.subr.bf16.mxu0 0
        %856 = vmatpush2.bf16.msra.mxu0 0
        %857 = vmatprep.subr.bf16.mxu0 0
        %858 = vmatpush2.bf16.msra.mxu0 0
        %859 = vmatprep.subr.bf16.mxu0 0
        %860 = vmatpush2.bf16.msra.mxu0 0
        %861 = vmatprep.subr.bf16.mxu0 0
        %862 = vmatpush2.bf16.msra.mxu0 0
        %863 = vmatprep.subr.bf16.mxu0 0
        %864 = vmatpush2.bf16.msra.mxu0 0
        %865 = vmatprep.mubr.bf16.mxu0 0
        %866 = vmatmul.mubr.bf16.gmra.mxu0 %v405
        %v867 = vpop.f32.mrf.mxu0
        %v868 = vadd.f32 %v476, %v867
        %v869 = vpop.f32.mrf.mxu0
        %v870 = vadd.f32 %v480, %v869
        %v871 = vpop.f32.mrf.mxu0
        %v872 = vpop.f32.mrf.mxu0
        %873 = vdwg.mxu0
        %874 = vmatprep.subr.bf16.mxu0 %v764
        %875 = vmatpush1.bf16.msra.mxu0 %v763
        %876 = vmatprep.subr.bf16.mxu0 %v756
        %877 = vmatpush1.bf16.msra.mxu0 %v755
        %878 = vmatprep.subr.bf16.mxu0 %v748
        %879 = vmatpush1.bf16.msra.mxu0 %v747
        %880 = vmatprep.subr.bf16.mxu0 %v740
        %881 = vmatpush1.bf16.msra.mxu0 %v739
        %882 = vmatprep.subr.bf16.mxu0 %v732
        %883 = vmatpush1.bf16.msra.mxu0 %v731
        %884 = vmatprep.subr.bf16.mxu0 %v724
        %885 = vmatpush1.bf16.msra.mxu0 %v723
        %886 = vmatprep.subr.bf16.mxu0 %v716
        %887 = vmatpush1.bf16.msra.mxu0 %v715
        %888 = vmatprep.subr.bf16.mxu0 %v708
        %889 = vmatpush1.bf16.msra.mxu0 %v707
        %890 = vmatprep.subr.bf16.mxu0 0
        %891 = vmatpush2.bf16.msra.mxu0 0
        %892 = vmatprep.subr.bf16.mxu0 0
        %893 = vmatpush2.bf16.msra.mxu0 0
        %894 = vmatprep.subr.bf16.mxu0 0
        %895 = vmatpush2.bf16.msra.mxu0 0
        %896 = vmatprep.subr.bf16.mxu0 0
        %897 = vmatpush2.bf16.msra.mxu0 0
        %898 = vmatprep.subr.bf16.mxu0 0
        %899 = vmatpush2.bf16.msra.mxu0 0
        %900 = vmatprep.subr.bf16.mxu0 0
        %901 = vmatpush2.bf16.msra.mxu0 0
        %902 = vmatprep.subr.bf16.mxu0 0
        %903 = vmatpush2.bf16.msra.mxu0 0
        %904 = vmatprep.subr.bf16.mxu0 0
        %905 = vmatpush2.bf16.msra.mxu0 0
        %906 = vmatprep.mubr.bf16.mxu0 0
        %907 = vmatmul.mubr.bf16.gmra.mxu0 %v405
        %v908 = vpop.f32.mrf.mxu0
        %v909 = vadd.f32 %v484, %v908
        %v910 = vpop.f32.mrf.mxu0
        %v911 = vadd.f32 %v488, %v910
        %v912 = vpop.f32.mrf.mxu0
        %v913 = vpop.f32.mrf.mxu0
        %914 = vdwg.mxu0
        %915 = vmatprep.subr.bf16.mxu0 %v766
        %916 = vmatpush1.bf16.msra.mxu0 %v765
        %917 = vmatprep.subr.bf16.mxu0 %v758
        %918 = vmatpush1.bf16.msra.mxu0 %v757
        %919 = vmatprep.subr.bf16.mxu0 %v750
        %920 = vmatpush1.bf16.msra.mxu0 %v749
        %921 = vmatprep.subr.bf16.mxu0 %v742
        %922 = vmatpush1.bf16.msra.mxu0 %v741
        %923 = vmatprep.subr.bf16.mxu0 %v734
        %924 = vmatpush1.bf16.msra.mxu0 %v733
        %925 = vmatprep.subr.bf16.mxu0 %v726
        %926 = vmatpush1.bf16.msra.mxu0 %v725
        %927 = vmatprep.subr.bf16.mxu0 %v718
        %928 = vmatpush1.bf16.msra.mxu0 %v717
        %929 = vmatprep.subr.bf16.mxu0 %v710
        %930 = vmatpush1.bf16.msra.mxu0 %v709
        %931 = vmatprep.subr.bf16.mxu0 0
        %932 = vmatpush2.bf16.msra.mxu0 0
        %933 = vmatprep.subr.bf16.mxu0 0
        %934 = vmatpush2.bf16.msra.mxu0 0
        %935 = vmatprep.subr.bf16.mxu0 0
        %936 = vmatpush2.bf16.msra.mxu0 0
        %937 = vmatprep.subr.bf16.mxu0 0
        %938 = vmatpush2.bf16.msra.mxu0 0
        %939 = vmatprep.subr.bf16.mxu0 0
        %940 = vmatpush2.bf16.msra.mxu0 0
        %941 = vmatprep.subr.bf16.mxu0 0
        %942 = vmatpush2.bf16.msra.mxu0 0
        %943 = vmatprep.subr.bf16.mxu0 0
        %944 = vmatpush2.bf16.msra.mxu0 0
        %945 = vmatprep.subr.bf16.mxu0 0
        %946 = vmatpush2.bf16.msra.mxu0 0
        %947 = vmatprep.mubr.bf16.mxu0 0
        %948 = vmatmul.mubr.bf16.gmra.mxu0 %v405
        %v949 = vpop.f32.mrf.mxu0
        %v950 = vadd.f32 %v492, %v949
        %v951 = vpop.f32.mrf.mxu0
        %v952 = vadd.f32 %v496, %v951
        %v953 = vpop.f32.mrf.mxu0
        %v954 = vpop.f32.mrf.mxu0
        %955 = vdwg.mxu0
        %956 = vmatprep.subr.bf16.mxu0 %v768
        %957 = vmatpush1.bf16.msra.mxu0 %v767
        %958 = vmatprep.subr.bf16.mxu0 %v760
        %959 = vmatpush1.bf16.msra.mxu0 %v759
        %960 = vmatprep.subr.bf16.mxu0 %v752
        %961 = vmatpush1.bf16.msra.mxu0 %v751
        %962 = vmatprep.subr.bf16.mxu0 %v744
        %963 = vmatpush1.bf16.msra.mxu0 %v743
        %964 = vmatprep.subr.bf16.mxu0 %v736
        %965 = vmatpush1.bf16.msra.mxu0 %v735
        %966 = vmatprep.subr.bf16.mxu0 %v728
        %967 = vmatpush1.bf16.msra.mxu0 %v727
        %968 = vmatprep.subr.bf16.mxu0 %v720
        %969 = vmatpush1.bf16.msra.mxu0 %v719
        %970 = vmatprep.subr.bf16.mxu0 %v712
        %971 = vmatpush1.bf16.msra.mxu0 %v711
        %972 = vmatprep.subr.bf16.mxu0 0
        %973 = vmatpush2.bf16.msra.mxu0 0
        %974 = vmatprep.subr.bf16.mxu0 0
        %975 = vmatpush2.bf16.msra.mxu0 0
        %976 = vmatprep.subr.bf16.mxu0 0
        %977 = vmatpush2.bf16.msra.mxu0 0
        %978 = vmatprep.subr.bf16.mxu0 0
        %979 = vmatpush2.bf16.msra.mxu0 0
        %980 = vmatprep.subr.bf16.mxu0 0
        %981 = vmatpush2.bf16.msra.mxu0 0
        %982 = vmatprep.subr.bf16.mxu0 0
        %983 = vmatpush2.bf16.msra.mxu0 0
        %984 = vmatprep.subr.bf16.mxu0 0
        %985 = vmatpush2.bf16.msra.mxu0 0
        %986 = vmatprep.subr.bf16.mxu0 0
        %987 = vmatpush2.bf16.msra.mxu0 0
        %988 = vmatprep.mubr.bf16.mxu0 0
        %989 = vmatmul.mubr.bf16.gmra.mxu0 %v405
        %v990 = vpop.f32.mrf.mxu0
        %v991 = vadd.f32 %v500, %v990
        %v992 = vpop.f32.mrf.mxu0
        %v993 = vadd.f32 %v504, %v992
        %v994 = vpop.f32.mrf.mxu0
        %v995 = vpop.f32.mrf.mxu0
        %996 = vdwg.mxu0
        %v997 = vpack.c.bf16 %v868, %v868
        %v998 = vpack.c.bf16 %v870, %v870
        %v999 = vpack.c.bf16 %v909, %v909
        %v1000 = vpack.c.bf16 %v911, %v911
        %v1001 = vpack.c.bf16 %v950, %v950
        %v1002 = vpack.c.bf16 %v952, %v952
        %v1003 = vpack.c.bf16 %v991, %v991
        %v1004 = vpack.c.bf16 %v993, %v993
        %v1005 = vld [vmem:[#allocation6] sm:$0xff]
        %v1006 = vld [vmem:[#allocation6 + $0x8] sm:$0xff]
        %v1007 = vld [vmem:[#allocation6 + $0x10] sm:$0xff]
        %v1008 = vld [vmem:[#allocation6 + $0x18] sm:$0xff]
        %v1009 = vld [vmem:[#allocation6 + $0x20] sm:$0xff]
        %v1010 = vld [vmem:[#allocation6 + $0x28] sm:$0xff]
        %v1011 = vld [vmem:[#allocation6 + $0x30] sm:$0xff]
        %v1012 = vld [vmem:[#allocation6 + $0x38] sm:$0xff]
        %v1013 = vld [vmem:[#allocation6 + $0x40] sm:$0xff]
        %v1014 = vld [vmem:[#allocation6 + $0x48] sm:$0xff]
        %v1015 = vld [vmem:[#allocation6 + $0x50] sm:$0xff]
        %v1016 = vld [vmem:[#allocation6 + $0x58] sm:$0xff]
        %v1017 = vld [vmem:[#allocation6 + $0x60] sm:$0xff]
        %v1018 = vld [vmem:[#allocation6 + $0x68] sm:$0xff]
        %v1019 = vld [vmem:[#allocation6 + $0x70] sm:$0xff]
        %v1020 = vld [vmem:[#allocation6 + $0x78] sm:$0xff]
        %v1021 = vld [vmem:[#allocation6 + $0x80] sm:$0xff]
        %v1022 = vld [vmem:[#allocation6 + $0x88] sm:$0xff]
        %v1023 = vld [vmem:[#allocation6 + $0x90] sm:$0xff]
        %v1024 = vld [vmem:[#allocation6 + $0x98] sm:$0xff]
        %v1025 = vld [vmem:[#allocation6 + $0xa0] sm:$0xff]
        %v1026 = vld [vmem:[#allocation6 + $0xa8] sm:$0xff]
        %v1027 = vld [vmem:[#allocation6 + $0xb0] sm:$0xff]
        %v1028 = vld [vmem:[#allocation6 + $0xb8] sm:$0xff]
        %v1029 = vld [vmem:[#allocation6 + $0xc0] sm:$0xff]
        %v1030 = vld [vmem:[#allocation6 + $0xc8] sm:$0xff]
        %v1031 = vld [vmem:[#allocation6 + $0xd0] sm:$0xff]
        %v1032 = vld [vmem:[#allocation6 + $0xd8] sm:$0xff]
        %v1033 = vld [vmem:[#allocation6 + $0xe0] sm:$0xff]
        %v1034 = vld [vmem:[#allocation6 + $0xe8] sm:$0xff]
        %v1035 = vld [vmem:[#allocation6 + $0xf0] sm:$0xff]
        %v1036 = vld [vmem:[#allocation6 + $0xf8] sm:$0xff]
        %v1037 = vld [vmem:[#allocation6 + $0x100] sm:$0xff]
        %v1038 = vld [vmem:[#allocation6 + $0x108] sm:$0xff]
        %v1039 = vld [vmem:[#allocation6 + $0x110] sm:$0xff]
        %v1040 = vld [vmem:[#allocation6 + $0x118] sm:$0xff]
        %v1041 = vld [vmem:[#allocation6 + $0x120] sm:$0xff]
        %v1042 = vld [vmem:[#allocation6 + $0x128] sm:$0xff]
        %v1043 = vld [vmem:[#allocation6 + $0x130] sm:$0xff]
        %v1044 = vld [vmem:[#allocation6 + $0x138] sm:$0xff]
        %v1045 = vld [vmem:[#allocation6 + $0x140] sm:$0xff]
        %v1046 = vld [vmem:[#allocation6 + $0x148] sm:$0xff]
        %v1047 = vld [vmem:[#allocation6 + $0x150] sm:$0xff]
        %v1048 = vld [vmem:[#allocation6 + $0x158] sm:$0xff]
        %v1049 = vld [vmem:[#allocation6 + $0x160] sm:$0xff]
        %v1050 = vld [vmem:[#allocation6 + $0x168] sm:$0xff]
        %v1051 = vld [vmem:[#allocation6 + $0x170] sm:$0xff]
        %v1052 = vld [vmem:[#allocation6 + $0x178] sm:$0xff]
        %v1053 = vld [vmem:[#allocation6 + $0x180] sm:$0xff]
        %v1054 = vld [vmem:[#allocation6 + $0x188] sm:$0xff]
        %v1055 = vld [vmem:[#allocation6 + $0x190] sm:$0xff]
        %v1056 = vld [vmem:[#allocation6 + $0x198] sm:$0xff]
        %v1057 = vld [vmem:[#allocation6 + $0x1a0] sm:$0xff]
        %v1058 = vld [vmem:[#allocation6 + $0x1a8] sm:$0xff]
        %v1059 = vld [vmem:[#allocation6 + $0x1b0] sm:$0xff]
        %v1060 = vld [vmem:[#allocation6 + $0x1b8] sm:$0xff]
        %v1061 = vld [vmem:[#allocation6 + $0x1c0] sm:$0xff]
        %v1062 = vld [vmem:[#allocation6 + $0x1c8] sm:$0xff]
        %v1063 = vld [vmem:[#allocation6 + $0x1d0] sm:$0xff]
        %v1064 = vld [vmem:[#allocation6 + $0x1d8] sm:$0xff]
        %v1065 = vld [vmem:[#allocation6 + $0x1e0] sm:$0xff]
        %v1066 = vld [vmem:[#allocation6 + $0x1e8] sm:$0xff]
        %v1067 = vld [vmem:[#allocation6 + $0x1f0] sm:$0xff]
        %v1068 = vld [vmem:[#allocation6 + $0x1f8] sm:$0xff]
        %v1133 = vunpack.c.l.b16 %v1005
        %v1134 = vunpack.c.h.b16 %v1005
        %v1135 = vunpack.c.l.b16 %v1006
        %v1136 = vunpack.c.h.b16 %v1006
        %v1137 = vunpack.c.l.b16 %v1007
        %v1138 = vunpack.c.h.b16 %v1007
        %v1139 = vunpack.c.l.b16 %v1008
        %v1140 = vunpack.c.h.b16 %v1008
        %v1141 = vunpack.c.l.b16 %v1009
        %v1142 = vunpack.c.h.b16 %v1009
        %v1143 = vunpack.c.l.b16 %v1010
        %v1144 = vunpack.c.h.b16 %v1010
        %v1145 = vunpack.c.l.b16 %v1011
        %v1146 = vunpack.c.h.b16 %v1011
        %v1147 = vunpack.c.l.b16 %v1012
        %v1148 = vunpack.c.h.b16 %v1012
        %v1149 = vunpack.c.l.b16 %v1013
        %v1150 = vunpack.c.h.b16 %v1013
        %v1151 = vunpack.c.l.b16 %v1014
        %v1152 = vunpack.c.h.b16 %v1014
        %v1153 = vunpack.c.l.b16 %v1015
        %v1154 = vunpack.c.h.b16 %v1015
        %v1155 = vunpack.c.l.b16 %v1016
        %v1156 = vunpack.c.h.b16 %v1016
        %v1157 = vunpack.c.l.b16 %v1017
        %v1158 = vunpack.c.h.b16 %v1017
        %v1159 = vunpack.c.l.b16 %v1018
        %v1160 = vunpack.c.h.b16 %v1018
        %v1161 = vunpack.c.l.b16 %v1019
        %v1162 = vunpack.c.h.b16 %v1019
        %v1163 = vunpack.c.l.b16 %v1020
        %v1164 = vunpack.c.h.b16 %v1020
        %v1165 = vunpack.c.l.b16 %v1021
        %v1166 = vunpack.c.h.b16 %v1021
        %v1167 = vunpack.c.l.b16 %v1022
        %v1168 = vunpack.c.h.b16 %v1022
        %v1169 = vunpack.c.l.b16 %v1023
        %v1170 = vunpack.c.h.b16 %v1023
        %v1171 = vunpack.c.l.b16 %v1024
        %v1172 = vunpack.c.h.b16 %v1024
        %v1173 = vunpack.c.l.b16 %v1025
        %v1174 = vunpack.c.h.b16 %v1025
        %v1175 = vunpack.c.l.b16 %v1026
        %v1176 = vunpack.c.h.b16 %v1026
        %v1177 = vunpack.c.l.b16 %v1027
        %v1178 = vunpack.c.h.b16 %v1027
        %v1179 = vunpack.c.l.b16 %v1028
        %v1180 = vunpack.c.h.b16 %v1028
        %v1181 = vunpack.c.l.b16 %v1029
        %v1182 = vunpack.c.h.b16 %v1029
        %v1183 = vunpack.c.l.b16 %v1030
        %v1184 = vunpack.c.h.b16 %v1030
        %v1185 = vunpack.c.l.b16 %v1031
        %v1186 = vunpack.c.h.b16 %v1031
        %v1187 = vunpack.c.l.b16 %v1032
        %v1188 = vunpack.c.h.b16 %v1032
        %v1189 = vunpack.c.l.b16 %v1033
        %v1190 = vunpack.c.h.b16 %v1033
        %v1191 = vunpack.c.l.b16 %v1034
        %v1192 = vunpack.c.h.b16 %v1034
        %v1193 = vunpack.c.l.b16 %v1035
        %v1194 = vunpack.c.h.b16 %v1035
        %v1195 = vunpack.c.l.b16 %v1036
        %v1196 = vunpack.c.h.b16 %v1036
        %v1197 = vunpack.c.l.b16 %v1037
        %v1198 = vunpack.c.h.b16 %v1037
        %v1199 = vunpack.c.l.b16 %v1038
        %v1200 = vunpack.c.h.b16 %v1038
        %v1201 = vunpack.c.l.b16 %v1039
        %v1202 = vunpack.c.h.b16 %v1039
        %v1203 = vunpack.c.l.b16 %v1040
        %v1204 = vunpack.c.h.b16 %v1040
        %v1205 = vunpack.c.l.b16 %v1041
        %v1206 = vunpack.c.h.b16 %v1041
        %v1207 = vunpack.c.l.b16 %v1042
        %v1208 = vunpack.c.h.b16 %v1042
        %v1209 = vunpack.c.l.b16 %v1043
        %v1210 = vunpack.c.h.b16 %v1043
        %v1211 = vunpack.c.l.b16 %v1044
        %v1212 = vunpack.c.h.b16 %v1044
        %v1213 = vunpack.c.l.b16 %v1045
        %v1214 = vunpack.c.h.b16 %v1045
        %v1215 = vunpack.c.l.b16 %v1046
        %v1216 = vunpack.c.h.b16 %v1046
        %v1217 = vunpack.c.l.b16 %v1047
        %v1218 = vunpack.c.h.b16 %v1047
        %v1219 = vunpack.c.l.b16 %v1048
        %v1220 = vunpack.c.h.b16 %v1048
        %v1221 = vunpack.c.l.b16 %v1049
        %v1222 = vunpack.c.h.b16 %v1049
        %v1223 = vunpack.c.l.b16 %v1050
        %v1224 = vunpack.c.h.b16 %v1050
        %v1225 = vunpack.c.l.b16 %v1051
        %v1226 = vunpack.c.h.b16 %v1051
        %v1227 = vunpack.c.l.b16 %v1052
        %v1228 = vunpack.c.h.b16 %v1052
        %v1229 = vunpack.c.l.b16 %v1053
        %v1230 = vunpack.c.h.b16 %v1053
        %v1231 = vunpack.c.l.b16 %v1054
        %v1232 = vunpack.c.h.b16 %v1054
        %v1233 = vunpack.c.l.b16 %v1055
        %v1234 = vunpack.c.h.b16 %v1055
        %v1235 = vunpack.c.l.b16 %v1056
        %v1236 = vunpack.c.h.b16 %v1056
        %v1237 = vunpack.c.l.b16 %v1057
        %v1238 = vunpack.c.h.b16 %v1057
        %v1239 = vunpack.c.l.b16 %v1058
        %v1240 = vunpack.c.h.b16 %v1058
        %v1241 = vunpack.c.l.b16 %v1059
        %v1242 = vunpack.c.h.b16 %v1059
        %v1243 = vunpack.c.l.b16 %v1060
        %v1244 = vunpack.c.h.b16 %v1060
        %v1245 = vunpack.c.l.b16 %v1061
        %v1246 = vunpack.c.h.b16 %v1061
        %v1247 = vunpack.c.l.b16 %v1062
        %v1248 = vunpack.c.h.b16 %v1062
        %v1249 = vunpack.c.l.b16 %v1063
        %v1250 = vunpack.c.h.b16 %v1063
        %v1251 = vunpack.c.l.b16 %v1064
        %v1252 = vunpack.c.h.b16 %v1064
        %v1253 = vunpack.c.l.b16 %v1065
        %v1254 = vunpack.c.h.b16 %v1065
        %v1255 = vunpack.c.l.b16 %v1066
        %v1256 = vunpack.c.h.b16 %v1066
        %v1257 = vunpack.c.l.b16 %v1067
        %v1258 = vunpack.c.h.b16 %v1067
        %v1259 = vunpack.c.l.b16 %v1068
        %v1260 = vunpack.c.h.b16 %v1068
        %v1261 = vpack.c.b16 %v1141, %v1133
        %v1262 = vpack.c.b16 %v1142, %v1134
        %v1263 = vpack.c.b16 %v1143, %v1135
        %v1264 = vpack.c.b16 %v1144, %v1136
        %v1265 = vpack.c.b16 %v1145, %v1137
        %v1266 = vpack.c.b16 %v1146, %v1138
        %v1267 = vpack.c.b16 %v1147, %v1139
        %v1268 = vpack.c.b16 %v1148, %v1140
        %v1269 = vpack.c.b16 %v1157, %v1149
        %v1270 = vpack.c.b16 %v1158, %v1150
        %v1271 = vpack.c.b16 %v1159, %v1151
        %v1272 = vpack.c.b16 %v1160, %v1152
        %v1273 = vpack.c.b16 %v1161, %v1153
        %v1274 = vpack.c.b16 %v1162, %v1154
        %v1275 = vpack.c.b16 %v1163, %v1155
        %v1276 = vpack.c.b16 %v1164, %v1156
        %v1277 = vpack.c.b16 %v1173, %v1165
        %v1278 = vpack.c.b16 %v1174, %v1166
        %v1279 = vpack.c.b16 %v1175, %v1167
        %v1280 = vpack.c.b16 %v1176, %v1168
        %v1281 = vpack.c.b16 %v1177, %v1169
        %v1282 = vpack.c.b16 %v1178, %v1170
        %v1283 = vpack.c.b16 %v1179, %v1171
        %v1284 = vpack.c.b16 %v1180, %v1172
        %v1285 = vpack.c.b16 %v1189, %v1181
        %v1286 = vpack.c.b16 %v1190, %v1182
        %v1287 = vpack.c.b16 %v1191, %v1183
        %v1288 = vpack.c.b16 %v1192, %v1184
        %v1289 = vpack.c.b16 %v1193, %v1185
        %v1290 = vpack.c.b16 %v1194, %v1186
        %v1291 = vpack.c.b16 %v1195, %v1187
        %v1292 = vpack.c.b16 %v1196, %v1188
        %v1293 = vpack.c.b16 %v1205, %v1197
        %v1294 = vpack.c.b16 %v1206, %v1198
        %v1295 = vpack.c.b16 %v1207, %v1199
        %v1296 = vpack.c.b16 %v1208, %v1200
        %v1297 = vpack.c.b16 %v1209, %v1201
        %v1298 = vpack.c.b16 %v1210, %v1202
        %v1299 = vpack.c.b16 %v1211, %v1203
        %v1300 = vpack.c.b16 %v1212, %v1204
        %v1301 = vpack.c.b16 %v1221, %v1213
        %v1302 = vpack.c.b16 %v1222, %v1214
        %v1303 = vpack.c.b16 %v1223, %v1215
        %v1304 = vpack.c.b16 %v1224, %v1216
        %v1305 = vpack.c.b16 %v1225, %v1217
        %v1306 = vpack.c.b16 %v1226, %v1218
        %v1307 = vpack.c.b16 %v1227, %v1219
        %v1308 = vpack.c.b16 %v1228, %v1220
        %v1309 = vpack.c.b16 %v1237, %v1229
        %v1310 = vpack.c.b16 %v1238, %v1230
        %v1311 = vpack.c.b16 %v1239, %v1231
        %v1312 = vpack.c.b16 %v1240, %v1232
        %v1313 = vpack.c.b16 %v1241, %v1233
        %v1314 = vpack.c.b16 %v1242, %v1234
        %v1315 = vpack.c.b16 %v1243, %v1235
        %v1316 = vpack.c.b16 %v1244, %v1236
        %v1317 = vpack.c.b16 %v1253, %v1245
        %v1318 = vpack.c.b16 %v1254, %v1246
        %v1319 = vpack.c.b16 %v1255, %v1247
        %v1320 = vpack.c.b16 %v1256, %v1248
        %v1321 = vpack.c.b16 %v1257, %v1249
        %v1322 = vpack.c.b16 %v1258, %v1250
        %v1323 = vpack.c.b16 %v1259, %v1251
        %v1324 = vpack.c.b16 %v1260, %v1252
        %1389 = vmatprep.subr.bf16.mxu0 %v1318
        %1390 = vmatpush1.bf16.msra.mxu0 %v1317
        %1391 = vmatprep.subr.bf16.mxu0 %v1310
        %1392 = vmatpush1.bf16.msra.mxu0 %v1309
        %1393 = vmatprep.subr.bf16.mxu0 %v1302
        %1394 = vmatpush1.bf16.msra.mxu0 %v1301
        %1395 = vmatprep.subr.bf16.mxu0 %v1294
        %1396 = vmatpush1.bf16.msra.mxu0 %v1293
        %1397 = vmatprep.subr.bf16.mxu0 %v1286
        %1398 = vmatpush1.bf16.msra.mxu0 %v1285
        %1399 = vmatprep.subr.bf16.mxu0 %v1278
        %1400 = vmatpush1.bf16.msra.mxu0 %v1277
        %1401 = vmatprep.subr.bf16.mxu0 %v1270
        %1402 = vmatpush1.bf16.msra.mxu0 %v1269
        %1403 = vmatprep.subr.bf16.mxu0 %v1262
        %1404 = vmatpush1.bf16.msra.mxu0 %v1261
        %1405 = vmatprep.subr.bf16.mxu0 0
        %1406 = vmatpush2.bf16.msra.mxu0 0
        %1407 = vmatprep.subr.bf16.mxu0 0
        %1408 = vmatpush2.bf16.msra.mxu0 0
        %1409 = vmatprep.subr.bf16.mxu0 0
        %1410 = vmatpush2.bf16.msra.mxu0 0
        %1411 = vmatprep.subr.bf16.mxu0 0
        %1412 = vmatpush2.bf16.msra.mxu0 0
        %1413 = vmatprep.subr.bf16.mxu0 0
        %1414 = vmatpush2.bf16.msra.mxu0 0
        %1415 = vmatprep.subr.bf16.mxu0 0
        %1416 = vmatpush2.bf16.msra.mxu0 0
        %1417 = vmatprep.subr.bf16.mxu0 0
        %1418 = vmatpush2.bf16.msra.mxu0 0
        %1419 = vmatprep.subr.bf16.mxu0 0
        %1420 = vmatpush2.bf16.msra.mxu0 0
        %1421 = vmatprep.mubr.bf16.mxu0 0
        %1422 = vmatmul.mubr.bf16.gmra.mxu0 %v406
        %v1423 = vpop.f32.mrf.mxu0
        %v1424 = vadd.f32 0.0, %v1423
        %v1425 = vpop.f32.mrf.mxu0
        %v1426 = vadd.f32 0.0, %v1425
        %v1427 = vpop.f32.mrf.mxu0
        %v1428 = vpop.f32.mrf.mxu0
        %1429 = vdwg.mxu0
        %1430 = vmatprep.subr.bf16.mxu0 %v1320
        %1431 = vmatpush1.bf16.msra.mxu0 %v1319
        %1432 = vmatprep.subr.bf16.mxu0 %v1312
        %1433 = vmatpush1.bf16.msra.mxu0 %v1311
        %1434 = vmatprep.subr.bf16.mxu0 %v1304
        %1435 = vmatpush1.bf16.msra.mxu0 %v1303
        %1436 = vmatprep.subr.bf16.mxu0 %v1296
        %1437 = vmatpush1.bf16.msra.mxu0 %v1295
        %1438 = vmatprep.subr.bf16.mxu0 %v1288
        %1439 = vmatpush1.bf16.msra.mxu0 %v1287
        %1440 = vmatprep.subr.bf16.mxu0 %v1280
        %1441 = vmatpush1.bf16.msra.mxu0 %v1279
        %1442 = vmatprep.subr.bf16.mxu0 %v1272
        %1443 = vmatpush1.bf16.msra.mxu0 %v1271
        %1444 = vmatprep.subr.bf16.mxu0 %v1264
        %1445 = vmatpush1.bf16.msra.mxu0 %v1263
        %1446 = vmatprep.subr.bf16.mxu0 0
        %1447 = vmatpush2.bf16.msra.mxu0 0
        %1448 = vmatprep.subr.bf16.mxu0 0
        %1449 = vmatpush2.bf16.msra.mxu0 0
        %1450 = vmatprep.subr.bf16.mxu0 0
        %1451 = vmatpush2.bf16.msra.mxu0 0
        %1452 = vmatprep.subr.bf16.mxu0 0
        %1453 = vmatpush2.bf16.msra.mxu0 0
        %1454 = vmatprep.subr.bf16.mxu0 0
        %1455 = vmatpush2.bf16.msra.mxu0 0
        %1456 = vmatprep.subr.bf16.mxu0 0
        %1457 = vmatpush2.bf16.msra.mxu0 0
        %1458 = vmatprep.subr.bf16.mxu0 0
        %1459 = vmatpush2.bf16.msra.mxu0 0
        %1460 = vmatprep.subr.bf16.mxu0 0
        %1461 = vmatpush2.bf16.msra.mxu0 0
        %1462 = vmatprep.mubr.bf16.mxu0 0
        %1463 = vmatmul.mubr.bf16.gmra.mxu0 %v406
        %v1464 = vpop.f32.mrf.mxu0
        %v1465 = vadd.f32 0.0, %v1464
        %v1466 = vpop.f32.mrf.mxu0
        %v1467 = vadd.f32 0.0, %v1466
        %v1468 = vpop.f32.mrf.mxu0
        %v1469 = vpop.f32.mrf.mxu0
        %1470 = vdwg.mxu0
        %1471 = vmatprep.subr.bf16.mxu0 %v1322
        %1472 = vmatpush1.bf16.msra.mxu0 %v1321
        %1473 = vmatprep.subr.bf16.mxu0 %v1314
        %1474 = vmatpush1.bf16.msra.mxu0 %v1313
        %1475 = vmatprep.subr.bf16.mxu0 %v1306
        %1476 = vmatpush1.bf16.msra.mxu0 %v1305
        %1477 = vmatprep.subr.bf16.mxu0 %v1298
        %1478 = vmatpush1.bf16.msra.mxu0 %v1297
        %1479 = vmatprep.subr.bf16.mxu0 %v1290
        %1480 = vmatpush1.bf16.msra.mxu0 %v1289
        %1481 = vmatprep.subr.bf16.mxu0 %v1282
        %1482 = vmatpush1.bf16.msra.mxu0 %v1281
        %1483 = vmatprep.subr.bf16.mxu0 %v1274
        %1484 = vmatpush1.bf16.msra.mxu0 %v1273
        %1485 = vmatprep.subr.bf16.mxu0 %v1266
        %1486 = vmatpush1.bf16.msra.mxu0 %v1265
        %1487 = vmatprep.subr.bf16.mxu0 0
        %1488 = vmatpush2.bf16.msra.mxu0 0
        %1489 = vmatprep.subr.bf16.mxu0 0
        %1490 = vmatpush2.bf16.msra.mxu0 0
        %1491 = vmatprep.subr.bf16.mxu0 0
        %1492 = vmatpush2.bf16.msra.mxu0 0
        %1493 = vmatprep.subr.bf16.mxu0 0
        %1494 = vmatpush2.bf16.msra.mxu0 0
        %1495 = vmatprep.subr.bf16.mxu0 0
        %1496 = vmatpush2.bf16.msra.mxu0 0
        %1497 = vmatprep.subr.bf16.mxu0 0
        %1498 = vmatpush2.bf16.msra.mxu0 0
        %1499 = vmatprep.subr.bf16.mxu0 0
        %1500 = vmatpush2.bf16.msra.mxu0 0
        %1501 = vmatprep.subr.bf16.mxu0 0
        %1502 = vmatpush2.bf16.msra.mxu0 0
        %1503 = vmatprep.mubr.bf16.mxu0 0
        %1504 = vmatmul.mubr.bf16.gmra.mxu0 %v406
        %v1505 = vpop.f32.mrf.mxu0
        %v1506 = vadd.f32 0.0, %v1505
        %v1507 = vpop.f32.mrf.mxu0
        %v1508 = vadd.f32 0.0, %v1507
        %v1509 = vpop.f32.mrf.mxu0
        %v1510 = vpop.f32.mrf.mxu0
        %1511 = vdwg.mxu0
        %1512 = vmatprep.subr.bf16.mxu0 %v1324
        %1513 = vmatpush1.bf16.msra.mxu0 %v1323
        %1514 = vmatprep.subr.bf16.mxu0 %v1316
        %1515 = vmatpush1.bf16.msra.mxu0 %v1315
        %1516 = vmatprep.subr.bf16.mxu0 %v1308
        %1517 = vmatpush1.bf16.msra.mxu0 %v1307
        %1518 = vmatprep.subr.bf16.mxu0 %v1300
        %1519 = vmatpush1.bf16.msra.mxu0 %v1299
        %1520 = vmatprep.subr.bf16.mxu0 %v1292
        %1521 = vmatpush1.bf16.msra.mxu0 %v1291
        %1522 = vmatprep.subr.bf16.mxu0 %v1284
        %1523 = vmatpush1.bf16.msra.mxu0 %v1283
        %1524 = vmatprep.subr.bf16.mxu0 %v1276
        %1525 = vmatpush1.bf16.msra.mxu0 %v1275
        %1526 = vmatprep.subr.bf16.mxu0 %v1268
        %1527 = vmatpush1.bf16.msra.mxu0 %v1267
        %1528 = vmatprep.subr.bf16.mxu0 0
        %1529 = vmatpush2.bf16.msra.mxu0 0
        %1530 = vmatprep.subr.bf16.mxu0 0
        %1531 = vmatpush2.bf16.msra.mxu0 0
        %1532 = vmatprep.subr.bf16.mxu0 0
        %1533 = vmatpush2.bf16.msra.mxu0 0
        %1534 = vmatprep.subr.bf16.mxu0 0
        %1535 = vmatpush2.bf16.msra.mxu0 0
        %1536 = vmatprep.subr.bf16.mxu0 0
        %1537 = vmatpush2.bf16.msra.mxu0 0
        %1538 = vmatprep.subr.bf16.mxu0 0
        %1539 = vmatpush2.bf16.msra.mxu0 0
        %1540 = vmatprep.subr.bf16.mxu0 0
        %1541 = vmatpush2.bf16.msra.mxu0 0
        %1542 = vmatprep.subr.bf16.mxu0 0
        %1543 = vmatpush2.bf16.msra.mxu0 0
        %1544 = vmatprep.mubr.bf16.mxu0 0
        %1545 = vmatmul.mubr.bf16.gmra.mxu0 %v406
        %v1546 = vpop.f32.mrf.mxu0
        %v1547 = vadd.f32 0.0, %v1546
        %v1548 = vpop.f32.mrf.mxu0
        %v1549 = vadd.f32 0.0, %v1548
        %v1550 = vpop.f32.mrf.mxu0
        %v1551 = vpop.f32.mrf.mxu0
        %1552 = vdwg.mxu0
        %v1553 = vpack.c.bf16 %v1424, %v1424
        %v1554 = vpack.c.bf16 %v1426, %v1426
        %v1555 = vpack.c.bf16 %v1465, %v1465
        %v1556 = vpack.c.bf16 %v1467, %v1467
        %v1557 = vpack.c.bf16 %v1506, %v1506
        %v1558 = vpack.c.bf16 %v1508, %v1508
        %v1559 = vpack.c.bf16 %v1547, %v1547
        %v1560 = vpack.c.bf16 %v1549, %v1549
        %1561 = vmatprep.subr.bf16.mxu0 0
        %1562 = vmatpush1.bf16.xpose.msra.mxu0 0
        %1563 = vmatprep.subr.bf16.mxu0 0
        %1564 = vmatpush1.bf16.xpose.msra.mxu0 0
        %1565 = vmatprep.subr.bf16.mxu0 0
        %1566 = vmatpush1.bf16.xpose.msra.mxu0 0
        %1567 = vmatprep.subr.bf16.mxu0 0
        %1568 = vmatpush1.bf16.xpose.msra.mxu0 0
        %1569 = vmatprep.subr.bf16.mxu0 0
        %1570 = vmatpush1.bf16.xpose.msra.mxu0 0
        %1571 = vmatprep.subr.bf16.mxu0 0
        %1572 = vmatpush1.bf16.xpose.msra.mxu0 0
        %1573 = vmatprep.subr.bf16.mxu0 0
        %1574 = vmatpush1.bf16.xpose.msra.mxu0 0
        %1575 = vmatprep.subr.bf16.mxu0 0
        %1576 = vmatpush1.bf16.xpose.msra.mxu0 %v406
        %1577 = vmatprep.subr.bf16.mxu0 0
        %1578 = vmatpush2.bf16.xpose.msra.mxu0 0
        %1579 = vmatprep.subr.bf16.mxu0 0
        %1580 = vmatpush2.bf16.xpose.msra.mxu0 0
        %1581 = vmatprep.subr.bf16.mxu0 0
        %1582 = vmatpush2.bf16.xpose.msra.mxu0 0
        %1583 = vmatprep.subr.bf16.mxu0 0
        %1584 = vmatpush2.bf16.xpose.msra.mxu0 0
        %1585 = vmatprep.subr.bf16.mxu0 0
        %1586 = vmatpush2.bf16.xpose.msra.mxu0 0
        %1587 = vmatprep.subr.bf16.mxu0 0
        %1588 = vmatpush2.bf16.xpose.msra.mxu0 0
        %1589 = vmatprep.subr.bf16.mxu0 0
        %1590 = vmatpush2.bf16.xpose.msra.mxu0 0
        %1591 = vmatprep.subr.bf16.mxu0 0
        %1592 = vmatpush2.bf16.xpose.msra.mxu0 0
        %1593 = vmatprep.mubr.bf16.mxu0 0
        %1594 = vmatmul.mubr.bf16.gmra.mxu0 %v997
        %v1595 = vpop.f32.mrf.mxu0
        %v1596 = vadd.f32 0.0, %v1595
        %v1597 = vpop.f32.mrf.mxu0
        %v1598 = vpop.f32.mrf.mxu0
        %v1599 = vpop.f32.mrf.mxu0
        %1600 = vdwg.mxu0
        %vm1601 = vcmask 64512
        %v1602 = vsel %vm1601, %v1596, -inf
        %1603 = vmax.xlane.f32.xlu0 %v1602
        %v1604 = vpop.xlane.xlu0 %1603
        %v1605 = vsub.f32 %v1596, %v1604
        %v1606 = vmul.f32 %v1605, 1.442695
        %v1607 = vpow.pop %v1606
        %v1608 = vsel %vm1601, %v1607, 0.0
        %1609 = vadd.xlane.f32.xlu0 %v1608
        %v1610 = vpop.xlane.xlu0 %1609
        %v1611 = vrcp.pop %v1610
        %v1612 = vmul.f32 %v1607, %v1611
        %v1613 = vpack.c.bf16 %v1612, %v1612
        %1614 = vmatprep.subr.bf16.mxu0 0
        %1615 = vmatpush1.bf16.xpose.msra.mxu0 0
        %1616 = vmatprep.subr.bf16.mxu0 0
        %1617 = vmatpush1.bf16.xpose.msra.mxu0 0
        %1618 = vmatprep.subr.bf16.mxu0 0
        %1619 = vmatpush1.bf16.xpose.msra.mxu0 0
        %1620 = vmatprep.subr.bf16.mxu0 0
        %1621 = vmatpush1.bf16.xpose.msra.mxu0 0
        %1622 = vmatprep.subr.bf16.mxu0 0
        %1623 = vmatpush1.bf16.xpose.msra.mxu0 0
        %1624 = vmatprep.subr.bf16.mxu0 0
        %1625 = vmatpush1.bf16.xpose.msra.mxu0 0
        %1626 = vmatprep.subr.bf16.mxu0 0
        %1627 = vmatpush1.bf16.xpose.msra.mxu0 0
        %1628 = vmatprep.subr.bf16.mxu0 0
        %1629 = vmatpush1.bf16.xpose.msra.mxu0 %v406
        %1630 = vmatprep.subr.bf16.mxu0 0
        %1631 = vmatpush2.bf16.xpose.msra.mxu0 0
        %1632 = vmatprep.subr.bf16.mxu0 0
        %1633 = vmatpush2.bf16.xpose.msra.mxu0 0
        %1634 = vmatprep.subr.bf16.mxu0 0
        %1635 = vmatpush2.bf16.xpose.msra.mxu0 0
        %1636 = vmatprep.subr.bf16.mxu0 0
        %1637 = vmatpush2.bf16.xpose.msra.mxu0 0
        %1638 = vmatprep.subr.bf16.mxu0 0
        %1639 = vmatpush2.bf16.xpose.msra.mxu0 0
        %1640 = vmatprep.subr.bf16.mxu0 0
        %1641 = vmatpush2.bf16.xpose.msra.mxu0 0
        %1642 = vmatprep.subr.bf16.mxu0 0
        %1643 = vmatpush2.bf16.xpose.msra.mxu0 0
        %1644 = vmatprep.subr.bf16.mxu0 0
        %1645 = vmatpush2.bf16.xpose.msra.mxu0 0
        %1646 = vmatprep.mubr.bf16.mxu0 0
        %1647 = vmatmul.mubr.bf16.gmra.mxu0 %v998
        %v1648 = vpop.f32.mrf.mxu0
        %v1649 = vadd.f32 0.0, %v1648
        %v1650 = vpop.f32.mrf.mxu0
        %v1651 = vpop.f32.mrf.mxu0
        %v1652 = vpop.f32.mrf.mxu0
        %1653 = vdwg.mxu0
        %v1654 = vsel %vm1601, %v1649, -inf
        %1655 = vmax.xlane.f32.xlu0 %v1654
        %v1656 = vpop.xlane.xlu0 %1655
        %v1657 = vsub.f32 %v1649, %v1656
        %v1658 = vmul.f32 %v1657, 1.442695
        %v1659 = vpow.pop %v1658
        %v1660 = vsel %vm1601, %v1659, 0.0
        %1661 = vadd.xlane.f32.xlu0 %v1660
        %v1662 = vpop.xlane.xlu0 %1661
        %v1663 = vrcp.pop %v1662
        %v1664 = vmul.f32 %v1659, %v1663
        %v1665 = vpack.c.bf16 %v1664, %v1664
        %v1667 = vsel %vm1601, %v1665, 0
        %vm1669 = vcmask 1043456
        %v1671 = vsel %vm1669, %v1554, 0
        %1673 = vmatprep.subr.bf16.mxu0 0
        %1674 = vmatpush1.bf16.msra.mxu0 0
        %1675 = vmatprep.subr.bf16.mxu0 0
        %1676 = vmatpush1.bf16.msra.mxu0 0
        %1677 = vmatprep.subr.bf16.mxu0 0
        %1678 = vmatpush1.bf16.msra.mxu0 0
        %1679 = vmatprep.subr.bf16.mxu0 0
        %1680 = vmatpush1.bf16.msra.mxu0 0
        %1681 = vmatprep.subr.bf16.mxu0 0
        %1682 = vmatpush1.bf16.msra.mxu0 0
        %1683 = vmatprep.subr.bf16.mxu0 0
        %1684 = vmatpush1.bf16.msra.mxu0 0
        %1685 = vmatprep.subr.bf16.mxu0 0
        %1686 = vmatpush1.bf16.msra.mxu0 0
        %1687 = vmatprep.subr.bf16.mxu0 0
        %1688 = vmatpush1.bf16.msra.mxu0 %v1671
        %1689 = vmatprep.subr.bf16.mxu0 0
        %1690 = vmatpush2.bf16.msra.mxu0 0
        %1691 = vmatprep.subr.bf16.mxu0 0
        %1692 = vmatpush2.bf16.msra.mxu0 0
        %1693 = vmatprep.subr.bf16.mxu0 0
        %1694 = vmatpush2.bf16.msra.mxu0 0
        %1695 = vmatprep.subr.bf16.mxu0 0
        %1696 = vmatpush2.bf16.msra.mxu0 0
        %1697 = vmatprep.subr.bf16.mxu0 0
        %1698 = vmatpush2.bf16.msra.mxu0 0
        %1699 = vmatprep.subr.bf16.mxu0 0
        %1700 = vmatpush2.bf16.msra.mxu0 0
        %1701 = vmatprep.subr.bf16.mxu0 0
        %1702 = vmatpush2.bf16.msra.mxu0 0
        %1703 = vmatprep.subr.bf16.mxu0 0
        %1704 = vmatpush2.bf16.msra.mxu0 0
        %1705 = vmatprep.mubr.bf16.mxu0 0
        %1706 = vmatmul.mubr.bf16.gmra.mxu0 %v1667
        %v1707 = vpop.f32.mrf.mxu0
        %v1708 = vadd.f32 0.0, %v1707
        %v1709 = vpop.f32.mrf.mxu0
        %v1710 = vpop.f32.mrf.mxu0
        %v1711 = vpop.f32.mrf.mxu0
        %1712 = vdwg.mxu0
        %v1714 = vsel %vm1601, %v1613, 0
        %v1717 = vsel %vm1669, %v1553, 0
        %1719 = vmatprep.subr.bf16.mxu0 0
        %1720 = vmatpush1.bf16.msra.mxu0 0
        %1721 = vmatprep.subr.bf16.mxu0 0
        %1722 = vmatpush1.bf16.msra.mxu0 0
        %1723 = vmatprep.subr.bf16.mxu0 0
        %1724 = vmatpush1.bf16.msra.mxu0 0
        %1725 = vmatprep.subr.bf16.mxu0 0
        %1726 = vmatpush1.bf16.msra.mxu0 0
        %1727 = vmatprep.subr.bf16.mxu0 0
        %1728 = vmatpush1.bf16.msra.mxu0 0
        %1729 = vmatprep.subr.bf16.mxu0 0
        %1730 = vmatpush1.bf16.msra.mxu0 0
        %1731 = vmatprep.subr.bf16.mxu0 0
        %1732 = vmatpush1.bf16.msra.mxu0 0
        %1733 = vmatprep.subr.bf16.mxu0 0
        %1734 = vmatpush1.bf16.msra.mxu0 %v1717
        %1735 = vmatprep.subr.bf16.mxu0 0
        %1736 = vmatpush2.bf16.msra.mxu0 0
        %1737 = vmatprep.subr.bf16.mxu0 0
        %1738 = vmatpush2.bf16.msra.mxu0 0
        %1739 = vmatprep.subr.bf16.mxu0 0
        %1740 = vmatpush2.bf16.msra.mxu0 0
        %1741 = vmatprep.subr.bf16.mxu0 0
        %1742 = vmatpush2.bf16.msra.mxu0 0
        %1743 = vmatprep.subr.bf16.mxu0 0
        %1744 = vmatpush2.bf16.msra.mxu0 0
        %1745 = vmatprep.subr.bf16.mxu0 0
        %1746 = vmatpush2.bf16.msra.mxu0 0
        %1747 = vmatprep.subr.bf16.mxu0 0
        %1748 = vmatpush2.bf16.msra.mxu0 0
        %1749 = vmatprep.subr.bf16.mxu0 0
        %1750 = vmatpush2.bf16.msra.mxu0 0
        %1751 = vmatprep.mubr.bf16.mxu0 0
        %1752 = vmatmul.mubr.bf16.gmra.mxu0 %v1714
        %v1753 = vpop.f32.mrf.mxu0
        %v1754 = vadd.f32 %v1708, %v1753
        %v1755 = vpop.f32.mrf.mxu0
        %v1756 = vpop.f32.mrf.mxu0
        %v1757 = vpop.f32.mrf.mxu0
        %1758 = vdwg.mxu0
        %1759 = vmatprep.subr.bf16.mxu0 0
        %1760 = vmatpush1.bf16.xpose.msra.mxu0 0
        %1761 = vmatprep.subr.bf16.mxu0 0
        %1762 = vmatpush1.bf16.xpose.msra.mxu0 0
        %1763 = vmatprep.subr.bf16.mxu0 0
        %1764 = vmatpush1.bf16.xpose.msra.mxu0 0
        %1765 = vmatprep.subr.bf16.mxu0 0
        %1766 = vmatpush1.bf16.xpose.msra.mxu0 0
        %1767 = vmatprep.subr.bf16.mxu0 0
        %1768 = vmatpush1.bf16.xpose.msra.mxu0 0
        %1769 = vmatprep.subr.bf16.mxu0 0
        %1770 = vmatpush1.bf16.xpose.msra.mxu0 0
        %1771 = vmatprep.subr.bf16.mxu0 0
        %1772 = vmatpush1.bf16.xpose.msra.mxu0 0
        %1773 = vmatprep.subr.bf16.mxu0 0
        %1774 = vmatpush1.bf16.xpose.msra.mxu0 %v406
        %1775 = vmatprep.subr.bf16.mxu0 0
        %1776 = vmatpush2.bf16.xpose.msra.mxu0 0
        %1777 = vmatprep.subr.bf16.mxu0 0
        %1778 = vmatpush2.bf16.xpose.msra.mxu0 0
        %1779 = vmatprep.subr.bf16.mxu0 0
        %1780 = vmatpush2.bf16.xpose.msra.mxu0 0
        %1781 = vmatprep.subr.bf16.mxu0 0
        %1782 = vmatpush2.bf16.xpose.msra.mxu0 0
        %1783 = vmatprep.subr.bf16.mxu0 0
        %1784 = vmatpush2.bf16.xpose.msra.mxu0 0
        %1785 = vmatprep.subr.bf16.mxu0 0
        %1786 = vmatpush2.bf16.xpose.msra.mxu0 0
        %1787 = vmatprep.subr.bf16.mxu0 0
        %1788 = vmatpush2.bf16.xpose.msra.mxu0 0
        %1789 = vmatprep.subr.bf16.mxu0 0
        %1790 = vmatpush2.bf16.xpose.msra.mxu0 0
        %1791 = vmatprep.mubr.bf16.mxu0 0
        %1792 = vmatmul.mubr.bf16.gmra.mxu0 %v999
        %v1793 = vpop.f32.mrf.mxu0
        %v1794 = vadd.f32 0.0, %v1793
        %v1795 = vpop.f32.mrf.mxu0
        %v1796 = vpop.f32.mrf.mxu0
        %v1797 = vpop.f32.mrf.mxu0
        %1798 = vdwg.mxu0
        %v1799 = vsel %vm1601, %v1794, -inf
        %1800 = vmax.xlane.f32.xlu0 %v1799
        %v1801 = vpop.xlane.xlu0 %1800
        %v1802 = vsub.f32 %v1794, %v1801
        %v1803 = vmul.f32 %v1802, 1.442695
        %v1804 = vpow.pop %v1803
        %v1805 = vsel %vm1601, %v1804, 0.0
        %1806 = vadd.xlane.f32.xlu0 %v1805
        %v1807 = vpop.xlane.xlu0 %1806
        %v1808 = vrcp.pop %v1807
        %v1809 = vmul.f32 %v1804, %v1808
        %v1810 = vpack.c.bf16 %v1809, %v1809
        %v1812 = vsel %vm1601, %v1810, 0
        %v1815 = vsel %vm1669, %v1555, 0
        %1817 = vmatprep.subr.bf16.mxu0 0
        %1818 = vmatpush1.bf16.msra.mxu0 0
        %1819 = vmatprep.subr.bf16.mxu0 0
        %1820 = vmatpush1.bf16.msra.mxu0 0
        %1821 = vmatprep.subr.bf16.mxu0 0
        %1822 = vmatpush1.bf16.msra.mxu0 0
        %1823 = vmatprep.subr.bf16.mxu0 0
        %1824 = vmatpush1.bf16.msra.mxu0 0
        %1825 = vmatprep.subr.bf16.mxu0 0
        %1826 = vmatpush1.bf16.msra.mxu0 0
        %1827 = vmatprep.subr.bf16.mxu0 0
        %1828 = vmatpush1.bf16.msra.mxu0 0
        %1829 = vmatprep.subr.bf16.mxu0 0
        %1830 = vmatpush1.bf16.msra.mxu0 0
        %1831 = vmatprep.subr.bf16.mxu0 0
        %1832 = vmatpush1.bf16.msra.mxu0 %v1815
        %1833 = vmatprep.subr.bf16.mxu0 0
        %1834 = vmatpush2.bf16.msra.mxu0 0
        %1835 = vmatprep.subr.bf16.mxu0 0
        %1836 = vmatpush2.bf16.msra.mxu0 0
        %1837 = vmatprep.subr.bf16.mxu0 0
        %1838 = vmatpush2.bf16.msra.mxu0 0
        %1839 = vmatprep.subr.bf16.mxu0 0
        %1840 = vmatpush2.bf16.msra.mxu0 0
        %1841 = vmatprep.subr.bf16.mxu0 0
        %1842 = vmatpush2.bf16.msra.mxu0 0
        %1843 = vmatprep.subr.bf16.mxu0 0
        %1844 = vmatpush2.bf16.msra.mxu0 0
        %1845 = vmatprep.subr.bf16.mxu0 0
        %1846 = vmatpush2.bf16.msra.mxu0 0
        %1847 = vmatprep.subr.bf16.mxu0 0
        %1848 = vmatpush2.bf16.msra.mxu0 0
        %1849 = vmatprep.mubr.bf16.mxu0 0
        %1850 = vmatmul.mubr.bf16.gmra.mxu0 %v1812
        %v1851 = vpop.f32.mrf.mxu0
        %v1852 = vadd.f32 0.0, %v1851
        %v1853 = vpop.f32.mrf.mxu0
        %v1854 = vpop.f32.mrf.mxu0
        %v1855 = vpop.f32.mrf.mxu0
        %1856 = vdwg.mxu0
        %v1857 = vadd.f32 %v1754, %v1852
        %1858 = vmatprep.subr.bf16.mxu0 0
        %1859 = vmatpush1.bf16.xpose.msra.mxu0 0
        %1860 = vmatprep.subr.bf16.mxu0 0
        %1861 = vmatpush1.bf16.xpose.msra.mxu0 0
        %1862 = vmatprep.subr.bf16.mxu0 0
        %1863 = vmatpush1.bf16.xpose.msra.mxu0 0
        %1864 = vmatprep.subr.bf16.mxu0 0
        %1865 = vmatpush1.bf16.xpose.msra.mxu0 0
        %1866 = vmatprep.subr.bf16.mxu0 0
        %1867 = vmatpush1.bf16.xpose.msra.mxu0 0
        %1868 = vmatprep.subr.bf16.mxu0 0
        %1869 = vmatpush1.bf16.xpose.msra.mxu0 0
        %1870 = vmatprep.subr.bf16.mxu0 0
        %1871 = vmatpush1.bf16.xpose.msra.mxu0 0
        %1872 = vmatprep.subr.bf16.mxu0 0
        %1873 = vmatpush1.bf16.xpose.msra.mxu0 %v406
        %1874 = vmatprep.subr.bf16.mxu0 0
        %1875 = vmatpush2.bf16.xpose.msra.mxu0 0
        %1876 = vmatprep.subr.bf16.mxu0 0
        %1877 = vmatpush2.bf16.xpose.msra.mxu0 0
        %1878 = vmatprep.subr.bf16.mxu0 0
        %1879 = vmatpush2.bf16.xpose.msra.mxu0 0
        %1880 = vmatprep.subr.bf16.mxu0 0
        %1881 = vmatpush2.bf16.xpose.msra.mxu0 0
        %1882 = vmatprep.subr.bf16.mxu0 0
        %1883 = vmatpush2.bf16.xpose.msra.mxu0 0
        %1884 = vmatprep.subr.bf16.mxu0 0
        %1885 = vmatpush2.bf16.xpose.msra.mxu0 0
        %1886 = vmatprep.subr.bf16.mxu0 0
        %1887 = vmatpush2.bf16.xpose.msra.mxu0 0
        %1888 = vmatprep.subr.bf16.mxu0 0
        %1889 = vmatpush2.bf16.xpose.msra.mxu0 0
        %1890 = vmatprep.mubr.bf16.mxu0 0
        %1891 = vmatmul.mubr.bf16.gmra.mxu0 %v1000
        %v1892 = vpop.f32.mrf.mxu0
        %v1893 = vadd.f32 0.0, %v1892
        %v1894 = vpop.f32.mrf.mxu0
        %v1895 = vpop.f32.mrf.mxu0
        %v1896 = vpop.f32.mrf.mxu0
        %1897 = vdwg.mxu0
        %v1898 = vsel %vm1601, %v1893, -inf
        %1899 = vmax.xlane.f32.xlu0 %v1898
        %v1900 = vpop.xlane.xlu0 %1899
        %v1901 = vsub.f32 %v1893, %v1900
        %v1902 = vmul.f32 %v1901, 1.442695
        %v1903 = vpow.pop %v1902
        %v1904 = vsel %vm1601, %v1903, 0.0
        %1905 = vadd.xlane.f32.xlu0 %v1904
        %v1906 = vpop.xlane.xlu0 %1905
        %v1907 = vrcp.pop %v1906
        %v1908 = vmul.f32 %v1903, %v1907
        %v1909 = vpack.c.bf16 %v1908, %v1908
        %v1911 = vsel %vm1601, %v1909, 0
        %v1914 = vsel %vm1669, %v1556, 0
        %1916 = vmatprep.subr.bf16.mxu0 0
        %1917 = vmatpush1.bf16.msra.mxu0 0
        %1918 = vmatprep.subr.bf16.mxu0 0
        %1919 = vmatpush1.bf16.msra.mxu0 0
        %1920 = vmatprep.subr.bf16.mxu0 0
        %1921 = vmatpush1.bf16.msra.mxu0 0
        %1922 = vmatprep.subr.bf16.mxu0 0
        %1923 = vmatpush1.bf16.msra.mxu0 0
        %1924 = vmatprep.subr.bf16.mxu0 0
        %1925 = vmatpush1.bf16.msra.mxu0 0
        %1926 = vmatprep.subr.bf16.mxu0 0
        %1927 = vmatpush1.bf16.msra.mxu0 0
        %1928 = vmatprep.subr.bf16.mxu0 0
        %1929 = vmatpush1.bf16.msra.mxu0 0
        %1930 = vmatprep.subr.bf16.mxu0 0
        %1931 = vmatpush1.bf16.msra.mxu0 %v1914
        %1932 = vmatprep.subr.bf16.mxu0 0
        %1933 = vmatpush2.bf16.msra.mxu0 0
        %1934 = vmatprep.subr.bf16.mxu0 0
        %1935 = vmatpush2.bf16.msra.mxu0 0
        %1936 = vmatprep.subr.bf16.mxu0 0
        %1937 = vmatpush2.bf16.msra.mxu0 0
        %1938 = vmatprep.subr.bf16.mxu0 0
        %1939 = vmatpush2.bf16.msra.mxu0 0
        %1940 = vmatprep.subr.bf16.mxu0 0
        %1941 = vmatpush2.bf16.msra.mxu0 0
        %1942 = vmatprep.subr.bf16.mxu0 0
        %1943 = vmatpush2.bf16.msra.mxu0 0
        %1944 = vmatprep.subr.bf16.mxu0 0
        %1945 = vmatpush2.bf16.msra.mxu0 0
        %1946 = vmatprep.subr.bf16.mxu0 0
        %1947 = vmatpush2.bf16.msra.mxu0 0
        %1948 = vmatprep.mubr.bf16.mxu0 0
        %1949 = vmatmul.mubr.bf16.gmra.mxu0 %v1911
        %v1950 = vpop.f32.mrf.mxu0
        %v1951 = vadd.f32 0.0, %v1950
        %v1952 = vpop.f32.mrf.mxu0
        %v1953 = vpop.f32.mrf.mxu0
        %v1954 = vpop.f32.mrf.mxu0
        %1955 = vdwg.mxu0
        %v1956 = vadd.f32 %v1857, %v1951
        %1957 = vmatprep.subr.bf16.mxu0 0
        %1958 = vmatpush1.bf16.xpose.msra.mxu0 0
        %1959 = vmatprep.subr.bf16.mxu0 0
        %1960 = vmatpush1.bf16.xpose.msra.mxu0 0
        %1961 = vmatprep.subr.bf16.mxu0 0
        %1962 = vmatpush1.bf16.xpose.msra.mxu0 0
        %1963 = vmatprep.subr.bf16.mxu0 0
        %1964 = vmatpush1.bf16.xpose.msra.mxu0 0
        %1965 = vmatprep.subr.bf16.mxu0 0
        %1966 = vmatpush1.bf16.xpose.msra.mxu0 0
        %1967 = vmatprep.subr.bf16.mxu0 0
        %1968 = vmatpush1.bf16.xpose.msra.mxu0 0
        %1969 = vmatprep.subr.bf16.mxu0 0
        %1970 = vmatpush1.bf16.xpose.msra.mxu0 0
        %1971 = vmatprep.subr.bf16.mxu0 0
        %1972 = vmatpush1.bf16.xpose.msra.mxu0 %v406
        %1973 = vmatprep.subr.bf16.mxu0 0
        %1974 = vmatpush2.bf16.xpose.msra.mxu0 0
        %1975 = vmatprep.subr.bf16.mxu0 0
        %1976 = vmatpush2.bf16.xpose.msra.mxu0 0
        %1977 = vmatprep.subr.bf16.mxu0 0
        %1978 = vmatpush2.bf16.xpose.msra.mxu0 0
        %1979 = vmatprep.subr.bf16.mxu0 0
        %1980 = vmatpush2.bf16.xpose.msra.mxu0 0
        %1981 = vmatprep.subr.bf16.mxu0 0
        %1982 = vmatpush2.bf16.xpose.msra.mxu0 0
        %1983 = vmatprep.subr.bf16.mxu0 0
        %1984 = vmatpush2.bf16.xpose.msra.mxu0 0
        %1985 = vmatprep.subr.bf16.mxu0 0
        %1986 = vmatpush2.bf16.xpose.msra.mxu0 0
        %1987 = vmatprep.subr.bf16.mxu0 0
        %1988 = vmatpush2.bf16.xpose.msra.mxu0 0
        %1989 = vmatprep.mubr.bf16.mxu0 0
        %1990 = vmatmul.mubr.bf16.gmra.mxu0 %v1001
        %v1991 = vpop.f32.mrf.mxu0
        %v1992 = vadd.f32 0.0, %v1991
        %v1993 = vpop.f32.mrf.mxu0
        %v1994 = vpop.f32.mrf.mxu0
        %v1995 = vpop.f32.mrf.mxu0
        %1996 = vdwg.mxu0
        %v1997 = vsel %vm1601, %v1992, -inf
        %1998 = vmax.xlane.f32.xlu0 %v1997
        %v1999 = vpop.xlane.xlu0 %1998
        %v2000 = vsub.f32 %v1992, %v1999
        %v2001 = vmul.f32 %v2000, 1.442695
        %v2002 = vpow.pop %v2001
        %v2003 = vsel %vm1601, %v2002, 0.0
        %2004 = vadd.xlane.f32.xlu0 %v2003
        %v2005 = vpop.xlane.xlu0 %2004
        %v2006 = vrcp.pop %v2005
        %v2007 = vmul.f32 %v2002, %v2006
        %v2008 = vpack.c.bf16 %v2007, %v2007
        %v2010 = vsel %vm1601, %v2008, 0
        %v2013 = vsel %vm1669, %v1557, 0
        %2015 = vmatprep.subr.bf16.mxu0 0
        %2016 = vmatpush1.bf16.msra.mxu0 0
        %2017 = vmatprep.subr.bf16.mxu0 0
        %2018 = vmatpush1.bf16.msra.mxu0 0
        %2019 = vmatprep.subr.bf16.mxu0 0
        %2020 = vmatpush1.bf16.msra.mxu0 0
        %2021 = vmatprep.subr.bf16.mxu0 0
        %2022 = vmatpush1.bf16.msra.mxu0 0
        %2023 = vmatprep.subr.bf16.mxu0 0
        %2024 = vmatpush1.bf16.msra.mxu0 0
        %2025 = vmatprep.subr.bf16.mxu0 0
        %2026 = vmatpush1.bf16.msra.mxu0 0
        %2027 = vmatprep.subr.bf16.mxu0 0
        %2028 = vmatpush1.bf16.msra.mxu0 0
        %2029 = vmatprep.subr.bf16.mxu0 0
        %2030 = vmatpush1.bf16.msra.mxu0 %v2013
        %2031 = vmatprep.subr.bf16.mxu0 0
        %2032 = vmatpush2.bf16.msra.mxu0 0
        %2033 = vmatprep.subr.bf16.mxu0 0
        %2034 = vmatpush2.bf16.msra.mxu0 0
        %2035 = vmatprep.subr.bf16.mxu0 0
        %2036 = vmatpush2.bf16.msra.mxu0 0
        %2037 = vmatprep.subr.bf16.mxu0 0
        %2038 = vmatpush2.bf16.msra.mxu0 0
        %2039 = vmatprep.subr.bf16.mxu0 0
        %2040 = vmatpush2.bf16.msra.mxu0 0
        %2041 = vmatprep.subr.bf16.mxu0 0
        %2042 = vmatpush2.bf16.msra.mxu0 0
        %2043 = vmatprep.subr.bf16.mxu0 0
        %2044 = vmatpush2.bf16.msra.mxu0 0
        %2045 = vmatprep.subr.bf16.mxu0 0
        %2046 = vmatpush2.bf16.msra.mxu0 0
        %2047 = vmatprep.mubr.bf16.mxu0 0
        %2048 = vmatmul.mubr.bf16.gmra.mxu0 %v2010
        %v2049 = vpop.f32.mrf.mxu0
        %v2050 = vadd.f32 0.0, %v2049
        %v2051 = vpop.f32.mrf.mxu0
        %v2052 = vpop.f32.mrf.mxu0
        %v2053 = vpop.f32.mrf.mxu0
        %2054 = vdwg.mxu0
        %v2055 = vadd.f32 %v1956, %v2050
        %2056 = vmatprep.subr.bf16.mxu0 0
        %2057 = vmatpush1.bf16.xpose.msra.mxu0 0
        %2058 = vmatprep.subr.bf16.mxu0 0
        %2059 = vmatpush1.bf16.xpose.msra.mxu0 0
        %2060 = vmatprep.subr.bf16.mxu0 0
        %2061 = vmatpush1.bf16.xpose.msra.mxu0 0
        %2062 = vmatprep.subr.bf16.mxu0 0
        %2063 = vmatpush1.bf16.xpose.msra.mxu0 0
        %2064 = vmatprep.subr.bf16.mxu0 0
        %2065 = vmatpush1.bf16.xpose.msra.mxu0 0
        %2066 = vmatprep.subr.bf16.mxu0 0
        %2067 = vmatpush1.bf16.xpose.msra.mxu0 0
        %2068 = vmatprep.subr.bf16.mxu0 0
        %2069 = vmatpush1.bf16.xpose.msra.mxu0 0
        %2070 = vmatprep.subr.bf16.mxu0 0
        %2071 = vmatpush1.bf16.xpose.msra.mxu0 %v406
        %2072 = vmatprep.subr.bf16.mxu0 0
        %2073 = vmatpush2.bf16.xpose.msra.mxu0 0
        %2074 = vmatprep.subr.bf16.mxu0 0
        %2075 = vmatpush2.bf16.xpose.msra.mxu0 0
        %2076 = vmatprep.subr.bf16.mxu0 0
        %2077 = vmatpush2.bf16.xpose.msra.mxu0 0
        %2078 = vmatprep.subr.bf16.mxu0 0
        %2079 = vmatpush2.bf16.xpose.msra.mxu0 0
        %2080 = vmatprep.subr.bf16.mxu0 0
        %2081 = vmatpush2.bf16.xpose.msra.mxu0 0
        %2082 = vmatprep.subr.bf16.mxu0 0
        %2083 = vmatpush2.bf16.xpose.msra.mxu0 0
        %2084 = vmatprep.subr.bf16.mxu0 0
        %2085 = vmatpush2.bf16.xpose.msra.mxu0 0
        %2086 = vmatprep.subr.bf16.mxu0 0
        %2087 = vmatpush2.bf16.xpose.msra.mxu0 0
        %2088 = vmatprep.mubr.bf16.mxu0 0
        %2089 = vmatmul.mubr.bf16.gmra.mxu0 %v1002
        %v2090 = vpop.f32.mrf.mxu0
        %v2091 = vadd.f32 0.0, %v2090
        %v2092 = vpop.f32.mrf.mxu0
        %v2093 = vpop.f32.mrf.mxu0
        %v2094 = vpop.f32.mrf.mxu0
        %2095 = vdwg.mxu0
        %v2096 = vsel %vm1601, %v2091, -inf
        %2097 = vmax.xlane.f32.xlu0 %v2096
        %v2098 = vpop.xlane.xlu0 %2097
        %v2099 = vsub.f32 %v2091, %v2098
        %v2100 = vmul.f32 %v2099, 1.442695
        %v2101 = vpow.pop %v2100
        %v2102 = vsel %vm1601, %v2101, 0.0
        %2103 = vadd.xlane.f32.xlu0 %v2102
        %v2104 = vpop.xlane.xlu0 %2103
        %v2105 = vrcp.pop %v2104
        %v2106 = vmul.f32 %v2101, %v2105
        %v2107 = vpack.c.bf16 %v2106, %v2106
        %v2109 = vsel %vm1601, %v2107, 0
        %v2112 = vsel %vm1669, %v1558, 0
        %2114 = vmatprep.subr.bf16.mxu0 0
        %2115 = vmatpush1.bf16.msra.mxu0 0
        %2116 = vmatprep.subr.bf16.mxu0 0
        %2117 = vmatpush1.bf16.msra.mxu0 0
        %2118 = vmatprep.subr.bf16.mxu0 0
        %2119 = vmatpush1.bf16.msra.mxu0 0
        %2120 = vmatprep.subr.bf16.mxu0 0
        %2121 = vmatpush1.bf16.msra.mxu0 0
        %2122 = vmatprep.subr.bf16.mxu0 0
        %2123 = vmatpush1.bf16.msra.mxu0 0
        %2124 = vmatprep.subr.bf16.mxu0 0
        %2125 = vmatpush1.bf16.msra.mxu0 0
        %2126 = vmatprep.subr.bf16.mxu0 0
        %2127 = vmatpush1.bf16.msra.mxu0 0
        %2128 = vmatprep.subr.bf16.mxu0 0
        %2129 = vmatpush1.bf16.msra.mxu0 %v2112
        %2130 = vmatprep.subr.bf16.mxu0 0
        %2131 = vmatpush2.bf16.msra.mxu0 0
        %2132 = vmatprep.subr.bf16.mxu0 0
        %2133 = vmatpush2.bf16.msra.mxu0 0
        %2134 = vmatprep.subr.bf16.mxu0 0
        %2135 = vmatpush2.bf16.msra.mxu0 0
        %2136 = vmatprep.subr.bf16.mxu0 0
        %2137 = vmatpush2.bf16.msra.mxu0 0
        %2138 = vmatprep.subr.bf16.mxu0 0
        %2139 = vmatpush2.bf16.msra.mxu0 0
        %2140 = vmatprep.subr.bf16.mxu0 0
        %2141 = vmatpush2.bf16.msra.mxu0 0
        %2142 = vmatprep.subr.bf16.mxu0 0
        %2143 = vmatpush2.bf16.msra.mxu0 0
        %2144 = vmatprep.subr.bf16.mxu0 0
        %2145 = vmatpush2.bf16.msra.mxu0 0
        %2146 = vmatprep.mubr.bf16.mxu0 0
        %2147 = vmatmul.mubr.bf16.gmra.mxu0 %v2109
        %v2148 = vpop.f32.mrf.mxu0
        %v2149 = vadd.f32 0.0, %v2148
        %v2150 = vpop.f32.mrf.mxu0
        %v2151 = vpop.f32.mrf.mxu0
        %v2152 = vpop.f32.mrf.mxu0
        %2153 = vdwg.mxu0
        %v2154 = vadd.f32 %v2055, %v2149
        %2155 = vmatprep.subr.bf16.mxu0 0
        %2156 = vmatpush1.bf16.xpose.msra.mxu0 0
        %2157 = vmatprep.subr.bf16.mxu0 0
        %2158 = vmatpush1.bf16.xpose.msra.mxu0 0
        %2159 = vmatprep.subr.bf16.mxu0 0
        %2160 = vmatpush1.bf16.xpose.msra.mxu0 0
        %2161 = vmatprep.subr.bf16.mxu0 0
        %2162 = vmatpush1.bf16.xpose.msra.mxu0 0
        %2163 = vmatprep.subr.bf16.mxu0 0
        %2164 = vmatpush1.bf16.xpose.msra.mxu0 0
        %2165 = vmatprep.subr.bf16.mxu0 0
        %2166 = vmatpush1.bf16.xpose.msra.mxu0 0
        %2167 = vmatprep.subr.bf16.mxu0 0
        %2168 = vmatpush1.bf16.xpose.msra.mxu0 0
        %2169 = vmatprep.subr.bf16.mxu0 0
        %2170 = vmatpush1.bf16.xpose.msra.mxu0 %v406
        %2171 = vmatprep.subr.bf16.mxu0 0
        %2172 = vmatpush2.bf16.xpose.msra.mxu0 0
        %2173 = vmatprep.subr.bf16.mxu0 0
        %2174 = vmatpush2.bf16.xpose.msra.mxu0 0
        %2175 = vmatprep.subr.bf16.mxu0 0
        %2176 = vmatpush2.bf16.xpose.msra.mxu0 0
        %2177 = vmatprep.subr.bf16.mxu0 0
        %2178 = vmatpush2.bf16.xpose.msra.mxu0 0
        %2179 = vmatprep.subr.bf16.mxu0 0
        %2180 = vmatpush2.bf16.xpose.msra.mxu0 0
        %2181 = vmatprep.subr.bf16.mxu0 0
        %2182 = vmatpush2.bf16.xpose.msra.mxu0 0
        %2183 = vmatprep.subr.bf16.mxu0 0
        %2184 = vmatpush2.bf16.xpose.msra.mxu0 0
        %2185 = vmatprep.subr.bf16.mxu0 0
        %2186 = vmatpush2.bf16.xpose.msra.mxu0 0
        %2187 = vmatprep.mubr.bf16.mxu0 0
        %2188 = vmatmul.mubr.bf16.gmra.mxu0 %v1003
        %v2189 = vpop.f32.mrf.mxu0
        %v2190 = vadd.f32 0.0, %v2189
        %v2191 = vpop.f32.mrf.mxu0
        %v2192 = vpop.f32.mrf.mxu0
        %v2193 = vpop.f32.mrf.mxu0
        %2194 = vdwg.mxu0
        %v2195 = vsel %vm1601, %v2190, -inf
        %2196 = vmax.xlane.f32.xlu0 %v2195
        %v2197 = vpop.xlane.xlu0 %2196
        %v2198 = vsub.f32 %v2190, %v2197
        %v2199 = vmul.f32 %v2198, 1.442695
        %v2200 = vpow.pop %v2199
        %v2201 = vsel %vm1601, %v2200, 0.0
        %2202 = vadd.xlane.f32.xlu0 %v2201
        %v2203 = vpop.xlane.xlu0 %2202
        %v2204 = vrcp.pop %v2203
        %v2205 = vmul.f32 %v2200, %v2204
        %v2206 = vpack.c.bf16 %v2205, %v2205
        %v2208 = vsel %vm1601, %v2206, 0
        %v2211 = vsel %vm1669, %v1559, 0
        %2213 = vmatprep.subr.bf16.mxu0 0
        %2214 = vmatpush1.bf16.msra.mxu0 0
        %2215 = vmatprep.subr.bf16.mxu0 0
        %2216 = vmatpush1.bf16.msra.mxu0 0
        %2217 = vmatprep.subr.bf16.mxu0 0
        %2218 = vmatpush1.bf16.msra.mxu0 0
        %2219 = vmatprep.subr.bf16.mxu0 0
        %2220 = vmatpush1.bf16.msra.mxu0 0
        %2221 = vmatprep.subr.bf16.mxu0 0
        %2222 = vmatpush1.bf16.msra.mxu0 0
        %2223 = vmatprep.subr.bf16.mxu0 0
        %2224 = vmatpush1.bf16.msra.mxu0 0
        %2225 = vmatprep.subr.bf16.mxu0 0
        %2226 = vmatpush1.bf16.msra.mxu0 0
        %2227 = vmatprep.subr.bf16.mxu0 0
        %2228 = vmatpush1.bf16.msra.mxu0 %v2211
        %2229 = vmatprep.subr.bf16.mxu0 0
        %2230 = vmatpush2.bf16.msra.mxu0 0
        %2231 = vmatprep.subr.bf16.mxu0 0
        %2232 = vmatpush2.bf16.msra.mxu0 0
        %2233 = vmatprep.subr.bf16.mxu0 0
        %2234 = vmatpush2.bf16.msra.mxu0 0
        %2235 = vmatprep.subr.bf16.mxu0 0
        %2236 = vmatpush2.bf16.msra.mxu0 0
        %2237 = vmatprep.subr.bf16.mxu0 0
        %2238 = vmatpush2.bf16.msra.mxu0 0
        %2239 = vmatprep.subr.bf16.mxu0 0
        %2240 = vmatpush2.bf16.msra.mxu0 0
        %2241 = vmatprep.subr.bf16.mxu0 0
        %2242 = vmatpush2.bf16.msra.mxu0 0
        %2243 = vmatprep.subr.bf16.mxu0 0
        %2244 = vmatpush2.bf16.msra.mxu0 0
        %2245 = vmatprep.mubr.bf16.mxu0 0
        %2246 = vmatmul.mubr.bf16.gmra.mxu0 %v2208
        %v2247 = vpop.f32.mrf.mxu0
        %v2248 = vadd.f32 0.0, %v2247
        %v2249 = vpop.f32.mrf.mxu0
        %v2250 = vpop.f32.mrf.mxu0
        %v2251 = vpop.f32.mrf.mxu0
        %2252 = vdwg.mxu0
        %v2253 = vadd.f32 %v2154, %v2248
        %2254 = vmatprep.subr.bf16.mxu0 0
        %2255 = vmatpush1.bf16.xpose.msra.mxu0 0
        %2256 = vmatprep.subr.bf16.mxu0 0
        %2257 = vmatpush1.bf16.xpose.msra.mxu0 0
        %2258 = vmatprep.subr.bf16.mxu0 0
        %2259 = vmatpush1.bf16.xpose.msra.mxu0 0
        %2260 = vmatprep.subr.bf16.mxu0 0
        %2261 = vmatpush1.bf16.xpose.msra.mxu0 0
        %2262 = vmatprep.subr.bf16.mxu0 0
        %2263 = vmatpush1.bf16.xpose.msra.mxu0 0
        %2264 = vmatprep.subr.bf16.mxu0 0
        %2265 = vmatpush1.bf16.xpose.msra.mxu0 0
        %2266 = vmatprep.subr.bf16.mxu0 0
        %2267 = vmatpush1.bf16.xpose.msra.mxu0 0
        %2268 = vmatprep.subr.bf16.mxu0 0
        %2269 = vmatpush1.bf16.xpose.msra.mxu0 %v406
        %2270 = vmatprep.subr.bf16.mxu0 0
        %2271 = vmatpush2.bf16.xpose.msra.mxu0 0
        %2272 = vmatprep.subr.bf16.mxu0 0
        %2273 = vmatpush2.bf16.xpose.msra.mxu0 0
        %2274 = vmatprep.subr.bf16.mxu0 0
        %2275 = vmatpush2.bf16.xpose.msra.mxu0 0
        %2276 = vmatprep.subr.bf16.mxu0 0
        %2277 = vmatpush2.bf16.xpose.msra.mxu0 0
        %2278 = vmatprep.subr.bf16.mxu0 0
        %2279 = vmatpush2.bf16.xpose.msra.mxu0 0
        %2280 = vmatprep.subr.bf16.mxu0 0
        %2281 = vmatpush2.bf16.xpose.msra.mxu0 0
        %2282 = vmatprep.subr.bf16.mxu0 0
        %2283 = vmatpush2.bf16.xpose.msra.mxu0 0
        %2284 = vmatprep.subr.bf16.mxu0 0
        %2285 = vmatpush2.bf16.xpose.msra.mxu0 0
        %2286 = vmatprep.mubr.bf16.mxu0 0
        %2287 = vmatmul.mubr.bf16.gmra.mxu0 %v1004
        %v2288 = vpop.f32.mrf.mxu0
        %v2289 = vadd.f32 0.0, %v2288
        %v2290 = vpop.f32.mrf.mxu0
        %v2291 = vpop.f32.mrf.mxu0
        %v2292 = vpop.f32.mrf.mxu0
        %2293 = vdwg.mxu0
        %v2294 = vsel %vm1601, %v2289, -inf
        %2295 = vmax.xlane.f32.xlu0 %v2294
        %v2296 = vpop.xlane.xlu0 %2295
        %v2297 = vsub.f32 %v2289, %v2296
        %v2298 = vmul.f32 %v2297, 1.442695
        %v2299 = vpow.pop %v2298
        %v2300 = vsel %vm1601, %v2299, 0.0
        %2301 = vadd.xlane.f32.xlu0 %v2300
        %v2302 = vpop.xlane.xlu0 %2301
        %v2303 = vrcp.pop %v2302
        %v2304 = vmul.f32 %v2299, %v2303
        %v2305 = vpack.c.bf16 %v2304, %v2304
        %v2307 = vsel %vm1601, %v2305, 0
        %v2310 = vsel %vm1669, %v1560, 0
        %2312 = vmatprep.subr.bf16.mxu0 0
        %2313 = vmatpush1.bf16.msra.mxu0 0
        %2314 = vmatprep.subr.bf16.mxu0 0
        %2315 = vmatpush1.bf16.msra.mxu0 0
        %2316 = vmatprep.subr.bf16.mxu0 0
        %2317 = vmatpush1.bf16.msra.mxu0 0
        %2318 = vmatprep.subr.bf16.mxu0 0
        %2319 = vmatpush1.bf16.msra.mxu0 0
        %2320 = vmatprep.subr.bf16.mxu0 0
        %2321 = vmatpush1.bf16.msra.mxu0 0
        %2322 = vmatprep.subr.bf16.mxu0 0
        %2323 = vmatpush1.bf16.msra.mxu0 0
        %2324 = vmatprep.subr.bf16.mxu0 0
        %2325 = vmatpush1.bf16.msra.mxu0 0
        %2326 = vmatprep.subr.bf16.mxu0 0
        %2327 = vmatpush1.bf16.msra.mxu0 %v2310
        %2328 = vmatprep.subr.bf16.mxu0 0
        %2329 = vmatpush2.bf16.msra.mxu0 0
        %2330 = vmatprep.subr.bf16.mxu0 0
        %2331 = vmatpush2.bf16.msra.mxu0 0
        %2332 = vmatprep.subr.bf16.mxu0 0
        %2333 = vmatpush2.bf16.msra.mxu0 0
        %2334 = vmatprep.subr.bf16.mxu0 0
        %2335 = vmatpush2.bf16.msra.mxu0 0
        %2336 = vmatprep.subr.bf16.mxu0 0
        %2337 = vmatpush2.bf16.msra.mxu0 0
        %2338 = vmatprep.subr.bf16.mxu0 0
        %2339 = vmatpush2.bf16.msra.mxu0 0
        %2340 = vmatprep.subr.bf16.mxu0 0
        %2341 = vmatpush2.bf16.msra.mxu0 0
        %2342 = vmatprep.subr.bf16.mxu0 0
        %2343 = vmatpush2.bf16.msra.mxu0 0
        %2344 = vmatprep.mubr.bf16.mxu0 0
        %2345 = vmatmul.mubr.bf16.gmra.mxu0 %v2307
        %v2346 = vpop.f32.mrf.mxu0
        %v2347 = vadd.f32 0.0, %v2346
        %v2348 = vpop.f32.mrf.mxu0
        %v2349 = vpop.f32.mrf.mxu0
        %v2350 = vpop.f32.mrf.mxu0
        %2351 = vdwg.mxu0
        %v2352 = vadd.f32 %v2253, %v2347
        %v2353 = vld [vmem:[#allocation7] sm:$0x1]
        %v2355 = vlaneseq
        %v2356 = vshrl.u32 %v2355, 7
        %v2357 = vsub.s32 0, %v2356
        %v2358 = vrot.slane %v2353, %v2357
        %v2360 = vadd.f32 %v2352, %v2358
        %v2361 = vunpack.c.l.bf16 %v405
        %v2362 = vadd.f32 %v2360, %v2361
        %v2363 = vld [vmem:[%s6] sm:$0x1]
        %v2364 = vld [vmem:[%s7] sm:$0x1]
        %2365 = vadd.xlane.f32.xlu0 %v2362
        %v2366 = vpop.xlane.xlu0 %2365
        %v2367 = vrcp.pop 128.0
        %v2368 = vmul.f32 %v2366, %v2367
        %v2369 = vsub.f32 %v2362, %v2368
        %v2370 = vmul.f32 %v2369, %v2369
        %2371 = vadd.xlane.f32.xlu0 %v2370
        %v2372 = vpop.xlane.xlu0 %2371
        %v2373 = vmul.f32 %v2372, %v2367
        %v2374 = vadd.f32 %v2373, 1e-05
        %v2375 = vrsqrt.pop %v2374
        %v2376 = vmul.f32 %v2369, %v2375
        %v2378 = vlaneseq
        %v2379 = vshrl.u32 %v2378, 7
        %v2380 = vsub.s32 0, %v2379
        %v2381 = vrot.slane %v2363, %v2380
        %v2383 = vmul.f32 %v2376, %v2381
        %v2385 = vlaneseq
        %v2386 = vshrl.u32 %v2385, 7
        %v2387 = vsub.s32 0, %v2386
        %v2388 = vrot.slane %v2364, %v2387
        %v2390 = vadd.f32 %v2383, %v2388
        %v2391 = vpack.c.bf16 %v2390, %v2390
        %2392 = vst [vmem:[%s403] sm:$0xf] %v2391
        %p2393 = scmp.lt.s32.totalorder %s26, 1
        %s2394 = scalar_select %p2393, %s26, 1
        %p2395 = scmp.lt.s32.totalorder %s27, 0
        %s2396 = scalar_select %p2395, %s27, 0
        %s2397 = sadd.s32 %s2396, %s2394
        %s2398 = smul.addr %s2397, 4
        %s2399 = scalar_lea.vmem %s8, %s2398
        // Predicated region
        $region69: #{custom_transformer_forward.7} parent=51 // pred_check
          %p2400 = pneg %p234
        $region70: #{custom_transformer_forward.7} parent=51 // pred_check_branch
          %2402 = sbr.rel (%p2400) target = $region72
        $region71: #{custom_transformer_forward.7} parent=51 // pred_region
          _
        $region72: #{custom_transformer_forward.7} parent=51 // pred_fallthru
          _
      $region52: #{custom_transformer_forward.7} parent=5 // pred_fallthru
        _
      %p2403 = scmp.le.s32.totalorder 2, %s17
      // Predicated region
      $region73: #{custom_transformer_forward.7} parent=5 // pred_check
        %p2404 = pneg %p2403
      $region74: #{custom_transformer_forward.7} parent=5 // pred_check_branch
        %2406 = sbr.rel (%p2404) target = $region76
      $region75: #{custom_transformer_forward.7} parent=5 // pred_region
        %s2407 = ssub.s32 %s17, 2
        // Predicated region
        $region77: #{custom_transformer_forward.7} parent=75 // pred_check
          %p2408 = pneg %p240
        $region78: #{custom_transformer_forward.7} parent=75 // pred_check_branch
          %2410 = sbr.rel (%p2408) target = $region80
        $region79: #{custom_transformer_forward.7} parent=75 // pred_region
          %p2411 = scmp.lt.s32.totalorder %s28, 1
          %s2412 = scalar_select %p2411, %s28, 1
          %p2413 = scmp.lt.s32.totalorder %s29, 0
          %s2414 = scalar_select %p2413, %s29, 0
          %s2415 = sadd.s32 %s2414, %s2412
          %s2416 = smul.addr %s2415, 4
          %s2417 = scalar_lea.vmem %s8, %s2416
        $region80: #{custom_transformer_forward.7} parent=75 // pred_fallthru
          _
      $region76: #{custom_transformer_forward.7} parent=5 // pred_fallthru
        _
    $region6: #{custom_transformer_forward.7} parent=1 // loop_footer
      %s21 = sadd.s32 1, %s17
    $region7: #{custom_transformer_forward.7} parent=1 // loop_footer_branch
      %16 = sbr.rel target = $region3
    $region8: #{custom_transformer_forward.7} parent=1 // loop_exit
      _
    %2418 = vsyncpa [#allocation3], 1
    %s2419 = scalar_lea.sflag [#allocation3], 1
    %2420 = vsyncpa %s2419, 1
    %2421 = vsyncpa [#allocation5], 1
    %2422 = vsyncpa [#allocation8], 1

// kernel: custom_transformer_forward.8
$region0: #{custom_transformer_forward.8}
  #allocation0 [shape = 'u32[]', space=smem, size = 0x4, offset = 0x4, fixed_abs, tag = 'smem constant byte address 0x4 - core index']
  #allocation1 [shape = 'u32[144,128]{1,0:T(1,128)}', space=vmem, size = 0x12000, scoped, tag = 'internal scratch']
  %s0 = inlined_call_operand.vmem [shape: bf16[16,128], index: 0, kind: input, shape index: {}]
  %s1 = inlined_call_operand.vmem [shape: bf16[128,2048], index: 1, kind: input, shape index: {}]
  %s2 = inlined_call_operand.vmem [shape: f32[1,2048], index: 2, kind: input, shape index: {}]
  %s3 = inlined_call_operand.hbm [shape: bf16[2048,128], index: 3, kind: input, shape index: {}]
  %s4 = inlined_call_operand.vmem [shape: f32[1,128], index: 4, kind: input, shape index: {}]
  %s5 = inlined_call_operand.vmem [shape: f32[1,128], index: 5, kind: input, shape index: {}]
  %s6 = inlined_call_operand.vmem [shape: f32[1,128], index: 6, kind: input, shape index: {}]
  %s7 = inlined_call_operand.vmem [shape: bf16[16,128], index: 7, kind: output, shape index: {}]
  %s8 = sld [smem:[#allocation0]]
  $region42: #{custom_transformer_forward.8} parent=0
    _
  %s10 = ssub.s32 1, %s8
  %s11 = scalar_select 0, %s10, %s8
  $region1: #{custom_transformer_forward.8} parent=0
    #allocation2 [shape = 'u8[524288]{0}', space=vmem, size = 0x80000, scoped, tag = 'input window, operand 3, single buffered']
    #allocation3 [shape = 's32[1]{0}', space=sflag, size = 0x4, scoped, tag = 'scoped memory for custom_transformer_forward.8']
    %12 = vsyncpa [#allocation3], 0
    // Predicated region
    $region2: #{custom_transformer_forward.8} parent=1 // pred_check
      _
    $region3: #{custom_transformer_forward.8} parent=1 // pred_check_branch
      %14 = sbr.rel (0) target = $region5
    $region4: #{custom_transformer_forward.8} parent=1 // pred_region
      _
    $region5: #{custom_transformer_forward.8} parent=1 // pred_fallthru
      _
    // Predicated region
    $region6: #{custom_transformer_forward.8} parent=1 // pred_check
      _
    $region7: #{custom_transformer_forward.8} parent=1 // pred_check_branch
      %16 = sbr.rel (0) target = $region9
    $region8: #{custom_transformer_forward.8} parent=1 // pred_region
      _
    $region9: #{custom_transformer_forward.8} parent=1 // pred_fallthru
      _
    // Predicated region
    $region10: #{custom_transformer_forward.8} parent=1 // pred_check
      _
    $region11: #{custom_transformer_forward.8} parent=1 // pred_check_branch
      %18 = sbr.rel (0) target = $region13
    $region12: #{custom_transformer_forward.8} parent=1 // pred_region
      _
    $region13: #{custom_transformer_forward.8} parent=1 // pred_fallthru
      _
    // Predicated region
    $region14: #{custom_transformer_forward.8} parent=1 // pred_check
      _
    $region15: #{custom_transformer_forward.8} parent=1 // pred_check_branch
      %20 = sbr.rel (0) target = $region17
    $region16: #{custom_transformer_forward.8} parent=1 // pred_region
      %s22 = ssub.s32 16384, 16384
      %23 = vsyncadd [#allocation3], %s22
      %s24 = sshll.u32 [#allocation2], 4
      %s25 = int_to_ptr.vmem [resolvable:$true] %s24
      %30 = dma.hbm_to_vmem [thread:$0]  %s3, 16384, %s25, [#allocation3], 64, 64, 4
    $region17: #{custom_transformer_forward.8} parent=1 // pred_fallthru
      _
    // Predicated region
    $region18: #{custom_transformer_forward.8} parent=1 // pred_check
      _
    $region19: #{custom_transformer_forward.8} parent=1 // pred_check_branch
      %32 = sbr.rel (0) target = $region21
    $region20: #{custom_transformer_forward.8} parent=1 // pred_region
      _
    $region21: #{custom_transformer_forward.8} parent=1 // pred_fallthru
      _
    // Predicated region
    $region22: #{custom_transformer_forward.8} parent=1 // pred_check
      _
    $region23: #{custom_transformer_forward.8} parent=1 // pred_check_branch
      %34 = sbr.rel (0) target = $region25
    $region24: #{custom_transformer_forward.8} parent=1 // pred_region
      _
    $region25: #{custom_transformer_forward.8} parent=1 // pred_fallthru
      _
    // Predicated region
    $region26: #{custom_transformer_forward.8} parent=1 // pred_check
      _
    $region27: #{custom_transformer_forward.8} parent=1 // pred_check_branch
      %36 = sbr.rel (0) target = $region29
    $region28: #{custom_transformer_forward.8} parent=1 // pred_region
      _
    $region29: #{custom_transformer_forward.8} parent=1 // pred_fallthru
      _
    // Predicated region
    $region30: #{custom_transformer_forward.8} parent=1 // pred_check
      _
    $region31: #{custom_transformer_forward.8} parent=1 // pred_check_branch
      %38 = sbr.rel (0) target = $region33
    $region32: #{custom_transformer_forward.8} parent=1 // pred_region
      %39 = dma.done [#allocation3], 16384
    $region33: #{custom_transformer_forward.8} parent=1 // pred_fallthru
      _
    %v41 = vld [vmem:[%s0] sm:$0xf]
    %v42 = vld [vmem:[%s0 + $0x4] sm:$0xf]
    %v43 = vld [vmem:[%s1] sm:$0xff]
    %v44 = vld [vmem:[%s1 + $0x8] sm:$0xff]
    %v45 = vld [vmem:[%s1 + $0x10] sm:$0xff]
    %v46 = vld [vmem:[%s1 + $0x18] sm:$0xff]
    %v47 = vld [vmem:[%s1 + $0x20] sm:$0xff]
    %v48 = vld [vmem:[%s1 + $0x28] sm:$0xff]
    %v49 = vld [vmem:[%s1 + $0x30] sm:$0xff]
    %v50 = vld [vmem:[%s1 + $0x38] sm:$0xff]
    %v51 = vld [vmem:[%s1 + $0x40] sm:$0xff]
    %v52 = vld [vmem:[%s1 + $0x48] sm:$0xff]
    %v53 = vld [vmem:[%s1 + $0x50] sm:$0xff]
    %v54 = vld [vmem:[%s1 + $0x58] sm:$0xff]
    %v55 = vld [vmem:[%s1 + $0x60] sm:$0xff]
    %v56 = vld [vmem:[%s1 + $0x68] sm:$0xff]
    %v57 = vld [vmem:[%s1 + $0x70] sm:$0xff]
    %v58 = vld [vmem:[%s1 + $0x78] sm:$0xff]
    %v59 = vld [vmem:[%s1 + $0x80] sm:$0xff]
    %v60 = vld [vmem:[%s1 + $0x88] sm:$0xff]
    %v61 = vld [vmem:[%s1 + $0x90] sm:$0xff]
    %v62 = vld [vmem:[%s1 + $0x98] sm:$0xff]
    %v63 = vld [vmem:[%s1 + $0xa0] sm:$0xff]
    %v64 = vld [vmem:[%s1 + $0xa8] sm:$0xff]
    %v65 = vld [vmem:[%s1 + $0xb0] sm:$0xff]
    %v66 = vld [vmem:[%s1 + $0xb8] sm:$0xff]
    %v67 = vld [vmem:[%s1 + $0xc0] sm:$0xff]
    %v68 = vld [vmem:[%s1 + $0xc8] sm:$0xff]
    %v69 = vld [vmem:[%s1 + $0xd0] sm:$0xff]
    %v70 = vld [vmem:[%s1 + $0xd8] sm:$0xff]
    %v71 = vld [vmem:[%s1 + $0xe0] sm:$0xff]
    %v72 = vld [vmem:[%s1 + $0xe8] sm:$0xff]
    %v73 = vld [vmem:[%s1 + $0xf0] sm:$0xff]
    %v74 = vld [vmem:[%s1 + $0xf8] sm:$0xff]
    %v75 = vld [vmem:[%s1 + $0x100] sm:$0xff]
    %v76 = vld [vmem:[%s1 + $0x108] sm:$0xff]
    %v77 = vld [vmem:[%s1 + $0x110] sm:$0xff]
    %v78 = vld [vmem:[%s1 + $0x118] sm:$0xff]
    %v79 = vld [vmem:[%s1 + $0x120] sm:$0xff]
    %v80 = vld [vmem:[%s1 + $0x128] sm:$0xff]
    %v81 = vld [vmem:[%s1 + $0x130] sm:$0xff]
    %v82 = vld [vmem:[%s1 + $0x138] sm:$0xff]
    %v83 = vld [vmem:[%s1 + $0x140] sm:$0xff]
    %v84 = vld [vmem:[%s1 + $0x148] sm:$0xff]
    %v85 = vld [vmem:[%s1 + $0x150] sm:$0xff]
    %v86 = vld [vmem:[%s1 + $0x158] sm:$0xff]
    %v87 = vld [vmem:[%s1 + $0x160] sm:$0xff]
    %v88 = vld [vmem:[%s1 + $0x168] sm:$0xff]
    %v89 = vld [vmem:[%s1 + $0x170] sm:$0xff]
    %v90 = vld [vmem:[%s1 + $0x178] sm:$0xff]
    %v91 = vld [vmem:[%s1 + $0x180] sm:$0xff]
    %v92 = vld [vmem:[%s1 + $0x188] sm:$0xff]
    %v93 = vld [vmem:[%s1 + $0x190] sm:$0xff]
    %v94 = vld [vmem:[%s1 + $0x198] sm:$0xff]
    %v95 = vld [vmem:[%s1 + $0x1a0] sm:$0xff]
    %v96 = vld [vmem:[%s1 + $0x1a8] sm:$0xff]
    %v97 = vld [vmem:[%s1 + $0x1b0] sm:$0xff]
    %v98 = vld [vmem:[%s1 + $0x1b8] sm:$0xff]
    %v99 = vld [vmem:[%s1 + $0x1c0] sm:$0xff]
    %v100 = vld [vmem:[%s1 + $0x1c8] sm:$0xff]
    %v101 = vld [vmem:[%s1 + $0x1d0] sm:$0xff]
    %v102 = vld [vmem:[%s1 + $0x1d8] sm:$0xff]
    %v103 = vld [vmem:[%s1 + $0x1e0] sm:$0xff]
    %v104 = vld [vmem:[%s1 + $0x1e8] sm:$0xff]
    %v105 = vld [vmem:[%s1 + $0x1f0] sm:$0xff]
    %v106 = vld [vmem:[%s1 + $0x1f8] sm:$0xff]
    %v107 = vld [vmem:[%s1 + $0x200] sm:$0xff]
    %v108 = vld [vmem:[%s1 + $0x208] sm:$0xff]
    %v109 = vld [vmem:[%s1 + $0x210] sm:$0xff]
    %v110 = vld [vmem:[%s1 + $0x218] sm:$0xff]
    %v111 = vld [vmem:[%s1 + $0x220] sm:$0xff]
    %v112 = vld [vmem:[%s1 + $0x228] sm:$0xff]
    %v113 = vld [vmem:[%s1 + $0x230] sm:$0xff]
    %v114 = vld [vmem:[%s1 + $0x238] sm:$0xff]
    %v115 = vld [vmem:[%s1 + $0x240] sm:$0xff]
    %v116 = vld [vmem:[%s1 + $0x248] sm:$0xff]
    %v117 = vld [vmem:[%s1 + $0x250] sm:$0xff]
    %v118 = vld [vmem:[%s1 + $0x258] sm:$0xff]
    %v119 = vld [vmem:[%s1 + $0x260] sm:$0xff]
    %v120 = vld [vmem:[%s1 + $0x268] sm:$0xff]
    %v121 = vld [vmem:[%s1 + $0x270] sm:$0xff]
    %v122 = vld [vmem:[%s1 + $0x278] sm:$0xff]
    %v123 = vld [vmem:[%s1 + $0x280] sm:$0xff]
    %v124 = vld [vmem:[%s1 + $0x288] sm:$0xff]
    %v125 = vld [vmem:[%s1 + $0x290] sm:$0xff]
    %v126 = vld [vmem:[%s1 + $0x298] sm:$0xff]
    %v127 = vld [vmem:[%s1 + $0x2a0] sm:$0xff]
    %v128 = vld [vmem:[%s1 + $0x2a8] sm:$0xff]
    %v129 = vld [vmem:[%s1 + $0x2b0] sm:$0xff]
    %v130 = vld [vmem:[%s1 + $0x2b8] sm:$0xff]
    %v131 = vld [vmem:[%s1 + $0x2c0] sm:$0xff]
    %v132 = vld [vmem:[%s1 + $0x2c8] sm:$0xff]
    %v133 = vld [vmem:[%s1 + $0x2d0] sm:$0xff]
    %v134 = vld [vmem:[%s1 + $0x2d8] sm:$0xff]
    %v135 = vld [vmem:[%s1 + $0x2e0] sm:$0xff]
    %v136 = vld [vmem:[%s1 + $0x2e8] sm:$0xff]
    %v137 = vld [vmem:[%s1 + $0x2f0] sm:$0xff]
    %v138 = vld [vmem:[%s1 + $0x2f8] sm:$0xff]
    %v139 = vld [vmem:[%s1 + $0x300] sm:$0xff]
    %v140 = vld [vmem:[%s1 + $0x308] sm:$0xff]
    %v141 = vld [vmem:[%s1 + $0x310] sm:$0xff]
    %v142 = vld [vmem:[%s1 + $0x318] sm:$0xff]
    %v143 = vld [vmem:[%s1 + $0x320] sm:$0xff]
    %v144 = vld [vmem:[%s1 + $0x328] sm:$0xff]
    %v145 = vld [vmem:[%s1 + $0x330] sm:$0xff]
    %v146 = vld [vmem:[%s1 + $0x338] sm:$0xff]
    %v147 = vld [vmem:[%s1 + $0x340] sm:$0xff]
    %v148 = vld [vmem:[%s1 + $0x348] sm:$0xff]
    %v149 = vld [vmem:[%s1 + $0x350] sm:$0xff]
    %v150 = vld [vmem:[%s1 + $0x358] sm:$0xff]
    %v151 = vld [vmem:[%s1 + $0x360] sm:$0xff]
    %v152 = vld [vmem:[%s1 + $0x368] sm:$0xff]
    %v153 = vld [vmem:[%s1 + $0x370] sm:$0xff]
    %v154 = vld [vmem:[%s1 + $0x378] sm:$0xff]
    %v155 = vld [vmem:[%s1 + $0x380] sm:$0xff]
    %v156 = vld [vmem:[%s1 + $0x388] sm:$0xff]
    %v157 = vld [vmem:[%s1 + $0x390] sm:$0xff]
    %v158 = vld [vmem:[%s1 + $0x398] sm:$0xff]
    %v159 = vld [vmem:[%s1 + $0x3a0] sm:$0xff]
    %v160 = vld [vmem:[%s1 + $0x3a8] sm:$0xff]
    %v161 = vld [vmem:[%s1 + $0x3b0] sm:$0xff]
    %v162 = vld [vmem:[%s1 + $0x3b8] sm:$0xff]
    %v163 = vld [vmem:[%s1 + $0x3c0] sm:$0xff]
    %v164 = vld [vmem:[%s1 + $0x3c8] sm:$0xff]
    %v165 = vld [vmem:[%s1 + $0x3d0] sm:$0xff]
    %v166 = vld [vmem:[%s1 + $0x3d8] sm:$0xff]
    %v167 = vld [vmem:[%s1 + $0x3e0] sm:$0xff]
    %v168 = vld [vmem:[%s1 + $0x3e8] sm:$0xff]
    %v169 = vld [vmem:[%s1 + $0x3f0] sm:$0xff]
    %v170 = vld [vmem:[%s1 + $0x3f8] sm:$0xff]
    %v171 = vld [vmem:[%s2] sm:$0xff]
    %v172 = vld [vmem:[%s2 + $0x8] sm:$0xff]
    %v175 = vlaneseq
    %v176 = vshrl.u32 %v175, 7
    %v177 = vsub.s32 0, %v176
    %v178 = vrot.slane %v171, %v177
    %v179 = vlaneseq
    %v180 = vshrl.u32 %v179, 7
    %v181 = vsub.s32 1, %v180
    %v182 = vrot.slane %v171, %v181
    %v183 = vlaneseq
    %v184 = vshrl.u32 %v183, 7
    %v185 = vsub.s32 2, %v184
    %v186 = vrot.slane %v171, %v185
    %v187 = vlaneseq
    %v188 = vshrl.u32 %v187, 7
    %v189 = vsub.s32 3, %v188
    %v190 = vrot.slane %v171, %v189
    %v191 = vlaneseq
    %v192 = vshrl.u32 %v191, 7
    %v193 = vsub.s32 4, %v192
    %v194 = vrot.slane %v171, %v193
    %v195 = vlaneseq
    %v196 = vshrl.u32 %v195, 7
    %v197 = vsub.s32 5, %v196
    %v198 = vrot.slane %v171, %v197
    %v199 = vlaneseq
    %v200 = vshrl.u32 %v199, 7
    %v201 = vsub.s32 6, %v200
    %v202 = vrot.slane %v171, %v201
    %v203 = vlaneseq
    %v204 = vshrl.u32 %v203, 7
    %v205 = vsub.s32 7, %v204
    %v206 = vrot.slane %v171, %v205
    %v207 = vlaneseq
    %v208 = vshrl.u32 %v207, 7
    %v209 = vsub.s32 0, %v208
    %v210 = vrot.slane %v172, %v209
    %v211 = vlaneseq
    %v212 = vshrl.u32 %v211, 7
    %v213 = vsub.s32 1, %v212
    %v214 = vrot.slane %v172, %v213
    %v215 = vlaneseq
    %v216 = vshrl.u32 %v215, 7
    %v217 = vsub.s32 2, %v216
    %v218 = vrot.slane %v172, %v217
    %v219 = vlaneseq
    %v220 = vshrl.u32 %v219, 7
    %v221 = vsub.s32 3, %v220
    %v222 = vrot.slane %v172, %v221
    %v223 = vlaneseq
    %v224 = vshrl.u32 %v223, 7
    %v225 = vsub.s32 4, %v224
    %v226 = vrot.slane %v172, %v225
    %v227 = vlaneseq
    %v228 = vshrl.u32 %v227, 7
    %v229 = vsub.s32 5, %v228
    %v230 = vrot.slane %v172, %v229
    %v231 = vlaneseq
    %v232 = vshrl.u32 %v231, 7
    %v233 = vsub.s32 6, %v232
    %v234 = vrot.slane %v172, %v233
    %v235 = vlaneseq
    %v236 = vshrl.u32 %v235, 7
    %v237 = vsub.s32 7, %v236
    %v238 = vrot.slane %v172, %v237
    %v257 = vunpack.c.l.b16 %v41
    %v258 = vunpack.c.l.b16 %v42
    %v259 = vpack.c.b16 %v258, %v257
    %v389 = vunpack.c.l.b16 %v43
    %v390 = vunpack.c.h.b16 %v43
    %v391 = vunpack.c.l.b16 %v44
    %v392 = vunpack.c.h.b16 %v44
    %v393 = vunpack.c.l.b16 %v45
    %v394 = vunpack.c.h.b16 %v45
    %v395 = vunpack.c.l.b16 %v46
    %v396 = vunpack.c.h.b16 %v46
    %v397 = vunpack.c.l.b16 %v47
    %v398 = vunpack.c.h.b16 %v47
    %v399 = vunpack.c.l.b16 %v48
    %v400 = vunpack.c.h.b16 %v48
    %v401 = vunpack.c.l.b16 %v49
    %v402 = vunpack.c.h.b16 %v49
    %v403 = vunpack.c.l.b16 %v50
    %v404 = vunpack.c.h.b16 %v50
    %v405 = vunpack.c.l.b16 %v51
    %v406 = vunpack.c.h.b16 %v51
    %v407 = vunpack.c.l.b16 %v52
    %v408 = vunpack.c.h.b16 %v52
    %v409 = vunpack.c.l.b16 %v53
    %v410 = vunpack.c.h.b16 %v53
    %v411 = vunpack.c.l.b16 %v54
    %v412 = vunpack.c.h.b16 %v54
    %v413 = vunpack.c.l.b16 %v55
    %v414 = vunpack.c.h.b16 %v55
    %v415 = vunpack.c.l.b16 %v56
    %v416 = vunpack.c.h.b16 %v56
    %v417 = vunpack.c.l.b16 %v57
    %v418 = vunpack.c.h.b16 %v57
    %v419 = vunpack.c.l.b16 %v58
    %v420 = vunpack.c.h.b16 %v58
    %v421 = vunpack.c.l.b16 %v59
    %v422 = vunpack.c.h.b16 %v59
    %v423 = vunpack.c.l.b16 %v60
    %v424 = vunpack.c.h.b16 %v60
    %v425 = vunpack.c.l.b16 %v61
    %v426 = vunpack.c.h.b16 %v61
    %v427 = vunpack.c.l.b16 %v62
    %v428 = vunpack.c.h.b16 %v62
    %v429 = vunpack.c.l.b16 %v63
    %v430 = vunpack.c.h.b16 %v63
    %v431 = vunpack.c.l.b16 %v64
    %v432 = vunpack.c.h.b16 %v64
    %v433 = vunpack.c.l.b16 %v65
    %v434 = vunpack.c.h.b16 %v65
    %v435 = vunpack.c.l.b16 %v66
    %v436 = vunpack.c.h.b16 %v66
    %v437 = vunpack.c.l.b16 %v67
    %v438 = vunpack.c.h.b16 %v67
    %v439 = vunpack.c.l.b16 %v68
    %v440 = vunpack.c.h.b16 %v68
    %v441 = vunpack.c.l.b16 %v69
    %v442 = vunpack.c.h.b16 %v69
    %v443 = vunpack.c.l.b16 %v70
    %v444 = vunpack.c.h.b16 %v70
    %v445 = vunpack.c.l.b16 %v71
    %v446 = vunpack.c.h.b16 %v71
    %v447 = vunpack.c.l.b16 %v72
    %v448 = vunpack.c.h.b16 %v72
    %v449 = vunpack.c.l.b16 %v73
    %v450 = vunpack.c.h.b16 %v73
    %v451 = vunpack.c.l.b16 %v74
    %v452 = vunpack.c.h.b16 %v74
    %v453 = vunpack.c.l.b16 %v75
    %v454 = vunpack.c.h.b16 %v75
    %v455 = vunpack.c.l.b16 %v76
    %v456 = vunpack.c.h.b16 %v76
    %v457 = vunpack.c.l.b16 %v77
    %v458 = vunpack.c.h.b16 %v77
    %v459 = vunpack.c.l.b16 %v78
    %v460 = vunpack.c.h.b16 %v78
    %v461 = vunpack.c.l.b16 %v79
    %v462 = vunpack.c.h.b16 %v79
    %v463 = vunpack.c.l.b16 %v80
    %v464 = vunpack.c.h.b16 %v80
    %v465 = vunpack.c.l.b16 %v81
    %v466 = vunpack.c.h.b16 %v81
    %v467 = vunpack.c.l.b16 %v82
    %v468 = vunpack.c.h.b16 %v82
    %v469 = vunpack.c.l.b16 %v83
    %v470 = vunpack.c.h.b16 %v83
    %v471 = vunpack.c.l.b16 %v84
    %v472 = vunpack.c.h.b16 %v84
    %v473 = vunpack.c.l.b16 %v85
    %v474 = vunpack.c.h.b16 %v85
    %v475 = vunpack.c.l.b16 %v86
    %v476 = vunpack.c.h.b16 %v86
    %v477 = vunpack.c.l.b16 %v87
    %v478 = vunpack.c.h.b16 %v87
    %v479 = vunpack.c.l.b16 %v88
    %v480 = vunpack.c.h.b16 %v88
    %v481 = vunpack.c.l.b16 %v89
    %v482 = vunpack.c.h.b16 %v89
    %v483 = vunpack.c.l.b16 %v90
    %v484 = vunpack.c.h.b16 %v90
    %v485 = vunpack.c.l.b16 %v91
    %v486 = vunpack.c.h.b16 %v91
    %v487 = vunpack.c.l.b16 %v92
    %v488 = vunpack.c.h.b16 %v92
    %v489 = vunpack.c.l.b16 %v93
    %v490 = vunpack.c.h.b16 %v93
    %v491 = vunpack.c.l.b16 %v94
    %v492 = vunpack.c.h.b16 %v94
    %v493 = vunpack.c.l.b16 %v95
    %v494 = vunpack.c.h.b16 %v95
    %v495 = vunpack.c.l.b16 %v96
    %v496 = vunpack.c.h.b16 %v96
    %v497 = vunpack.c.l.b16 %v97
    %v498 = vunpack.c.h.b16 %v97
    %v499 = vunpack.c.l.b16 %v98
    %v500 = vunpack.c.h.b16 %v98
    %v501 = vunpack.c.l.b16 %v99
    %v502 = vunpack.c.h.b16 %v99
    %v503 = vunpack.c.l.b16 %v100
    %v504 = vunpack.c.h.b16 %v100
    %v505 = vunpack.c.l.b16 %v101
    %v506 = vunpack.c.h.b16 %v101
    %v507 = vunpack.c.l.b16 %v102
    %v508 = vunpack.c.h.b16 %v102
    %v509 = vunpack.c.l.b16 %v103
    %v510 = vunpack.c.h.b16 %v103
    %v511 = vunpack.c.l.b16 %v104
    %v512 = vunpack.c.h.b16 %v104
    %v513 = vunpack.c.l.b16 %v105
    %v514 = vunpack.c.h.b16 %v105
    %v515 = vunpack.c.l.b16 %v106
    %v516 = vunpack.c.h.b16 %v106
    %v517 = vunpack.c.l.b16 %v107
    %v518 = vunpack.c.h.b16 %v107
    %v519 = vunpack.c.l.b16 %v108
    %v520 = vunpack.c.h.b16 %v108
    %v521 = vunpack.c.l.b16 %v109
    %v522 = vunpack.c.h.b16 %v109
    %v523 = vunpack.c.l.b16 %v110
    %v524 = vunpack.c.h.b16 %v110
    %v525 = vunpack.c.l.b16 %v111
    %v526 = vunpack.c.h.b16 %v111
    %v527 = vunpack.c.l.b16 %v112
    %v528 = vunpack.c.h.b16 %v112
    %v529 = vunpack.c.l.b16 %v113
    %v530 = vunpack.c.h.b16 %v113
    %v531 = vunpack.c.l.b16 %v114
    %v532 = vunpack.c.h.b16 %v114
    %v533 = vunpack.c.l.b16 %v115
    %v534 = vunpack.c.h.b16 %v115
    %v535 = vunpack.c.l.b16 %v116
    %v536 = vunpack.c.h.b16 %v116
    %v537 = vunpack.c.l.b16 %v117
    %v538 = vunpack.c.h.b16 %v117
    %v539 = vunpack.c.l.b16 %v118
    %v540 = vunpack.c.h.b16 %v118
    %v541 = vunpack.c.l.b16 %v119
    %v542 = vunpack.c.h.b16 %v119
    %v543 = vunpack.c.l.b16 %v120
    %v544 = vunpack.c.h.b16 %v120
    %v545 = vunpack.c.l.b16 %v121
    %v546 = vunpack.c.h.b16 %v121
    %v547 = vunpack.c.l.b16 %v122
    %v548 = vunpack.c.h.b16 %v122
    %v549 = vunpack.c.l.b16 %v123
    %v550 = vunpack.c.h.b16 %v123
    %v551 = vunpack.c.l.b16 %v124
    %v552 = vunpack.c.h.b16 %v124
    %v553 = vunpack.c.l.b16 %v125
    %v554 = vunpack.c.h.b16 %v125
    %v555 = vunpack.c.l.b16 %v126
    %v556 = vunpack.c.h.b16 %v126
    %v557 = vunpack.c.l.b16 %v127
    %v558 = vunpack.c.h.b16 %v127
    %v559 = vunpack.c.l.b16 %v128
    %v560 = vunpack.c.h.b16 %v128
    %v561 = vunpack.c.l.b16 %v129
    %v562 = vunpack.c.h.b16 %v129
    %v563 = vunpack.c.l.b16 %v130
    %v564 = vunpack.c.h.b16 %v130
    %v565 = vunpack.c.l.b16 %v131
    %v566 = vunpack.c.h.b16 %v131
    %v567 = vunpack.c.l.b16 %v132
    %v568 = vunpack.c.h.b16 %v132
    %v569 = vunpack.c.l.b16 %v133
    %v570 = vunpack.c.h.b16 %v133
    %v571 = vunpack.c.l.b16 %v134
    %v572 = vunpack.c.h.b16 %v134
    %v573 = vunpack.c.l.b16 %v135
    %v574 = vunpack.c.h.b16 %v135
    %v575 = vunpack.c.l.b16 %v136
    %v576 = vunpack.c.h.b16 %v136
    %v577 = vunpack.c.l.b16 %v137
    %v578 = vunpack.c.h.b16 %v137
    %v579 = vunpack.c.l.b16 %v138
    %v580 = vunpack.c.h.b16 %v138
    %v581 = vunpack.c.l.b16 %v139
    %v582 = vunpack.c.h.b16 %v139
    %v583 = vunpack.c.l.b16 %v140
    %v584 = vunpack.c.h.b16 %v140
    %v585 = vunpack.c.l.b16 %v141
    %v586 = vunpack.c.h.b16 %v141
    %v587 = vunpack.c.l.b16 %v142
    %v588 = vunpack.c.h.b16 %v142
    %v589 = vunpack.c.l.b16 %v143
    %v590 = vunpack.c.h.b16 %v143
    %v591 = vunpack.c.l.b16 %v144
    %v592 = vunpack.c.h.b16 %v144
    %v593 = vunpack.c.l.b16 %v145
    %v594 = vunpack.c.h.b16 %v145
    %v595 = vunpack.c.l.b16 %v146
    %v596 = vunpack.c.h.b16 %v146
    %v597 = vunpack.c.l.b16 %v147
    %v598 = vunpack.c.h.b16 %v147
    %v599 = vunpack.c.l.b16 %v148
    %v600 = vunpack.c.h.b16 %v148
    %v601 = vunpack.c.l.b16 %v149
    %v602 = vunpack.c.h.b16 %v149
    %v603 = vunpack.c.l.b16 %v150
    %v604 = vunpack.c.h.b16 %v150
    %v605 = vunpack.c.l.b16 %v151
    %v606 = vunpack.c.h.b16 %v151
    %v607 = vunpack.c.l.b16 %v152
    %v608 = vunpack.c.h.b16 %v152
    %v609 = vunpack.c.l.b16 %v153
    %v610 = vunpack.c.h.b16 %v153
    %v611 = vunpack.c.l.b16 %v154
    %v612 = vunpack.c.h.b16 %v154
    %v613 = vunpack.c.l.b16 %v155
    %v614 = vunpack.c.h.b16 %v155
    %v615 = vunpack.c.l.b16 %v156
    %v616 = vunpack.c.h.b16 %v156
    %v617 = vunpack.c.l.b16 %v157
    %v618 = vunpack.c.h.b16 %v157
    %v619 = vunpack.c.l.b16 %v158
    %v620 = vunpack.c.h.b16 %v158
    %v621 = vunpack.c.l.b16 %v159
    %v622 = vunpack.c.h.b16 %v159
    %v623 = vunpack.c.l.b16 %v160
    %v624 = vunpack.c.h.b16 %v160
    %v625 = vunpack.c.l.b16 %v161
    %v626 = vunpack.c.h.b16 %v161
    %v627 = vunpack.c.l.b16 %v162
    %v628 = vunpack.c.h.b16 %v162
    %v629 = vunpack.c.l.b16 %v163
    %v630 = vunpack.c.h.b16 %v163
    %v631 = vunpack.c.l.b16 %v164
    %v632 = vunpack.c.h.b16 %v164
    %v633 = vunpack.c.l.b16 %v165
    %v634 = vunpack.c.h.b16 %v165
    %v635 = vunpack.c.l.b16 %v166
    %v636 = vunpack.c.h.b16 %v166
    %v637 = vunpack.c.l.b16 %v167
    %v638 = vunpack.c.h.b16 %v167
    %v639 = vunpack.c.l.b16 %v168
    %v640 = vunpack.c.h.b16 %v168
    %v641 = vunpack.c.l.b16 %v169
    %v642 = vunpack.c.h.b16 %v169
    %v643 = vunpack.c.l.b16 %v170
    %v644 = vunpack.c.h.b16 %v170
    %v645 = vpack.c.b16 %v405, %v389
    %v646 = vpack.c.b16 %v406, %v390
    %v647 = vpack.c.b16 %v407, %v391
    %v648 = vpack.c.b16 %v408, %v392
    %v649 = vpack.c.b16 %v409, %v393
    %v650 = vpack.c.b16 %v410, %v394
    %v651 = vpack.c.b16 %v411, %v395
    %v652 = vpack.c.b16 %v412, %v396
    %v653 = vpack.c.b16 %v413, %v397
    %v654 = vpack.c.b16 %v414, %v398
    %v655 = vpack.c.b16 %v415, %v399
    %v656 = vpack.c.b16 %v416, %v400
    %v657 = vpack.c.b16 %v417, %v401
    %v658 = vpack.c.b16 %v418, %v402
    %v659 = vpack.c.b16 %v419, %v403
    %v660 = vpack.c.b16 %v420, %v404
    %v661 = vpack.c.b16 %v437, %v421
    %v662 = vpack.c.b16 %v438, %v422
    %v663 = vpack.c.b16 %v439, %v423
    %v664 = vpack.c.b16 %v440, %v424
    %v665 = vpack.c.b16 %v441, %v425
    %v666 = vpack.c.b16 %v442, %v426
    %v667 = vpack.c.b16 %v443, %v427
    %v668 = vpack.c.b16 %v444, %v428
    %v669 = vpack.c.b16 %v445, %v429
    %v670 = vpack.c.b16 %v446, %v430
    %v671 = vpack.c.b16 %v447, %v431
    %v672 = vpack.c.b16 %v448, %v432
    %v673 = vpack.c.b16 %v449, %v433
    %v674 = vpack.c.b16 %v450, %v434
    %v675 = vpack.c.b16 %v451, %v435
    %v676 = vpack.c.b16 %v452, %v436
    %v677 = vpack.c.b16 %v469, %v453
    %v678 = vpack.c.b16 %v470, %v454
    %v679 = vpack.c.b16 %v471, %v455
    %v680 = vpack.c.b16 %v472, %v456
    %v681 = vpack.c.b16 %v473, %v457
    %v682 = vpack.c.b16 %v474, %v458
    %v683 = vpack.c.b16 %v475, %v459
    %v684 = vpack.c.b16 %v476, %v460
    %v685 = vpack.c.b16 %v477, %v461
    %v686 = vpack.c.b16 %v478, %v462
    %v687 = vpack.c.b16 %v479, %v463
    %v688 = vpack.c.b16 %v480, %v464
    %v689 = vpack.c.b16 %v481, %v465
    %v690 = vpack.c.b16 %v482, %v466
    %v691 = vpack.c.b16 %v483, %v467
    %v692 = vpack.c.b16 %v484, %v468
    %v693 = vpack.c.b16 %v501, %v485
    %v694 = vpack.c.b16 %v502, %v486
    %v695 = vpack.c.b16 %v503, %v487
    %v696 = vpack.c.b16 %v504, %v488
    %v697 = vpack.c.b16 %v505, %v489
    %v698 = vpack.c.b16 %v506, %v490
    %v699 = vpack.c.b16 %v507, %v491
    %v700 = vpack.c.b16 %v508, %v492
    %v701 = vpack.c.b16 %v509, %v493
    %v702 = vpack.c.b16 %v510, %v494
    %v703 = vpack.c.b16 %v511, %v495
    %v704 = vpack.c.b16 %v512, %v496
    %v705 = vpack.c.b16 %v513, %v497
    %v706 = vpack.c.b16 %v514, %v498
    %v707 = vpack.c.b16 %v515, %v499
    %v708 = vpack.c.b16 %v516, %v500
    %v709 = vpack.c.b16 %v533, %v517
    %v710 = vpack.c.b16 %v534, %v518
    %v711 = vpack.c.b16 %v535, %v519
    %v712 = vpack.c.b16 %v536, %v520
    %v713 = vpack.c.b16 %v537, %v521
    %v714 = vpack.c.b16 %v538, %v522
    %v715 = vpack.c.b16 %v539, %v523
    %v716 = vpack.c.b16 %v540, %v524
    %v717 = vpack.c.b16 %v541, %v525
    %v718 = vpack.c.b16 %v542, %v526
    %v719 = vpack.c.b16 %v543, %v527
    %v720 = vpack.c.b16 %v544, %v528
    %v721 = vpack.c.b16 %v545, %v529
    %v722 = vpack.c.b16 %v546, %v530
    %v723 = vpack.c.b16 %v547, %v531
    %v724 = vpack.c.b16 %v548, %v532
    %v725 = vpack.c.b16 %v565, %v549
    %v726 = vpack.c.b16 %v566, %v550
    %v727 = vpack.c.b16 %v567, %v551
    %v728 = vpack.c.b16 %v568, %v552
    %v729 = vpack.c.b16 %v569, %v553
    %v730 = vpack.c.b16 %v570, %v554
    %v731 = vpack.c.b16 %v571, %v555
    %v732 = vpack.c.b16 %v572, %v556
    %v733 = vpack.c.b16 %v573, %v557
    %v734 = vpack.c.b16 %v574, %v558
    %v735 = vpack.c.b16 %v575, %v559
    %v736 = vpack.c.b16 %v576, %v560
    %v737 = vpack.c.b16 %v577, %v561
    %v738 = vpack.c.b16 %v578, %v562
    %v739 = vpack.c.b16 %v579, %v563
    %v740 = vpack.c.b16 %v580, %v564
    %v741 = vpack.c.b16 %v597, %v581
    %v742 = vpack.c.b16 %v598, %v582
    %v743 = vpack.c.b16 %v599, %v583
    %v744 = vpack.c.b16 %v600, %v584
    %v745 = vpack.c.b16 %v601, %v585
    %v746 = vpack.c.b16 %v602, %v586
    %v747 = vpack.c.b16 %v603, %v587
    %v748 = vpack.c.b16 %v604, %v588
    %v749 = vpack.c.b16 %v605, %v589
    %v750 = vpack.c.b16 %v606, %v590
    %v751 = vpack.c.b16 %v607, %v591
    %v752 = vpack.c.b16 %v608, %v592
    %v753 = vpack.c.b16 %v609, %v593
    %v754 = vpack.c.b16 %v610, %v594
    %v755 = vpack.c.b16 %v611, %v595
    %v756 = vpack.c.b16 %v612, %v596
    %v757 = vpack.c.b16 %v629, %v613
    %v758 = vpack.c.b16 %v630, %v614
    %v759 = vpack.c.b16 %v631, %v615
    %v760 = vpack.c.b16 %v632, %v616
    %v761 = vpack.c.b16 %v633, %v617
    %v762 = vpack.c.b16 %v634, %v618
    %v763 = vpack.c.b16 %v635, %v619
    %v764 = vpack.c.b16 %v636, %v620
    %v765 = vpack.c.b16 %v637, %v621
    %v766 = vpack.c.b16 %v638, %v622
    %v767 = vpack.c.b16 %v639, %v623
    %v768 = vpack.c.b16 %v640, %v624
    %v769 = vpack.c.b16 %v641, %v625
    %v770 = vpack.c.b16 %v642, %v626
    %v771 = vpack.c.b16 %v643, %v627
    %v772 = vpack.c.b16 %v644, %v628
    %901 = vmatprep.subr.bf16.mxu0 %v758
    %902 = vmatpush1.bf16.msra.mxu0 %v757
    %903 = vmatprep.subr.bf16.mxu0 %v742
    %904 = vmatpush1.bf16.msra.mxu0 %v741
    %905 = vmatprep.subr.bf16.mxu0 %v726
    %906 = vmatpush1.bf16.msra.mxu0 %v725
    %907 = vmatprep.subr.bf16.mxu0 %v710
    %908 = vmatpush1.bf16.msra.mxu0 %v709
    %909 = vmatprep.subr.bf16.mxu0 %v694
    %910 = vmatpush1.bf16.msra.mxu0 %v693
    %911 = vmatprep.subr.bf16.mxu0 %v678
    %912 = vmatpush1.bf16.msra.mxu0 %v677
    %913 = vmatprep.subr.bf16.mxu0 %v662
    %914 = vmatpush1.bf16.msra.mxu0 %v661
    %915 = vmatprep.subr.bf16.mxu0 %v646
    %916 = vmatpush1.bf16.msra.mxu0 %v645
    %917 = vmatprep.subr.bf16.mxu0 0
    %918 = vmatpush2.bf16.msra.mxu0 0
    %919 = vmatprep.subr.bf16.mxu0 0
    %920 = vmatpush2.bf16.msra.mxu0 0
    %921 = vmatprep.subr.bf16.mxu0 0
    %922 = vmatpush2.bf16.msra.mxu0 0
    %923 = vmatprep.subr.bf16.mxu0 0
    %924 = vmatpush2.bf16.msra.mxu0 0
    %925 = vmatprep.subr.bf16.mxu0 0
    %926 = vmatpush2.bf16.msra.mxu0 0
    %927 = vmatprep.subr.bf16.mxu0 0
    %928 = vmatpush2.bf16.msra.mxu0 0
    %929 = vmatprep.subr.bf16.mxu0 0
    %930 = vmatpush2.bf16.msra.mxu0 0
    %931 = vmatprep.subr.bf16.mxu0 0
    %932 = vmatpush2.bf16.msra.mxu0 0
    %933 = vmatprep.mubr.bf16.mxu0 0
    %934 = vmatmul.mubr.bf16.gmra.mxu0 %v259
    %v935 = vpop.f32.mrf.mxu0
    %v936 = vadd.f32 %v178, %v935
    %v937 = vpop.f32.mrf.mxu0
    %v938 = vadd.f32 %v182, %v937
    %v939 = vpop.f32.mrf.mxu0
    %v940 = vadd.f32 %v178, %v939
    %v941 = vpop.f32.mrf.mxu0
    %v942 = vadd.f32 %v182, %v941
    %943 = vdwg.mxu0
    %944 = vmatprep.subr.bf16.mxu0 %v760
    %945 = vmatpush1.bf16.msra.mxu0 %v759
    %946 = vmatprep.subr.bf16.mxu0 %v744
    %947 = vmatpush1.bf16.msra.mxu0 %v743
    %948 = vmatprep.subr.bf16.mxu0 %v728
    %949 = vmatpush1.bf16.msra.mxu0 %v727
    %950 = vmatprep.subr.bf16.mxu0 %v712
    %951 = vmatpush1.bf16.msra.mxu0 %v711
    %952 = vmatprep.subr.bf16.mxu0 %v696
    %953 = vmatpush1.bf16.msra.mxu0 %v695
    %954 = vmatprep.subr.bf16.mxu0 %v680
    %955 = vmatpush1.bf16.msra.mxu0 %v679
    %956 = vmatprep.subr.bf16.mxu0 %v664
    %957 = vmatpush1.bf16.msra.mxu0 %v663
    %958 = vmatprep.subr.bf16.mxu0 %v648
    %959 = vmatpush1.bf16.msra.mxu0 %v647
    %960 = vmatprep.subr.bf16.mxu0 0
    %961 = vmatpush2.bf16.msra.mxu0 0
    %962 = vmatprep.subr.bf16.mxu0 0
    %963 = vmatpush2.bf16.msra.mxu0 0
    %964 = vmatprep.subr.bf16.mxu0 0
    %965 = vmatpush2.bf16.msra.mxu0 0
    %966 = vmatprep.subr.bf16.mxu0 0
    %967 = vmatpush2.bf16.msra.mxu0 0
    %968 = vmatprep.subr.bf16.mxu0 0
    %969 = vmatpush2.bf16.msra.mxu0 0
    %970 = vmatprep.subr.bf16.mxu0 0
    %971 = vmatpush2.bf16.msra.mxu0 0
    %972 = vmatprep.subr.bf16.mxu0 0
    %973 = vmatpush2.bf16.msra.mxu0 0
    %974 = vmatprep.subr.bf16.mxu0 0
    %975 = vmatpush2.bf16.msra.mxu0 0
    %976 = vmatprep.mubr.bf16.mxu0 0
    %977 = vmatmul.mubr.bf16.gmra.mxu0 %v259
    %v978 = vpop.f32.mrf.mxu0
    %v979 = vadd.f32 %v186, %v978
    %v980 = vpop.f32.mrf.mxu0
    %v981 = vadd.f32 %v190, %v980
    %v982 = vpop.f32.mrf.mxu0
    %v983 = vadd.f32 %v186, %v982
    %v984 = vpop.f32.mrf.mxu0
    %v985 = vadd.f32 %v190, %v984
    %986 = vdwg.mxu0
    %987 = vmatprep.subr.bf16.mxu0 %v762
    %988 = vmatpush1.bf16.msra.mxu0 %v761
    %989 = vmatprep.subr.bf16.mxu0 %v746
    %990 = vmatpush1.bf16.msra.mxu0 %v745
    %991 = vmatprep.subr.bf16.mxu0 %v730
    %992 = vmatpush1.bf16.msra.mxu0 %v729
    %993 = vmatprep.subr.bf16.mxu0 %v714
    %994 = vmatpush1.bf16.msra.mxu0 %v713
    %995 = vmatprep.subr.bf16.mxu0 %v698
    %996 = vmatpush1.bf16.msra.mxu0 %v697
    %997 = vmatprep.subr.bf16.mxu0 %v682
    %998 = vmatpush1.bf16.msra.mxu0 %v681
    %999 = vmatprep.subr.bf16.mxu0 %v666
    %1000 = vmatpush1.bf16.msra.mxu0 %v665
    %1001 = vmatprep.subr.bf16.mxu0 %v650
    %1002 = vmatpush1.bf16.msra.mxu0 %v649
    %1003 = vmatprep.subr.bf16.mxu0 0
    %1004 = vmatpush2.bf16.msra.mxu0 0
    %1005 = vmatprep.subr.bf16.mxu0 0
    %1006 = vmatpush2.bf16.msra.mxu0 0
    %1007 = vmatprep.subr.bf16.mxu0 0
    %1008 = vmatpush2.bf16.msra.mxu0 0
    %1009 = vmatprep.subr.bf16.mxu0 0
    %1010 = vmatpush2.bf16.msra.mxu0 0
    %1011 = vmatprep.subr.bf16.mxu0 0
    %1012 = vmatpush2.bf16.msra.mxu0 0
    %1013 = vmatprep.subr.bf16.mxu0 0
    %1014 = vmatpush2.bf16.msra.mxu0 0
    %1015 = vmatprep.subr.bf16.mxu0 0
    %1016 = vmatpush2.bf16.msra.mxu0 0
    %1017 = vmatprep.subr.bf16.mxu0 0
    %1018 = vmatpush2.bf16.msra.mxu0 0
    %1019 = vmatprep.mubr.bf16.mxu0 0
    %1020 = vmatmul.mubr.bf16.gmra.mxu0 %v259
    %v1021 = vpop.f32.mrf.mxu0
    %v1022 = vadd.f32 %v194, %v1021
    %v1023 = vpop.f32.mrf.mxu0
    %v1024 = vadd.f32 %v198, %v1023
    %v1025 = vpop.f32.mrf.mxu0
    %v1026 = vadd.f32 %v194, %v1025
    %v1027 = vpop.f32.mrf.mxu0
    %v1028 = vadd.f32 %v198, %v1027
    %1029 = vdwg.mxu0
    %1030 = vmatprep.subr.bf16.mxu0 %v764
    %1031 = vmatpush1.bf16.msra.mxu0 %v763
    %1032 = vmatprep.subr.bf16.mxu0 %v748
    %1033 = vmatpush1.bf16.msra.mxu0 %v747
    %1034 = vmatprep.subr.bf16.mxu0 %v732
    %1035 = vmatpush1.bf16.msra.mxu0 %v731
    %1036 = vmatprep.subr.bf16.mxu0 %v716
    %1037 = vmatpush1.bf16.msra.mxu0 %v715
    %1038 = vmatprep.subr.bf16.mxu0 %v700
    %1039 = vmatpush1.bf16.msra.mxu0 %v699
    %1040 = vmatprep.subr.bf16.mxu0 %v684
    %1041 = vmatpush1.bf16.msra.mxu0 %v683
    %1042 = vmatprep.subr.bf16.mxu0 %v668
    %1043 = vmatpush1.bf16.msra.mxu0 %v667
    %1044 = vmatprep.subr.bf16.mxu0 %v652
    %1045 = vmatpush1.bf16.msra.mxu0 %v651
    %1046 = vmatprep.subr.bf16.mxu0 0
    %1047 = vmatpush2.bf16.msra.mxu0 0
    %1048 = vmatprep.subr.bf16.mxu0 0
    %1049 = vmatpush2.bf16.msra.mxu0 0
    %1050 = vmatprep.subr.bf16.mxu0 0
    %1051 = vmatpush2.bf16.msra.mxu0 0
    %1052 = vmatprep.subr.bf16.mxu0 0
    %1053 = vmatpush2.bf16.msra.mxu0 0
    %1054 = vmatprep.subr.bf16.mxu0 0
    %1055 = vmatpush2.bf16.msra.mxu0 0
    %1056 = vmatprep.subr.bf16.mxu0 0
    %1057 = vmatpush2.bf16.msra.mxu0 0
    %1058 = vmatprep.subr.bf16.mxu0 0
    %1059 = vmatpush2.bf16.msra.mxu0 0
    %1060 = vmatprep.subr.bf16.mxu0 0
    %1061 = vmatpush2.bf16.msra.mxu0 0
    %1062 = vmatprep.mubr.bf16.mxu0 0
    %1063 = vmatmul.mubr.bf16.gmra.mxu0 %v259
    %v1064 = vpop.f32.mrf.mxu0
    %v1065 = vadd.f32 %v202, %v1064
    %v1066 = vpop.f32.mrf.mxu0
    %v1067 = vadd.f32 %v206, %v1066
    %v1068 = vpop.f32.mrf.mxu0
    %v1069 = vadd.f32 %v202, %v1068
    %v1070 = vpop.f32.mrf.mxu0
    %v1071 = vadd.f32 %v206, %v1070
    %1072 = vdwg.mxu0
    %1073 = vmatprep.subr.bf16.mxu0 %v766
    %1074 = vmatpush1.bf16.msra.mxu0 %v765
    %1075 = vmatprep.subr.bf16.mxu0 %v750
    %1076 = vmatpush1.bf16.msra.mxu0 %v749
    %1077 = vmatprep.subr.bf16.mxu0 %v734
    %1078 = vmatpush1.bf16.msra.mxu0 %v733
    %1079 = vmatprep.subr.bf16.mxu0 %v718
    %1080 = vmatpush1.bf16.msra.mxu0 %v717
    %1081 = vmatprep.subr.bf16.mxu0 %v702
    %1082 = vmatpush1.bf16.msra.mxu0 %v701
    %1083 = vmatprep.subr.bf16.mxu0 %v686
    %1084 = vmatpush1.bf16.msra.mxu0 %v685
    %1085 = vmatprep.subr.bf16.mxu0 %v670
    %1086 = vmatpush1.bf16.msra.mxu0 %v669
    %1087 = vmatprep.subr.bf16.mxu0 %v654
    %1088 = vmatpush1.bf16.msra.mxu0 %v653
    %1089 = vmatprep.subr.bf16.mxu0 0
    %1090 = vmatpush2.bf16.msra.mxu0 0
    %1091 = vmatprep.subr.bf16.mxu0 0
    %1092 = vmatpush2.bf16.msra.mxu0 0
    %1093 = vmatprep.subr.bf16.mxu0 0
    %1094 = vmatpush2.bf16.msra.mxu0 0
    %1095 = vmatprep.subr.bf16.mxu0 0
    %1096 = vmatpush2.bf16.msra.mxu0 0
    %1097 = vmatprep.subr.bf16.mxu0 0
    %1098 = vmatpush2.bf16.msra.mxu0 0
    %1099 = vmatprep.subr.bf16.mxu0 0
    %1100 = vmatpush2.bf16.msra.mxu0 0
    %1101 = vmatprep.subr.bf16.mxu0 0
    %1102 = vmatpush2.bf16.msra.mxu0 0
    %1103 = vmatprep.subr.bf16.mxu0 0
    %1104 = vmatpush2.bf16.msra.mxu0 0
    %1105 = vmatprep.mubr.bf16.mxu0 0
    %1106 = vmatmul.mubr.bf16.gmra.mxu0 %v259
    %v1107 = vpop.f32.mrf.mxu0
    %v1108 = vadd.f32 %v210, %v1107
    %v1109 = vpop.f32.mrf.mxu0
    %v1110 = vadd.f32 %v214, %v1109
    %v1111 = vpop.f32.mrf.mxu0
    %v1112 = vadd.f32 %v210, %v1111
    %v1113 = vpop.f32.mrf.mxu0
    %v1114 = vadd.f32 %v214, %v1113
    %1115 = vdwg.mxu0
    %1116 = vmatprep.subr.bf16.mxu0 %v768
    %1117 = vmatpush1.bf16.msra.mxu0 %v767
    %1118 = vmatprep.subr.bf16.mxu0 %v752
    %1119 = vmatpush1.bf16.msra.mxu0 %v751
    %1120 = vmatprep.subr.bf16.mxu0 %v736
    %1121 = vmatpush1.bf16.msra.mxu0 %v735
    %1122 = vmatprep.subr.bf16.mxu0 %v720
    %1123 = vmatpush1.bf16.msra.mxu0 %v719
    %1124 = vmatprep.subr.bf16.mxu0 %v704
    %1125 = vmatpush1.bf16.msra.mxu0 %v703
    %1126 = vmatprep.subr.bf16.mxu0 %v688
    %1127 = vmatpush1.bf16.msra.mxu0 %v687
    %1128 = vmatprep.subr.bf16.mxu0 %v672
    %1129 = vmatpush1.bf16.msra.mxu0 %v671
    %1130 = vmatprep.subr.bf16.mxu0 %v656
    %1131 = vmatpush1.bf16.msra.mxu0 %v655
    %1132 = vmatprep.subr.bf16.mxu0 0
    %1133 = vmatpush2.bf16.msra.mxu0 0
    %1134 = vmatprep.subr.bf16.mxu0 0
    %1135 = vmatpush2.bf16.msra.mxu0 0
    %1136 = vmatprep.subr.bf16.mxu0 0
    %1137 = vmatpush2.bf16.msra.mxu0 0
    %1138 = vmatprep.subr.bf16.mxu0 0
    %1139 = vmatpush2.bf16.msra.mxu0 0
    %1140 = vmatprep.subr.bf16.mxu0 0
    %1141 = vmatpush2.bf16.msra.mxu0 0
    %1142 = vmatprep.subr.bf16.mxu0 0
    %1143 = vmatpush2.bf16.msra.mxu0 0
    %1144 = vmatprep.subr.bf16.mxu0 0
    %1145 = vmatpush2.bf16.msra.mxu0 0
    %1146 = vmatprep.subr.bf16.mxu0 0
    %1147 = vmatpush2.bf16.msra.mxu0 0
    %1148 = vmatprep.mubr.bf16.mxu0 0
    %1149 = vmatmul.mubr.bf16.gmra.mxu0 %v259
    %v1150 = vpop.f32.mrf.mxu0
    %v1151 = vadd.f32 %v218, %v1150
    %v1152 = vpop.f32.mrf.mxu0
    %v1153 = vadd.f32 %v222, %v1152
    %v1154 = vpop.f32.mrf.mxu0
    %v1155 = vadd.f32 %v218, %v1154
    %v1156 = vpop.f32.mrf.mxu0
    %v1157 = vadd.f32 %v222, %v1156
    %1158 = vdwg.mxu0
    %1159 = vmatprep.subr.bf16.mxu0 %v770
    %1160 = vmatpush1.bf16.msra.mxu0 %v769
    %1161 = vmatprep.subr.bf16.mxu0 %v754
    %1162 = vmatpush1.bf16.msra.mxu0 %v753
    %1163 = vmatprep.subr.bf16.mxu0 %v738
    %1164 = vmatpush1.bf16.msra.mxu0 %v737
    %1165 = vmatprep.subr.bf16.mxu0 %v722
    %1166 = vmatpush1.bf16.msra.mxu0 %v721
    %1167 = vmatprep.subr.bf16.mxu0 %v706
    %1168 = vmatpush1.bf16.msra.mxu0 %v705
    %1169 = vmatprep.subr.bf16.mxu0 %v690
    %1170 = vmatpush1.bf16.msra.mxu0 %v689
    %1171 = vmatprep.subr.bf16.mxu0 %v674
    %1172 = vmatpush1.bf16.msra.mxu0 %v673
    %1173 = vmatprep.subr.bf16.mxu0 %v658
    %1174 = vmatpush1.bf16.msra.mxu0 %v657
    %1175 = vmatprep.subr.bf16.mxu0 0
    %1176 = vmatpush2.bf16.msra.mxu0 0
    %1177 = vmatprep.subr.bf16.mxu0 0
    %1178 = vmatpush2.bf16.msra.mxu0 0
    %1179 = vmatprep.subr.bf16.mxu0 0
    %1180 = vmatpush2.bf16.msra.mxu0 0
    %1181 = vmatprep.subr.bf16.mxu0 0
    %1182 = vmatpush2.bf16.msra.mxu0 0
    %1183 = vmatprep.subr.bf16.mxu0 0
    %1184 = vmatpush2.bf16.msra.mxu0 0
    %1185 = vmatprep.subr.bf16.mxu0 0
    %1186 = vmatpush2.bf16.msra.mxu0 0
    %1187 = vmatprep.subr.bf16.mxu0 0
    %1188 = vmatpush2.bf16.msra.mxu0 0
    %1189 = vmatprep.subr.bf16.mxu0 0
    %1190 = vmatpush2.bf16.msra.mxu0 0
    %1191 = vmatprep.mubr.bf16.mxu0 0
    %1192 = vmatmul.mubr.bf16.gmra.mxu0 %v259
    %v1193 = vpop.f32.mrf.mxu0
    %v1194 = vadd.f32 %v226, %v1193
    %v1195 = vpop.f32.mrf.mxu0
    %v1196 = vadd.f32 %v230, %v1195
    %v1197 = vpop.f32.mrf.mxu0
    %v1198 = vadd.f32 %v226, %v1197
    %v1199 = vpop.f32.mrf.mxu0
    %v1200 = vadd.f32 %v230, %v1199
    %1201 = vdwg.mxu0
    %1202 = vmatprep.subr.bf16.mxu0 %v772
    %1203 = vmatpush1.bf16.msra.mxu0 %v771
    %1204 = vmatprep.subr.bf16.mxu0 %v756
    %1205 = vmatpush1.bf16.msra.mxu0 %v755
    %1206 = vmatprep.subr.bf16.mxu0 %v740
    %1207 = vmatpush1.bf16.msra.mxu0 %v739
    %1208 = vmatprep.subr.bf16.mxu0 %v724
    %1209 = vmatpush1.bf16.msra.mxu0 %v723
    %1210 = vmatprep.subr.bf16.mxu0 %v708
    %1211 = vmatpush1.bf16.msra.mxu0 %v707
    %1212 = vmatprep.subr.bf16.mxu0 %v692
    %1213 = vmatpush1.bf16.msra.mxu0 %v691
    %1214 = vmatprep.subr.bf16.mxu0 %v676
    %1215 = vmatpush1.bf16.msra.mxu0 %v675
    %1216 = vmatprep.subr.bf16.mxu0 %v660
    %1217 = vmatpush1.bf16.msra.mxu0 %v659
    %1218 = vmatprep.subr.bf16.mxu0 0
    %1219 = vmatpush2.bf16.msra.mxu0 0
    %1220 = vmatprep.subr.bf16.mxu0 0
    %1221 = vmatpush2.bf16.msra.mxu0 0
    %1222 = vmatprep.subr.bf16.mxu0 0
    %1223 = vmatpush2.bf16.msra.mxu0 0
    %1224 = vmatprep.subr.bf16.mxu0 0
    %1225 = vmatpush2.bf16.msra.mxu0 0
    %1226 = vmatprep.subr.bf16.mxu0 0
    %1227 = vmatpush2.bf16.msra.mxu0 0
    %1228 = vmatprep.subr.bf16.mxu0 0
    %1229 = vmatpush2.bf16.msra.mxu0 0
    %1230 = vmatprep.subr.bf16.mxu0 0
    %1231 = vmatpush2.bf16.msra.mxu0 0
    %1232 = vmatprep.subr.bf16.mxu0 0
    %1233 = vmatpush2.bf16.msra.mxu0 0
    %1234 = vmatprep.mubr.bf16.mxu0 0
    %1235 = vmatmul.mubr.bf16.gmra.mxu0 %v259
    %v1236 = vpop.f32.mrf.mxu0
    %v1237 = vadd.f32 %v234, %v1236
    %v1238 = vpop.f32.mrf.mxu0
    %v1239 = vadd.f32 %v238, %v1238
    %v1240 = vpop.f32.mrf.mxu0
    %v1241 = vadd.f32 %v234, %v1240
    %v1242 = vpop.f32.mrf.mxu0
    %v1243 = vadd.f32 %v238, %v1242
    %1244 = vdwg.mxu0
    %v1245 = vmul.f32 %v936, 0.5
    %v1246 = vmul.f32 %v938, 0.5
    %v1247 = vmul.f32 %v979, 0.5
    %v1248 = vmul.f32 %v981, 0.5
    %v1249 = vmul.f32 %v1022, 0.5
    %v1250 = vmul.f32 %v1024, 0.5
    %v1251 = vmul.f32 %v1065, 0.5
    %v1252 = vmul.f32 %v1067, 0.5
    %v1253 = vmul.f32 %v1108, 0.5
    %v1254 = vmul.f32 %v1110, 0.5
    %v1255 = vmul.f32 %v1151, 0.5
    %v1256 = vmul.f32 %v1153, 0.5
    %v1257 = vmul.f32 %v1194, 0.5
    %v1258 = vmul.f32 %v1196, 0.5
    %v1259 = vmul.f32 %v1237, 0.5
    %v1260 = vmul.f32 %v1239, 0.5
    %v1261 = vmul.f32 %v940, 0.5
    %v1262 = vmul.f32 %v942, 0.5
    %v1263 = vmul.f32 %v983, 0.5
    %v1264 = vmul.f32 %v985, 0.5
    %v1265 = vmul.f32 %v1026, 0.5
    %v1266 = vmul.f32 %v1028, 0.5
    %v1267 = vmul.f32 %v1069, 0.5
    %v1268 = vmul.f32 %v1071, 0.5
    %v1269 = vmul.f32 %v1112, 0.5
    %v1270 = vmul.f32 %v1114, 0.5
    %v1271 = vmul.f32 %v1155, 0.5
    %v1272 = vmul.f32 %v1157, 0.5
    %v1273 = vmul.f32 %v1198, 0.5
    %v1274 = vmul.f32 %v1200, 0.5
    %v1275 = vmul.f32 %v1241, 0.5
    %v1276 = vmul.f32 %v1243, 0.5
    %v1277 = vmul.f32 %v936, 0.70710677
    %v1278 = vmul.f32 %v938, 0.70710677
    %v1279 = vmul.f32 %v979, 0.70710677
    %v1280 = vmul.f32 %v981, 0.70710677
    %v1281 = vmul.f32 %v1022, 0.70710677
    %v1282 = vmul.f32 %v1024, 0.70710677
    %v1283 = vmul.f32 %v1065, 0.70710677
    %v1284 = vmul.f32 %v1067, 0.70710677
    %v1285 = vmul.f32 %v1108, 0.70710677
    %v1286 = vmul.f32 %v1110, 0.70710677
    %v1287 = vmul.f32 %v1151, 0.70710677
    %v1288 = vmul.f32 %v1153, 0.70710677
    %v1289 = vmul.f32 %v1194, 0.70710677
    %v1290 = vmul.f32 %v1196, 0.70710677
    %v1291 = vmul.f32 %v1237, 0.70710677
    %v1292 = vmul.f32 %v1239, 0.70710677
    %v1293 = vmul.f32 %v940, 0.70710677
    %v1294 = vmul.f32 %v942, 0.70710677
    %v1295 = vmul.f32 %v983, 0.70710677
    %v1296 = vmul.f32 %v985, 0.70710677
    %v1297 = vmul.f32 %v1026, 0.70710677
    %v1298 = vmul.f32 %v1028, 0.70710677
    %v1299 = vmul.f32 %v1069, 0.70710677
    %v1300 = vmul.f32 %v1071, 0.70710677
    %v1301 = vmul.f32 %v1112, 0.70710677
    %v1302 = vmul.f32 %v1114, 0.70710677
    %v1303 = vmul.f32 %v1155, 0.70710677
    %v1304 = vmul.f32 %v1157, 0.70710677
    %v1305 = vmul.f32 %v1198, 0.70710677
    %v1306 = vmul.f32 %v1200, 0.70710677
    %v1307 = vmul.f32 %v1241, 0.70710677
    %v1308 = vmul.f32 %v1243, 0.70710677
    %v1309 = verf.f32.pop %v1277
    %v1310 = verf.f32.pop %v1278
    %v1311 = verf.f32.pop %v1279
    %v1312 = verf.f32.pop %v1280
    %v1313 = verf.f32.pop %v1281
    %v1314 = verf.f32.pop %v1282
    %v1315 = verf.f32.pop %v1283
    %v1316 = verf.f32.pop %v1284
    %v1317 = verf.f32.pop %v1285
    %v1318 = verf.f32.pop %v1286
    %v1319 = verf.f32.pop %v1287
    %v1320 = verf.f32.pop %v1288
    %v1321 = verf.f32.pop %v1289
    %v1322 = verf.f32.pop %v1290
    %v1323 = verf.f32.pop %v1291
    %v1324 = verf.f32.pop %v1292
    %v1325 = verf.f32.pop %v1293
    %v1326 = verf.f32.pop %v1294
    %v1327 = verf.f32.pop %v1295
    %v1328 = verf.f32.pop %v1296
    %v1329 = verf.f32.pop %v1297
    %v1330 = verf.f32.pop %v1298
    %v1331 = verf.f32.pop %v1299
    %v1332 = verf.f32.pop %v1300
    %v1333 = verf.f32.pop %v1301
    %v1334 = verf.f32.pop %v1302
    %v1335 = verf.f32.pop %v1303
    %v1336 = verf.f32.pop %v1304
    %v1337 = verf.f32.pop %v1305
    %v1338 = verf.f32.pop %v1306
    %v1339 = verf.f32.pop %v1307
    %v1340 = verf.f32.pop %v1308
    %v1341 = vadd.f32 %v1309, 1.0
    %v1342 = vadd.f32 %v1310, 1.0
    %v1343 = vadd.f32 %v1311, 1.0
    %v1344 = vadd.f32 %v1312, 1.0
    %v1345 = vadd.f32 %v1313, 1.0
    %v1346 = vadd.f32 %v1314, 1.0
    %v1347 = vadd.f32 %v1315, 1.0
    %v1348 = vadd.f32 %v1316, 1.0
    %v1349 = vadd.f32 %v1317, 1.0
    %v1350 = vadd.f32 %v1318, 1.0
    %v1351 = vadd.f32 %v1319, 1.0
    %v1352 = vadd.f32 %v1320, 1.0
    %v1353 = vadd.f32 %v1321, 1.0
    %v1354 = vadd.f32 %v1322, 1.0
    %v1355 = vadd.f32 %v1323, 1.0
    %v1356 = vadd.f32 %v1324, 1.0
    %v1357 = vadd.f32 %v1325, 1.0
    %v1358 = vadd.f32 %v1326, 1.0
    %v1359 = vadd.f32 %v1327, 1.0
    %v1360 = vadd.f32 %v1328, 1.0
    %v1361 = vadd.f32 %v1329, 1.0
    %v1362 = vadd.f32 %v1330, 1.0
    %v1363 = vadd.f32 %v1331, 1.0
    %v1364 = vadd.f32 %v1332, 1.0
    %v1365 = vadd.f32 %v1333, 1.0
    %v1366 = vadd.f32 %v1334, 1.0
    %v1367 = vadd.f32 %v1335, 1.0
    %v1368 = vadd.f32 %v1336, 1.0
    %v1369 = vadd.f32 %v1337, 1.0
    %v1370 = vadd.f32 %v1338, 1.0
    %v1371 = vadd.f32 %v1339, 1.0
    %v1372 = vadd.f32 %v1340, 1.0
    %v1373 = vmul.f32 %v1245, %v1341
    %v1374 = vmul.f32 %v1246, %v1342
    %v1375 = vmul.f32 %v1247, %v1343
    %v1376 = vmul.f32 %v1248, %v1344
    %v1377 = vmul.f32 %v1249, %v1345
    %v1378 = vmul.f32 %v1250, %v1346
    %v1379 = vmul.f32 %v1251, %v1347
    %v1380 = vmul.f32 %v1252, %v1348
    %v1381 = vmul.f32 %v1253, %v1349
    %v1382 = vmul.f32 %v1254, %v1350
    %v1383 = vmul.f32 %v1255, %v1351
    %v1384 = vmul.f32 %v1256, %v1352
    %v1385 = vmul.f32 %v1257, %v1353
    %v1386 = vmul.f32 %v1258, %v1354
    %v1387 = vmul.f32 %v1259, %v1355
    %v1388 = vmul.f32 %v1260, %v1356
    %v1389 = vmul.f32 %v1261, %v1357
    %v1390 = vmul.f32 %v1262, %v1358
    %v1391 = vmul.f32 %v1263, %v1359
    %v1392 = vmul.f32 %v1264, %v1360
    %v1393 = vmul.f32 %v1265, %v1361
    %v1394 = vmul.f32 %v1266, %v1362
    %v1395 = vmul.f32 %v1267, %v1363
    %v1396 = vmul.f32 %v1268, %v1364
    %v1397 = vmul.f32 %v1269, %v1365
    %v1398 = vmul.f32 %v1270, %v1366
    %v1399 = vmul.f32 %v1271, %v1367
    %v1400 = vmul.f32 %v1272, %v1368
    %v1401 = vmul.f32 %v1273, %v1369
    %v1402 = vmul.f32 %v1274, %v1370
    %v1403 = vmul.f32 %v1275, %v1371
    %v1404 = vmul.f32 %v1276, %v1372
    %v1405 = vpack.c.bf16 %v1389, %v1373
    %v1406 = vpack.c.bf16 %v1390, %v1374
    %v1407 = vpack.c.bf16 %v1391, %v1375
    %v1408 = vpack.c.bf16 %v1392, %v1376
    %v1409 = vpack.c.bf16 %v1393, %v1377
    %v1410 = vpack.c.bf16 %v1394, %v1378
    %v1411 = vpack.c.bf16 %v1395, %v1379
    %v1412 = vpack.c.bf16 %v1396, %v1380
    %v1413 = vpack.c.bf16 %v1397, %v1381
    %v1414 = vpack.c.bf16 %v1398, %v1382
    %v1415 = vpack.c.bf16 %v1399, %v1383
    %v1416 = vpack.c.bf16 %v1400, %v1384
    %v1417 = vpack.c.bf16 %v1401, %v1385
    %v1418 = vpack.c.bf16 %v1402, %v1386
    %v1419 = vpack.c.bf16 %v1403, %v1387
    %v1420 = vpack.c.bf16 %v1404, %v1388
    %v1421 = vld [vmem:[#allocation2] sm:$0xf]
    %v1422 = vld [vmem:[#allocation2 + $0x4] sm:$0xf]
    %v1423 = vld [vmem:[#allocation2 + $0x8] sm:$0xf]
    %v1424 = vld [vmem:[#allocation2 + $0xc] sm:$0xf]
    %v1425 = vld [vmem:[#allocation2 + $0x10] sm:$0xf]
    %v1426 = vld [vmem:[#allocation2 + $0x14] sm:$0xf]
    %v1427 = vld [vmem:[#allocation2 + $0x18] sm:$0xf]
    %v1428 = vld [vmem:[#allocation2 + $0x1c] sm:$0xf]
    %v1429 = vld [vmem:[#allocation2 + $0x20] sm:$0xf]
    %v1430 = vld [vmem:[#allocation2 + $0x24] sm:$0xf]
    %v1431 = vld [vmem:[#allocation2 + $0x28] sm:$0xf]
    %v1432 = vld [vmem:[#allocation2 + $0x2c] sm:$0xf]
    %v1433 = vld [vmem:[#allocation2 + $0x30] sm:$0xf]
    %v1434 = vld [vmem:[#allocation2 + $0x34] sm:$0xf]
    %v1435 = vld [vmem:[#allocation2 + $0x38] sm:$0xf]
    %v1436 = vld [vmem:[#allocation2 + $0x3c] sm:$0xf]
    %v1437 = vld [vmem:[#allocation2 + $0x40] sm:$0xf]
    %v1438 = vld [vmem:[#allocation2 + $0x44] sm:$0xf]
    %v1439 = vld [vmem:[#allocation2 + $0x48] sm:$0xf]
    %v1440 = vld [vmem:[#allocation2 + $0x4c] sm:$0xf]
    %v1441 = vld [vmem:[#allocation2 + $0x50] sm:$0xf]
    %v1442 = vld [vmem:[#allocation2 + $0x54] sm:$0xf]
    %v1443 = vld [vmem:[#allocation2 + $0x58] sm:$0xf]
    %v1444 = vld [vmem:[#allocation2 + $0x5c] sm:$0xf]
    %v1445 = vld [vmem:[#allocation2 + $0x60] sm:$0xf]
    %v1446 = vld [vmem:[#allocation2 + $0x64] sm:$0xf]
    %v1447 = vld [vmem:[#allocation2 + $0x68] sm:$0xf]
    %v1448 = vld [vmem:[#allocation2 + $0x6c] sm:$0xf]
    %v1449 = vld [vmem:[#allocation2 + $0x70] sm:$0xf]
    %v1450 = vld [vmem:[#allocation2 + $0x74] sm:$0xf]
    %v1451 = vld [vmem:[#allocation2 + $0x78] sm:$0xf]
    %v1452 = vld [vmem:[#allocation2 + $0x7c] sm:$0xf]
    %v1453 = vld [vmem:[#allocation2 + $0x80] sm:$0xf]
    %v1454 = vld [vmem:[#allocation2 + $0x84] sm:$0xf]
    %v1455 = vld [vmem:[#allocation2 + $0x88] sm:$0xf]
    %v1456 = vld [vmem:[#allocation2 + $0x8c] sm:$0xf]
    %v1457 = vld [vmem:[#allocation2 + $0x90] sm:$0xf]
    %v1458 = vld [vmem:[#allocation2 + $0x94] sm:$0xf]
    %v1459 = vld [vmem:[#allocation2 + $0x98] sm:$0xf]
    %v1460 = vld [vmem:[#allocation2 + $0x9c] sm:$0xf]
    %v1461 = vld [vmem:[#allocation2 + $0xa0] sm:$0xf]
    %v1462 = vld [vmem:[#allocation2 + $0xa4] sm:$0xf]
    %v1463 = vld [vmem:[#allocation2 + $0xa8] sm:$0xf]
    %v1464 = vld [vmem:[#allocation2 + $0xac] sm:$0xf]
    %v1465 = vld [vmem:[#allocation2 + $0xb0] sm:$0xf]
    %v1466 = vld [vmem:[#allocation2 + $0xb4] sm:$0xf]
    %v1467 = vld [vmem:[#allocation2 + $0xb8] sm:$0xf]
    %v1468 = vld [vmem:[#allocation2 + $0xbc] sm:$0xf]
    %v1469 = vld [vmem:[#allocation2 + $0xc0] sm:$0xf]
    %v1470 = vld [vmem:[#allocation2 + $0xc4] sm:$0xf]
    %v1471 = vld [vmem:[#allocation2 + $0xc8] sm:$0xf]
    %v1472 = vld [vmem:[#allocation2 + $0xcc] sm:$0xf]
    %v1473 = vld [vmem:[#allocation2 + $0xd0] sm:$0xf]
    %v1474 = vld [vmem:[#allocation2 + $0xd4] sm:$0xf]
    %v1475 = vld [vmem:[#allocation2 + $0xd8] sm:$0xf]
    %v1476 = vld [vmem:[#allocation2 + $0xdc] sm:$0xf]
    %v1477 = vld [vmem:[#allocation2 + $0xe0] sm:$0xf]
    %v1478 = vld [vmem:[#allocation2 + $0xe4] sm:$0xf]
    %v1479 = vld [vmem:[#allocation2 + $0xe8] sm:$0xf]
    %v1480 = vld [vmem:[#allocation2 + $0xec] sm:$0xf]
    %v1481 = vld [vmem:[#allocation2 + $0xf0] sm:$0xf]
    %v1482 = vld [vmem:[#allocation2 + $0xf4] sm:$0xf]
    %v1483 = vld [vmem:[#allocation2 + $0xf8] sm:$0xf]
    %v1484 = vld [vmem:[#allocation2 + $0xfc] sm:$0xf]
    %v1485 = vld [vmem:[#allocation2 + $0x100] sm:$0xf]
    %v1486 = vld [vmem:[#allocation2 + $0x104] sm:$0xf]
    %v1487 = vld [vmem:[#allocation2 + $0x108] sm:$0xf]
    %v1488 = vld [vmem:[#allocation2 + $0x10c] sm:$0xf]
    %v1489 = vld [vmem:[#allocation2 + $0x110] sm:$0xf]
    %v1490 = vld [vmem:[#allocation2 + $0x114] sm:$0xf]
    %v1491 = vld [vmem:[#allocation2 + $0x118] sm:$0xf]
    %v1492 = vld [vmem:[#allocation2 + $0x11c] sm:$0xf]
    %v1493 = vld [vmem:[#allocation2 + $0x120] sm:$0xf]
    %v1494 = vld [vmem:[#allocation2 + $0x124] sm:$0xf]
    %v1495 = vld [vmem:[#allocation2 + $0x128] sm:$0xf]
    %v1496 = vld [vmem:[#allocation2 + $0x12c] sm:$0xf]
    %v1497 = vld [vmem:[#allocation2 + $0x130] sm:$0xf]
    %v1498 = vld [vmem:[#allocation2 + $0x134] sm:$0xf]
    %v1499 = vld [vmem:[#allocation2 + $0x138] sm:$0xf]
    %v1500 = vld [vmem:[#allocation2 + $0x13c] sm:$0xf]
    %v1501 = vld [vmem:[#allocation2 + $0x140] sm:$0xf]
    %v1502 = vld [vmem:[#allocation2 + $0x144] sm:$0xf]
    %v1503 = vld [vmem:[#allocation2 + $0x148] sm:$0xf]
    %v1504 = vld [vmem:[#allocation2 + $0x14c] sm:$0xf]
    %v1505 = vld [vmem:[#allocation2 + $0x150] sm:$0xf]
    %v1506 = vld [vmem:[#allocation2 + $0x154] sm:$0xf]
    %v1507 = vld [vmem:[#allocation2 + $0x158] sm:$0xf]
    %v1508 = vld [vmem:[#allocation2 + $0x15c] sm:$0xf]
    %v1509 = vld [vmem:[#allocation2 + $0x160] sm:$0xf]
    %v1510 = vld [vmem:[#allocation2 + $0x164] sm:$0xf]
    %v1511 = vld [vmem:[#allocation2 + $0x168] sm:$0xf]
    %v1512 = vld [vmem:[#allocation2 + $0x16c] sm:$0xf]
    %v1513 = vld [vmem:[#allocation2 + $0x170] sm:$0xf]
    %v1514 = vld [vmem:[#allocation2 + $0x174] sm:$0xf]
    %v1515 = vld [vmem:[#allocation2 + $0x178] sm:$0xf]
    %v1516 = vld [vmem:[#allocation2 + $0x17c] sm:$0xf]
    %v1517 = vld [vmem:[#allocation2 + $0x180] sm:$0xf]
    %v1518 = vld [vmem:[#allocation2 + $0x184] sm:$0xf]
    %v1519 = vld [vmem:[#allocation2 + $0x188] sm:$0xf]
    %v1520 = vld [vmem:[#allocation2 + $0x18c] sm:$0xf]
    %v1521 = vld [vmem:[#allocation2 + $0x190] sm:$0xf]
    %v1522 = vld [vmem:[#allocation2 + $0x194] sm:$0xf]
    %v1523 = vld [vmem:[#allocation2 + $0x198] sm:$0xf]
    %v1524 = vld [vmem:[#allocation2 + $0x19c] sm:$0xf]
    %v1525 = vld [vmem:[#allocation2 + $0x1a0] sm:$0xf]
    %v1526 = vld [vmem:[#allocation2 + $0x1a4] sm:$0xf]
    %v1527 = vld [vmem:[#allocation2 + $0x1a8] sm:$0xf]
    %v1528 = vld [vmem:[#allocation2 + $0x1ac] sm:$0xf]
    %v1529 = vld [vmem:[#allocation2 + $0x1b0] sm:$0xf]
    %v1530 = vld [vmem:[#allocation2 + $0x1b4] sm:$0xf]
    %v1531 = vld [vmem:[#allocation2 + $0x1b8] sm:$0xf]
    %v1532 = vld [vmem:[#allocation2 + $0x1bc] sm:$0xf]
    %v1533 = vld [vmem:[#allocation2 + $0x1c0] sm:$0xf]
    %v1534 = vld [vmem:[#allocation2 + $0x1c4] sm:$0xf]
    %v1535 = vld [vmem:[#allocation2 + $0x1c8] sm:$0xf]
    %v1536 = vld [vmem:[#allocation2 + $0x1cc] sm:$0xf]
    %v1537 = vld [vmem:[#allocation2 + $0x1d0] sm:$0xf]
    %v1538 = vld [vmem:[#allocation2 + $0x1d4] sm:$0xf]
    %v1539 = vld [vmem:[#allocation2 + $0x1d8] sm:$0xf]
    %v1540 = vld [vmem:[#allocation2 + $0x1dc] sm:$0xf]
    %v1541 = vld [vmem:[#allocation2 + $0x1e0] sm:$0xf]
    %v1542 = vld [vmem:[#allocation2 + $0x1e4] sm:$0xf]
    %v1543 = vld [vmem:[#allocation2 + $0x1e8] sm:$0xf]
    %v1544 = vld [vmem:[#allocation2 + $0x1ec] sm:$0xf]
    %v1545 = vld [vmem:[#allocation2 + $0x1f0] sm:$0xf]
    %v1546 = vld [vmem:[#allocation2 + $0x1f4] sm:$0xf]
    %v1547 = vld [vmem:[#allocation2 + $0x1f8] sm:$0xf]
    %v1548 = vld [vmem:[#allocation2 + $0x1fc] sm:$0xf]
    %v1549 = vld [vmem:[#allocation2 + $0x200] sm:$0xf]
    %v1550 = vld [vmem:[#allocation2 + $0x204] sm:$0xf]
    %v1551 = vld [vmem:[#allocation2 + $0x208] sm:$0xf]
    %v1552 = vld [vmem:[#allocation2 + $0x20c] sm:$0xf]
    %v1553 = vld [vmem:[#allocation2 + $0x210] sm:$0xf]
    %v1554 = vld [vmem:[#allocation2 + $0x214] sm:$0xf]
    %v1555 = vld [vmem:[#allocation2 + $0x218] sm:$0xf]
    %v1556 = vld [vmem:[#allocation2 + $0x21c] sm:$0xf]
    %v1557 = vld [vmem:[#allocation2 + $0x220] sm:$0xf]
    %v1558 = vld [vmem:[#allocation2 + $0x224] sm:$0xf]
    %v1559 = vld [vmem:[#allocation2 + $0x228] sm:$0xf]
    %v1560 = vld [vmem:[#allocation2 + $0x22c] sm:$0xf]
    %v1561 = vld [vmem:[#allocation2 + $0x230] sm:$0xf]
    %v1562 = vld [vmem:[#allocation2 + $0x234] sm:$0xf]
    %v1563 = vld [vmem:[#allocation2 + $0x238] sm:$0xf]
    %v1564 = vld [vmem:[#allocation2 + $0x23c] sm:$0xf]
    %v1565 = vld [vmem:[#allocation2 + $0x240] sm:$0xf]
    %v1566 = vld [vmem:[#allocation2 + $0x244] sm:$0xf]
    %v1567 = vld [vmem:[#allocation2 + $0x248] sm:$0xf]
    %v1568 = vld [vmem:[#allocation2 + $0x24c] sm:$0xf]
    %v1569 = vld [vmem:[#allocation2 + $0x250] sm:$0xf]
    %v1570 = vld [vmem:[#allocation2 + $0x254] sm:$0xf]
    %v1571 = vld [vmem:[#allocation2 + $0x258] sm:$0xf]
    %v1572 = vld [vmem:[#allocation2 + $0x25c] sm:$0xf]
    %v1573 = vld [vmem:[#allocation2 + $0x260] sm:$0xf]
    %v1574 = vld [vmem:[#allocation2 + $0x264] sm:$0xf]
    %v1575 = vld [vmem:[#allocation2 + $0x268] sm:$0xf]
    %v1576 = vld [vmem:[#allocation2 + $0x26c] sm:$0xf]
    %v1577 = vld [vmem:[#allocation2 + $0x270] sm:$0xf]
    %v1578 = vld [vmem:[#allocation2 + $0x274] sm:$0xf]
    %v1579 = vld [vmem:[#allocation2 + $0x278] sm:$0xf]
    %v1580 = vld [vmem:[#allocation2 + $0x27c] sm:$0xf]
    %v1581 = vld [vmem:[#allocation2 + $0x280] sm:$0xf]
    %v1582 = vld [vmem:[#allocation2 + $0x284] sm:$0xf]
    %v1583 = vld [vmem:[#allocation2 + $0x288] sm:$0xf]
    %v1584 = vld [vmem:[#allocation2 + $0x28c] sm:$0xf]
    %v1585 = vld [vmem:[#allocation2 + $0x290] sm:$0xf]
    %v1586 = vld [vmem:[#allocation2 + $0x294] sm:$0xf]
    %v1587 = vld [vmem:[#allocation2 + $0x298] sm:$0xf]
    %v1588 = vld [vmem:[#allocation2 + $0x29c] sm:$0xf]
    %v1589 = vld [vmem:[#allocation2 + $0x2a0] sm:$0xf]
    %v1590 = vld [vmem:[#allocation2 + $0x2a4] sm:$0xf]
    %v1591 = vld [vmem:[#allocation2 + $0x2a8] sm:$0xf]
    %v1592 = vld [vmem:[#allocation2 + $0x2ac] sm:$0xf]
    %v1593 = vld [vmem:[#allocation2 + $0x2b0] sm:$0xf]
    %v1594 = vld [vmem:[#allocation2 + $0x2b4] sm:$0xf]
    %v1595 = vld [vmem:[#allocation2 + $0x2b8] sm:$0xf]
    %v1596 = vld [vmem:[#allocation2 + $0x2bc] sm:$0xf]
    %v1597 = vld [vmem:[#allocation2 + $0x2c0] sm:$0xf]
    %v1598 = vld [vmem:[#allocation2 + $0x2c4] sm:$0xf]
    %v1599 = vld [vmem:[#allocation2 + $0x2c8] sm:$0xf]
    %v1600 = vld [vmem:[#allocation2 + $0x2cc] sm:$0xf]
    %v1601 = vld [vmem:[#allocation2 + $0x2d0] sm:$0xf]
    %v1602 = vld [vmem:[#allocation2 + $0x2d4] sm:$0xf]
    %v1603 = vld [vmem:[#allocation2 + $0x2d8] sm:$0xf]
    %v1604 = vld [vmem:[#allocation2 + $0x2dc] sm:$0xf]
    %v1605 = vld [vmem:[#allocation2 + $0x2e0] sm:$0xf]
    %v1606 = vld [vmem:[#allocation2 + $0x2e4] sm:$0xf]
    %v1607 = vld [vmem:[#allocation2 + $0x2e8] sm:$0xf]
    %v1608 = vld [vmem:[#allocation2 + $0x2ec] sm:$0xf]
    %v1609 = vld [vmem:[#allocation2 + $0x2f0] sm:$0xf]
    %v1610 = vld [vmem:[#allocation2 + $0x2f4] sm:$0xf]
    %v1611 = vld [vmem:[#allocation2 + $0x2f8] sm:$0xf]
    %v1612 = vld [vmem:[#allocation2 + $0x2fc] sm:$0xf]
    %v1613 = vld [vmem:[#allocation2 + $0x300] sm:$0xf]
    %v1614 = vld [vmem:[#allocation2 + $0x304] sm:$0xf]
    %v1615 = vld [vmem:[#allocation2 + $0x308] sm:$0xf]
    %v1616 = vld [vmem:[#allocation2 + $0x30c] sm:$0xf]
    %v1617 = vld [vmem:[#allocation2 + $0x310] sm:$0xf]
    %v1618 = vld [vmem:[#allocation2 + $0x314] sm:$0xf]
    %v1619 = vld [vmem:[#allocation2 + $0x318] sm:$0xf]
    %v1620 = vld [vmem:[#allocation2 + $0x31c] sm:$0xf]
    %v1621 = vld [vmem:[#allocation2 + $0x320] sm:$0xf]
    %v1622 = vld [vmem:[#allocation2 + $0x324] sm:$0xf]
    %v1623 = vld [vmem:[#allocation2 + $0x328] sm:$0xf]
    %v1624 = vld [vmem:[#allocation2 + $0x32c] sm:$0xf]
    %v1625 = vld [vmem:[#allocation2 + $0x330] sm:$0xf]
    %v1626 = vld [vmem:[#allocation2 + $0x334] sm:$0xf]
    %v1627 = vld [vmem:[#allocation2 + $0x338] sm:$0xf]
    %v1628 = vld [vmem:[#allocation2 + $0x33c] sm:$0xf]
    %v1629 = vld [vmem:[#allocation2 + $0x340] sm:$0xf]
    %v1630 = vld [vmem:[#allocation2 + $0x344] sm:$0xf]
    %v1631 = vld [vmem:[#allocation2 + $0x348] sm:$0xf]
    %v1632 = vld [vmem:[#allocation2 + $0x34c] sm:$0xf]
    %v1633 = vld [vmem:[#allocation2 + $0x350] sm:$0xf]
    %v1634 = vld [vmem:[#allocation2 + $0x354] sm:$0xf]
    %v1635 = vld [vmem:[#allocation2 + $0x358] sm:$0xf]
    %v1636 = vld [vmem:[#allocation2 + $0x35c] sm:$0xf]
    %v1637 = vld [vmem:[#allocation2 + $0x360] sm:$0xf]
    %v1638 = vld [vmem:[#allocation2 + $0x364] sm:$0xf]
    %v1639 = vld [vmem:[#allocation2 + $0x368] sm:$0xf]
    %v1640 = vld [vmem:[#allocation2 + $0x36c] sm:$0xf]
    %v1641 = vld [vmem:[#allocation2 + $0x370] sm:$0xf]
    %v1642 = vld [vmem:[#allocation2 + $0x374] sm:$0xf]
    %v1643 = vld [vmem:[#allocation2 + $0x378] sm:$0xf]
    %v1644 = vld [vmem:[#allocation2 + $0x37c] sm:$0xf]
    %v1645 = vld [vmem:[#allocation2 + $0x380] sm:$0xf]
    %v1646 = vld [vmem:[#allocation2 + $0x384] sm:$0xf]
    %v1647 = vld [vmem:[#allocation2 + $0x388] sm:$0xf]
    %v1648 = vld [vmem:[#allocation2 + $0x38c] sm:$0xf]
    %v1649 = vld [vmem:[#allocation2 + $0x390] sm:$0xf]
    %v1650 = vld [vmem:[#allocation2 + $0x394] sm:$0xf]
    %v1651 = vld [vmem:[#allocation2 + $0x398] sm:$0xf]
    %v1652 = vld [vmem:[#allocation2 + $0x39c] sm:$0xf]
    %v1653 = vld [vmem:[#allocation2 + $0x3a0] sm:$0xf]
    %v1654 = vld [vmem:[#allocation2 + $0x3a4] sm:$0xf]
    %v1655 = vld [vmem:[#allocation2 + $0x3a8] sm:$0xf]
    %v1656 = vld [vmem:[#allocation2 + $0x3ac] sm:$0xf]
    %v1657 = vld [vmem:[#allocation2 + $0x3b0] sm:$0xf]
    %v1658 = vld [vmem:[#allocation2 + $0x3b4] sm:$0xf]
    %v1659 = vld [vmem:[#allocation2 + $0x3b8] sm:$0xf]
    %v1660 = vld [vmem:[#allocation2 + $0x3bc] sm:$0xf]
    %v1661 = vld [vmem:[#allocation2 + $0x3c0] sm:$0xf]
    %v1662 = vld [vmem:[#allocation2 + $0x3c4] sm:$0xf]
    %v1663 = vld [vmem:[#allocation2 + $0x3c8] sm:$0xf]
    %v1664 = vld [vmem:[#allocation2 + $0x3cc] sm:$0xf]
    %v1665 = vld [vmem:[#allocation2 + $0x3d0] sm:$0xf]
    %v1666 = vld [vmem:[#allocation2 + $0x3d4] sm:$0xf]
    %v1667 = vld [vmem:[#allocation2 + $0x3d8] sm:$0xf]
    %v1668 = vld [vmem:[#allocation2 + $0x3dc] sm:$0xf]
    %v1669 = vld [vmem:[#allocation2 + $0x3e0] sm:$0xf]
    %v1670 = vld [vmem:[#allocation2 + $0x3e4] sm:$0xf]
    %v1671 = vld [vmem:[#allocation2 + $0x3e8] sm:$0xf]
    %v1672 = vld [vmem:[#allocation2 + $0x3ec] sm:$0xf]
    %v1673 = vld [vmem:[#allocation2 + $0x3f0] sm:$0xf]
    %v1674 = vld [vmem:[#allocation2 + $0x3f4] sm:$0xf]
    %v1675 = vld [vmem:[#allocation2 + $0x3f8] sm:$0xf]
    %v1676 = vld [vmem:[#allocation2 + $0x3fc] sm:$0xf]
    %v1677 = vld [vmem:[%s4] sm:$0x1]
    %v1679 = vlaneseq
    %v1680 = vshrl.u32 %v1679, 7
    %v1681 = vsub.s32 0, %v1680
    %v1682 = vrot.slane %v1677, %v1681
    %v1940 = vunpack.c.l.b16 %v1421
    %v1941 = vunpack.c.l.b16 %v1422
    %v1942 = vunpack.c.l.b16 %v1423
    %v1943 = vunpack.c.l.b16 %v1424
    %v1944 = vunpack.c.l.b16 %v1425
    %v1945 = vunpack.c.l.b16 %v1426
    %v1946 = vunpack.c.l.b16 %v1427
    %v1947 = vunpack.c.l.b16 %v1428
    %v1948 = vunpack.c.l.b16 %v1429
    %v1949 = vunpack.c.l.b16 %v1430
    %v1950 = vunpack.c.l.b16 %v1431
    %v1951 = vunpack.c.l.b16 %v1432
    %v1952 = vunpack.c.l.b16 %v1433
    %v1953 = vunpack.c.l.b16 %v1434
    %v1954 = vunpack.c.l.b16 %v1435
    %v1955 = vunpack.c.l.b16 %v1436
    %v1956 = vunpack.c.l.b16 %v1437
    %v1957 = vunpack.c.l.b16 %v1438
    %v1958 = vunpack.c.l.b16 %v1439
    %v1959 = vunpack.c.l.b16 %v1440
    %v1960 = vunpack.c.l.b16 %v1441
    %v1961 = vunpack.c.l.b16 %v1442
    %v1962 = vunpack.c.l.b16 %v1443
    %v1963 = vunpack.c.l.b16 %v1444
    %v1964 = vunpack.c.l.b16 %v1445
    %v1965 = vunpack.c.l.b16 %v1446
    %v1966 = vunpack.c.l.b16 %v1447
    %v1967 = vunpack.c.l.b16 %v1448
    %v1968 = vunpack.c.l.b16 %v1449
    %v1969 = vunpack.c.l.b16 %v1450
    %v1970 = vunpack.c.l.b16 %v1451
    %v1971 = vunpack.c.l.b16 %v1452
    %v1972 = vunpack.c.l.b16 %v1453
    %v1973 = vunpack.c.l.b16 %v1454
    %v1974 = vunpack.c.l.b16 %v1455
    %v1975 = vunpack.c.l.b16 %v1456
    %v1976 = vunpack.c.l.b16 %v1457
    %v1977 = vunpack.c.l.b16 %v1458
    %v1978 = vunpack.c.l.b16 %v1459
    %v1979 = vunpack.c.l.b16 %v1460
    %v1980 = vunpack.c.l.b16 %v1461
    %v1981 = vunpack.c.l.b16 %v1462
    %v1982 = vunpack.c.l.b16 %v1463
    %v1983 = vunpack.c.l.b16 %v1464
    %v1984 = vunpack.c.l.b16 %v1465
    %v1985 = vunpack.c.l.b16 %v1466
    %v1986 = vunpack.c.l.b16 %v1467
    %v1987 = vunpack.c.l.b16 %v1468
    %v1988 = vunpack.c.l.b16 %v1469
    %v1989 = vunpack.c.l.b16 %v1470
    %v1990 = vunpack.c.l.b16 %v1471
    %v1991 = vunpack.c.l.b16 %v1472
    %v1992 = vunpack.c.l.b16 %v1473
    %v1993 = vunpack.c.l.b16 %v1474
    %v1994 = vunpack.c.l.b16 %v1475
    %v1995 = vunpack.c.l.b16 %v1476
    %v1996 = vunpack.c.l.b16 %v1477
    %v1997 = vunpack.c.l.b16 %v1478
    %v1998 = vunpack.c.l.b16 %v1479
    %v1999 = vunpack.c.l.b16 %v1480
    %v2000 = vunpack.c.l.b16 %v1481
    %v2001 = vunpack.c.l.b16 %v1482
    %v2002 = vunpack.c.l.b16 %v1483
    %v2003 = vunpack.c.l.b16 %v1484
    %v2004 = vunpack.c.l.b16 %v1485
    %v2005 = vunpack.c.l.b16 %v1486
    %v2006 = vunpack.c.l.b16 %v1487
    %v2007 = vunpack.c.l.b16 %v1488
    %v2008 = vunpack.c.l.b16 %v1489
    %v2009 = vunpack.c.l.b16 %v1490
    %v2010 = vunpack.c.l.b16 %v1491
    %v2011 = vunpack.c.l.b16 %v1492
    %v2012 = vunpack.c.l.b16 %v1493
    %v2013 = vunpack.c.l.b16 %v1494
    %v2014 = vunpack.c.l.b16 %v1495
    %v2015 = vunpack.c.l.b16 %v1496
    %v2016 = vunpack.c.l.b16 %v1497
    %v2017 = vunpack.c.l.b16 %v1498
    %v2018 = vunpack.c.l.b16 %v1499
    %v2019 = vunpack.c.l.b16 %v1500
    %v2020 = vunpack.c.l.b16 %v1501
    %v2021 = vunpack.c.l.b16 %v1502
    %v2022 = vunpack.c.l.b16 %v1503
    %v2023 = vunpack.c.l.b16 %v1504
    %v2024 = vunpack.c.l.b16 %v1505
    %v2025 = vunpack.c.l.b16 %v1506
    %v2026 = vunpack.c.l.b16 %v1507
    %v2027 = vunpack.c.l.b16 %v1508
    %v2028 = vunpack.c.l.b16 %v1509
    %v2029 = vunpack.c.l.b16 %v1510
    %v2030 = vunpack.c.l.b16 %v1511
    %v2031 = vunpack.c.l.b16 %v1512
    %v2032 = vunpack.c.l.b16 %v1513
    %v2033 = vunpack.c.l.b16 %v1514
    %v2034 = vunpack.c.l.b16 %v1515
    %v2035 = vunpack.c.l.b16 %v1516
    %v2036 = vunpack.c.l.b16 %v1517
    %v2037 = vunpack.c.l.b16 %v1518
    %v2038 = vunpack.c.l.b16 %v1519
    %v2039 = vunpack.c.l.b16 %v1520
    %v2040 = vunpack.c.l.b16 %v1521
    %v2041 = vunpack.c.l.b16 %v1522
    %v2042 = vunpack.c.l.b16 %v1523
    %v2043 = vunpack.c.l.b16 %v1524
    %v2044 = vunpack.c.l.b16 %v1525
    %v2045 = vunpack.c.l.b16 %v1526
    %v2046 = vunpack.c.l.b16 %v1527
    %v2047 = vunpack.c.l.b16 %v1528
    %v2048 = vunpack.c.l.b16 %v1529
    %v2049 = vunpack.c.l.b16 %v1530
    %v2050 = vunpack.c.l.b16 %v1531
    %v2051 = vunpack.c.l.b16 %v1532
    %v2052 = vunpack.c.l.b16 %v1533
    %v2053 = vunpack.c.l.b16 %v1534
    %v2054 = vunpack.c.l.b16 %v1535
    %v2055 = vunpack.c.l.b16 %v1536
    %v2056 = vunpack.c.l.b16 %v1537
    %v2057 = vunpack.c.l.b16 %v1538
    %v2058 = vunpack.c.l.b16 %v1539
    %v2059 = vunpack.c.l.b16 %v1540
    %v2060 = vunpack.c.l.b16 %v1541
    %v2061 = vunpack.c.l.b16 %v1542
    %v2062 = vunpack.c.l.b16 %v1543
    %v2063 = vunpack.c.l.b16 %v1544
    %v2064 = vunpack.c.l.b16 %v1545
    %v2065 = vunpack.c.l.b16 %v1546
    %v2066 = vunpack.c.l.b16 %v1547
    %v2067 = vunpack.c.l.b16 %v1548
    %v2068 = vunpack.c.l.b16 %v1549
    %v2069 = vunpack.c.l.b16 %v1550
    %v2070 = vunpack.c.l.b16 %v1551
    %v2071 = vunpack.c.l.b16 %v1552
    %v2072 = vunpack.c.l.b16 %v1553
    %v2073 = vunpack.c.l.b16 %v1554
    %v2074 = vunpack.c.l.b16 %v1555
    %v2075 = vunpack.c.l.b16 %v1556
    %v2076 = vunpack.c.l.b16 %v1557
    %v2077 = vunpack.c.l.b16 %v1558
    %v2078 = vunpack.c.l.b16 %v1559
    %v2079 = vunpack.c.l.b16 %v1560
    %v2080 = vunpack.c.l.b16 %v1561
    %v2081 = vunpack.c.l.b16 %v1562
    %v2082 = vunpack.c.l.b16 %v1563
    %v2083 = vunpack.c.l.b16 %v1564
    %v2084 = vunpack.c.l.b16 %v1565
    %v2085 = vunpack.c.l.b16 %v1566
    %v2086 = vunpack.c.l.b16 %v1567
    %v2087 = vunpack.c.l.b16 %v1568
    %v2088 = vunpack.c.l.b16 %v1569
    %v2089 = vunpack.c.l.b16 %v1570
    %v2090 = vunpack.c.l.b16 %v1571
    %v2091 = vunpack.c.l.b16 %v1572
    %v2092 = vunpack.c.l.b16 %v1573
    %v2093 = vunpack.c.l.b16 %v1574
    %v2094 = vunpack.c.l.b16 %v1575
    %v2095 = vunpack.c.l.b16 %v1576
    %v2096 = vunpack.c.l.b16 %v1577
    %v2097 = vunpack.c.l.b16 %v1578
    %v2098 = vunpack.c.l.b16 %v1579
    %v2099 = vunpack.c.l.b16 %v1580
    %v2100 = vunpack.c.l.b16 %v1581
    %v2101 = vunpack.c.l.b16 %v1582
    %v2102 = vunpack.c.l.b16 %v1583
    %v2103 = vunpack.c.l.b16 %v1584
    %v2104 = vunpack.c.l.b16 %v1585
    %v2105 = vunpack.c.l.b16 %v1586
    %v2106 = vunpack.c.l.b16 %v1587
    %v2107 = vunpack.c.l.b16 %v1588
    %v2108 = vunpack.c.l.b16 %v1589
    %v2109 = vunpack.c.l.b16 %v1590
    %v2110 = vunpack.c.l.b16 %v1591
    %v2111 = vunpack.c.l.b16 %v1592
    %v2112 = vunpack.c.l.b16 %v1593
    %v2113 = vunpack.c.l.b16 %v1594
    %v2114 = vunpack.c.l.b16 %v1595
    %v2115 = vunpack.c.l.b16 %v1596
    %v2116 = vunpack.c.l.b16 %v1597
    %v2117 = vunpack.c.l.b16 %v1598
    %v2118 = vunpack.c.l.b16 %v1599
    %v2119 = vunpack.c.l.b16 %v1600
    %v2120 = vunpack.c.l.b16 %v1601
    %v2121 = vunpack.c.l.b16 %v1602
    %v2122 = vunpack.c.l.b16 %v1603
    %v2123 = vunpack.c.l.b16 %v1604
    %v2124 = vunpack.c.l.b16 %v1605
    %v2125 = vunpack.c.l.b16 %v1606
    %v2126 = vunpack.c.l.b16 %v1607
    %v2127 = vunpack.c.l.b16 %v1608
    %v2128 = vunpack.c.l.b16 %v1609
    %v2129 = vunpack.c.l.b16 %v1610
    %v2130 = vunpack.c.l.b16 %v1611
    %v2131 = vunpack.c.l.b16 %v1612
    %v2132 = vunpack.c.l.b16 %v1613
    %v2133 = vunpack.c.l.b16 %v1614
    %v2134 = vunpack.c.l.b16 %v1615
    %v2135 = vunpack.c.l.b16 %v1616
    %v2136 = vunpack.c.l.b16 %v1617
    %v2137 = vunpack.c.l.b16 %v1618
    %v2138 = vunpack.c.l.b16 %v1619
    %v2139 = vunpack.c.l.b16 %v1620
    %v2140 = vunpack.c.l.b16 %v1621
    %v2141 = vunpack.c.l.b16 %v1622
    %v2142 = vunpack.c.l.b16 %v1623
    %v2143 = vunpack.c.l.b16 %v1624
    %v2144 = vunpack.c.l.b16 %v1625
    %v2145 = vunpack.c.l.b16 %v1626
    %v2146 = vunpack.c.l.b16 %v1627
    %v2147 = vunpack.c.l.b16 %v1628
    %v2148 = vunpack.c.l.b16 %v1629
    %v2149 = vunpack.c.l.b16 %v1630
    %v2150 = vunpack.c.l.b16 %v1631
    %v2151 = vunpack.c.l.b16 %v1632
    %v2152 = vunpack.c.l.b16 %v1633
    %v2153 = vunpack.c.l.b16 %v1634
    %v2154 = vunpack.c.l.b16 %v1635
    %v2155 = vunpack.c.l.b16 %v1636
    %v2156 = vunpack.c.l.b16 %v1637
    %v2157 = vunpack.c.l.b16 %v1638
    %v2158 = vunpack.c.l.b16 %v1639
    %v2159 = vunpack.c.l.b16 %v1640
    %v2160 = vunpack.c.l.b16 %v1641
    %v2161 = vunpack.c.l.b16 %v1642
    %v2162 = vunpack.c.l.b16 %v1643
    %v2163 = vunpack.c.l.b16 %v1644
    %v2164 = vunpack.c.l.b16 %v1645
    %v2165 = vunpack.c.l.b16 %v1646
    %v2166 = vunpack.c.l.b16 %v1647
    %v2167 = vunpack.c.l.b16 %v1648
    %v2168 = vunpack.c.l.b16 %v1649
    %v2169 = vunpack.c.l.b16 %v1650
    %v2170 = vunpack.c.l.b16 %v1651
    %v2171 = vunpack.c.l.b16 %v1652
    %v2172 = vunpack.c.l.b16 %v1653
    %v2173 = vunpack.c.l.b16 %v1654
    %v2174 = vunpack.c.l.b16 %v1655
    %v2175 = vunpack.c.l.b16 %v1656
    %v2176 = vunpack.c.l.b16 %v1657
    %v2177 = vunpack.c.l.b16 %v1658
    %v2178 = vunpack.c.l.b16 %v1659
    %v2179 = vunpack.c.l.b16 %v1660
    %v2180 = vunpack.c.l.b16 %v1661
    %v2181 = vunpack.c.l.b16 %v1662
    %v2182 = vunpack.c.l.b16 %v1663
    %v2183 = vunpack.c.l.b16 %v1664
    %v2184 = vunpack.c.l.b16 %v1665
    %v2185 = vunpack.c.l.b16 %v1666
    %v2186 = vunpack.c.l.b16 %v1667
    %v2187 = vunpack.c.l.b16 %v1668
    %v2188 = vunpack.c.l.b16 %v1669
    %v2189 = vunpack.c.l.b16 %v1670
    %v2190 = vunpack.c.l.b16 %v1671
    %v2191 = vunpack.c.l.b16 %v1672
    %v2192 = vunpack.c.l.b16 %v1673
    %v2193 = vunpack.c.l.b16 %v1674
    %v2194 = vunpack.c.l.b16 %v1675
    %v2195 = vunpack.c.l.b16 %v1676
    %v2196 = vpack.c.b16 %v1941, %v1940
    %v2197 = vpack.c.b16 %v1943, %v1942
    %v2198 = vpack.c.b16 %v1945, %v1944
    %v2199 = vpack.c.b16 %v1947, %v1946
    %v2200 = vpack.c.b16 %v1949, %v1948
    %v2201 = vpack.c.b16 %v1951, %v1950
    %v2202 = vpack.c.b16 %v1953, %v1952
    %v2203 = vpack.c.b16 %v1955, %v1954
    %v2204 = vpack.c.b16 %v1957, %v1956
    %v2205 = vpack.c.b16 %v1959, %v1958
    %v2206 = vpack.c.b16 %v1961, %v1960
    %v2207 = vpack.c.b16 %v1963, %v1962
    %v2208 = vpack.c.b16 %v1965, %v1964
    %v2209 = vpack.c.b16 %v1967, %v1966
    %v2210 = vpack.c.b16 %v1969, %v1968
    %v2211 = vpack.c.b16 %v1971, %v1970
    %v2212 = vpack.c.b16 %v1973, %v1972
    %v2213 = vpack.c.b16 %v1975, %v1974
    %v2214 = vpack.c.b16 %v1977, %v1976
    %v2215 = vpack.c.b16 %v1979, %v1978
    %v2216 = vpack.c.b16 %v1981, %v1980
    %v2217 = vpack.c.b16 %v1983, %v1982
    %v2218 = vpack.c.b16 %v1985, %v1984
    %v2219 = vpack.c.b16 %v1987, %v1986
    %v2220 = vpack.c.b16 %v1989, %v1988
    %v2221 = vpack.c.b16 %v1991, %v1990
    %v2222 = vpack.c.b16 %v1993, %v1992
    %v2223 = vpack.c.b16 %v1995, %v1994
    %v2224 = vpack.c.b16 %v1997, %v1996
    %v2225 = vpack.c.b16 %v1999, %v1998
    %v2226 = vpack.c.b16 %v2001, %v2000
    %v2227 = vpack.c.b16 %v2003, %v2002
    %v2228 = vpack.c.b16 %v2005, %v2004
    %v2229 = vpack.c.b16 %v2007, %v2006
    %v2230 = vpack.c.b16 %v2009, %v2008
    %v2231 = vpack.c.b16 %v2011, %v2010
    %v2232 = vpack.c.b16 %v2013, %v2012
    %v2233 = vpack.c.b16 %v2015, %v2014
    %v2234 = vpack.c.b16 %v2017, %v2016
    %v2235 = vpack.c.b16 %v2019, %v2018
    %v2236 = vpack.c.b16 %v2021, %v2020
    %v2237 = vpack.c.b16 %v2023, %v2022
    %v2238 = vpack.c.b16 %v2025, %v2024
    %v2239 = vpack.c.b16 %v2027, %v2026
    %v2240 = vpack.c.b16 %v2029, %v2028
    %v2241 = vpack.c.b16 %v2031, %v2030
    %v2242 = vpack.c.b16 %v2033, %v2032
    %v2243 = vpack.c.b16 %v2035, %v2034
    %v2244 = vpack.c.b16 %v2037, %v2036
    %v2245 = vpack.c.b16 %v2039, %v2038
    %v2246 = vpack.c.b16 %v2041, %v2040
    %v2247 = vpack.c.b16 %v2043, %v2042
    %v2248 = vpack.c.b16 %v2045, %v2044
    %v2249 = vpack.c.b16 %v2047, %v2046
    %v2250 = vpack.c.b16 %v2049, %v2048
    %v2251 = vpack.c.b16 %v2051, %v2050
    %v2252 = vpack.c.b16 %v2053, %v2052
    %v2253 = vpack.c.b16 %v2055, %v2054
    %v2254 = vpack.c.b16 %v2057, %v2056
    %v2255 = vpack.c.b16 %v2059, %v2058
    %v2256 = vpack.c.b16 %v2061, %v2060
    %v2257 = vpack.c.b16 %v2063, %v2062
    %v2258 = vpack.c.b16 %v2065, %v2064
    %v2259 = vpack.c.b16 %v2067, %v2066
    %v2260 = vpack.c.b16 %v2069, %v2068
    %v2261 = vpack.c.b16 %v2071, %v2070
    %v2262 = vpack.c.b16 %v2073, %v2072
    %v2263 = vpack.c.b16 %v2075, %v2074
    %v2264 = vpack.c.b16 %v2077, %v2076
    %v2265 = vpack.c.b16 %v2079, %v2078
    %v2266 = vpack.c.b16 %v2081, %v2080
    %v2267 = vpack.c.b16 %v2083, %v2082
    %v2268 = vpack.c.b16 %v2085, %v2084
    %v2269 = vpack.c.b16 %v2087, %v2086
    %v2270 = vpack.c.b16 %v2089, %v2088
    %v2271 = vpack.c.b16 %v2091, %v2090
    %v2272 = vpack.c.b16 %v2093, %v2092
    %v2273 = vpack.c.b16 %v2095, %v2094
    %v2274 = vpack.c.b16 %v2097, %v2096
    %v2275 = vpack.c.b16 %v2099, %v2098
    %v2276 = vpack.c.b16 %v2101, %v2100
    %v2277 = vpack.c.b16 %v2103, %v2102
    %v2278 = vpack.c.b16 %v2105, %v2104
    %v2279 = vpack.c.b16 %v2107, %v2106
    %v2280 = vpack.c.b16 %v2109, %v2108
    %v2281 = vpack.c.b16 %v2111, %v2110
    %v2282 = vpack.c.b16 %v2113, %v2112
    %v2283 = vpack.c.b16 %v2115, %v2114
    %v2284 = vpack.c.b16 %v2117, %v2116
    %v2285 = vpack.c.b16 %v2119, %v2118
    %v2286 = vpack.c.b16 %v2121, %v2120
    %v2287 = vpack.c.b16 %v2123, %v2122
    %v2288 = vpack.c.b16 %v2125, %v2124
    %v2289 = vpack.c.b16 %v2127, %v2126
    %v2290 = vpack.c.b16 %v2129, %v2128
    %v2291 = vpack.c.b16 %v2131, %v2130
    %v2292 = vpack.c.b16 %v2133, %v2132
    %v2293 = vpack.c.b16 %v2135, %v2134
    %v2294 = vpack.c.b16 %v2137, %v2136
    %v2295 = vpack.c.b16 %v2139, %v2138
    %v2296 = vpack.c.b16 %v2141, %v2140
    %v2297 = vpack.c.b16 %v2143, %v2142
    %v2298 = vpack.c.b16 %v2145, %v2144
    %v2299 = vpack.c.b16 %v2147, %v2146
    %v2300 = vpack.c.b16 %v2149, %v2148
    %v2301 = vpack.c.b16 %v2151, %v2150
    %v2302 = vpack.c.b16 %v2153, %v2152
    %v2303 = vpack.c.b16 %v2155, %v2154
    %v2304 = vpack.c.b16 %v2157, %v2156
    %v2305 = vpack.c.b16 %v2159, %v2158
    %v2306 = vpack.c.b16 %v2161, %v2160
    %v2307 = vpack.c.b16 %v2163, %v2162
    %v2308 = vpack.c.b16 %v2165, %v2164
    %v2309 = vpack.c.b16 %v2167, %v2166
    %v2310 = vpack.c.b16 %v2169, %v2168
    %v2311 = vpack.c.b16 %v2171, %v2170
    %v2312 = vpack.c.b16 %v2173, %v2172
    %v2313 = vpack.c.b16 %v2175, %v2174
    %v2314 = vpack.c.b16 %v2177, %v2176
    %v2315 = vpack.c.b16 %v2179, %v2178
    %v2316 = vpack.c.b16 %v2181, %v2180
    %v2317 = vpack.c.b16 %v2183, %v2182
    %v2318 = vpack.c.b16 %v2185, %v2184
    %v2319 = vpack.c.b16 %v2187, %v2186
    %v2320 = vpack.c.b16 %v2189, %v2188
    %v2321 = vpack.c.b16 %v2191, %v2190
    %v2322 = vpack.c.b16 %v2193, %v2192
    %v2323 = vpack.c.b16 %v2195, %v2194
    %2452 = vmatprep.subr.bf16.mxu0 0
    %2453 = vmatpush1.bf16.msra.mxu0 %v2203
    %2454 = vmatprep.subr.bf16.mxu0 0
    %2455 = vmatpush1.bf16.msra.mxu0 %v2202
    %2456 = vmatprep.subr.bf16.mxu0 0
    %2457 = vmatpush1.bf16.msra.mxu0 %v2201
    %2458 = vmatprep.subr.bf16.mxu0 0
    %2459 = vmatpush1.bf16.msra.mxu0 %v2200
    %2460 = vmatprep.subr.bf16.mxu0 0
    %2461 = vmatpush1.bf16.msra.mxu0 %v2199
    %2462 = vmatprep.subr.bf16.mxu0 0
    %2463 = vmatpush1.bf16.msra.mxu0 %v2198
    %2464 = vmatprep.subr.bf16.mxu0 0
    %2465 = vmatpush1.bf16.msra.mxu0 %v2197
    %2466 = vmatprep.subr.bf16.mxu0 0
    %2467 = vmatpush1.bf16.msra.mxu0 %v2196
    %2468 = vmatprep.subr.bf16.mxu0 0
    %2469 = vmatpush2.bf16.msra.mxu0 %v2211
    %2470 = vmatprep.subr.bf16.mxu0 0
    %2471 = vmatpush2.bf16.msra.mxu0 %v2210
    %2472 = vmatprep.subr.bf16.mxu0 0
    %2473 = vmatpush2.bf16.msra.mxu0 %v2209
    %2474 = vmatprep.subr.bf16.mxu0 0
    %2475 = vmatpush2.bf16.msra.mxu0 %v2208
    %2476 = vmatprep.subr.bf16.mxu0 0
    %2477 = vmatpush2.bf16.msra.mxu0 %v2207
    %2478 = vmatprep.subr.bf16.mxu0 0
    %2479 = vmatpush2.bf16.msra.mxu0 %v2206
    %2480 = vmatprep.subr.bf16.mxu0 0
    %2481 = vmatpush2.bf16.msra.mxu0 %v2205
    %2482 = vmatprep.subr.bf16.mxu0 0
    %2483 = vmatpush2.bf16.msra.mxu0 %v2204
    %2484 = vmatprep.mubr.bf16.mxu0 %v1406
    %2485 = vmatmul.mubr.bf16.gmra.mxu0 %v1405
    %v2486 = vpop.f32.mrf.mxu0
    %v2487 = vadd.f32 %v1682, %v2486
    %v2488 = vpop.f32.mrf.mxu0
    %v2489 = vpop.f32.mrf.mxu0
    %v2490 = vadd.f32 %v1682, %v2489
    %v2491 = vpop.f32.mrf.mxu0
    %2492 = vdwg.mxu0
    %2493 = vmatprep.subr.bf16.mxu0 0
    %2494 = vmatpush1.bf16.msra.mxu0 %v2219
    %2495 = vmatprep.subr.bf16.mxu0 0
    %2496 = vmatpush1.bf16.msra.mxu0 %v2218
    %2497 = vmatprep.subr.bf16.mxu0 0
    %2498 = vmatpush1.bf16.msra.mxu0 %v2217
    %2499 = vmatprep.subr.bf16.mxu0 0
    %2500 = vmatpush1.bf16.msra.mxu0 %v2216
    %2501 = vmatprep.subr.bf16.mxu0 0
    %2502 = vmatpush1.bf16.msra.mxu0 %v2215
    %2503 = vmatprep.subr.bf16.mxu0 0
    %2504 = vmatpush1.bf16.msra.mxu0 %v2214
    %2505 = vmatprep.subr.bf16.mxu0 0
    %2506 = vmatpush1.bf16.msra.mxu0 %v2213
    %2507 = vmatprep.subr.bf16.mxu0 0
    %2508 = vmatpush1.bf16.msra.mxu0 %v2212
    %2509 = vmatprep.subr.bf16.mxu0 0
    %2510 = vmatpush2.bf16.msra.mxu0 %v2227
    %2511 = vmatprep.subr.bf16.mxu0 0
    %2512 = vmatpush2.bf16.msra.mxu0 %v2226
    %2513 = vmatprep.subr.bf16.mxu0 0
    %2514 = vmatpush2.bf16.msra.mxu0 %v2225
    %2515 = vmatprep.subr.bf16.mxu0 0
    %2516 = vmatpush2.bf16.msra.mxu0 %v2224
    %2517 = vmatprep.subr.bf16.mxu0 0
    %2518 = vmatpush2.bf16.msra.mxu0 %v2223
    %2519 = vmatprep.subr.bf16.mxu0 0
    %2520 = vmatpush2.bf16.msra.mxu0 %v2222
    %2521 = vmatprep.subr.bf16.mxu0 0
    %2522 = vmatpush2.bf16.msra.mxu0 %v2221
    %2523 = vmatprep.subr.bf16.mxu0 0
    %2524 = vmatpush2.bf16.msra.mxu0 %v2220
    %2525 = vmatprep.mubr.bf16.mxu0 %v1408
    %2526 = vmatmul.mubr.bf16.gmra.mxu0 %v1407
    %v2527 = vpop.f32.mrf.mxu0
    %v2528 = vadd.f32 %v2487, %v2527
    %v2529 = vpop.f32.mrf.mxu0
    %v2530 = vpop.f32.mrf.mxu0
    %v2531 = vadd.f32 %v2490, %v2530
    %v2532 = vpop.f32.mrf.mxu0
    %2533 = vdwg.mxu0
    %2534 = vmatprep.subr.bf16.mxu0 0
    %2535 = vmatpush1.bf16.msra.mxu0 %v2235
    %2536 = vmatprep.subr.bf16.mxu0 0
    %2537 = vmatpush1.bf16.msra.mxu0 %v2234
    %2538 = vmatprep.subr.bf16.mxu0 0
    %2539 = vmatpush1.bf16.msra.mxu0 %v2233
    %2540 = vmatprep.subr.bf16.mxu0 0
    %2541 = vmatpush1.bf16.msra.mxu0 %v2232
    %2542 = vmatprep.subr.bf16.mxu0 0
    %2543 = vmatpush1.bf16.msra.mxu0 %v2231
    %2544 = vmatprep.subr.bf16.mxu0 0
    %2545 = vmatpush1.bf16.msra.mxu0 %v2230
    %2546 = vmatprep.subr.bf16.mxu0 0
    %2547 = vmatpush1.bf16.msra.mxu0 %v2229
    %2548 = vmatprep.subr.bf16.mxu0 0
    %2549 = vmatpush1.bf16.msra.mxu0 %v2228
    %2550 = vmatprep.subr.bf16.mxu0 0
    %2551 = vmatpush2.bf16.msra.mxu0 %v2243
    %2552 = vmatprep.subr.bf16.mxu0 0
    %2553 = vmatpush2.bf16.msra.mxu0 %v2242
    %2554 = vmatprep.subr.bf16.mxu0 0
    %2555 = vmatpush2.bf16.msra.mxu0 %v2241
    %2556 = vmatprep.subr.bf16.mxu0 0
    %2557 = vmatpush2.bf16.msra.mxu0 %v2240
    %2558 = vmatprep.subr.bf16.mxu0 0
    %2559 = vmatpush2.bf16.msra.mxu0 %v2239
    %2560 = vmatprep.subr.bf16.mxu0 0
    %2561 = vmatpush2.bf16.msra.mxu0 %v2238
    %2562 = vmatprep.subr.bf16.mxu0 0
    %2563 = vmatpush2.bf16.msra.mxu0 %v2237
    %2564 = vmatprep.subr.bf16.mxu0 0
    %2565 = vmatpush2.bf16.msra.mxu0 %v2236
    %2566 = vmatprep.mubr.bf16.mxu0 %v1410
    %2567 = vmatmul.mubr.bf16.gmra.mxu0 %v1409
    %v2568 = vpop.f32.mrf.mxu0
    %v2569 = vadd.f32 %v2528, %v2568
    %v2570 = vpop.f32.mrf.mxu0
    %v2571 = vpop.f32.mrf.mxu0
    %v2572 = vadd.f32 %v2531, %v2571
    %v2573 = vpop.f32.mrf.mxu0
    %2574 = vdwg.mxu0
    %2575 = vmatprep.subr.bf16.mxu0 0
    %2576 = vmatpush1.bf16.msra.mxu0 %v2251
    %2577 = vmatprep.subr.bf16.mxu0 0
    %2578 = vmatpush1.bf16.msra.mxu0 %v2250
    %2579 = vmatprep.subr.bf16.mxu0 0
    %2580 = vmatpush1.bf16.msra.mxu0 %v2249
    %2581 = vmatprep.subr.bf16.mxu0 0
    %2582 = vmatpush1.bf16.msra.mxu0 %v2248
    %2583 = vmatprep.subr.bf16.mxu0 0
    %2584 = vmatpush1.bf16.msra.mxu0 %v2247
    %2585 = vmatprep.subr.bf16.mxu0 0
    %2586 = vmatpush1.bf16.msra.mxu0 %v2246
    %2587 = vmatprep.subr.bf16.mxu0 0
    %2588 = vmatpush1.bf16.msra.mxu0 %v2245
    %2589 = vmatprep.subr.bf16.mxu0 0
    %2590 = vmatpush1.bf16.msra.mxu0 %v2244
    %2591 = vmatprep.subr.bf16.mxu0 0
    %2592 = vmatpush2.bf16.msra.mxu0 %v2259
    %2593 = vmatprep.subr.bf16.mxu0 0
    %2594 = vmatpush2.bf16.msra.mxu0 %v2258
    %2595 = vmatprep.subr.bf16.mxu0 0
    %2596 = vmatpush2.bf16.msra.mxu0 %v2257
    %2597 = vmatprep.subr.bf16.mxu0 0
    %2598 = vmatpush2.bf16.msra.mxu0 %v2256
    %2599 = vmatprep.subr.bf16.mxu0 0
    %2600 = vmatpush2.bf16.msra.mxu0 %v2255
    %2601 = vmatprep.subr.bf16.mxu0 0
    %2602 = vmatpush2.bf16.msra.mxu0 %v2254
    %2603 = vmatprep.subr.bf16.mxu0 0
    %2604 = vmatpush2.bf16.msra.mxu0 %v2253
    %2605 = vmatprep.subr.bf16.mxu0 0
    %2606 = vmatpush2.bf16.msra.mxu0 %v2252
    %2607 = vmatprep.mubr.bf16.mxu0 %v1412
    %2608 = vmatmul.mubr.bf16.gmra.mxu0 %v1411
    %v2609 = vpop.f32.mrf.mxu0
    %v2610 = vadd.f32 %v2569, %v2609
    %v2611 = vpop.f32.mrf.mxu0
    %v2612 = vpop.f32.mrf.mxu0
    %v2613 = vadd.f32 %v2572, %v2612
    %v2614 = vpop.f32.mrf.mxu0
    %2615 = vdwg.mxu0
    %2616 = vmatprep.subr.bf16.mxu0 0
    %2617 = vmatpush1.bf16.msra.mxu0 %v2267
    %2618 = vmatprep.subr.bf16.mxu0 0
    %2619 = vmatpush1.bf16.msra.mxu0 %v2266
    %2620 = vmatprep.subr.bf16.mxu0 0
    %2621 = vmatpush1.bf16.msra.mxu0 %v2265
    %2622 = vmatprep.subr.bf16.mxu0 0
    %2623 = vmatpush1.bf16.msra.mxu0 %v2264
    %2624 = vmatprep.subr.bf16.mxu0 0
    %2625 = vmatpush1.bf16.msra.mxu0 %v2263
    %2626 = vmatprep.subr.bf16.mxu0 0
    %2627 = vmatpush1.bf16.msra.mxu0 %v2262
    %2628 = vmatprep.subr.bf16.mxu0 0
    %2629 = vmatpush1.bf16.msra.mxu0 %v2261
    %2630 = vmatprep.subr.bf16.mxu0 0
    %2631 = vmatpush1.bf16.msra.mxu0 %v2260
    %2632 = vmatprep.subr.bf16.mxu0 0
    %2633 = vmatpush2.bf16.msra.mxu0 %v2275
    %2634 = vmatprep.subr.bf16.mxu0 0
    %2635 = vmatpush2.bf16.msra.mxu0 %v2274
    %2636 = vmatprep.subr.bf16.mxu0 0
    %2637 = vmatpush2.bf16.msra.mxu0 %v2273
    %2638 = vmatprep.subr.bf16.mxu0 0
    %2639 = vmatpush2.bf16.msra.mxu0 %v2272
    %2640 = vmatprep.subr.bf16.mxu0 0
    %2641 = vmatpush2.bf16.msra.mxu0 %v2271
    %2642 = vmatprep.subr.bf16.mxu0 0
    %2643 = vmatpush2.bf16.msra.mxu0 %v2270
    %2644 = vmatprep.subr.bf16.mxu0 0
    %2645 = vmatpush2.bf16.msra.mxu0 %v2269
    %2646 = vmatprep.subr.bf16.mxu0 0
    %2647 = vmatpush2.bf16.msra.mxu0 %v2268
    %2648 = vmatprep.mubr.bf16.mxu0 %v1414
    %2649 = vmatmul.mubr.bf16.gmra.mxu0 %v1413
    %v2650 = vpop.f32.mrf.mxu0
    %v2651 = vadd.f32 %v2610, %v2650
    %v2652 = vpop.f32.mrf.mxu0
    %v2653 = vpop.f32.mrf.mxu0
    %v2654 = vadd.f32 %v2613, %v2653
    %v2655 = vpop.f32.mrf.mxu0
    %2656 = vdwg.mxu0
    %2657 = vmatprep.subr.bf16.mxu0 0
    %2658 = vmatpush1.bf16.msra.mxu0 %v2283
    %2659 = vmatprep.subr.bf16.mxu0 0
    %2660 = vmatpush1.bf16.msra.mxu0 %v2282
    %2661 = vmatprep.subr.bf16.mxu0 0
    %2662 = vmatpush1.bf16.msra.mxu0 %v2281
    %2663 = vmatprep.subr.bf16.mxu0 0
    %2664 = vmatpush1.bf16.msra.mxu0 %v2280
    %2665 = vmatprep.subr.bf16.mxu0 0
    %2666 = vmatpush1.bf16.msra.mxu0 %v2279
    %2667 = vmatprep.subr.bf16.mxu0 0
    %2668 = vmatpush1.bf16.msra.mxu0 %v2278
    %2669 = vmatprep.subr.bf16.mxu0 0
    %2670 = vmatpush1.bf16.msra.mxu0 %v2277
    %2671 = vmatprep.subr.bf16.mxu0 0
    %2672 = vmatpush1.bf16.msra.mxu0 %v2276
    %2673 = vmatprep.subr.bf16.mxu0 0
    %2674 = vmatpush2.bf16.msra.mxu0 %v2291
    %2675 = vmatprep.subr.bf16.mxu0 0
    %2676 = vmatpush2.bf16.msra.mxu0 %v2290
    %2677 = vmatprep.subr.bf16.mxu0 0
    %2678 = vmatpush2.bf16.msra.mxu0 %v2289
    %2679 = vmatprep.subr.bf16.mxu0 0
    %2680 = vmatpush2.bf16.msra.mxu0 %v2288
    %2681 = vmatprep.subr.bf16.mxu0 0
    %2682 = vmatpush2.bf16.msra.mxu0 %v2287
    %2683 = vmatprep.subr.bf16.mxu0 0
    %2684 = vmatpush2.bf16.msra.mxu0 %v2286
    %2685 = vmatprep.subr.bf16.mxu0 0
    %2686 = vmatpush2.bf16.msra.mxu0 %v2285
    %2687 = vmatprep.subr.bf16.mxu0 0
    %2688 = vmatpush2.bf16.msra.mxu0 %v2284
    %2689 = vmatprep.mubr.bf16.mxu0 %v1416
    %2690 = vmatmul.mubr.bf16.gmra.mxu0 %v1415
    %v2691 = vpop.f32.mrf.mxu0
    %v2692 = vadd.f32 %v2651, %v2691
    %v2693 = vpop.f32.mrf.mxu0
    %v2694 = vpop.f32.mrf.mxu0
    %v2695 = vadd.f32 %v2654, %v2694
    %v2696 = vpop.f32.mrf.mxu0
    %2697 = vdwg.mxu0
    %2698 = vmatprep.subr.bf16.mxu0 0
    %2699 = vmatpush1.bf16.msra.mxu0 %v2299
    %2700 = vmatprep.subr.bf16.mxu0 0
    %2701 = vmatpush1.bf16.msra.mxu0 %v2298
    %2702 = vmatprep.subr.bf16.mxu0 0
    %2703 = vmatpush1.bf16.msra.mxu0 %v2297
    %2704 = vmatprep.subr.bf16.mxu0 0
    %2705 = vmatpush1.bf16.msra.mxu0 %v2296
    %2706 = vmatprep.subr.bf16.mxu0 0
    %2707 = vmatpush1.bf16.msra.mxu0 %v2295
    %2708 = vmatprep.subr.bf16.mxu0 0
    %2709 = vmatpush1.bf16.msra.mxu0 %v2294
    %2710 = vmatprep.subr.bf16.mxu0 0
    %2711 = vmatpush1.bf16.msra.mxu0 %v2293
    %2712 = vmatprep.subr.bf16.mxu0 0
    %2713 = vmatpush1.bf16.msra.mxu0 %v2292
    %2714 = vmatprep.subr.bf16.mxu0 0
    %2715 = vmatpush2.bf16.msra.mxu0 %v2307
    %2716 = vmatprep.subr.bf16.mxu0 0
    %2717 = vmatpush2.bf16.msra.mxu0 %v2306
    %2718 = vmatprep.subr.bf16.mxu0 0
    %2719 = vmatpush2.bf16.msra.mxu0 %v2305
    %2720 = vmatprep.subr.bf16.mxu0 0
    %2721 = vmatpush2.bf16.msra.mxu0 %v2304
    %2722 = vmatprep.subr.bf16.mxu0 0
    %2723 = vmatpush2.bf16.msra.mxu0 %v2303
    %2724 = vmatprep.subr.bf16.mxu0 0
    %2725 = vmatpush2.bf16.msra.mxu0 %v2302
    %2726 = vmatprep.subr.bf16.mxu0 0
    %2727 = vmatpush2.bf16.msra.mxu0 %v2301
    %2728 = vmatprep.subr.bf16.mxu0 0
    %2729 = vmatpush2.bf16.msra.mxu0 %v2300
    %2730 = vmatprep.mubr.bf16.mxu0 %v1418
    %2731 = vmatmul.mubr.bf16.gmra.mxu0 %v1417
    %v2732 = vpop.f32.mrf.mxu0
    %v2733 = vadd.f32 %v2692, %v2732
    %v2734 = vpop.f32.mrf.mxu0
    %v2735 = vpop.f32.mrf.mxu0
    %v2736 = vadd.f32 %v2695, %v2735
    %v2737 = vpop.f32.mrf.mxu0
    %2738 = vdwg.mxu0
    %2739 = vmatprep.subr.bf16.mxu0 0
    %2740 = vmatpush1.bf16.msra.mxu0 %v2315
    %2741 = vmatprep.subr.bf16.mxu0 0
    %2742 = vmatpush1.bf16.msra.mxu0 %v2314
    %2743 = vmatprep.subr.bf16.mxu0 0
    %2744 = vmatpush1.bf16.msra.mxu0 %v2313
    %2745 = vmatprep.subr.bf16.mxu0 0
    %2746 = vmatpush1.bf16.msra.mxu0 %v2312
    %2747 = vmatprep.subr.bf16.mxu0 0
    %2748 = vmatpush1.bf16.msra.mxu0 %v2311
    %2749 = vmatprep.subr.bf16.mxu0 0
    %2750 = vmatpush1.bf16.msra.mxu0 %v2310
    %2751 = vmatprep.subr.bf16.mxu0 0
    %2752 = vmatpush1.bf16.msra.mxu0 %v2309
    %2753 = vmatprep.subr.bf16.mxu0 0
    %2754 = vmatpush1.bf16.msra.mxu0 %v2308
    %2755 = vmatprep.subr.bf16.mxu0 0
    %2756 = vmatpush2.bf16.msra.mxu0 %v2323
    %2757 = vmatprep.subr.bf16.mxu0 0
    %2758 = vmatpush2.bf16.msra.mxu0 %v2322
    %2759 = vmatprep.subr.bf16.mxu0 0
    %2760 = vmatpush2.bf16.msra.mxu0 %v2321
    %2761 = vmatprep.subr.bf16.mxu0 0
    %2762 = vmatpush2.bf16.msra.mxu0 %v2320
    %2763 = vmatprep.subr.bf16.mxu0 0
    %2764 = vmatpush2.bf16.msra.mxu0 %v2319
    %2765 = vmatprep.subr.bf16.mxu0 0
    %2766 = vmatpush2.bf16.msra.mxu0 %v2318
    %2767 = vmatprep.subr.bf16.mxu0 0
    %2768 = vmatpush2.bf16.msra.mxu0 %v2317
    %2769 = vmatprep.subr.bf16.mxu0 0
    %2770 = vmatpush2.bf16.msra.mxu0 %v2316
    %2771 = vmatprep.mubr.bf16.mxu0 %v1420
    %2772 = vmatmul.mubr.bf16.gmra.mxu0 %v1419
    %v2773 = vpop.f32.mrf.mxu0
    %v2774 = vadd.f32 %v2733, %v2773
    %v2775 = vpop.f32.mrf.mxu0
    %v2776 = vpop.f32.mrf.mxu0
    %v2777 = vadd.f32 %v2736, %v2776
    %v2778 = vpop.f32.mrf.mxu0
    %2779 = vdwg.mxu0
    %v2780 = vunpack.c.l.bf16 %v41
    %v2781 = vunpack.c.l.bf16 %v42
    %v2782 = vadd.f32 %v2774, %v2780
    %v2783 = vadd.f32 %v2777, %v2781
    %v2784 = vld [vmem:[%s5] sm:$0x1]
    %v2785 = vld [vmem:[%s6] sm:$0x1]
    %2786 = vadd.xlane.f32.xlu0 %v2782
    %v2787 = vpop.xlane.xlu0 %2786
    %2788 = vadd.xlane.f32.xlu0 %v2783
    %v2789 = vpop.xlane.xlu0 %2788
    %v2790 = vrcp.pop 128.0
    %v2791 = vmul.f32 %v2787, %v2790
    %v2792 = vmul.f32 %v2789, %v2790
    %v2793 = vsub.f32 %v2782, %v2791
    %v2794 = vsub.f32 %v2783, %v2792
    %v2795 = vmul.f32 %v2793, %v2793
    %v2796 = vmul.f32 %v2794, %v2794
    %2797 = vadd.xlane.f32.xlu0 %v2795
    %v2798 = vpop.xlane.xlu0 %2797
    %2799 = vadd.xlane.f32.xlu0 %v2796
    %v2800 = vpop.xlane.xlu0 %2799
    %v2801 = vmul.f32 %v2798, %v2790
    %v2802 = vmul.f32 %v2800, %v2790
    %v2803 = vadd.f32 %v2801, 1e-05
    %v2804 = vadd.f32 %v2802, 1e-05
    %v2805 = vrsqrt.pop %v2803
    %v2806 = vrsqrt.pop %v2804
    %v2807 = vmul.f32 %v2793, %v2805
    %v2808 = vmul.f32 %v2794, %v2806
    %v2810 = vlaneseq
    %v2811 = vshrl.u32 %v2810, 7
    %v2812 = vsub.s32 0, %v2811
    %v2813 = vrot.slane %v2784, %v2812
    %v2815 = vmul.f32 %v2807, %v2813
    %v2816 = vmul.f32 %v2808, %v2813
    %v2818 = vlaneseq
    %v2819 = vshrl.u32 %v2818, 7
    %v2820 = vsub.s32 0, %v2819
    %v2821 = vrot.slane %v2785, %v2820
    %v2823 = vadd.f32 %v2815, %v2821
    %v2824 = vadd.f32 %v2816, %v2821
    %v2825 = vpack.c.bf16 %v2824, %v2823
    %v2827 = vunpack.c.l.b16 %v2825
    %v2828 = vunpack.c.h.b16 %v2825
    %v2829 = vpack.c.b16 %v2827, %v2827
    %v2830 = vpack.c.b16 %v2828, %v2828
    %2833 = vst [vmem:[%s7] sm:$0xf] %v2829
    %2834 = vst [vmem:[%s7 + $0x4] sm:$0xf] %v2830
    // Predicated region
    $region34: #{custom_transformer_forward.8} parent=1 // pred_check
      _
    $region35: #{custom_transformer_forward.8} parent=1 // pred_check_branch
      %2836 = sbr.rel (0) target = $region37
    $region36: #{custom_transformer_forward.8} parent=1 // pred_region
      _
    $region37: #{custom_transformer_forward.8} parent=1 // pred_fallthru
      _
    // Predicated region
    $region38: #{custom_transformer_forward.8} parent=1 // pred_check
      _
    $region39: #{custom_transformer_forward.8} parent=1 // pred_check_branch
      %2838 = sbr.rel (0) target = $region41
    $region40: #{custom_transformer_forward.8} parent=1 // pred_region
      _
    $region41: #{custom_transformer_forward.8} parent=1 // pred_fallthru
      _
    %2839 = vsyncpa [#allocation3], 1

// kernel: custom_transformer_forward.9
$region0: #{custom_transformer_forward.9}
  #allocation0 [shape = 'u32[]', space=smem, size = 0x4, offset = 0x4, fixed_abs, tag = 'smem constant byte address 0x4 - core index']
  #allocation1 [shape = 'u32[144,128]{1,0:T(1,128)}', space=vmem, size = 0x12000, scoped, tag = 'internal scratch']
  %s0 = inlined_call_operand.vmem [shape: bf16[2,8,128], index: 0, kind: input, shape index: {}, may-alias: {0,1}]
  %s1 = inlined_call_operand.vmem [shape: bf16[2,8,128], index: 1, kind: input, shape index: {}, may-alias: {0,1}]
  %s2 = inlined_call_operand.vmem [shape: bf16[128,1024], index: 2, kind: input, shape index: {}]
  %s3 = inlined_call_operand.vmem [shape: f32[1,1024], index: 3, kind: input, shape index: {}]
  %s4 = inlined_call_operand.vmem [shape: bf16[128,1024], index: 4, kind: input, shape index: {}]
  %s5 = inlined_call_operand.vmem [shape: f32[1,128], index: 5, kind: input, shape index: {}]
  %s6 = inlined_call_operand.vmem [shape: f32[1,128], index: 6, kind: input, shape index: {}]
  %s7 = inlined_call_operand.vmem [shape: f32[1,128], index: 7, kind: input, shape index: {}]
  %s8 = inlined_call_operand.vmem [shape: bf16[2,8,128], index: 8, kind: output, shape index: {}]
  %s9 = sld [smem:[#allocation0]]
  $region65: #{custom_transformer_forward.9} parent=0
    _
  %s11 = ssub.s32 1, %s9
  %s12 = scalar_select 0, %s11, %s9
  loop: start=0, step=1, limit=4
  $region2: #{custom_transformer_forward.9} parent=0 // loop_pre_header
    _
  $region3: #{custom_transformer_forward.9} parent=0 // loop_header
    %s14 = sphi 0, %s18
    %p15 = scmp.ge.s32.totalorder %s14, 4
    %s21 = sphi 0, %s33
    %s22 = sphi 0, %s29
    %s23 = sphi 0, %s21
    %s24 = sphi 0, %s22
    %s25 = sphi 0, %s23
    %s26 = sphi 0, %s24
    %s38 = sphi 0, %s40
    %s41 = sphi 0, %s38
    %s42 = sphi 0, %s41
    %s58 = sphi 0, %s42
    %s64 = sphi 0, %s66
    %s67 = sphi 0, %s64
    %s68 = sphi 0, %s67
    %s84 = sphi 0, %s68
    %s88 = sphi 0, %s88
    %s90 = sphi 0, %s88
    %s91 = sphi 0, %s90
    %s105 = sphi 0, %s91
    %s109 = sphi 0, %s109
    %s111 = sphi 0, %s109
    %s112 = sphi 0, %s111
    %s126 = sphi 0, %s112
    %s130 = sphi 0, %s130
    %s132 = sphi 0, %s130
    %s133 = sphi 0, %s132
    %s147 = sphi 0, %s133
    %s151 = sphi 0, %s151
    %s153 = sphi 0, %s151
    %s154 = sphi 0, %s153
    %s168 = sphi 0, %s154
    %s172 = sphi 0, %s172
    %s174 = sphi 0, %s172
    %s175 = sphi 0, %s174
    %s189 = sphi 0, %s175
    %s193 = sphi 0, %s193
    %s195 = sphi 0, %s193
    %s196 = sphi 0, %s195
    %s210 = sphi 0, %s196
    %s218 = sphi 0, %s220
    %s221 = sphi 0, %s218
    %s222 = sphi 0, %s221
    %s238 = sphi 0, %s222
  $region4: #{custom_transformer_forward.9} parent=0 // loop_header_branch
    %17 = sbr.rel (%p15) target = $region8
  $region5: #{custom_transformer_forward.9} parent=0 // loop_body
    %s19 = ssub.s32 %s14, 1
    %s20 = ssub.s32 %s14, 2
    %s27 = sadd.s32 1, %s22
    %p28 = scmp.ge.s32.totalorder %s27, 1
    %s29 = scalar_select %p28, 0, %s27
    %s30 = sadd.s32 1, %s21
    %s31 = scalar_select %p28, %s30, %s21
    %p32 = scmp.ge.s32.totalorder %s31, 2
    %s33 = scalar_select %p32, 0, %s31
    %s34 = ssub.s32 %s21, %s33
    %s35 = ssub.s32 %s22, %s29
    %s36 = sor.u32 %s34, %s35
    %p37 = scmp.eq.s32.totalorder %s36, 0
    %s39 = sadd.s32 %s38, 1
    %s40 = scalar_select %p37, %s38, %s39
    %p43 = pneg %p37
    %p44 = scmp.eq.s32.totalorder %s14, 1
    %p45 = por %p43, %p44
    %p46 = scmp.ne.s32.totalorder %s38, %s41
    %p47 = scmp.eq.s32.totalorder %s14, 0
    %p48 = por %p46, %p47
    %p49 = scmp.ne.s32.totalorder %s38, %s41
    %p50 = scmp.eq.s32.totalorder %s19, 1
    %p51 = por %p49, %p50
    %p52 = scmp.ne.s32.totalorder %s41, %s42
    %p53 = scmp.eq.s32.totalorder %s19, 0
    %p54 = por %p52, %p53
    %p55 = scmp.ne.s32.totalorder %s41, %s42
    %p56 = scmp.eq.s32.totalorder %s20, 1
    %p57 = por %p55, %p56
    %p59 = scmp.ne.s32.totalorder %s42, %s58
    %p60 = scmp.eq.s32.totalorder %s20, 0
    %p61 = por %p59, %p60
    %s62 = ssub.s32 %s21, %s33
    %p63 = scmp.eq.s32.totalorder %s62, 0
    %s65 = sadd.s32 %s64, 1
    %s66 = scalar_select %p63, %s64, %s65
    %p69 = pneg %p63
    %p70 = scmp.eq.s32.totalorder %s14, 1
    %p71 = por %p69, %p70
    %p72 = scmp.ne.s32.totalorder %s64, %s67
    %p73 = scmp.eq.s32.totalorder %s14, 0
    %p74 = por %p72, %p73
    %p75 = scmp.ne.s32.totalorder %s64, %s67
    %p76 = scmp.eq.s32.totalorder %s19, 1
    %p77 = por %p75, %p76
    %p78 = scmp.ne.s32.totalorder %s67, %s68
    %p79 = scmp.eq.s32.totalorder %s19, 0
    %p80 = por %p78, %p79
    %p81 = scmp.ne.s32.totalorder %s67, %s68
    %p82 = scmp.eq.s32.totalorder %s20, 1
    %p83 = por %p81, %p82
    %p85 = scmp.ne.s32.totalorder %s68, %s84
    %p86 = scmp.eq.s32.totalorder %s20, 0
    %p87 = por %p85, %p86
    %s89 = sadd.s32 %s88, 1
    %p92 = scmp.eq.s32.totalorder %s14, 1
    %p93 = scmp.ne.s32.totalorder %s88, %s90
    %p94 = scmp.eq.s32.totalorder %s14, 0
    %p95 = por %p93, %p94
    %p96 = scmp.ne.s32.totalorder %s88, %s90
    %p97 = scmp.eq.s32.totalorder %s19, 1
    %p98 = por %p96, %p97
    %p99 = scmp.ne.s32.totalorder %s90, %s91
    %p100 = scmp.eq.s32.totalorder %s19, 0
    %p101 = por %p99, %p100
    %p102 = scmp.ne.s32.totalorder %s90, %s91
    %p103 = scmp.eq.s32.totalorder %s20, 1
    %p104 = por %p102, %p103
    %p106 = scmp.ne.s32.totalorder %s91, %s105
    %p107 = scmp.eq.s32.totalorder %s20, 0
    %p108 = por %p106, %p107
    %s110 = sadd.s32 %s109, 1
    %p113 = scmp.eq.s32.totalorder %s14, 1
    %p114 = scmp.ne.s32.totalorder %s109, %s111
    %p115 = scmp.eq.s32.totalorder %s14, 0
    %p116 = por %p114, %p115
    %p117 = scmp.ne.s32.totalorder %s109, %s111
    %p118 = scmp.eq.s32.totalorder %s19, 1
    %p119 = por %p117, %p118
    %p120 = scmp.ne.s32.totalorder %s111, %s112
    %p121 = scmp.eq.s32.totalorder %s19, 0
    %p122 = por %p120, %p121
    %p123 = scmp.ne.s32.totalorder %s111, %s112
    %p124 = scmp.eq.s32.totalorder %s20, 1
    %p125 = por %p123, %p124
    %p127 = scmp.ne.s32.totalorder %s112, %s126
    %p128 = scmp.eq.s32.totalorder %s20, 0
    %p129 = por %p127, %p128
    %s131 = sadd.s32 %s130, 1
    %p134 = scmp.eq.s32.totalorder %s14, 1
    %p135 = scmp.ne.s32.totalorder %s130, %s132
    %p136 = scmp.eq.s32.totalorder %s14, 0
    %p137 = por %p135, %p136
    %p138 = scmp.ne.s32.totalorder %s130, %s132
    %p139 = scmp.eq.s32.totalorder %s19, 1
    %p140 = por %p138, %p139
    %p141 = scmp.ne.s32.totalorder %s132, %s133
    %p142 = scmp.eq.s32.totalorder %s19, 0
    %p143 = por %p141, %p142
    %p144 = scmp.ne.s32.totalorder %s132, %s133
    %p145 = scmp.eq.s32.totalorder %s20, 1
    %p146 = por %p144, %p145
    %p148 = scmp.ne.s32.totalorder %s133, %s147
    %p149 = scmp.eq.s32.totalorder %s20, 0
    %p150 = por %p148, %p149
    %s152 = sadd.s32 %s151, 1
    %p155 = scmp.eq.s32.totalorder %s14, 1
    %p156 = scmp.ne.s32.totalorder %s151, %s153
    %p157 = scmp.eq.s32.totalorder %s14, 0
    %p158 = por %p156, %p157
    %p159 = scmp.ne.s32.totalorder %s151, %s153
    %p160 = scmp.eq.s32.totalorder %s19, 1
    %p161 = por %p159, %p160
    %p162 = scmp.ne.s32.totalorder %s153, %s154
    %p163 = scmp.eq.s32.totalorder %s19, 0
    %p164 = por %p162, %p163
    %p165 = scmp.ne.s32.totalorder %s153, %s154
    %p166 = scmp.eq.s32.totalorder %s20, 1
    %p167 = por %p165, %p166
    %p169 = scmp.ne.s32.totalorder %s154, %s168
    %p170 = scmp.eq.s32.totalorder %s20, 0
    %p171 = por %p169, %p170
    %s173 = sadd.s32 %s172, 1
    %p176 = scmp.eq.s32.totalorder %s14, 1
    %p177 = scmp.ne.s32.totalorder %s172, %s174
    %p178 = scmp.eq.s32.totalorder %s14, 0
    %p179 = por %p177, %p178
    %p180 = scmp.ne.s32.totalorder %s172, %s174
    %p181 = scmp.eq.s32.totalorder %s19, 1
    %p182 = por %p180, %p181
    %p183 = scmp.ne.s32.totalorder %s174, %s175
    %p184 = scmp.eq.s32.totalorder %s19, 0
    %p185 = por %p183, %p184
    %p186 = scmp.ne.s32.totalorder %s174, %s175
    %p187 = scmp.eq.s32.totalorder %s20, 1
    %p188 = por %p186, %p187
    %p190 = scmp.ne.s32.totalorder %s175, %s189
    %p191 = scmp.eq.s32.totalorder %s20, 0
    %p192 = por %p190, %p191
    %s194 = sadd.s32 %s193, 1
    %p197 = scmp.eq.s32.totalorder %s14, 1
    %p198 = scmp.ne.s32.totalorder %s193, %s195
    %p199 = scmp.eq.s32.totalorder %s14, 0
    %p200 = por %p198, %p199
    %p201 = scmp.ne.s32.totalorder %s193, %s195
    %p202 = scmp.eq.s32.totalorder %s19, 1
    %p203 = por %p201, %p202
    %p204 = scmp.ne.s32.totalorder %s195, %s196
    %p205 = scmp.eq.s32.totalorder %s19, 0
    %p206 = por %p204, %p205
    %p207 = scmp.ne.s32.totalorder %s195, %s196
    %p208 = scmp.eq.s32.totalorder %s20, 1
    %p209 = por %p207, %p208
    %p211 = scmp.ne.s32.totalorder %s196, %s210
    %p212 = scmp.eq.s32.totalorder %s20, 0
    %p213 = por %p211, %p212
    %s214 = ssub.s32 %s21, %s33
    %s215 = ssub.s32 %s22, %s29
    %s216 = sor.u32 %s214, %s215
    %p217 = scmp.eq.s32.totalorder %s216, 0
    %s219 = sadd.s32 %s218, 1
    %s220 = scalar_select %p217, %s218, %s219
    %p223 = pneg %p217
    %p224 = scmp.eq.s32.totalorder %s14, 1
    %p225 = por %p223, %p224
    %p226 = scmp.ne.s32.totalorder %s218, %s221
    %p227 = scmp.eq.s32.totalorder %s14, 0
    %p228 = por %p226, %p227
    %p229 = scmp.ne.s32.totalorder %s218, %s221
    %p230 = scmp.eq.s32.totalorder %s19, 1
    %p231 = por %p229, %p230
    %p232 = scmp.ne.s32.totalorder %s221, %s222
    %p233 = scmp.eq.s32.totalorder %s19, 0
    %p234 = por %p232, %p233
    %p235 = scmp.ne.s32.totalorder %s221, %s222
    %p236 = scmp.eq.s32.totalorder %s20, 1
    %p237 = por %p235, %p236
    %p239 = scmp.ne.s32.totalorder %s222, %s238
    %p240 = scmp.eq.s32.totalorder %s20, 0
    %p241 = por %p239, %p240
    %p242 = scmp.le.s32.totalorder 1, %s14
    %p243 = scmp.lt.s32.totalorder %s14, 3
    %p244 = pnand %p242, %p243
    %p245 = pneg %p244
    // Predicated region
    $region9: #{custom_transformer_forward.9} parent=5 // pred_check
      _
    $region10: #{custom_transformer_forward.9} parent=5 // pred_check_branch
      %247 = sbr.rel (%p244) target = $region12
    $region11: #{custom_transformer_forward.9} parent=5 // pred_region
      %s248 = ssub.s32 %s14, 1
      // Predicated region
      $region13: #{custom_transformer_forward.9} parent=11 // pred_check
        %p249 = pneg %p101
      $region14: #{custom_transformer_forward.9} parent=11 // pred_check_branch
        %251 = sbr.rel (%p249) target = $region16
      $region15: #{custom_transformer_forward.9} parent=11 // pred_region
        _
      $region16: #{custom_transformer_forward.9} parent=11 // pred_fallthru
        _
      // Predicated region
      $region17: #{custom_transformer_forward.9} parent=11 // pred_check
        %p252 = pneg %p122
      $region18: #{custom_transformer_forward.9} parent=11 // pred_check_branch
        %254 = sbr.rel (%p252) target = $region20
      $region19: #{custom_transformer_forward.9} parent=11 // pred_region
        _
      $region20: #{custom_transformer_forward.9} parent=11 // pred_fallthru
        _
      // Predicated region
      $region21: #{custom_transformer_forward.9} parent=11 // pred_check
        %p255 = pneg %p143
      $region22: #{custom_transformer_forward.9} parent=11 // pred_check_branch
        %257 = sbr.rel (%p255) target = $region24
      $region23: #{custom_transformer_forward.9} parent=11 // pred_region
        _
      $region24: #{custom_transformer_forward.9} parent=11 // pred_fallthru
        _
      // Predicated region
      $region25: #{custom_transformer_forward.9} parent=11 // pred_check
        %p258 = pneg %p164
      $region26: #{custom_transformer_forward.9} parent=11 // pred_check_branch
        %260 = sbr.rel (%p258) target = $region28
      $region27: #{custom_transformer_forward.9} parent=11 // pred_region
        _
      $region28: #{custom_transformer_forward.9} parent=11 // pred_fallthru
        _
      // Predicated region
      $region29: #{custom_transformer_forward.9} parent=11 // pred_check
        %p261 = pneg %p185
      $region30: #{custom_transformer_forward.9} parent=11 // pred_check_branch
        %263 = sbr.rel (%p261) target = $region32
      $region31: #{custom_transformer_forward.9} parent=11 // pred_region
        _
      $region32: #{custom_transformer_forward.9} parent=11 // pred_fallthru
        _
      // Predicated region
      $region33: #{custom_transformer_forward.9} parent=11 // pred_check
        %p264 = pneg %p206
      $region34: #{custom_transformer_forward.9} parent=11 // pred_check_branch
        %266 = sbr.rel (%p264) target = $region36
      $region35: #{custom_transformer_forward.9} parent=11 // pred_region
        _
      $region36: #{custom_transformer_forward.9} parent=11 // pred_fallthru
        _
    $region12: #{custom_transformer_forward.9} parent=5 // pred_fallthru
      _
    %p267 = scmp.lt.s32.totalorder %s14, 2
    // Predicated region
    $region37: #{custom_transformer_forward.9} parent=5 // pred_check
      %p268 = pneg %p267
    $region38: #{custom_transformer_forward.9} parent=5 // pred_check_branch
      %270 = sbr.rel (%p268) target = $region40
    $region39: #{custom_transformer_forward.9} parent=5 // pred_region
      // Predicated region
      $region41: #{custom_transformer_forward.9} parent=39 // pred_check
        %p271 = pneg %p48
      $region42: #{custom_transformer_forward.9} parent=39 // pred_check_branch
        %273 = sbr.rel (%p271) target = $region44
      $region43: #{custom_transformer_forward.9} parent=39 // pred_region
        %p274 = scmp.lt.s32.totalorder %s21, 1
        %s275 = scalar_select %p274, %s21, 1
        %p276 = scmp.lt.s32.totalorder %s22, 0
        %s277 = scalar_select %p276, %s22, 0
        %s278 = sadd.s32 %s277, %s275
        %s279 = smul.addr %s278, 4
        %s280 = scalar_lea.vmem %s0, %s279
      $region44: #{custom_transformer_forward.9} parent=39 // pred_fallthru
        _
      // Predicated region
      $region45: #{custom_transformer_forward.9} parent=39 // pred_check
        %p281 = pneg %p74
      $region46: #{custom_transformer_forward.9} parent=39 // pred_check_branch
        %283 = sbr.rel (%p281) target = $region48
      $region47: #{custom_transformer_forward.9} parent=39 // pred_region
        %p284 = scmp.lt.s32.totalorder %s21, 1
        %s285 = scalar_select %p284, %s21, 1
        %s286 = smul.addr %s285, 4
        %s287 = scalar_lea.vmem %s1, %s286
      $region48: #{custom_transformer_forward.9} parent=39 // pred_fallthru
        _
    $region40: #{custom_transformer_forward.9} parent=5 // pred_fallthru
      _
    %p288 = scmp.le.s32.totalorder 1, %s14
    %p289 = scmp.lt.s32.totalorder %s14, 3
    %p290 = pnand %p288, %p289
    %p291 = pneg %p290
    // Predicated region
    $region49: #{custom_transformer_forward.9} parent=5 // pred_check
      _
    $region50: #{custom_transformer_forward.9} parent=5 // pred_check_branch
      %293 = sbr.rel (%p290) target = $region52
    $region51: #{custom_transformer_forward.9} parent=5 // pred_region
      %s294 = ssub.s32 %s14, 1
      %p295 = scmp.lt.s32.totalorder %s23, 1
      %s296 = scalar_select %p295, %s23, 1
      %p297 = scmp.lt.s32.totalorder %s24, 0
      %s298 = scalar_select %p297, %s24, 0
      %s299 = sadd.s32 %s298, %s296
      %s300 = smul.addr %s299, 4
      %s301 = scalar_lea.vmem %s0, %s300
      %p302 = pneg %p54
      %p303 = pneg %p51
      %p304 = scmp.lt.s32.totalorder %s23, 1
      %s305 = scalar_select %p304, %s23, 1
      %s306 = smul.addr %s305, 4
      %s307 = scalar_lea.vmem %s1, %s306
      %p308 = pneg %p80
      %p309 = pneg %p77
      %p310 = pneg %p101
      %p311 = pneg %p98
      %p312 = pneg %p122
      %p313 = pneg %p119
      %p314 = pneg %p143
      %p315 = pneg %p140
      %p316 = pneg %p164
      %p317 = pneg %p161
      %p318 = pneg %p185
      %p319 = pneg %p182
      %p320 = pneg %p206
      %p321 = pneg %p203
      %p322 = pneg %p234
      %p323 = pneg %p231
      %p324 = scmp.lt.s32.totalorder %s23, 1
      %s325 = scalar_select %p324, %s23, 1
      %p326 = scmp.lt.s32.totalorder %s24, 0
      %s327 = scalar_select %p326, %s24, 0
      %s328 = sadd.s32 %s327, %s325
      %s329 = smul.addr %s328, 4
      %s330 = scalar_lea.vmem %s8, %s329
      %p331 = scmp.lt.s32.totalorder %s23, 1
      %s332 = scalar_select %p331, %s23, 1
      %p333 = scmp.lt.s32.totalorder %s24, 0
      %s334 = scalar_select %p333, %s24, 0
      %s335 = sadd.s32 %s334, %s332
      %s336 = smul.addr %s335, 4
      %s337 = scalar_lea.vmem %s0, %s336
      %p338 = scmp.lt.s32.totalorder %s23, 1
      %s339 = scalar_select %p338, %s23, 1
      %s340 = smul.addr %s339, 4
      %s341 = scalar_lea.vmem %s1, %s340
      %p342 = scmp.lt.s32.totalorder %s23, 1
      %s343 = scalar_select %p342, %s23, 1
      %p344 = scmp.lt.s32.totalorder %s24, 0
      %s345 = scalar_select %p344, %s24, 0
      %s346 = sadd.s32 %s345, %s343
      %s347 = smul.addr %s346, 4
      %s348 = scalar_lea.vmem %s8, %s347
      %v350 = vld [vmem:[%s337] sm:$0xf]
      %v351 = vld [vmem:[%s341] sm:$0xf]
      %v352 = vld [vmem:[%s2] sm:$0xff]
      %v353 = vld [vmem:[%s2 + $0x8] sm:$0xff]
      %v354 = vld [vmem:[%s2 + $0x10] sm:$0xff]
      %v355 = vld [vmem:[%s2 + $0x18] sm:$0xff]
      %v356 = vld [vmem:[%s2 + $0x20] sm:$0xff]
      %v357 = vld [vmem:[%s2 + $0x28] sm:$0xff]
      %v358 = vld [vmem:[%s2 + $0x30] sm:$0xff]
      %v359 = vld [vmem:[%s2 + $0x38] sm:$0xff]
      %v360 = vld [vmem:[%s2 + $0x40] sm:$0xff]
      %v361 = vld [vmem:[%s2 + $0x48] sm:$0xff]
      %v362 = vld [vmem:[%s2 + $0x50] sm:$0xff]
      %v363 = vld [vmem:[%s2 + $0x58] sm:$0xff]
      %v364 = vld [vmem:[%s2 + $0x60] sm:$0xff]
      %v365 = vld [vmem:[%s2 + $0x68] sm:$0xff]
      %v366 = vld [vmem:[%s2 + $0x70] sm:$0xff]
      %v367 = vld [vmem:[%s2 + $0x78] sm:$0xff]
      %v368 = vld [vmem:[%s2 + $0x80] sm:$0xff]
      %v369 = vld [vmem:[%s2 + $0x88] sm:$0xff]
      %v370 = vld [vmem:[%s2 + $0x90] sm:$0xff]
      %v371 = vld [vmem:[%s2 + $0x98] sm:$0xff]
      %v372 = vld [vmem:[%s2 + $0xa0] sm:$0xff]
      %v373 = vld [vmem:[%s2 + $0xa8] sm:$0xff]
      %v374 = vld [vmem:[%s2 + $0xb0] sm:$0xff]
      %v375 = vld [vmem:[%s2 + $0xb8] sm:$0xff]
      %v376 = vld [vmem:[%s2 + $0xc0] sm:$0xff]
      %v377 = vld [vmem:[%s2 + $0xc8] sm:$0xff]
      %v378 = vld [vmem:[%s2 + $0xd0] sm:$0xff]
      %v379 = vld [vmem:[%s2 + $0xd8] sm:$0xff]
      %v380 = vld [vmem:[%s2 + $0xe0] sm:$0xff]
      %v381 = vld [vmem:[%s2 + $0xe8] sm:$0xff]
      %v382 = vld [vmem:[%s2 + $0xf0] sm:$0xff]
      %v383 = vld [vmem:[%s2 + $0xf8] sm:$0xff]
      %v384 = vld [vmem:[%s2 + $0x100] sm:$0xff]
      %v385 = vld [vmem:[%s2 + $0x108] sm:$0xff]
      %v386 = vld [vmem:[%s2 + $0x110] sm:$0xff]
      %v387 = vld [vmem:[%s2 + $0x118] sm:$0xff]
      %v388 = vld [vmem:[%s2 + $0x120] sm:$0xff]
      %v389 = vld [vmem:[%s2 + $0x128] sm:$0xff]
      %v390 = vld [vmem:[%s2 + $0x130] sm:$0xff]
      %v391 = vld [vmem:[%s2 + $0x138] sm:$0xff]
      %v392 = vld [vmem:[%s2 + $0x140] sm:$0xff]
      %v393 = vld [vmem:[%s2 + $0x148] sm:$0xff]
      %v394 = vld [vmem:[%s2 + $0x150] sm:$0xff]
      %v395 = vld [vmem:[%s2 + $0x158] sm:$0xff]
      %v396 = vld [vmem:[%s2 + $0x160] sm:$0xff]
      %v397 = vld [vmem:[%s2 + $0x168] sm:$0xff]
      %v398 = vld [vmem:[%s2 + $0x170] sm:$0xff]
      %v399 = vld [vmem:[%s2 + $0x178] sm:$0xff]
      %v400 = vld [vmem:[%s2 + $0x180] sm:$0xff]
      %v401 = vld [vmem:[%s2 + $0x188] sm:$0xff]
      %v402 = vld [vmem:[%s2 + $0x190] sm:$0xff]
      %v403 = vld [vmem:[%s2 + $0x198] sm:$0xff]
      %v404 = vld [vmem:[%s2 + $0x1a0] sm:$0xff]
      %v405 = vld [vmem:[%s2 + $0x1a8] sm:$0xff]
      %v406 = vld [vmem:[%s2 + $0x1b0] sm:$0xff]
      %v407 = vld [vmem:[%s2 + $0x1b8] sm:$0xff]
      %v408 = vld [vmem:[%s2 + $0x1c0] sm:$0xff]
      %v409 = vld [vmem:[%s2 + $0x1c8] sm:$0xff]
      %v410 = vld [vmem:[%s2 + $0x1d0] sm:$0xff]
      %v411 = vld [vmem:[%s2 + $0x1d8] sm:$0xff]
      %v412 = vld [vmem:[%s2 + $0x1e0] sm:$0xff]
      %v413 = vld [vmem:[%s2 + $0x1e8] sm:$0xff]
      %v414 = vld [vmem:[%s2 + $0x1f0] sm:$0xff]
      %v415 = vld [vmem:[%s2 + $0x1f8] sm:$0xff]
      %v416 = vld [vmem:[%s3] sm:$0xff]
      %v418 = vlaneseq
      %v419 = vshrl.u32 %v418, 7
      %v420 = vsub.s32 0, %v419
      %v421 = vrot.slane %v416, %v420
      %v422 = vlaneseq
      %v423 = vshrl.u32 %v422, 7
      %v424 = vsub.s32 1, %v423
      %v425 = vrot.slane %v416, %v424
      %v426 = vlaneseq
      %v427 = vshrl.u32 %v426, 7
      %v428 = vsub.s32 2, %v427
      %v429 = vrot.slane %v416, %v428
      %v430 = vlaneseq
      %v431 = vshrl.u32 %v430, 7
      %v432 = vsub.s32 3, %v431
      %v433 = vrot.slane %v416, %v432
      %v434 = vlaneseq
      %v435 = vshrl.u32 %v434, 7
      %v436 = vsub.s32 4, %v435
      %v437 = vrot.slane %v416, %v436
      %v438 = vlaneseq
      %v439 = vshrl.u32 %v438, 7
      %v440 = vsub.s32 5, %v439
      %v441 = vrot.slane %v416, %v440
      %v442 = vlaneseq
      %v443 = vshrl.u32 %v442, 7
      %v444 = vsub.s32 6, %v443
      %v445 = vrot.slane %v416, %v444
      %v446 = vlaneseq
      %v447 = vshrl.u32 %v446, 7
      %v448 = vsub.s32 7, %v447
      %v449 = vrot.slane %v416, %v448
      %v522 = vunpack.c.l.b16 %v352
      %v523 = vunpack.c.h.b16 %v352
      %v524 = vunpack.c.l.b16 %v353
      %v525 = vunpack.c.h.b16 %v353
      %v526 = vunpack.c.l.b16 %v354
      %v527 = vunpack.c.h.b16 %v354
      %v528 = vunpack.c.l.b16 %v355
      %v529 = vunpack.c.h.b16 %v355
      %v530 = vunpack.c.l.b16 %v356
      %v531 = vunpack.c.h.b16 %v356
      %v532 = vunpack.c.l.b16 %v357
      %v533 = vunpack.c.h.b16 %v357
      %v534 = vunpack.c.l.b16 %v358
      %v535 = vunpack.c.h.b16 %v358
      %v536 = vunpack.c.l.b16 %v359
      %v537 = vunpack.c.h.b16 %v359
      %v538 = vunpack.c.l.b16 %v360
      %v539 = vunpack.c.h.b16 %v360
      %v540 = vunpack.c.l.b16 %v361
      %v541 = vunpack.c.h.b16 %v361
      %v542 = vunpack.c.l.b16 %v362
      %v543 = vunpack.c.h.b16 %v362
      %v544 = vunpack.c.l.b16 %v363
      %v545 = vunpack.c.h.b16 %v363
      %v546 = vunpack.c.l.b16 %v364
      %v547 = vunpack.c.h.b16 %v364
      %v548 = vunpack.c.l.b16 %v365
      %v549 = vunpack.c.h.b16 %v365
      %v550 = vunpack.c.l.b16 %v366
      %v551 = vunpack.c.h.b16 %v366
      %v552 = vunpack.c.l.b16 %v367
      %v553 = vunpack.c.h.b16 %v367
      %v554 = vunpack.c.l.b16 %v368
      %v555 = vunpack.c.h.b16 %v368
      %v556 = vunpack.c.l.b16 %v369
      %v557 = vunpack.c.h.b16 %v369
      %v558 = vunpack.c.l.b16 %v370
      %v559 = vunpack.c.h.b16 %v370
      %v560 = vunpack.c.l.b16 %v371
      %v561 = vunpack.c.h.b16 %v371
      %v562 = vunpack.c.l.b16 %v372
      %v563 = vunpack.c.h.b16 %v372
      %v564 = vunpack.c.l.b16 %v373
      %v565 = vunpack.c.h.b16 %v373
      %v566 = vunpack.c.l.b16 %v374
      %v567 = vunpack.c.h.b16 %v374
      %v568 = vunpack.c.l.b16 %v375
      %v569 = vunpack.c.h.b16 %v375
      %v570 = vunpack.c.l.b16 %v376
      %v571 = vunpack.c.h.b16 %v376
      %v572 = vunpack.c.l.b16 %v377
      %v573 = vunpack.c.h.b16 %v377
      %v574 = vunpack.c.l.b16 %v378
      %v575 = vunpack.c.h.b16 %v378
      %v576 = vunpack.c.l.b16 %v379
      %v577 = vunpack.c.h.b16 %v379
      %v578 = vunpack.c.l.b16 %v380
      %v579 = vunpack.c.h.b16 %v380
      %v580 = vunpack.c.l.b16 %v381
      %v581 = vunpack.c.h.b16 %v381
      %v582 = vunpack.c.l.b16 %v382
      %v583 = vunpack.c.h.b16 %v382
      %v584 = vunpack.c.l.b16 %v383
      %v585 = vunpack.c.h.b16 %v383
      %v586 = vunpack.c.l.b16 %v384
      %v587 = vunpack.c.h.b16 %v384
      %v588 = vunpack.c.l.b16 %v385
      %v589 = vunpack.c.h.b16 %v385
      %v590 = vunpack.c.l.b16 %v386
      %v591 = vunpack.c.h.b16 %v386
      %v592 = vunpack.c.l.b16 %v387
      %v593 = vunpack.c.h.b16 %v387
      %v594 = vunpack.c.l.b16 %v388
      %v595 = vunpack.c.h.b16 %v388
      %v596 = vunpack.c.l.b16 %v389
      %v597 = vunpack.c.h.b16 %v389
      %v598 = vunpack.c.l.b16 %v390
      %v599 = vunpack.c.h.b16 %v390
      %v600 = vunpack.c.l.b16 %v391
      %v601 = vunpack.c.h.b16 %v391
      %v602 = vunpack.c.l.b16 %v392
      %v603 = vunpack.c.h.b16 %v392
      %v604 = vunpack.c.l.b16 %v393
      %v605 = vunpack.c.h.b16 %v393
      %v606 = vunpack.c.l.b16 %v394
      %v607 = vunpack.c.h.b16 %v394
      %v608 = vunpack.c.l.b16 %v395
      %v609 = vunpack.c.h.b16 %v395
      %v610 = vunpack.c.l.b16 %v396
      %v611 = vunpack.c.h.b16 %v396
      %v612 = vunpack.c.l.b16 %v397
      %v613 = vunpack.c.h.b16 %v397
      %v614 = vunpack.c.l.b16 %v398
      %v615 = vunpack.c.h.b16 %v398
      %v616 = vunpack.c.l.b16 %v399
      %v617 = vunpack.c.h.b16 %v399
      %v618 = vunpack.c.l.b16 %v400
      %v619 = vunpack.c.h.b16 %v400
      %v620 = vunpack.c.l.b16 %v401
      %v621 = vunpack.c.h.b16 %v401
      %v622 = vunpack.c.l.b16 %v402
      %v623 = vunpack.c.h.b16 %v402
      %v624 = vunpack.c.l.b16 %v403
      %v625 = vunpack.c.h.b16 %v403
      %v626 = vunpack.c.l.b16 %v404
      %v627 = vunpack.c.h.b16 %v404
      %v628 = vunpack.c.l.b16 %v405
      %v629 = vunpack.c.h.b16 %v405
      %v630 = vunpack.c.l.b16 %v406
      %v631 = vunpack.c.h.b16 %v406
      %v632 = vunpack.c.l.b16 %v407
      %v633 = vunpack.c.h.b16 %v407
      %v634 = vunpack.c.l.b16 %v408
      %v635 = vunpack.c.h.b16 %v408
      %v636 = vunpack.c.l.b16 %v409
      %v637 = vunpack.c.h.b16 %v409
      %v638 = vunpack.c.l.b16 %v410
      %v639 = vunpack.c.h.b16 %v410
      %v640 = vunpack.c.l.b16 %v411
      %v641 = vunpack.c.h.b16 %v411
      %v642 = vunpack.c.l.b16 %v412
      %v643 = vunpack.c.h.b16 %v412
      %v644 = vunpack.c.l.b16 %v413
      %v645 = vunpack.c.h.b16 %v413
      %v646 = vunpack.c.l.b16 %v414
      %v647 = vunpack.c.h.b16 %v414
      %v648 = vunpack.c.l.b16 %v415
      %v649 = vunpack.c.h.b16 %v415
      %v650 = vpack.c.b16 %v530, %v522
      %v651 = vpack.c.b16 %v531, %v523
      %v652 = vpack.c.b16 %v532, %v524
      %v653 = vpack.c.b16 %v533, %v525
      %v654 = vpack.c.b16 %v534, %v526
      %v655 = vpack.c.b16 %v535, %v527
      %v656 = vpack.c.b16 %v536, %v528
      %v657 = vpack.c.b16 %v537, %v529
      %v658 = vpack.c.b16 %v546, %v538
      %v659 = vpack.c.b16 %v547, %v539
      %v660 = vpack.c.b16 %v548, %v540
      %v661 = vpack.c.b16 %v549, %v541
      %v662 = vpack.c.b16 %v550, %v542
      %v663 = vpack.c.b16 %v551, %v543
      %v664 = vpack.c.b16 %v552, %v544
      %v665 = vpack.c.b16 %v553, %v545
      %v666 = vpack.c.b16 %v562, %v554
      %v667 = vpack.c.b16 %v563, %v555
      %v668 = vpack.c.b16 %v564, %v556
      %v669 = vpack.c.b16 %v565, %v557
      %v670 = vpack.c.b16 %v566, %v558
      %v671 = vpack.c.b16 %v567, %v559
      %v672 = vpack.c.b16 %v568, %v560
      %v673 = vpack.c.b16 %v569, %v561
      %v674 = vpack.c.b16 %v578, %v570
      %v675 = vpack.c.b16 %v579, %v571
      %v676 = vpack.c.b16 %v580, %v572
      %v677 = vpack.c.b16 %v581, %v573
      %v678 = vpack.c.b16 %v582, %v574
      %v679 = vpack.c.b16 %v583, %v575
      %v680 = vpack.c.b16 %v584, %v576
      %v681 = vpack.c.b16 %v585, %v577
      %v682 = vpack.c.b16 %v594, %v586
      %v683 = vpack.c.b16 %v595, %v587
      %v684 = vpack.c.b16 %v596, %v588
      %v685 = vpack.c.b16 %v597, %v589
      %v686 = vpack.c.b16 %v598, %v590
      %v687 = vpack.c.b16 %v599, %v591
      %v688 = vpack.c.b16 %v600, %v592
      %v689 = vpack.c.b16 %v601, %v593
      %v690 = vpack.c.b16 %v610, %v602
      %v691 = vpack.c.b16 %v611, %v603
      %v692 = vpack.c.b16 %v612, %v604
      %v693 = vpack.c.b16 %v613, %v605
      %v694 = vpack.c.b16 %v614, %v606
      %v695 = vpack.c.b16 %v615, %v607
      %v696 = vpack.c.b16 %v616, %v608
      %v697 = vpack.c.b16 %v617, %v609
      %v698 = vpack.c.b16 %v626, %v618
      %v699 = vpack.c.b16 %v627, %v619
      %v700 = vpack.c.b16 %v628, %v620
      %v701 = vpack.c.b16 %v629, %v621
      %v702 = vpack.c.b16 %v630, %v622
      %v703 = vpack.c.b16 %v631, %v623
      %v704 = vpack.c.b16 %v632, %v624
      %v705 = vpack.c.b16 %v633, %v625
      %v706 = vpack.c.b16 %v642, %v634
      %v707 = vpack.c.b16 %v643, %v635
      %v708 = vpack.c.b16 %v644, %v636
      %v709 = vpack.c.b16 %v645, %v637
      %v710 = vpack.c.b16 %v646, %v638
      %v711 = vpack.c.b16 %v647, %v639
      %v712 = vpack.c.b16 %v648, %v640
      %v713 = vpack.c.b16 %v649, %v641
      %778 = vmatprep.subr.bf16.mxu0 %v707
      %779 = vmatpush1.bf16.msra.mxu0 %v706
      %780 = vmatprep.subr.bf16.mxu0 %v699
      %781 = vmatpush1.bf16.msra.mxu0 %v698
      %782 = vmatprep.subr.bf16.mxu0 %v691
      %783 = vmatpush1.bf16.msra.mxu0 %v690
      %784 = vmatprep.subr.bf16.mxu0 %v683
      %785 = vmatpush1.bf16.msra.mxu0 %v682
      %786 = vmatprep.subr.bf16.mxu0 %v675
      %787 = vmatpush1.bf16.msra.mxu0 %v674
      %788 = vmatprep.subr.bf16.mxu0 %v667
      %789 = vmatpush1.bf16.msra.mxu0 %v666
      %790 = vmatprep.subr.bf16.mxu0 %v659
      %791 = vmatpush1.bf16.msra.mxu0 %v658
      %792 = vmatprep.subr.bf16.mxu0 %v651
      %793 = vmatpush1.bf16.msra.mxu0 %v650
      %794 = vmatprep.subr.bf16.mxu0 0
      %795 = vmatpush2.bf16.msra.mxu0 0
      %796 = vmatprep.subr.bf16.mxu0 0
      %797 = vmatpush2.bf16.msra.mxu0 0
      %798 = vmatprep.subr.bf16.mxu0 0
      %799 = vmatpush2.bf16.msra.mxu0 0
      %800 = vmatprep.subr.bf16.mxu0 0
      %801 = vmatpush2.bf16.msra.mxu0 0
      %802 = vmatprep.subr.bf16.mxu0 0
      %803 = vmatpush2.bf16.msra.mxu0 0
      %804 = vmatprep.subr.bf16.mxu0 0
      %805 = vmatpush2.bf16.msra.mxu0 0
      %806 = vmatprep.subr.bf16.mxu0 0
      %807 = vmatpush2.bf16.msra.mxu0 0
      %808 = vmatprep.subr.bf16.mxu0 0
      %809 = vmatpush2.bf16.msra.mxu0 0
      %810 = vmatprep.mubr.bf16.mxu0 0
      %811 = vmatmul.mubr.bf16.gmra.mxu0 %v350
      %v812 = vpop.f32.mrf.mxu0
      %v813 = vadd.f32 %v421, %v812
      %v814 = vpop.f32.mrf.mxu0
      %v815 = vadd.f32 %v425, %v814
      %v816 = vpop.f32.mrf.mxu0
      %v817 = vpop.f32.mrf.mxu0
      %818 = vdwg.mxu0
      %819 = vmatprep.subr.bf16.mxu0 %v709
      %820 = vmatpush1.bf16.msra.mxu0 %v708
      %821 = vmatprep.subr.bf16.mxu0 %v701
      %822 = vmatpush1.bf16.msra.mxu0 %v700
      %823 = vmatprep.subr.bf16.mxu0 %v693
      %824 = vmatpush1.bf16.msra.mxu0 %v692
      %825 = vmatprep.subr.bf16.mxu0 %v685
      %826 = vmatpush1.bf16.msra.mxu0 %v684
      %827 = vmatprep.subr.bf16.mxu0 %v677
      %828 = vmatpush1.bf16.msra.mxu0 %v676
      %829 = vmatprep.subr.bf16.mxu0 %v669
      %830 = vmatpush1.bf16.msra.mxu0 %v668
      %831 = vmatprep.subr.bf16.mxu0 %v661
      %832 = vmatpush1.bf16.msra.mxu0 %v660
      %833 = vmatprep.subr.bf16.mxu0 %v653
      %834 = vmatpush1.bf16.msra.mxu0 %v652
      %835 = vmatprep.subr.bf16.mxu0 0
      %836 = vmatpush2.bf16.msra.mxu0 0
      %837 = vmatprep.subr.bf16.mxu0 0
      %838 = vmatpush2.bf16.msra.mxu0 0
      %839 = vmatprep.subr.bf16.mxu0 0
      %840 = vmatpush2.bf16.msra.mxu0 0
      %841 = vmatprep.subr.bf16.mxu0 0
      %842 = vmatpush2.bf16.msra.mxu0 0
      %843 = vmatprep.subr.bf16.mxu0 0
      %844 = vmatpush2.bf16.msra.mxu0 0
      %845 = vmatprep.subr.bf16.mxu0 0
      %846 = vmatpush2.bf16.msra.mxu0 0
      %847 = vmatprep.subr.bf16.mxu0 0
      %848 = vmatpush2.bf16.msra.mxu0 0
      %849 = vmatprep.subr.bf16.mxu0 0
      %850 = vmatpush2.bf16.msra.mxu0 0
      %851 = vmatprep.mubr.bf16.mxu0 0
      %852 = vmatmul.mubr.bf16.gmra.mxu0 %v350
      %v853 = vpop.f32.mrf.mxu0
      %v854 = vadd.f32 %v429, %v853
      %v855 = vpop.f32.mrf.mxu0
      %v856 = vadd.f32 %v433, %v855
      %v857 = vpop.f32.mrf.mxu0
      %v858 = vpop.f32.mrf.mxu0
      %859 = vdwg.mxu0
      %860 = vmatprep.subr.bf16.mxu0 %v711
      %861 = vmatpush1.bf16.msra.mxu0 %v710
      %862 = vmatprep.subr.bf16.mxu0 %v703
      %863 = vmatpush1.bf16.msra.mxu0 %v702
      %864 = vmatprep.subr.bf16.mxu0 %v695
      %865 = vmatpush1.bf16.msra.mxu0 %v694
      %866 = vmatprep.subr.bf16.mxu0 %v687
      %867 = vmatpush1.bf16.msra.mxu0 %v686
      %868 = vmatprep.subr.bf16.mxu0 %v679
      %869 = vmatpush1.bf16.msra.mxu0 %v678
      %870 = vmatprep.subr.bf16.mxu0 %v671
      %871 = vmatpush1.bf16.msra.mxu0 %v670
      %872 = vmatprep.subr.bf16.mxu0 %v663
      %873 = vmatpush1.bf16.msra.mxu0 %v662
      %874 = vmatprep.subr.bf16.mxu0 %v655
      %875 = vmatpush1.bf16.msra.mxu0 %v654
      %876 = vmatprep.subr.bf16.mxu0 0
      %877 = vmatpush2.bf16.msra.mxu0 0
      %878 = vmatprep.subr.bf16.mxu0 0
      %879 = vmatpush2.bf16.msra.mxu0 0
      %880 = vmatprep.subr.bf16.mxu0 0
      %881 = vmatpush2.bf16.msra.mxu0 0
      %882 = vmatprep.subr.bf16.mxu0 0
      %883 = vmatpush2.bf16.msra.mxu0 0
      %884 = vmatprep.subr.bf16.mxu0 0
      %885 = vmatpush2.bf16.msra.mxu0 0
      %886 = vmatprep.subr.bf16.mxu0 0
      %887 = vmatpush2.bf16.msra.mxu0 0
      %888 = vmatprep.subr.bf16.mxu0 0
      %889 = vmatpush2.bf16.msra.mxu0 0
      %890 = vmatprep.subr.bf16.mxu0 0
      %891 = vmatpush2.bf16.msra.mxu0 0
      %892 = vmatprep.mubr.bf16.mxu0 0
      %893 = vmatmul.mubr.bf16.gmra.mxu0 %v350
      %v894 = vpop.f32.mrf.mxu0
      %v895 = vadd.f32 %v437, %v894
      %v896 = vpop.f32.mrf.mxu0
      %v897 = vadd.f32 %v441, %v896
      %v898 = vpop.f32.mrf.mxu0
      %v899 = vpop.f32.mrf.mxu0
      %900 = vdwg.mxu0
      %901 = vmatprep.subr.bf16.mxu0 %v713
      %902 = vmatpush1.bf16.msra.mxu0 %v712
      %903 = vmatprep.subr.bf16.mxu0 %v705
      %904 = vmatpush1.bf16.msra.mxu0 %v704
      %905 = vmatprep.subr.bf16.mxu0 %v697
      %906 = vmatpush1.bf16.msra.mxu0 %v696
      %907 = vmatprep.subr.bf16.mxu0 %v689
      %908 = vmatpush1.bf16.msra.mxu0 %v688
      %909 = vmatprep.subr.bf16.mxu0 %v681
      %910 = vmatpush1.bf16.msra.mxu0 %v680
      %911 = vmatprep.subr.bf16.mxu0 %v673
      %912 = vmatpush1.bf16.msra.mxu0 %v672
      %913 = vmatprep.subr.bf16.mxu0 %v665
      %914 = vmatpush1.bf16.msra.mxu0 %v664
      %915 = vmatprep.subr.bf16.mxu0 %v657
      %916 = vmatpush1.bf16.msra.mxu0 %v656
      %917 = vmatprep.subr.bf16.mxu0 0
      %918 = vmatpush2.bf16.msra.mxu0 0
      %919 = vmatprep.subr.bf16.mxu0 0
      %920 = vmatpush2.bf16.msra.mxu0 0
      %921 = vmatprep.subr.bf16.mxu0 0
      %922 = vmatpush2.bf16.msra.mxu0 0
      %923 = vmatprep.subr.bf16.mxu0 0
      %924 = vmatpush2.bf16.msra.mxu0 0
      %925 = vmatprep.subr.bf16.mxu0 0
      %926 = vmatpush2.bf16.msra.mxu0 0
      %927 = vmatprep.subr.bf16.mxu0 0
      %928 = vmatpush2.bf16.msra.mxu0 0
      %929 = vmatprep.subr.bf16.mxu0 0
      %930 = vmatpush2.bf16.msra.mxu0 0
      %931 = vmatprep.subr.bf16.mxu0 0
      %932 = vmatpush2.bf16.msra.mxu0 0
      %933 = vmatprep.mubr.bf16.mxu0 0
      %934 = vmatmul.mubr.bf16.gmra.mxu0 %v350
      %v935 = vpop.f32.mrf.mxu0
      %v936 = vadd.f32 %v445, %v935
      %v937 = vpop.f32.mrf.mxu0
      %v938 = vadd.f32 %v449, %v937
      %v939 = vpop.f32.mrf.mxu0
      %v940 = vpop.f32.mrf.mxu0
      %941 = vdwg.mxu0
      %v942 = vpack.c.bf16 %v813, %v813
      %v943 = vpack.c.bf16 %v815, %v815
      %v944 = vpack.c.bf16 %v854, %v854
      %v945 = vpack.c.bf16 %v856, %v856
      %v946 = vpack.c.bf16 %v895, %v895
      %v947 = vpack.c.bf16 %v897, %v897
      %v948 = vpack.c.bf16 %v936, %v936
      %v949 = vpack.c.bf16 %v938, %v938
      %v950 = vld [vmem:[%s4] sm:$0xff]
      %v951 = vld [vmem:[%s4 + $0x8] sm:$0xff]
      %v952 = vld [vmem:[%s4 + $0x10] sm:$0xff]
      %v953 = vld [vmem:[%s4 + $0x18] sm:$0xff]
      %v954 = vld [vmem:[%s4 + $0x20] sm:$0xff]
      %v955 = vld [vmem:[%s4 + $0x28] sm:$0xff]
      %v956 = vld [vmem:[%s4 + $0x30] sm:$0xff]
      %v957 = vld [vmem:[%s4 + $0x38] sm:$0xff]
      %v958 = vld [vmem:[%s4 + $0x40] sm:$0xff]
      %v959 = vld [vmem:[%s4 + $0x48] sm:$0xff]
      %v960 = vld [vmem:[%s4 + $0x50] sm:$0xff]
      %v961 = vld [vmem:[%s4 + $0x58] sm:$0xff]
      %v962 = vld [vmem:[%s4 + $0x60] sm:$0xff]
      %v963 = vld [vmem:[%s4 + $0x68] sm:$0xff]
      %v964 = vld [vmem:[%s4 + $0x70] sm:$0xff]
      %v965 = vld [vmem:[%s4 + $0x78] sm:$0xff]
      %v966 = vld [vmem:[%s4 + $0x80] sm:$0xff]
      %v967 = vld [vmem:[%s4 + $0x88] sm:$0xff]
      %v968 = vld [vmem:[%s4 + $0x90] sm:$0xff]
      %v969 = vld [vmem:[%s4 + $0x98] sm:$0xff]
      %v970 = vld [vmem:[%s4 + $0xa0] sm:$0xff]
      %v971 = vld [vmem:[%s4 + $0xa8] sm:$0xff]
      %v972 = vld [vmem:[%s4 + $0xb0] sm:$0xff]
      %v973 = vld [vmem:[%s4 + $0xb8] sm:$0xff]
      %v974 = vld [vmem:[%s4 + $0xc0] sm:$0xff]
      %v975 = vld [vmem:[%s4 + $0xc8] sm:$0xff]
      %v976 = vld [vmem:[%s4 + $0xd0] sm:$0xff]
      %v977 = vld [vmem:[%s4 + $0xd8] sm:$0xff]
      %v978 = vld [vmem:[%s4 + $0xe0] sm:$0xff]
      %v979 = vld [vmem:[%s4 + $0xe8] sm:$0xff]
      %v980 = vld [vmem:[%s4 + $0xf0] sm:$0xff]
      %v981 = vld [vmem:[%s4 + $0xf8] sm:$0xff]
      %v982 = vld [vmem:[%s4 + $0x100] sm:$0xff]
      %v983 = vld [vmem:[%s4 + $0x108] sm:$0xff]
      %v984 = vld [vmem:[%s4 + $0x110] sm:$0xff]
      %v985 = vld [vmem:[%s4 + $0x118] sm:$0xff]
      %v986 = vld [vmem:[%s4 + $0x120] sm:$0xff]
      %v987 = vld [vmem:[%s4 + $0x128] sm:$0xff]
      %v988 = vld [vmem:[%s4 + $0x130] sm:$0xff]
      %v989 = vld [vmem:[%s4 + $0x138] sm:$0xff]
      %v990 = vld [vmem:[%s4 + $0x140] sm:$0xff]
      %v991 = vld [vmem:[%s4 + $0x148] sm:$0xff]
      %v992 = vld [vmem:[%s4 + $0x150] sm:$0xff]
      %v993 = vld [vmem:[%s4 + $0x158] sm:$0xff]
      %v994 = vld [vmem:[%s4 + $0x160] sm:$0xff]
      %v995 = vld [vmem:[%s4 + $0x168] sm:$0xff]
      %v996 = vld [vmem:[%s4 + $0x170] sm:$0xff]
      %v997 = vld [vmem:[%s4 + $0x178] sm:$0xff]
      %v998 = vld [vmem:[%s4 + $0x180] sm:$0xff]
      %v999 = vld [vmem:[%s4 + $0x188] sm:$0xff]
      %v1000 = vld [vmem:[%s4 + $0x190] sm:$0xff]
      %v1001 = vld [vmem:[%s4 + $0x198] sm:$0xff]
      %v1002 = vld [vmem:[%s4 + $0x1a0] sm:$0xff]
      %v1003 = vld [vmem:[%s4 + $0x1a8] sm:$0xff]
      %v1004 = vld [vmem:[%s4 + $0x1b0] sm:$0xff]
      %v1005 = vld [vmem:[%s4 + $0x1b8] sm:$0xff]
      %v1006 = vld [vmem:[%s4 + $0x1c0] sm:$0xff]
      %v1007 = vld [vmem:[%s4 + $0x1c8] sm:$0xff]
      %v1008 = vld [vmem:[%s4 + $0x1d0] sm:$0xff]
      %v1009 = vld [vmem:[%s4 + $0x1d8] sm:$0xff]
      %v1010 = vld [vmem:[%s4 + $0x1e0] sm:$0xff]
      %v1011 = vld [vmem:[%s4 + $0x1e8] sm:$0xff]
      %v1012 = vld [vmem:[%s4 + $0x1f0] sm:$0xff]
      %v1013 = vld [vmem:[%s4 + $0x1f8] sm:$0xff]
      %v1078 = vunpack.c.l.b16 %v950
      %v1079 = vunpack.c.h.b16 %v950
      %v1080 = vunpack.c.l.b16 %v951
      %v1081 = vunpack.c.h.b16 %v951
      %v1082 = vunpack.c.l.b16 %v952
      %v1083 = vunpack.c.h.b16 %v952
      %v1084 = vunpack.c.l.b16 %v953
      %v1085 = vunpack.c.h.b16 %v953
      %v1086 = vunpack.c.l.b16 %v954
      %v1087 = vunpack.c.h.b16 %v954
      %v1088 = vunpack.c.l.b16 %v955
      %v1089 = vunpack.c.h.b16 %v955
      %v1090 = vunpack.c.l.b16 %v956
      %v1091 = vunpack.c.h.b16 %v956
      %v1092 = vunpack.c.l.b16 %v957
      %v1093 = vunpack.c.h.b16 %v957
      %v1094 = vunpack.c.l.b16 %v958
      %v1095 = vunpack.c.h.b16 %v958
      %v1096 = vunpack.c.l.b16 %v959
      %v1097 = vunpack.c.h.b16 %v959
      %v1098 = vunpack.c.l.b16 %v960
      %v1099 = vunpack.c.h.b16 %v960
      %v1100 = vunpack.c.l.b16 %v961
      %v1101 = vunpack.c.h.b16 %v961
      %v1102 = vunpack.c.l.b16 %v962
      %v1103 = vunpack.c.h.b16 %v962
      %v1104 = vunpack.c.l.b16 %v963
      %v1105 = vunpack.c.h.b16 %v963
      %v1106 = vunpack.c.l.b16 %v964
      %v1107 = vunpack.c.h.b16 %v964
      %v1108 = vunpack.c.l.b16 %v965
      %v1109 = vunpack.c.h.b16 %v965
      %v1110 = vunpack.c.l.b16 %v966
      %v1111 = vunpack.c.h.b16 %v966
      %v1112 = vunpack.c.l.b16 %v967
      %v1113 = vunpack.c.h.b16 %v967
      %v1114 = vunpack.c.l.b16 %v968
      %v1115 = vunpack.c.h.b16 %v968
      %v1116 = vunpack.c.l.b16 %v969
      %v1117 = vunpack.c.h.b16 %v969
      %v1118 = vunpack.c.l.b16 %v970
      %v1119 = vunpack.c.h.b16 %v970
      %v1120 = vunpack.c.l.b16 %v971
      %v1121 = vunpack.c.h.b16 %v971
      %v1122 = vunpack.c.l.b16 %v972
      %v1123 = vunpack.c.h.b16 %v972
      %v1124 = vunpack.c.l.b16 %v973
      %v1125 = vunpack.c.h.b16 %v973
      %v1126 = vunpack.c.l.b16 %v974
      %v1127 = vunpack.c.h.b16 %v974
      %v1128 = vunpack.c.l.b16 %v975
      %v1129 = vunpack.c.h.b16 %v975
      %v1130 = vunpack.c.l.b16 %v976
      %v1131 = vunpack.c.h.b16 %v976
      %v1132 = vunpack.c.l.b16 %v977
      %v1133 = vunpack.c.h.b16 %v977
      %v1134 = vunpack.c.l.b16 %v978
      %v1135 = vunpack.c.h.b16 %v978
      %v1136 = vunpack.c.l.b16 %v979
      %v1137 = vunpack.c.h.b16 %v979
      %v1138 = vunpack.c.l.b16 %v980
      %v1139 = vunpack.c.h.b16 %v980
      %v1140 = vunpack.c.l.b16 %v981
      %v1141 = vunpack.c.h.b16 %v981
      %v1142 = vunpack.c.l.b16 %v982
      %v1143 = vunpack.c.h.b16 %v982
      %v1144 = vunpack.c.l.b16 %v983
      %v1145 = vunpack.c.h.b16 %v983
      %v1146 = vunpack.c.l.b16 %v984
      %v1147 = vunpack.c.h.b16 %v984
      %v1148 = vunpack.c.l.b16 %v985
      %v1149 = vunpack.c.h.b16 %v985
      %v1150 = vunpack.c.l.b16 %v986
      %v1151 = vunpack.c.h.b16 %v986
      %v1152 = vunpack.c.l.b16 %v987
      %v1153 = vunpack.c.h.b16 %v987
      %v1154 = vunpack.c.l.b16 %v988
      %v1155 = vunpack.c.h.b16 %v988
      %v1156 = vunpack.c.l.b16 %v989
      %v1157 = vunpack.c.h.b16 %v989
      %v1158 = vunpack.c.l.b16 %v990
      %v1159 = vunpack.c.h.b16 %v990
      %v1160 = vunpack.c.l.b16 %v991
      %v1161 = vunpack.c.h.b16 %v991
      %v1162 = vunpack.c.l.b16 %v992
      %v1163 = vunpack.c.h.b16 %v992
      %v1164 = vunpack.c.l.b16 %v993
      %v1165 = vunpack.c.h.b16 %v993
      %v1166 = vunpack.c.l.b16 %v994
      %v1167 = vunpack.c.h.b16 %v994
      %v1168 = vunpack.c.l.b16 %v995
      %v1169 = vunpack.c.h.b16 %v995
      %v1170 = vunpack.c.l.b16 %v996
      %v1171 = vunpack.c.h.b16 %v996
      %v1172 = vunpack.c.l.b16 %v997
      %v1173 = vunpack.c.h.b16 %v997
      %v1174 = vunpack.c.l.b16 %v998
      %v1175 = vunpack.c.h.b16 %v998
      %v1176 = vunpack.c.l.b16 %v999
      %v1177 = vunpack.c.h.b16 %v999
      %v1178 = vunpack.c.l.b16 %v1000
      %v1179 = vunpack.c.h.b16 %v1000
      %v1180 = vunpack.c.l.b16 %v1001
      %v1181 = vunpack.c.h.b16 %v1001
      %v1182 = vunpack.c.l.b16 %v1002
      %v1183 = vunpack.c.h.b16 %v1002
      %v1184 = vunpack.c.l.b16 %v1003
      %v1185 = vunpack.c.h.b16 %v1003
      %v1186 = vunpack.c.l.b16 %v1004
      %v1187 = vunpack.c.h.b16 %v1004
      %v1188 = vunpack.c.l.b16 %v1005
      %v1189 = vunpack.c.h.b16 %v1005
      %v1190 = vunpack.c.l.b16 %v1006
      %v1191 = vunpack.c.h.b16 %v1006
      %v1192 = vunpack.c.l.b16 %v1007
      %v1193 = vunpack.c.h.b16 %v1007
      %v1194 = vunpack.c.l.b16 %v1008
      %v1195 = vunpack.c.h.b16 %v1008
      %v1196 = vunpack.c.l.b16 %v1009
      %v1197 = vunpack.c.h.b16 %v1009
      %v1198 = vunpack.c.l.b16 %v1010
      %v1199 = vunpack.c.h.b16 %v1010
      %v1200 = vunpack.c.l.b16 %v1011
      %v1201 = vunpack.c.h.b16 %v1011
      %v1202 = vunpack.c.l.b16 %v1012
      %v1203 = vunpack.c.h.b16 %v1012
      %v1204 = vunpack.c.l.b16 %v1013
      %v1205 = vunpack.c.h.b16 %v1013
      %v1206 = vpack.c.b16 %v1086, %v1078
      %v1207 = vpack.c.b16 %v1087, %v1079
      %v1208 = vpack.c.b16 %v1088, %v1080
      %v1209 = vpack.c.b16 %v1089, %v1081
      %v1210 = vpack.c.b16 %v1090, %v1082
      %v1211 = vpack.c.b16 %v1091, %v1083
      %v1212 = vpack.c.b16 %v1092, %v1084
      %v1213 = vpack.c.b16 %v1093, %v1085
      %v1214 = vpack.c.b16 %v1102, %v1094
      %v1215 = vpack.c.b16 %v1103, %v1095
      %v1216 = vpack.c.b16 %v1104, %v1096
      %v1217 = vpack.c.b16 %v1105, %v1097
      %v1218 = vpack.c.b16 %v1106, %v1098
      %v1219 = vpack.c.b16 %v1107, %v1099
      %v1220 = vpack.c.b16 %v1108, %v1100
      %v1221 = vpack.c.b16 %v1109, %v1101
      %v1222 = vpack.c.b16 %v1118, %v1110
      %v1223 = vpack.c.b16 %v1119, %v1111
      %v1224 = vpack.c.b16 %v1120, %v1112
      %v1225 = vpack.c.b16 %v1121, %v1113
      %v1226 = vpack.c.b16 %v1122, %v1114
      %v1227 = vpack.c.b16 %v1123, %v1115
      %v1228 = vpack.c.b16 %v1124, %v1116
      %v1229 = vpack.c.b16 %v1125, %v1117
      %v1230 = vpack.c.b16 %v1134, %v1126
      %v1231 = vpack.c.b16 %v1135, %v1127
      %v1232 = vpack.c.b16 %v1136, %v1128
      %v1233 = vpack.c.b16 %v1137, %v1129
      %v1234 = vpack.c.b16 %v1138, %v1130
      %v1235 = vpack.c.b16 %v1139, %v1131
      %v1236 = vpack.c.b16 %v1140, %v1132
      %v1237 = vpack.c.b16 %v1141, %v1133
      %v1238 = vpack.c.b16 %v1150, %v1142
      %v1239 = vpack.c.b16 %v1151, %v1143
      %v1240 = vpack.c.b16 %v1152, %v1144
      %v1241 = vpack.c.b16 %v1153, %v1145
      %v1242 = vpack.c.b16 %v1154, %v1146
      %v1243 = vpack.c.b16 %v1155, %v1147
      %v1244 = vpack.c.b16 %v1156, %v1148
      %v1245 = vpack.c.b16 %v1157, %v1149
      %v1246 = vpack.c.b16 %v1166, %v1158
      %v1247 = vpack.c.b16 %v1167, %v1159
      %v1248 = vpack.c.b16 %v1168, %v1160
      %v1249 = vpack.c.b16 %v1169, %v1161
      %v1250 = vpack.c.b16 %v1170, %v1162
      %v1251 = vpack.c.b16 %v1171, %v1163
      %v1252 = vpack.c.b16 %v1172, %v1164
      %v1253 = vpack.c.b16 %v1173, %v1165
      %v1254 = vpack.c.b16 %v1182, %v1174
      %v1255 = vpack.c.b16 %v1183, %v1175
      %v1256 = vpack.c.b16 %v1184, %v1176
      %v1257 = vpack.c.b16 %v1185, %v1177
      %v1258 = vpack.c.b16 %v1186, %v1178
      %v1259 = vpack.c.b16 %v1187, %v1179
      %v1260 = vpack.c.b16 %v1188, %v1180
      %v1261 = vpack.c.b16 %v1189, %v1181
      %v1262 = vpack.c.b16 %v1198, %v1190
      %v1263 = vpack.c.b16 %v1199, %v1191
      %v1264 = vpack.c.b16 %v1200, %v1192
      %v1265 = vpack.c.b16 %v1201, %v1193
      %v1266 = vpack.c.b16 %v1202, %v1194
      %v1267 = vpack.c.b16 %v1203, %v1195
      %v1268 = vpack.c.b16 %v1204, %v1196
      %v1269 = vpack.c.b16 %v1205, %v1197
      %1334 = vmatprep.subr.bf16.mxu0 %v1263
      %1335 = vmatpush1.bf16.msra.mxu0 %v1262
      %1336 = vmatprep.subr.bf16.mxu0 %v1255
      %1337 = vmatpush1.bf16.msra.mxu0 %v1254
      %1338 = vmatprep.subr.bf16.mxu0 %v1247
      %1339 = vmatpush1.bf16.msra.mxu0 %v1246
      %1340 = vmatprep.subr.bf16.mxu0 %v1239
      %1341 = vmatpush1.bf16.msra.mxu0 %v1238
      %1342 = vmatprep.subr.bf16.mxu0 %v1231
      %1343 = vmatpush1.bf16.msra.mxu0 %v1230
      %1344 = vmatprep.subr.bf16.mxu0 %v1223
      %1345 = vmatpush1.bf16.msra.mxu0 %v1222
      %1346 = vmatprep.subr.bf16.mxu0 %v1215
      %1347 = vmatpush1.bf16.msra.mxu0 %v1214
      %1348 = vmatprep.subr.bf16.mxu0 %v1207
      %1349 = vmatpush1.bf16.msra.mxu0 %v1206
      %1350 = vmatprep.subr.bf16.mxu0 0
      %1351 = vmatpush2.bf16.msra.mxu0 0
      %1352 = vmatprep.subr.bf16.mxu0 0
      %1353 = vmatpush2.bf16.msra.mxu0 0
      %1354 = vmatprep.subr.bf16.mxu0 0
      %1355 = vmatpush2.bf16.msra.mxu0 0
      %1356 = vmatprep.subr.bf16.mxu0 0
      %1357 = vmatpush2.bf16.msra.mxu0 0
      %1358 = vmatprep.subr.bf16.mxu0 0
      %1359 = vmatpush2.bf16.msra.mxu0 0
      %1360 = vmatprep.subr.bf16.mxu0 0
      %1361 = vmatpush2.bf16.msra.mxu0 0
      %1362 = vmatprep.subr.bf16.mxu0 0
      %1363 = vmatpush2.bf16.msra.mxu0 0
      %1364 = vmatprep.subr.bf16.mxu0 0
      %1365 = vmatpush2.bf16.msra.mxu0 0
      %1366 = vmatprep.mubr.bf16.mxu0 0
      %1367 = vmatmul.mubr.bf16.gmra.mxu0 %v351
      %v1368 = vpop.f32.mrf.mxu0
      %v1369 = vadd.f32 0.0, %v1368
      %v1370 = vpop.f32.mrf.mxu0
      %v1371 = vadd.f32 0.0, %v1370
      %v1372 = vpop.f32.mrf.mxu0
      %v1373 = vpop.f32.mrf.mxu0
      %1374 = vdwg.mxu0
      %1375 = vmatprep.subr.bf16.mxu0 %v1265
      %1376 = vmatpush1.bf16.msra.mxu0 %v1264
      %1377 = vmatprep.subr.bf16.mxu0 %v1257
      %1378 = vmatpush1.bf16.msra.mxu0 %v1256
      %1379 = vmatprep.subr.bf16.mxu0 %v1249
      %1380 = vmatpush1.bf16.msra.mxu0 %v1248
      %1381 = vmatprep.subr.bf16.mxu0 %v1241
      %1382 = vmatpush1.bf16.msra.mxu0 %v1240
      %1383 = vmatprep.subr.bf16.mxu0 %v1233
      %1384 = vmatpush1.bf16.msra.mxu0 %v1232
      %1385 = vmatprep.subr.bf16.mxu0 %v1225
      %1386 = vmatpush1.bf16.msra.mxu0 %v1224
      %1387 = vmatprep.subr.bf16.mxu0 %v1217
      %1388 = vmatpush1.bf16.msra.mxu0 %v1216
      %1389 = vmatprep.subr.bf16.mxu0 %v1209
      %1390 = vmatpush1.bf16.msra.mxu0 %v1208
      %1391 = vmatprep.subr.bf16.mxu0 0
      %1392 = vmatpush2.bf16.msra.mxu0 0
      %1393 = vmatprep.subr.bf16.mxu0 0
      %1394 = vmatpush2.bf16.msra.mxu0 0
      %1395 = vmatprep.subr.bf16.mxu0 0
      %1396 = vmatpush2.bf16.msra.mxu0 0
      %1397 = vmatprep.subr.bf16.mxu0 0
      %1398 = vmatpush2.bf16.msra.mxu0 0
      %1399 = vmatprep.subr.bf16.mxu0 0
      %1400 = vmatpush2.bf16.msra.mxu0 0
      %1401 = vmatprep.subr.bf16.mxu0 0
      %1402 = vmatpush2.bf16.msra.mxu0 0
      %1403 = vmatprep.subr.bf16.mxu0 0
      %1404 = vmatpush2.bf16.msra.mxu0 0
      %1405 = vmatprep.subr.bf16.mxu0 0
      %1406 = vmatpush2.bf16.msra.mxu0 0
      %1407 = vmatprep.mubr.bf16.mxu0 0
      %1408 = vmatmul.mubr.bf16.gmra.mxu0 %v351
      %v1409 = vpop.f32.mrf.mxu0
      %v1410 = vadd.f32 0.0, %v1409
      %v1411 = vpop.f32.mrf.mxu0
      %v1412 = vadd.f32 0.0, %v1411
      %v1413 = vpop.f32.mrf.mxu0
      %v1414 = vpop.f32.mrf.mxu0
      %1415 = vdwg.mxu0
      %1416 = vmatprep.subr.bf16.mxu0 %v1267
      %1417 = vmatpush1.bf16.msra.mxu0 %v1266
      %1418 = vmatprep.subr.bf16.mxu0 %v1259
      %1419 = vmatpush1.bf16.msra.mxu0 %v1258
      %1420 = vmatprep.subr.bf16.mxu0 %v1251
      %1421 = vmatpush1.bf16.msra.mxu0 %v1250
      %1422 = vmatprep.subr.bf16.mxu0 %v1243
      %1423 = vmatpush1.bf16.msra.mxu0 %v1242
      %1424 = vmatprep.subr.bf16.mxu0 %v1235
      %1425 = vmatpush1.bf16.msra.mxu0 %v1234
      %1426 = vmatprep.subr.bf16.mxu0 %v1227
      %1427 = vmatpush1.bf16.msra.mxu0 %v1226
      %1428 = vmatprep.subr.bf16.mxu0 %v1219
      %1429 = vmatpush1.bf16.msra.mxu0 %v1218
      %1430 = vmatprep.subr.bf16.mxu0 %v1211
      %1431 = vmatpush1.bf16.msra.mxu0 %v1210
      %1432 = vmatprep.subr.bf16.mxu0 0
      %1433 = vmatpush2.bf16.msra.mxu0 0
      %1434 = vmatprep.subr.bf16.mxu0 0
      %1435 = vmatpush2.bf16.msra.mxu0 0
      %1436 = vmatprep.subr.bf16.mxu0 0
      %1437 = vmatpush2.bf16.msra.mxu0 0
      %1438 = vmatprep.subr.bf16.mxu0 0
      %1439 = vmatpush2.bf16.msra.mxu0 0
      %1440 = vmatprep.subr.bf16.mxu0 0
      %1441 = vmatpush2.bf16.msra.mxu0 0
      %1442 = vmatprep.subr.bf16.mxu0 0
      %1443 = vmatpush2.bf16.msra.mxu0 0
      %1444 = vmatprep.subr.bf16.mxu0 0
      %1445 = vmatpush2.bf16.msra.mxu0 0
      %1446 = vmatprep.subr.bf16.mxu0 0
      %1447 = vmatpush2.bf16.msra.mxu0 0
      %1448 = vmatprep.mubr.bf16.mxu0 0
      %1449 = vmatmul.mubr.bf16.gmra.mxu0 %v351
      %v1450 = vpop.f32.mrf.mxu0
      %v1451 = vadd.f32 0.0, %v1450
      %v1452 = vpop.f32.mrf.mxu0
      %v1453 = vadd.f32 0.0, %v1452
      %v1454 = vpop.f32.mrf.mxu0
      %v1455 = vpop.f32.mrf.mxu0
      %1456 = vdwg.mxu0
      %1457 = vmatprep.subr.bf16.mxu0 %v1269
      %1458 = vmatpush1.bf16.msra.mxu0 %v1268
      %1459 = vmatprep.subr.bf16.mxu0 %v1261
      %1460 = vmatpush1.bf16.msra.mxu0 %v1260
      %1461 = vmatprep.subr.bf16.mxu0 %v1253
      %1462 = vmatpush1.bf16.msra.mxu0 %v1252
      %1463 = vmatprep.subr.bf16.mxu0 %v1245
      %1464 = vmatpush1.bf16.msra.mxu0 %v1244
      %1465 = vmatprep.subr.bf16.mxu0 %v1237
      %1466 = vmatpush1.bf16.msra.mxu0 %v1236
      %1467 = vmatprep.subr.bf16.mxu0 %v1229
      %1468 = vmatpush1.bf16.msra.mxu0 %v1228
      %1469 = vmatprep.subr.bf16.mxu0 %v1221
      %1470 = vmatpush1.bf16.msra.mxu0 %v1220
      %1471 = vmatprep.subr.bf16.mxu0 %v1213
      %1472 = vmatpush1.bf16.msra.mxu0 %v1212
      %1473 = vmatprep.subr.bf16.mxu0 0
      %1474 = vmatpush2.bf16.msra.mxu0 0
      %1475 = vmatprep.subr.bf16.mxu0 0
      %1476 = vmatpush2.bf16.msra.mxu0 0
      %1477 = vmatprep.subr.bf16.mxu0 0
      %1478 = vmatpush2.bf16.msra.mxu0 0
      %1479 = vmatprep.subr.bf16.mxu0 0
      %1480 = vmatpush2.bf16.msra.mxu0 0
      %1481 = vmatprep.subr.bf16.mxu0 0
      %1482 = vmatpush2.bf16.msra.mxu0 0
      %1483 = vmatprep.subr.bf16.mxu0 0
      %1484 = vmatpush2.bf16.msra.mxu0 0
      %1485 = vmatprep.subr.bf16.mxu0 0
      %1486 = vmatpush2.bf16.msra.mxu0 0
      %1487 = vmatprep.subr.bf16.mxu0 0
      %1488 = vmatpush2.bf16.msra.mxu0 0
      %1489 = vmatprep.mubr.bf16.mxu0 0
      %1490 = vmatmul.mubr.bf16.gmra.mxu0 %v351
      %v1491 = vpop.f32.mrf.mxu0
      %v1492 = vadd.f32 0.0, %v1491
      %v1493 = vpop.f32.mrf.mxu0
      %v1494 = vadd.f32 0.0, %v1493
      %v1495 = vpop.f32.mrf.mxu0
      %v1496 = vpop.f32.mrf.mxu0
      %1497 = vdwg.mxu0
      %v1498 = vpack.c.bf16 %v1369, %v1369
      %v1499 = vpack.c.bf16 %v1371, %v1371
      %v1500 = vpack.c.bf16 %v1410, %v1410
      %v1501 = vpack.c.bf16 %v1412, %v1412
      %v1502 = vpack.c.bf16 %v1451, %v1451
      %v1503 = vpack.c.bf16 %v1453, %v1453
      %v1504 = vpack.c.bf16 %v1492, %v1492
      %v1505 = vpack.c.bf16 %v1494, %v1494
      %1506 = vmatprep.subr.bf16.mxu0 0
      %1507 = vmatpush1.bf16.xpose.msra.mxu0 0
      %1508 = vmatprep.subr.bf16.mxu0 0
      %1509 = vmatpush1.bf16.xpose.msra.mxu0 0
      %1510 = vmatprep.subr.bf16.mxu0 0
      %1511 = vmatpush1.bf16.xpose.msra.mxu0 0
      %1512 = vmatprep.subr.bf16.mxu0 0
      %1513 = vmatpush1.bf16.xpose.msra.mxu0 0
      %1514 = vmatprep.subr.bf16.mxu0 0
      %1515 = vmatpush1.bf16.xpose.msra.mxu0 0
      %1516 = vmatprep.subr.bf16.mxu0 0
      %1517 = vmatpush1.bf16.xpose.msra.mxu0 0
      %1518 = vmatprep.subr.bf16.mxu0 0
      %1519 = vmatpush1.bf16.xpose.msra.mxu0 0
      %1520 = vmatprep.subr.bf16.mxu0 0
      %1521 = vmatpush1.bf16.xpose.msra.mxu0 %v351
      %1522 = vmatprep.subr.bf16.mxu0 0
      %1523 = vmatpush2.bf16.xpose.msra.mxu0 0
      %1524 = vmatprep.subr.bf16.mxu0 0
      %1525 = vmatpush2.bf16.xpose.msra.mxu0 0
      %1526 = vmatprep.subr.bf16.mxu0 0
      %1527 = vmatpush2.bf16.xpose.msra.mxu0 0
      %1528 = vmatprep.subr.bf16.mxu0 0
      %1529 = vmatpush2.bf16.xpose.msra.mxu0 0
      %1530 = vmatprep.subr.bf16.mxu0 0
      %1531 = vmatpush2.bf16.xpose.msra.mxu0 0
      %1532 = vmatprep.subr.bf16.mxu0 0
      %1533 = vmatpush2.bf16.xpose.msra.mxu0 0
      %1534 = vmatprep.subr.bf16.mxu0 0
      %1535 = vmatpush2.bf16.xpose.msra.mxu0 0
      %1536 = vmatprep.subr.bf16.mxu0 0
      %1537 = vmatpush2.bf16.xpose.msra.mxu0 0
      %1538 = vmatprep.mubr.bf16.mxu0 0
      %1539 = vmatmul.mubr.bf16.gmra.mxu0 %v942
      %v1540 = vpop.f32.mrf.mxu0
      %v1541 = vadd.f32 0.0, %v1540
      %v1542 = vpop.f32.mrf.mxu0
      %v1543 = vpop.f32.mrf.mxu0
      %v1544 = vpop.f32.mrf.mxu0
      %1545 = vdwg.mxu0
      %vm1546 = vcmask 64512
      %v1547 = vsel %vm1546, %v1541, -inf
      %1548 = vmax.xlane.f32.xlu0 %v1547
      %v1549 = vpop.xlane.xlu0 %1548
      %v1550 = vsub.f32 %v1541, %v1549
      %v1551 = vmul.f32 %v1550, 1.442695
      %v1552 = vpow.pop %v1551
      %v1553 = vsel %vm1546, %v1552, 0.0
      %1554 = vadd.xlane.f32.xlu0 %v1553
      %v1555 = vpop.xlane.xlu0 %1554
      %v1556 = vrcp.pop %v1555
      %v1557 = vmul.f32 %v1552, %v1556
      %v1558 = vpack.c.bf16 %v1557, %v1557
      %1559 = vmatprep.subr.bf16.mxu0 0
      %1560 = vmatpush1.bf16.xpose.msra.mxu0 0
      %1561 = vmatprep.subr.bf16.mxu0 0
      %1562 = vmatpush1.bf16.xpose.msra.mxu0 0
      %1563 = vmatprep.subr.bf16.mxu0 0
      %1564 = vmatpush1.bf16.xpose.msra.mxu0 0
      %1565 = vmatprep.subr.bf16.mxu0 0
      %1566 = vmatpush1.bf16.xpose.msra.mxu0 0
      %1567 = vmatprep.subr.bf16.mxu0 0
      %1568 = vmatpush1.bf16.xpose.msra.mxu0 0
      %1569 = vmatprep.subr.bf16.mxu0 0
      %1570 = vmatpush1.bf16.xpose.msra.mxu0 0
      %1571 = vmatprep.subr.bf16.mxu0 0
      %1572 = vmatpush1.bf16.xpose.msra.mxu0 0
      %1573 = vmatprep.subr.bf16.mxu0 0
      %1574 = vmatpush1.bf16.xpose.msra.mxu0 %v351
      %1575 = vmatprep.subr.bf16.mxu0 0
      %1576 = vmatpush2.bf16.xpose.msra.mxu0 0
      %1577 = vmatprep.subr.bf16.mxu0 0
      %1578 = vmatpush2.bf16.xpose.msra.mxu0 0
      %1579 = vmatprep.subr.bf16.mxu0 0
      %1580 = vmatpush2.bf16.xpose.msra.mxu0 0
      %1581 = vmatprep.subr.bf16.mxu0 0
      %1582 = vmatpush2.bf16.xpose.msra.mxu0 0
      %1583 = vmatprep.subr.bf16.mxu0 0
      %1584 = vmatpush2.bf16.xpose.msra.mxu0 0
      %1585 = vmatprep.subr.bf16.mxu0 0
      %1586 = vmatpush2.bf16.xpose.msra.mxu0 0
      %1587 = vmatprep.subr.bf16.mxu0 0
      %1588 = vmatpush2.bf16.xpose.msra.mxu0 0
      %1589 = vmatprep.subr.bf16.mxu0 0
      %1590 = vmatpush2.bf16.xpose.msra.mxu0 0
      %1591 = vmatprep.mubr.bf16.mxu0 0
      %1592 = vmatmul.mubr.bf16.gmra.mxu0 %v943
      %v1593 = vpop.f32.mrf.mxu0
      %v1594 = vadd.f32 0.0, %v1593
      %v1595 = vpop.f32.mrf.mxu0
      %v1596 = vpop.f32.mrf.mxu0
      %v1597 = vpop.f32.mrf.mxu0
      %1598 = vdwg.mxu0
      %v1599 = vsel %vm1546, %v1594, -inf
      %1600 = vmax.xlane.f32.xlu0 %v1599
      %v1601 = vpop.xlane.xlu0 %1600
      %v1602 = vsub.f32 %v1594, %v1601
      %v1603 = vmul.f32 %v1602, 1.442695
      %v1604 = vpow.pop %v1603
      %v1605 = vsel %vm1546, %v1604, 0.0
      %1606 = vadd.xlane.f32.xlu0 %v1605
      %v1607 = vpop.xlane.xlu0 %1606
      %v1608 = vrcp.pop %v1607
      %v1609 = vmul.f32 %v1604, %v1608
      %v1610 = vpack.c.bf16 %v1609, %v1609
      %v1612 = vsel %vm1546, %v1610, 0
      %vm1614 = vcmask 1043456
      %v1616 = vsel %vm1614, %v1499, 0
      %1618 = vmatprep.subr.bf16.mxu0 0
      %1619 = vmatpush1.bf16.msra.mxu0 0
      %1620 = vmatprep.subr.bf16.mxu0 0
      %1621 = vmatpush1.bf16.msra.mxu0 0
      %1622 = vmatprep.subr.bf16.mxu0 0
      %1623 = vmatpush1.bf16.msra.mxu0 0
      %1624 = vmatprep.subr.bf16.mxu0 0
      %1625 = vmatpush1.bf16.msra.mxu0 0
      %1626 = vmatprep.subr.bf16.mxu0 0
      %1627 = vmatpush1.bf16.msra.mxu0 0
      %1628 = vmatprep.subr.bf16.mxu0 0
      %1629 = vmatpush1.bf16.msra.mxu0 0
      %1630 = vmatprep.subr.bf16.mxu0 0
      %1631 = vmatpush1.bf16.msra.mxu0 0
      %1632 = vmatprep.subr.bf16.mxu0 0
      %1633 = vmatpush1.bf16.msra.mxu0 %v1616
      %1634 = vmatprep.subr.bf16.mxu0 0
      %1635 = vmatpush2.bf16.msra.mxu0 0
      %1636 = vmatprep.subr.bf16.mxu0 0
      %1637 = vmatpush2.bf16.msra.mxu0 0
      %1638 = vmatprep.subr.bf16.mxu0 0
      %1639 = vmatpush2.bf16.msra.mxu0 0
      %1640 = vmatprep.subr.bf16.mxu0 0
      %1641 = vmatpush2.bf16.msra.mxu0 0
      %1642 = vmatprep.subr.bf16.mxu0 0
      %1643 = vmatpush2.bf16.msra.mxu0 0
      %1644 = vmatprep.subr.bf16.mxu0 0
      %1645 = vmatpush2.bf16.msra.mxu0 0
      %1646 = vmatprep.subr.bf16.mxu0 0
      %1647 = vmatpush2.bf16.msra.mxu0 0
      %1648 = vmatprep.subr.bf16.mxu0 0
      %1649 = vmatpush2.bf16.msra.mxu0 0
      %1650 = vmatprep.mubr.bf16.mxu0 0
      %1651 = vmatmul.mubr.bf16.gmra.mxu0 %v1612
      %v1652 = vpop.f32.mrf.mxu0
      %v1653 = vadd.f32 0.0, %v1652
      %v1654 = vpop.f32.mrf.mxu0
      %v1655 = vpop.f32.mrf.mxu0
      %v1656 = vpop.f32.mrf.mxu0
      %1657 = vdwg.mxu0
      %v1659 = vsel %vm1546, %v1558, 0
      %v1662 = vsel %vm1614, %v1498, 0
      %1664 = vmatprep.subr.bf16.mxu0 0
      %1665 = vmatpush1.bf16.msra.mxu0 0
      %1666 = vmatprep.subr.bf16.mxu0 0
      %1667 = vmatpush1.bf16.msra.mxu0 0
      %1668 = vmatprep.subr.bf16.mxu0 0
      %1669 = vmatpush1.bf16.msra.mxu0 0
      %1670 = vmatprep.subr.bf16.mxu0 0
      %1671 = vmatpush1.bf16.msra.mxu0 0
      %1672 = vmatprep.subr.bf16.mxu0 0
      %1673 = vmatpush1.bf16.msra.mxu0 0
      %1674 = vmatprep.subr.bf16.mxu0 0
      %1675 = vmatpush1.bf16.msra.mxu0 0
      %1676 = vmatprep.subr.bf16.mxu0 0
      %1677 = vmatpush1.bf16.msra.mxu0 0
      %1678 = vmatprep.subr.bf16.mxu0 0
      %1679 = vmatpush1.bf16.msra.mxu0 %v1662
      %1680 = vmatprep.subr.bf16.mxu0 0
      %1681 = vmatpush2.bf16.msra.mxu0 0
      %1682 = vmatprep.subr.bf16.mxu0 0
      %1683 = vmatpush2.bf16.msra.mxu0 0
      %1684 = vmatprep.subr.bf16.mxu0 0
      %1685 = vmatpush2.bf16.msra.mxu0 0
      %1686 = vmatprep.subr.bf16.mxu0 0
      %1687 = vmatpush2.bf16.msra.mxu0 0
      %1688 = vmatprep.subr.bf16.mxu0 0
      %1689 = vmatpush2.bf16.msra.mxu0 0
      %1690 = vmatprep.subr.bf16.mxu0 0
      %1691 = vmatpush2.bf16.msra.mxu0 0
      %1692 = vmatprep.subr.bf16.mxu0 0
      %1693 = vmatpush2.bf16.msra.mxu0 0
      %1694 = vmatprep.subr.bf16.mxu0 0
      %1695 = vmatpush2.bf16.msra.mxu0 0
      %1696 = vmatprep.mubr.bf16.mxu0 0
      %1697 = vmatmul.mubr.bf16.gmra.mxu0 %v1659
      %v1698 = vpop.f32.mrf.mxu0
      %v1699 = vadd.f32 %v1653, %v1698
      %v1700 = vpop.f32.mrf.mxu0
      %v1701 = vpop.f32.mrf.mxu0
      %v1702 = vpop.f32.mrf.mxu0
      %1703 = vdwg.mxu0
      %1704 = vmatprep.subr.bf16.mxu0 0
      %1705 = vmatpush1.bf16.xpose.msra.mxu0 0
      %1706 = vmatprep.subr.bf16.mxu0 0
      %1707 = vmatpush1.bf16.xpose.msra.mxu0 0
      %1708 = vmatprep.subr.bf16.mxu0 0
      %1709 = vmatpush1.bf16.xpose.msra.mxu0 0
      %1710 = vmatprep.subr.bf16.mxu0 0
      %1711 = vmatpush1.bf16.xpose.msra.mxu0 0
      %1712 = vmatprep.subr.bf16.mxu0 0
      %1713 = vmatpush1.bf16.xpose.msra.mxu0 0
      %1714 = vmatprep.subr.bf16.mxu0 0
      %1715 = vmatpush1.bf16.xpose.msra.mxu0 0
      %1716 = vmatprep.subr.bf16.mxu0 0
      %1717 = vmatpush1.bf16.xpose.msra.mxu0 0
      %1718 = vmatprep.subr.bf16.mxu0 0
      %1719 = vmatpush1.bf16.xpose.msra.mxu0 %v351
      %1720 = vmatprep.subr.bf16.mxu0 0
      %1721 = vmatpush2.bf16.xpose.msra.mxu0 0
      %1722 = vmatprep.subr.bf16.mxu0 0
      %1723 = vmatpush2.bf16.xpose.msra.mxu0 0
      %1724 = vmatprep.subr.bf16.mxu0 0
      %1725 = vmatpush2.bf16.xpose.msra.mxu0 0
      %1726 = vmatprep.subr.bf16.mxu0 0
      %1727 = vmatpush2.bf16.xpose.msra.mxu0 0
      %1728 = vmatprep.subr.bf16.mxu0 0
      %1729 = vmatpush2.bf16.xpose.msra.mxu0 0
      %1730 = vmatprep.subr.bf16.mxu0 0
      %1731 = vmatpush2.bf16.xpose.msra.mxu0 0
      %1732 = vmatprep.subr.bf16.mxu0 0
      %1733 = vmatpush2.bf16.xpose.msra.mxu0 0
      %1734 = vmatprep.subr.bf16.mxu0 0
      %1735 = vmatpush2.bf16.xpose.msra.mxu0 0
      %1736 = vmatprep.mubr.bf16.mxu0 0
      %1737 = vmatmul.mubr.bf16.gmra.mxu0 %v944
      %v1738 = vpop.f32.mrf.mxu0
      %v1739 = vadd.f32 0.0, %v1738
      %v1740 = vpop.f32.mrf.mxu0
      %v1741 = vpop.f32.mrf.mxu0
      %v1742 = vpop.f32.mrf.mxu0
      %1743 = vdwg.mxu0
      %v1744 = vsel %vm1546, %v1739, -inf
      %1745 = vmax.xlane.f32.xlu0 %v1744
      %v1746 = vpop.xlane.xlu0 %1745
      %v1747 = vsub.f32 %v1739, %v1746
      %v1748 = vmul.f32 %v1747, 1.442695
      %v1749 = vpow.pop %v1748
      %v1750 = vsel %vm1546, %v1749, 0.0
      %1751 = vadd.xlane.f32.xlu0 %v1750
      %v1752 = vpop.xlane.xlu0 %1751
      %v1753 = vrcp.pop %v1752
      %v1754 = vmul.f32 %v1749, %v1753
      %v1755 = vpack.c.bf16 %v1754, %v1754
      %v1757 = vsel %vm1546, %v1755, 0
      %v1760 = vsel %vm1614, %v1500, 0
      %1762 = vmatprep.subr.bf16.mxu0 0
      %1763 = vmatpush1.bf16.msra.mxu0 0
      %1764 = vmatprep.subr.bf16.mxu0 0
      %1765 = vmatpush1.bf16.msra.mxu0 0
      %1766 = vmatprep.subr.bf16.mxu0 0
      %1767 = vmatpush1.bf16.msra.mxu0 0
      %1768 = vmatprep.subr.bf16.mxu0 0
      %1769 = vmatpush1.bf16.msra.mxu0 0
      %1770 = vmatprep.subr.bf16.mxu0 0
      %1771 = vmatpush1.bf16.msra.mxu0 0
      %1772 = vmatprep.subr.bf16.mxu0 0
      %1773 = vmatpush1.bf16.msra.mxu0 0
      %1774 = vmatprep.subr.bf16.mxu0 0
      %1775 = vmatpush1.bf16.msra.mxu0 0
      %1776 = vmatprep.subr.bf16.mxu0 0
      %1777 = vmatpush1.bf16.msra.mxu0 %v1760
      %1778 = vmatprep.subr.bf16.mxu0 0
      %1779 = vmatpush2.bf16.msra.mxu0 0
      %1780 = vmatprep.subr.bf16.mxu0 0
      %1781 = vmatpush2.bf16.msra.mxu0 0
      %1782 = vmatprep.subr.bf16.mxu0 0
      %1783 = vmatpush2.bf16.msra.mxu0 0
      %1784 = vmatprep.subr.bf16.mxu0 0
      %1785 = vmatpush2.bf16.msra.mxu0 0
      %1786 = vmatprep.subr.bf16.mxu0 0
      %1787 = vmatpush2.bf16.msra.mxu0 0
      %1788 = vmatprep.subr.bf16.mxu0 0
      %1789 = vmatpush2.bf16.msra.mxu0 0
      %1790 = vmatprep.subr.bf16.mxu0 0
      %1791 = vmatpush2.bf16.msra.mxu0 0
      %1792 = vmatprep.subr.bf16.mxu0 0
      %1793 = vmatpush2.bf16.msra.mxu0 0
      %1794 = vmatprep.mubr.bf16.mxu0 0
      %1795 = vmatmul.mubr.bf16.gmra.mxu0 %v1757
      %v1796 = vpop.f32.mrf.mxu0
      %v1797 = vadd.f32 0.0, %v1796
      %v1798 = vpop.f32.mrf.mxu0
      %v1799 = vpop.f32.mrf.mxu0
      %v1800 = vpop.f32.mrf.mxu0
      %1801 = vdwg.mxu0
      %v1802 = vadd.f32 %v1699, %v1797
      %1803 = vmatprep.subr.bf16.mxu0 0
      %1804 = vmatpush1.bf16.xpose.msra.mxu0 0
      %1805 = vmatprep.subr.bf16.mxu0 0
      %1806 = vmatpush1.bf16.xpose.msra.mxu0 0
      %1807 = vmatprep.subr.bf16.mxu0 0
      %1808 = vmatpush1.bf16.xpose.msra.mxu0 0
      %1809 = vmatprep.subr.bf16.mxu0 0
      %1810 = vmatpush1.bf16.xpose.msra.mxu0 0
      %1811 = vmatprep.subr.bf16.mxu0 0
      %1812 = vmatpush1.bf16.xpose.msra.mxu0 0
      %1813 = vmatprep.subr.bf16.mxu0 0
      %1814 = vmatpush1.bf16.xpose.msra.mxu0 0
      %1815 = vmatprep.subr.bf16.mxu0 0
      %1816 = vmatpush1.bf16.xpose.msra.mxu0 0
      %1817 = vmatprep.subr.bf16.mxu0 0
      %1818 = vmatpush1.bf16.xpose.msra.mxu0 %v351
      %1819 = vmatprep.subr.bf16.mxu0 0
      %1820 = vmatpush2.bf16.xpose.msra.mxu0 0
      %1821 = vmatprep.subr.bf16.mxu0 0
      %1822 = vmatpush2.bf16.xpose.msra.mxu0 0
      %1823 = vmatprep.subr.bf16.mxu0 0
      %1824 = vmatpush2.bf16.xpose.msra.mxu0 0
      %1825 = vmatprep.subr.bf16.mxu0 0
      %1826 = vmatpush2.bf16.xpose.msra.mxu0 0
      %1827 = vmatprep.subr.bf16.mxu0 0
      %1828 = vmatpush2.bf16.xpose.msra.mxu0 0
      %1829 = vmatprep.subr.bf16.mxu0 0
      %1830 = vmatpush2.bf16.xpose.msra.mxu0 0
      %1831 = vmatprep.subr.bf16.mxu0 0
      %1832 = vmatpush2.bf16.xpose.msra.mxu0 0
      %1833 = vmatprep.subr.bf16.mxu0 0
      %1834 = vmatpush2.bf16.xpose.msra.mxu0 0
      %1835 = vmatprep.mubr.bf16.mxu0 0
      %1836 = vmatmul.mubr.bf16.gmra.mxu0 %v945
      %v1837 = vpop.f32.mrf.mxu0
      %v1838 = vadd.f32 0.0, %v1837
      %v1839 = vpop.f32.mrf.mxu0
      %v1840 = vpop.f32.mrf.mxu0
      %v1841 = vpop.f32.mrf.mxu0
      %1842 = vdwg.mxu0
      %v1843 = vsel %vm1546, %v1838, -inf
      %1844 = vmax.xlane.f32.xlu0 %v1843
      %v1845 = vpop.xlane.xlu0 %1844
      %v1846 = vsub.f32 %v1838, %v1845
      %v1847 = vmul.f32 %v1846, 1.442695
      %v1848 = vpow.pop %v1847
      %v1849 = vsel %vm1546, %v1848, 0.0
      %1850 = vadd.xlane.f32.xlu0 %v1849
      %v1851 = vpop.xlane.xlu0 %1850
      %v1852 = vrcp.pop %v1851
      %v1853 = vmul.f32 %v1848, %v1852
      %v1854 = vpack.c.bf16 %v1853, %v1853
      %v1856 = vsel %vm1546, %v1854, 0
      %v1859 = vsel %vm1614, %v1501, 0
      %1861 = vmatprep.subr.bf16.mxu0 0
      %1862 = vmatpush1.bf16.msra.mxu0 0
      %1863 = vmatprep.subr.bf16.mxu0 0
      %1864 = vmatpush1.bf16.msra.mxu0 0
      %1865 = vmatprep.subr.bf16.mxu0 0
      %1866 = vmatpush1.bf16.msra.mxu0 0
      %1867 = vmatprep.subr.bf16.mxu0 0
      %1868 = vmatpush1.bf16.msra.mxu0 0
      %1869 = vmatprep.subr.bf16.mxu0 0
      %1870 = vmatpush1.bf16.msra.mxu0 0
      %1871 = vmatprep.subr.bf16.mxu0 0
      %1872 = vmatpush1.bf16.msra.mxu0 0
      %1873 = vmatprep.subr.bf16.mxu0 0
      %1874 = vmatpush1.bf16.msra.mxu0 0
      %1875 = vmatprep.subr.bf16.mxu0 0
      %1876 = vmatpush1.bf16.msra.mxu0 %v1859
      %1877 = vmatprep.subr.bf16.mxu0 0
      %1878 = vmatpush2.bf16.msra.mxu0 0
      %1879 = vmatprep.subr.bf16.mxu0 0
      %1880 = vmatpush2.bf16.msra.mxu0 0
      %1881 = vmatprep.subr.bf16.mxu0 0
      %1882 = vmatpush2.bf16.msra.mxu0 0
      %1883 = vmatprep.subr.bf16.mxu0 0
      %1884 = vmatpush2.bf16.msra.mxu0 0
      %1885 = vmatprep.subr.bf16.mxu0 0
      %1886 = vmatpush2.bf16.msra.mxu0 0
      %1887 = vmatprep.subr.bf16.mxu0 0
      %1888 = vmatpush2.bf16.msra.mxu0 0
      %1889 = vmatprep.subr.bf16.mxu0 0
      %1890 = vmatpush2.bf16.msra.mxu0 0
      %1891 = vmatprep.subr.bf16.mxu0 0
      %1892 = vmatpush2.bf16.msra.mxu0 0
      %1893 = vmatprep.mubr.bf16.mxu0 0
      %1894 = vmatmul.mubr.bf16.gmra.mxu0 %v1856
      %v1895 = vpop.f32.mrf.mxu0
      %v1896 = vadd.f32 0.0, %v1895
      %v1897 = vpop.f32.mrf.mxu0
      %v1898 = vpop.f32.mrf.mxu0
      %v1899 = vpop.f32.mrf.mxu0
      %1900 = vdwg.mxu0
      %v1901 = vadd.f32 %v1802, %v1896
      %1902 = vmatprep.subr.bf16.mxu0 0
      %1903 = vmatpush1.bf16.xpose.msra.mxu0 0
      %1904 = vmatprep.subr.bf16.mxu0 0
      %1905 = vmatpush1.bf16.xpose.msra.mxu0 0
      %1906 = vmatprep.subr.bf16.mxu0 0
      %1907 = vmatpush1.bf16.xpose.msra.mxu0 0
      %1908 = vmatprep.subr.bf16.mxu0 0
      %1909 = vmatpush1.bf16.xpose.msra.mxu0 0
      %1910 = vmatprep.subr.bf16.mxu0 0
      %1911 = vmatpush1.bf16.xpose.msra.mxu0 0
      %1912 = vmatprep.subr.bf16.mxu0 0
      %1913 = vmatpush1.bf16.xpose.msra.mxu0 0
      %1914 = vmatprep.subr.bf16.mxu0 0
      %1915 = vmatpush1.bf16.xpose.msra.mxu0 0
      %1916 = vmatprep.subr.bf16.mxu0 0
      %1917 = vmatpush1.bf16.xpose.msra.mxu0 %v351
      %1918 = vmatprep.subr.bf16.mxu0 0
      %1919 = vmatpush2.bf16.xpose.msra.mxu0 0
      %1920 = vmatprep.subr.bf16.mxu0 0
      %1921 = vmatpush2.bf16.xpose.msra.mxu0 0
      %1922 = vmatprep.subr.bf16.mxu0 0
      %1923 = vmatpush2.bf16.xpose.msra.mxu0 0
      %1924 = vmatprep.subr.bf16.mxu0 0
      %1925 = vmatpush2.bf16.xpose.msra.mxu0 0
      %1926 = vmatprep.subr.bf16.mxu0 0
      %1927 = vmatpush2.bf16.xpose.msra.mxu0 0
      %1928 = vmatprep.subr.bf16.mxu0 0
      %1929 = vmatpush2.bf16.xpose.msra.mxu0 0
      %1930 = vmatprep.subr.bf16.mxu0 0
      %1931 = vmatpush2.bf16.xpose.msra.mxu0 0
      %1932 = vmatprep.subr.bf16.mxu0 0
      %1933 = vmatpush2.bf16.xpose.msra.mxu0 0
      %1934 = vmatprep.mubr.bf16.mxu0 0
      %1935 = vmatmul.mubr.bf16.gmra.mxu0 %v946
      %v1936 = vpop.f32.mrf.mxu0
      %v1937 = vadd.f32 0.0, %v1936
      %v1938 = vpop.f32.mrf.mxu0
      %v1939 = vpop.f32.mrf.mxu0
      %v1940 = vpop.f32.mrf.mxu0
      %1941 = vdwg.mxu0
      %v1942 = vsel %vm1546, %v1937, -inf
      %1943 = vmax.xlane.f32.xlu0 %v1942
      %v1944 = vpop.xlane.xlu0 %1943
      %v1945 = vsub.f32 %v1937, %v1944
      %v1946 = vmul.f32 %v1945, 1.442695
      %v1947 = vpow.pop %v1946
      %v1948 = vsel %vm1546, %v1947, 0.0
      %1949 = vadd.xlane.f32.xlu0 %v1948
      %v1950 = vpop.xlane.xlu0 %1949
      %v1951 = vrcp.pop %v1950
      %v1952 = vmul.f32 %v1947, %v1951
      %v1953 = vpack.c.bf16 %v1952, %v1952
      %v1955 = vsel %vm1546, %v1953, 0
      %v1958 = vsel %vm1614, %v1502, 0
      %1960 = vmatprep.subr.bf16.mxu0 0
      %1961 = vmatpush1.bf16.msra.mxu0 0
      %1962 = vmatprep.subr.bf16.mxu0 0
      %1963 = vmatpush1.bf16.msra.mxu0 0
      %1964 = vmatprep.subr.bf16.mxu0 0
      %1965 = vmatpush1.bf16.msra.mxu0 0
      %1966 = vmatprep.subr.bf16.mxu0 0
      %1967 = vmatpush1.bf16.msra.mxu0 0
      %1968 = vmatprep.subr.bf16.mxu0 0
      %1969 = vmatpush1.bf16.msra.mxu0 0
      %1970 = vmatprep.subr.bf16.mxu0 0
      %1971 = vmatpush1.bf16.msra.mxu0 0
      %1972 = vmatprep.subr.bf16.mxu0 0
      %1973 = vmatpush1.bf16.msra.mxu0 0
      %1974 = vmatprep.subr.bf16.mxu0 0
      %1975 = vmatpush1.bf16.msra.mxu0 %v1958
      %1976 = vmatprep.subr.bf16.mxu0 0
      %1977 = vmatpush2.bf16.msra.mxu0 0
      %1978 = vmatprep.subr.bf16.mxu0 0
      %1979 = vmatpush2.bf16.msra.mxu0 0
      %1980 = vmatprep.subr.bf16.mxu0 0
      %1981 = vmatpush2.bf16.msra.mxu0 0
      %1982 = vmatprep.subr.bf16.mxu0 0
      %1983 = vmatpush2.bf16.msra.mxu0 0
      %1984 = vmatprep.subr.bf16.mxu0 0
      %1985 = vmatpush2.bf16.msra.mxu0 0
      %1986 = vmatprep.subr.bf16.mxu0 0
      %1987 = vmatpush2.bf16.msra.mxu0 0
      %1988 = vmatprep.subr.bf16.mxu0 0
      %1989 = vmatpush2.bf16.msra.mxu0 0
      %1990 = vmatprep.subr.bf16.mxu0 0
      %1991 = vmatpush2.bf16.msra.mxu0 0
      %1992 = vmatprep.mubr.bf16.mxu0 0
      %1993 = vmatmul.mubr.bf16.gmra.mxu0 %v1955
      %v1994 = vpop.f32.mrf.mxu0
      %v1995 = vadd.f32 0.0, %v1994
      %v1996 = vpop.f32.mrf.mxu0
      %v1997 = vpop.f32.mrf.mxu0
      %v1998 = vpop.f32.mrf.mxu0
      %1999 = vdwg.mxu0
      %v2000 = vadd.f32 %v1901, %v1995
      %2001 = vmatprep.subr.bf16.mxu0 0
      %2002 = vmatpush1.bf16.xpose.msra.mxu0 0
      %2003 = vmatprep.subr.bf16.mxu0 0
      %2004 = vmatpush1.bf16.xpose.msra.mxu0 0
      %2005 = vmatprep.subr.bf16.mxu0 0
      %2006 = vmatpush1.bf16.xpose.msra.mxu0 0
      %2007 = vmatprep.subr.bf16.mxu0 0
      %2008 = vmatpush1.bf16.xpose.msra.mxu0 0
      %2009 = vmatprep.subr.bf16.mxu0 0
      %2010 = vmatpush1.bf16.xpose.msra.mxu0 0
      %2011 = vmatprep.subr.bf16.mxu0 0
      %2012 = vmatpush1.bf16.xpose.msra.mxu0 0
      %2013 = vmatprep.subr.bf16.mxu0 0
      %2014 = vmatpush1.bf16.xpose.msra.mxu0 0
      %2015 = vmatprep.subr.bf16.mxu0 0
      %2016 = vmatpush1.bf16.xpose.msra.mxu0 %v351
      %2017 = vmatprep.subr.bf16.mxu0 0
      %2018 = vmatpush2.bf16.xpose.msra.mxu0 0
      %2019 = vmatprep.subr.bf16.mxu0 0
      %2020 = vmatpush2.bf16.xpose.msra.mxu0 0
      %2021 = vmatprep.subr.bf16.mxu0 0
      %2022 = vmatpush2.bf16.xpose.msra.mxu0 0
      %2023 = vmatprep.subr.bf16.mxu0 0
      %2024 = vmatpush2.bf16.xpose.msra.mxu0 0
      %2025 = vmatprep.subr.bf16.mxu0 0
      %2026 = vmatpush2.bf16.xpose.msra.mxu0 0
      %2027 = vmatprep.subr.bf16.mxu0 0
      %2028 = vmatpush2.bf16.xpose.msra.mxu0 0
      %2029 = vmatprep.subr.bf16.mxu0 0
      %2030 = vmatpush2.bf16.xpose.msra.mxu0 0
      %2031 = vmatprep.subr.bf16.mxu0 0
      %2032 = vmatpush2.bf16.xpose.msra.mxu0 0
      %2033 = vmatprep.mubr.bf16.mxu0 0
      %2034 = vmatmul.mubr.bf16.gmra.mxu0 %v947
      %v2035 = vpop.f32.mrf.mxu0
      %v2036 = vadd.f32 0.0, %v2035
      %v2037 = vpop.f32.mrf.mxu0
      %v2038 = vpop.f32.mrf.mxu0
      %v2039 = vpop.f32.mrf.mxu0
      %2040 = vdwg.mxu0
      %v2041 = vsel %vm1546, %v2036, -inf
      %2042 = vmax.xlane.f32.xlu0 %v2041
      %v2043 = vpop.xlane.xlu0 %2042
      %v2044 = vsub.f32 %v2036, %v2043
      %v2045 = vmul.f32 %v2044, 1.442695
      %v2046 = vpow.pop %v2045
      %v2047 = vsel %vm1546, %v2046, 0.0
      %2048 = vadd.xlane.f32.xlu0 %v2047
      %v2049 = vpop.xlane.xlu0 %2048
      %v2050 = vrcp.pop %v2049
      %v2051 = vmul.f32 %v2046, %v2050
      %v2052 = vpack.c.bf16 %v2051, %v2051
      %v2054 = vsel %vm1546, %v2052, 0
      %v2057 = vsel %vm1614, %v1503, 0
      %2059 = vmatprep.subr.bf16.mxu0 0
      %2060 = vmatpush1.bf16.msra.mxu0 0
      %2061 = vmatprep.subr.bf16.mxu0 0
      %2062 = vmatpush1.bf16.msra.mxu0 0
      %2063 = vmatprep.subr.bf16.mxu0 0
      %2064 = vmatpush1.bf16.msra.mxu0 0
      %2065 = vmatprep.subr.bf16.mxu0 0
      %2066 = vmatpush1.bf16.msra.mxu0 0
      %2067 = vmatprep.subr.bf16.mxu0 0
      %2068 = vmatpush1.bf16.msra.mxu0 0
      %2069 = vmatprep.subr.bf16.mxu0 0
      %2070 = vmatpush1.bf16.msra.mxu0 0
      %2071 = vmatprep.subr.bf16.mxu0 0
      %2072 = vmatpush1.bf16.msra.mxu0 0
      %2073 = vmatprep.subr.bf16.mxu0 0
      %2074 = vmatpush1.bf16.msra.mxu0 %v2057
      %2075 = vmatprep.subr.bf16.mxu0 0
      %2076 = vmatpush2.bf16.msra.mxu0 0
      %2077 = vmatprep.subr.bf16.mxu0 0
      %2078 = vmatpush2.bf16.msra.mxu0 0
      %2079 = vmatprep.subr.bf16.mxu0 0
      %2080 = vmatpush2.bf16.msra.mxu0 0
      %2081 = vmatprep.subr.bf16.mxu0 0
      %2082 = vmatpush2.bf16.msra.mxu0 0
      %2083 = vmatprep.subr.bf16.mxu0 0
      %2084 = vmatpush2.bf16.msra.mxu0 0
      %2085 = vmatprep.subr.bf16.mxu0 0
      %2086 = vmatpush2.bf16.msra.mxu0 0
      %2087 = vmatprep.subr.bf16.mxu0 0
      %2088 = vmatpush2.bf16.msra.mxu0 0
      %2089 = vmatprep.subr.bf16.mxu0 0
      %2090 = vmatpush2.bf16.msra.mxu0 0
      %2091 = vmatprep.mubr.bf16.mxu0 0
      %2092 = vmatmul.mubr.bf16.gmra.mxu0 %v2054
      %v2093 = vpop.f32.mrf.mxu0
      %v2094 = vadd.f32 0.0, %v2093
      %v2095 = vpop.f32.mrf.mxu0
      %v2096 = vpop.f32.mrf.mxu0
      %v2097 = vpop.f32.mrf.mxu0
      %2098 = vdwg.mxu0
      %v2099 = vadd.f32 %v2000, %v2094
      %2100 = vmatprep.subr.bf16.mxu0 0
      %2101 = vmatpush1.bf16.xpose.msra.mxu0 0
      %2102 = vmatprep.subr.bf16.mxu0 0
      %2103 = vmatpush1.bf16.xpose.msra.mxu0 0
      %2104 = vmatprep.subr.bf16.mxu0 0
      %2105 = vmatpush1.bf16.xpose.msra.mxu0 0
      %2106 = vmatprep.subr.bf16.mxu0 0
      %2107 = vmatpush1.bf16.xpose.msra.mxu0 0
      %2108 = vmatprep.subr.bf16.mxu0 0
      %2109 = vmatpush1.bf16.xpose.msra.mxu0 0
      %2110 = vmatprep.subr.bf16.mxu0 0
      %2111 = vmatpush1.bf16.xpose.msra.mxu0 0
      %2112 = vmatprep.subr.bf16.mxu0 0
      %2113 = vmatpush1.bf16.xpose.msra.mxu0 0
      %2114 = vmatprep.subr.bf16.mxu0 0
      %2115 = vmatpush1.bf16.xpose.msra.mxu0 %v351
      %2116 = vmatprep.subr.bf16.mxu0 0
      %2117 = vmatpush2.bf16.xpose.msra.mxu0 0
      %2118 = vmatprep.subr.bf16.mxu0 0
      %2119 = vmatpush2.bf16.xpose.msra.mxu0 0
      %2120 = vmatprep.subr.bf16.mxu0 0
      %2121 = vmatpush2.bf16.xpose.msra.mxu0 0
      %2122 = vmatprep.subr.bf16.mxu0 0
      %2123 = vmatpush2.bf16.xpose.msra.mxu0 0
      %2124 = vmatprep.subr.bf16.mxu0 0
      %2125 = vmatpush2.bf16.xpose.msra.mxu0 0
      %2126 = vmatprep.subr.bf16.mxu0 0
      %2127 = vmatpush2.bf16.xpose.msra.mxu0 0
      %2128 = vmatprep.subr.bf16.mxu0 0
      %2129 = vmatpush2.bf16.xpose.msra.mxu0 0
      %2130 = vmatprep.subr.bf16.mxu0 0
      %2131 = vmatpush2.bf16.xpose.msra.mxu0 0
      %2132 = vmatprep.mubr.bf16.mxu0 0
      %2133 = vmatmul.mubr.bf16.gmra.mxu0 %v948
      %v2134 = vpop.f32.mrf.mxu0
      %v2135 = vadd.f32 0.0, %v2134
      %v2136 = vpop.f32.mrf.mxu0
      %v2137 = vpop.f32.mrf.mxu0
      %v2138 = vpop.f32.mrf.mxu0
      %2139 = vdwg.mxu0
      %v2140 = vsel %vm1546, %v2135, -inf
      %2141 = vmax.xlane.f32.xlu0 %v2140
      %v2142 = vpop.xlane.xlu0 %2141
      %v2143 = vsub.f32 %v2135, %v2142
      %v2144 = vmul.f32 %v2143, 1.442695
      %v2145 = vpow.pop %v2144
      %v2146 = vsel %vm1546, %v2145, 0.0
      %2147 = vadd.xlane.f32.xlu0 %v2146
      %v2148 = vpop.xlane.xlu0 %2147
      %v2149 = vrcp.pop %v2148
      %v2150 = vmul.f32 %v2145, %v2149
      %v2151 = vpack.c.bf16 %v2150, %v2150
      %v2153 = vsel %vm1546, %v2151, 0
      %v2156 = vsel %vm1614, %v1504, 0
      %2158 = vmatprep.subr.bf16.mxu0 0
      %2159 = vmatpush1.bf16.msra.mxu0 0
      %2160 = vmatprep.subr.bf16.mxu0 0
      %2161 = vmatpush1.bf16.msra.mxu0 0
      %2162 = vmatprep.subr.bf16.mxu0 0
      %2163 = vmatpush1.bf16.msra.mxu0 0
      %2164 = vmatprep.subr.bf16.mxu0 0
      %2165 = vmatpush1.bf16.msra.mxu0 0
      %2166 = vmatprep.subr.bf16.mxu0 0
      %2167 = vmatpush1.bf16.msra.mxu0 0
      %2168 = vmatprep.subr.bf16.mxu0 0
      %2169 = vmatpush1.bf16.msra.mxu0 0
      %2170 = vmatprep.subr.bf16.mxu0 0
      %2171 = vmatpush1.bf16.msra.mxu0 0
      %2172 = vmatprep.subr.bf16.mxu0 0
      %2173 = vmatpush1.bf16.msra.mxu0 %v2156
      %2174 = vmatprep.subr.bf16.mxu0 0
      %2175 = vmatpush2.bf16.msra.mxu0 0
      %2176 = vmatprep.subr.bf16.mxu0 0
      %2177 = vmatpush2.bf16.msra.mxu0 0
      %2178 = vmatprep.subr.bf16.mxu0 0
      %2179 = vmatpush2.bf16.msra.mxu0 0
      %2180 = vmatprep.subr.bf16.mxu0 0
      %2181 = vmatpush2.bf16.msra.mxu0 0
      %2182 = vmatprep.subr.bf16.mxu0 0
      %2183 = vmatpush2.bf16.msra.mxu0 0
      %2184 = vmatprep.subr.bf16.mxu0 0
      %2185 = vmatpush2.bf16.msra.mxu0 0
      %2186 = vmatprep.subr.bf16.mxu0 0
      %2187 = vmatpush2.bf16.msra.mxu0 0
      %2188 = vmatprep.subr.bf16.mxu0 0
      %2189 = vmatpush2.bf16.msra.mxu0 0
      %2190 = vmatprep.mubr.bf16.mxu0 0
      %2191 = vmatmul.mubr.bf16.gmra.mxu0 %v2153
      %v2192 = vpop.f32.mrf.mxu0
      %v2193 = vadd.f32 0.0, %v2192
      %v2194 = vpop.f32.mrf.mxu0
      %v2195 = vpop.f32.mrf.mxu0
      %v2196 = vpop.f32.mrf.mxu0
      %2197 = vdwg.mxu0
      %v2198 = vadd.f32 %v2099, %v2193
      %2199 = vmatprep.subr.bf16.mxu0 0
      %2200 = vmatpush1.bf16.xpose.msra.mxu0 0
      %2201 = vmatprep.subr.bf16.mxu0 0
      %2202 = vmatpush1.bf16.xpose.msra.mxu0 0
      %2203 = vmatprep.subr.bf16.mxu0 0
      %2204 = vmatpush1.bf16.xpose.msra.mxu0 0
      %2205 = vmatprep.subr.bf16.mxu0 0
      %2206 = vmatpush1.bf16.xpose.msra.mxu0 0
      %2207 = vmatprep.subr.bf16.mxu0 0
      %2208 = vmatpush1.bf16.xpose.msra.mxu0 0
      %2209 = vmatprep.subr.bf16.mxu0 0
      %2210 = vmatpush1.bf16.xpose.msra.mxu0 0
      %2211 = vmatprep.subr.bf16.mxu0 0
      %2212 = vmatpush1.bf16.xpose.msra.mxu0 0
      %2213 = vmatprep.subr.bf16.mxu0 0
      %2214 = vmatpush1.bf16.xpose.msra.mxu0 %v351
      %2215 = vmatprep.subr.bf16.mxu0 0
      %2216 = vmatpush2.bf16.xpose.msra.mxu0 0
      %2217 = vmatprep.subr.bf16.mxu0 0
      %2218 = vmatpush2.bf16.xpose.msra.mxu0 0
      %2219 = vmatprep.subr.bf16.mxu0 0
      %2220 = vmatpush2.bf16.xpose.msra.mxu0 0
      %2221 = vmatprep.subr.bf16.mxu0 0
      %2222 = vmatpush2.bf16.xpose.msra.mxu0 0
      %2223 = vmatprep.subr.bf16.mxu0 0
      %2224 = vmatpush2.bf16.xpose.msra.mxu0 0
      %2225 = vmatprep.subr.bf16.mxu0 0
      %2226 = vmatpush2.bf16.xpose.msra.mxu0 0
      %2227 = vmatprep.subr.bf16.mxu0 0
      %2228 = vmatpush2.bf16.xpose.msra.mxu0 0
      %2229 = vmatprep.subr.bf16.mxu0 0
      %2230 = vmatpush2.bf16.xpose.msra.mxu0 0
      %2231 = vmatprep.mubr.bf16.mxu0 0
      %2232 = vmatmul.mubr.bf16.gmra.mxu0 %v949
      %v2233 = vpop.f32.mrf.mxu0
      %v2234 = vadd.f32 0.0, %v2233
      %v2235 = vpop.f32.mrf.mxu0
      %v2236 = vpop.f32.mrf.mxu0
      %v2237 = vpop.f32.mrf.mxu0
      %2238 = vdwg.mxu0
      %v2239 = vsel %vm1546, %v2234, -inf
      %2240 = vmax.xlane.f32.xlu0 %v2239
      %v2241 = vpop.xlane.xlu0 %2240
      %v2242 = vsub.f32 %v2234, %v2241
      %v2243 = vmul.f32 %v2242, 1.442695
      %v2244 = vpow.pop %v2243
      %v2245 = vsel %vm1546, %v2244, 0.0
      %2246 = vadd.xlane.f32.xlu0 %v2245
      %v2247 = vpop.xlane.xlu0 %2246
      %v2248 = vrcp.pop %v2247
      %v2249 = vmul.f32 %v2244, %v2248
      %v2250 = vpack.c.bf16 %v2249, %v2249
      %v2252 = vsel %vm1546, %v2250, 0
      %v2255 = vsel %vm1614, %v1505, 0
      %2257 = vmatprep.subr.bf16.mxu0 0
      %2258 = vmatpush1.bf16.msra.mxu0 0
      %2259 = vmatprep.subr.bf16.mxu0 0
      %2260 = vmatpush1.bf16.msra.mxu0 0
      %2261 = vmatprep.subr.bf16.mxu0 0
      %2262 = vmatpush1.bf16.msra.mxu0 0
      %2263 = vmatprep.subr.bf16.mxu0 0
      %2264 = vmatpush1.bf16.msra.mxu0 0
      %2265 = vmatprep.subr.bf16.mxu0 0
      %2266 = vmatpush1.bf16.msra.mxu0 0
      %2267 = vmatprep.subr.bf16.mxu0 0
      %2268 = vmatpush1.bf16.msra.mxu0 0
      %2269 = vmatprep.subr.bf16.mxu0 0
      %2270 = vmatpush1.bf16.msra.mxu0 0
      %2271 = vmatprep.subr.bf16.mxu0 0
      %2272 = vmatpush1.bf16.msra.mxu0 %v2255
      %2273 = vmatprep.subr.bf16.mxu0 0
      %2274 = vmatpush2.bf16.msra.mxu0 0
      %2275 = vmatprep.subr.bf16.mxu0 0
      %2276 = vmatpush2.bf16.msra.mxu0 0
      %2277 = vmatprep.subr.bf16.mxu0 0
      %2278 = vmatpush2.bf16.msra.mxu0 0
      %2279 = vmatprep.subr.bf16.mxu0 0
      %2280 = vmatpush2.bf16.msra.mxu0 0
      %2281 = vmatprep.subr.bf16.mxu0 0
      %2282 = vmatpush2.bf16.msra.mxu0 0
      %2283 = vmatprep.subr.bf16.mxu0 0
      %2284 = vmatpush2.bf16.msra.mxu0 0
      %2285 = vmatprep.subr.bf16.mxu0 0
      %2286 = vmatpush2.bf16.msra.mxu0 0
      %2287 = vmatprep.subr.bf16.mxu0 0
      %2288 = vmatpush2.bf16.msra.mxu0 0
      %2289 = vmatprep.mubr.bf16.mxu0 0
      %2290 = vmatmul.mubr.bf16.gmra.mxu0 %v2252
      %v2291 = vpop.f32.mrf.mxu0
      %v2292 = vadd.f32 0.0, %v2291
      %v2293 = vpop.f32.mrf.mxu0
      %v2294 = vpop.f32.mrf.mxu0
      %v2295 = vpop.f32.mrf.mxu0
      %2296 = vdwg.mxu0
      %v2297 = vadd.f32 %v2198, %v2292
      %v2298 = vld [vmem:[%s5] sm:$0x1]
      %v2300 = vlaneseq
      %v2301 = vshrl.u32 %v2300, 7
      %v2302 = vsub.s32 0, %v2301
      %v2303 = vrot.slane %v2298, %v2302
      %v2305 = vadd.f32 %v2297, %v2303
      %v2306 = vunpack.c.l.bf16 %v350
      %v2307 = vadd.f32 %v2305, %v2306
      %v2308 = vld [vmem:[%s6] sm:$0x1]
      %v2309 = vld [vmem:[%s7] sm:$0x1]
      %2310 = vadd.xlane.f32.xlu0 %v2307
      %v2311 = vpop.xlane.xlu0 %2310
      %v2312 = vrcp.pop 128.0
      %v2313 = vmul.f32 %v2311, %v2312
      %v2314 = vsub.f32 %v2307, %v2313
      %v2315 = vmul.f32 %v2314, %v2314
      %2316 = vadd.xlane.f32.xlu0 %v2315
      %v2317 = vpop.xlane.xlu0 %2316
      %v2318 = vmul.f32 %v2317, %v2312
      %v2319 = vadd.f32 %v2318, 1e-05
      %v2320 = vrsqrt.pop %v2319
      %v2321 = vmul.f32 %v2314, %v2320
      %v2323 = vlaneseq
      %v2324 = vshrl.u32 %v2323, 7
      %v2325 = vsub.s32 0, %v2324
      %v2326 = vrot.slane %v2308, %v2325
      %v2328 = vmul.f32 %v2321, %v2326
      %v2330 = vlaneseq
      %v2331 = vshrl.u32 %v2330, 7
      %v2332 = vsub.s32 0, %v2331
      %v2333 = vrot.slane %v2309, %v2332
      %v2335 = vadd.f32 %v2328, %v2333
      %v2336 = vpack.c.bf16 %v2335, %v2335
      %2337 = vst [vmem:[%s348] sm:$0xf] %v2336
      %p2338 = scmp.lt.s32.totalorder %s23, 1
      %s2339 = scalar_select %p2338, %s23, 1
      %p2340 = scmp.lt.s32.totalorder %s24, 0
      %s2341 = scalar_select %p2340, %s24, 0
      %s2342 = sadd.s32 %s2341, %s2339
      %s2343 = smul.addr %s2342, 4
      %s2344 = scalar_lea.vmem %s8, %s2343
      // Predicated region
      $region53: #{custom_transformer_forward.9} parent=51 // pred_check
        %p2345 = pneg %p231
      $region54: #{custom_transformer_forward.9} parent=51 // pred_check_branch
        %2347 = sbr.rel (%p2345) target = $region56
      $region55: #{custom_transformer_forward.9} parent=51 // pred_region
        _
      $region56: #{custom_transformer_forward.9} parent=51 // pred_fallthru
        _
    $region52: #{custom_transformer_forward.9} parent=5 // pred_fallthru
      _
    %p2348 = scmp.le.s32.totalorder 2, %s14
    // Predicated region
    $region57: #{custom_transformer_forward.9} parent=5 // pred_check
      %p2349 = pneg %p2348
    $region58: #{custom_transformer_forward.9} parent=5 // pred_check_branch
      %2351 = sbr.rel (%p2349) target = $region60
    $region59: #{custom_transformer_forward.9} parent=5 // pred_region
      %s2352 = ssub.s32 %s14, 2
      // Predicated region
      $region61: #{custom_transformer_forward.9} parent=59 // pred_check
        %p2353 = pneg %p237
      $region62: #{custom_transformer_forward.9} parent=59 // pred_check_branch
        %2355 = sbr.rel (%p2353) target = $region64
      $region63: #{custom_transformer_forward.9} parent=59 // pred_region
        %p2356 = scmp.lt.s32.totalorder %s25, 1
        %s2357 = scalar_select %p2356, %s25, 1
        %p2358 = scmp.lt.s32.totalorder %s26, 0
        %s2359 = scalar_select %p2358, %s26, 0
        %s2360 = sadd.s32 %s2359, %s2357
        %s2361 = smul.addr %s2360, 4
        %s2362 = scalar_lea.vmem %s8, %s2361
      $region64: #{custom_transformer_forward.9} parent=59 // pred_fallthru
        _
    $region60: #{custom_transformer_forward.9} parent=5 // pred_fallthru
      _
  $region6: #{custom_transformer_forward.9} parent=0 // loop_footer
    %s18 = sadd.s32 1, %s14
  $region7: #{custom_transformer_forward.9} parent=0 // loop_footer_branch
    %13 = sbr.rel target = $region3
  $region8: #{custom_transformer_forward.9} parent=0 // loop_exit
    _

// kernel: custom_transformer_forward.11
$region0: #{custom_transformer_forward.11}
  #allocation0 [shape = 'u32[]', space=smem, size = 0x4, offset = 0x4, fixed_abs, tag = 'smem constant byte address 0x4 - core index']
  #allocation1 [shape = 'u32[144,128]{1,0:T(1,128)}', space=vmem, size = 0x12000, scoped, tag = 'internal scratch']
  %s0 = inlined_call_operand.vmem [shape: bf16[16,128], index: 0, kind: input, shape index: {}]
  %s1 = inlined_call_operand.vmem [shape: f32[1,128], index: 1, kind: input, shape index: {}]
  %s2 = inlined_call_operand.vmem [shape: f32[1,128], index: 2, kind: input, shape index: {}]
  %s3 = inlined_call_operand.vmem [shape: bf16[128,128], index: 3, kind: input, shape index: {}]
  %s4 = inlined_call_operand.vmem [shape: f32[1,128], index: 4, kind: input, shape index: {}]
  %s5 = inlined_call_operand.vmem [shape: f32[16,128], index: 5, kind: output, shape index: {}]
  %s6 = sld [smem:[#allocation0]]
  $region30: #{custom_transformer_forward.11} parent=0
    _
  %s8 = ssub.s32 1, %s6
  %s9 = scalar_select 0, %s8, %s6
  // Predicated region
  $region2: #{custom_transformer_forward.11} parent=0 // pred_check
    _
  $region3: #{custom_transformer_forward.11} parent=0 // pred_check_branch
    %11 = sbr.rel (0) target = $region5
  $region4: #{custom_transformer_forward.11} parent=0 // pred_region
    _
  $region5: #{custom_transformer_forward.11} parent=0 // pred_fallthru
    _
  // Predicated region
  $region6: #{custom_transformer_forward.11} parent=0 // pred_check
    _
  $region7: #{custom_transformer_forward.11} parent=0 // pred_check_branch
    %13 = sbr.rel (0) target = $region9
  $region8: #{custom_transformer_forward.11} parent=0 // pred_region
    _
  $region9: #{custom_transformer_forward.11} parent=0 // pred_fallthru
    _
  // Predicated region
  $region10: #{custom_transformer_forward.11} parent=0 // pred_check
    _
  $region11: #{custom_transformer_forward.11} parent=0 // pred_check_branch
    %15 = sbr.rel (0) target = $region13
  $region12: #{custom_transformer_forward.11} parent=0 // pred_region
    _
  $region13: #{custom_transformer_forward.11} parent=0 // pred_fallthru
    _
  // Predicated region
  $region14: #{custom_transformer_forward.11} parent=0 // pred_check
    _
  $region15: #{custom_transformer_forward.11} parent=0 // pred_check_branch
    %17 = sbr.rel (0) target = $region17
  $region16: #{custom_transformer_forward.11} parent=0 // pred_region
    _
  $region17: #{custom_transformer_forward.11} parent=0 // pred_fallthru
    _
  // Predicated region
  $region18: #{custom_transformer_forward.11} parent=0 // pred_check
    _
  $region19: #{custom_transformer_forward.11} parent=0 // pred_check_branch
    %19 = sbr.rel (0) target = $region21
  $region20: #{custom_transformer_forward.11} parent=0 // pred_region
    _
  $region21: #{custom_transformer_forward.11} parent=0 // pred_fallthru
    _
  %v21 = vld [vmem:[%s0] sm:$0xf]
  %v22 = vld [vmem:[%s0 + $0x4] sm:$0xf]
  %v23 = vunpack.c.l.bf16 %v21
  %v24 = vunpack.c.l.bf16 %v22
  %v25 = vld [vmem:[%s1] sm:$0x1]
  %v26 = vld [vmem:[%s2] sm:$0x1]
  %27 = vadd.xlane.f32.xlu0 %v23
  %v28 = vpop.xlane.xlu0 %27
  %29 = vadd.xlane.f32.xlu0 %v24
  %v30 = vpop.xlane.xlu0 %29
  %v31 = vrcp.pop 128.0
  %v32 = vmul.f32 %v28, %v31
  %v33 = vmul.f32 %v30, %v31
  %v34 = vsub.f32 %v23, %v32
  %v35 = vsub.f32 %v24, %v33
  %v36 = vmul.f32 %v34, %v34
  %v37 = vmul.f32 %v35, %v35
  %38 = vadd.xlane.f32.xlu0 %v36
  %v39 = vpop.xlane.xlu0 %38
  %40 = vadd.xlane.f32.xlu0 %v37
  %v41 = vpop.xlane.xlu0 %40
  %v42 = vmul.f32 %v39, %v31
  %v43 = vmul.f32 %v41, %v31
  %v44 = vadd.f32 %v42, 1e-05
  %v45 = vadd.f32 %v43, 1e-05
  %v46 = vrsqrt.pop %v44
  %v47 = vrsqrt.pop %v45
  %v48 = vmul.f32 %v34, %v46
  %v49 = vmul.f32 %v35, %v47
  %v51 = vlaneseq
  %v52 = vshrl.u32 %v51, 7
  %v53 = vsub.s32 0, %v52
  %v54 = vrot.slane %v25, %v53
  %v56 = vmul.f32 %v48, %v54
  %v57 = vmul.f32 %v49, %v54
  %v59 = vlaneseq
  %v60 = vshrl.u32 %v59, 7
  %v61 = vsub.s32 0, %v60
  %v62 = vrot.slane %v26, %v61
  %v64 = vadd.f32 %v56, %v62
  %v65 = vadd.f32 %v57, %v62
  %v66 = vpack.c.bf16 %v65, %v64
  %v67 = vld [vmem:[%s3] sm:$0xf]
  %v68 = vld [vmem:[%s3 + $0x4] sm:$0xf]
  %v69 = vld [vmem:[%s3 + $0x8] sm:$0xf]
  %v70 = vld [vmem:[%s3 + $0xc] sm:$0xf]
  %v71 = vld [vmem:[%s3 + $0x10] sm:$0xf]
  %v72 = vld [vmem:[%s3 + $0x14] sm:$0xf]
  %v73 = vld [vmem:[%s3 + $0x18] sm:$0xf]
  %v74 = vld [vmem:[%s3 + $0x1c] sm:$0xf]
  %v75 = vld [vmem:[%s3 + $0x20] sm:$0xf]
  %v76 = vld [vmem:[%s3 + $0x24] sm:$0xf]
  %v77 = vld [vmem:[%s3 + $0x28] sm:$0xf]
  %v78 = vld [vmem:[%s3 + $0x2c] sm:$0xf]
  %v79 = vld [vmem:[%s3 + $0x30] sm:$0xf]
  %v80 = vld [vmem:[%s3 + $0x34] sm:$0xf]
  %v81 = vld [vmem:[%s3 + $0x38] sm:$0xf]
  %v82 = vld [vmem:[%s3 + $0x3c] sm:$0xf]
  %v83 = vld [vmem:[%s4] sm:$0x1]
  %v85 = vlaneseq
  %v86 = vshrl.u32 %v85, 7
  %v87 = vsub.s32 0, %v86
  %v88 = vrot.slane %v83, %v87
  %v106 = vunpack.c.l.b16 %v67
  %v107 = vunpack.c.l.b16 %v68
  %v108 = vunpack.c.l.b16 %v69
  %v109 = vunpack.c.l.b16 %v70
  %v110 = vunpack.c.l.b16 %v71
  %v111 = vunpack.c.l.b16 %v72
  %v112 = vunpack.c.l.b16 %v73
  %v113 = vunpack.c.l.b16 %v74
  %v114 = vunpack.c.l.b16 %v75
  %v115 = vunpack.c.l.b16 %v76
  %v116 = vunpack.c.l.b16 %v77
  %v117 = vunpack.c.l.b16 %v78
  %v118 = vunpack.c.l.b16 %v79
  %v119 = vunpack.c.l.b16 %v80
  %v120 = vunpack.c.l.b16 %v81
  %v121 = vunpack.c.l.b16 %v82
  %v122 = vpack.c.b16 %v107, %v106
  %v123 = vpack.c.b16 %v109, %v108
  %v124 = vpack.c.b16 %v111, %v110
  %v125 = vpack.c.b16 %v113, %v112
  %v126 = vpack.c.b16 %v115, %v114
  %v127 = vpack.c.b16 %v117, %v116
  %v128 = vpack.c.b16 %v119, %v118
  %v129 = vpack.c.b16 %v121, %v120
  %138 = vmatprep.subr.bf16.mxu0 0
  %139 = vmatpush1.bf16.msra.mxu0 %v129
  %140 = vmatprep.subr.bf16.mxu0 0
  %141 = vmatpush1.bf16.msra.mxu0 %v128
  %142 = vmatprep.subr.bf16.mxu0 0
  %143 = vmatpush1.bf16.msra.mxu0 %v127
  %144 = vmatprep.subr.bf16.mxu0 0
  %145 = vmatpush1.bf16.msra.mxu0 %v126
  %146 = vmatprep.subr.bf16.mxu0 0
  %147 = vmatpush1.bf16.msra.mxu0 %v125
  %148 = vmatprep.subr.bf16.mxu0 0
  %149 = vmatpush1.bf16.msra.mxu0 %v124
  %150 = vmatprep.subr.bf16.mxu0 0
  %151 = vmatpush1.bf16.msra.mxu0 %v123
  %152 = vmatprep.subr.bf16.mxu0 0
  %153 = vmatpush1.bf16.msra.mxu0 %v122
  %154 = vmatprep.subr.bf16.mxu0 0
  %155 = vmatpush2.bf16.msra.mxu0 0
  %156 = vmatprep.subr.bf16.mxu0 0
  %157 = vmatpush2.bf16.msra.mxu0 0
  %158 = vmatprep.subr.bf16.mxu0 0
  %159 = vmatpush2.bf16.msra.mxu0 0
  %160 = vmatprep.subr.bf16.mxu0 0
  %161 = vmatpush2.bf16.msra.mxu0 0
  %162 = vmatprep.subr.bf16.mxu0 0
  %163 = vmatpush2.bf16.msra.mxu0 0
  %164 = vmatprep.subr.bf16.mxu0 0
  %165 = vmatpush2.bf16.msra.mxu0 0
  %166 = vmatprep.subr.bf16.mxu0 0
  %167 = vmatpush2.bf16.msra.mxu0 0
  %168 = vmatprep.subr.bf16.mxu0 0
  %169 = vmatpush2.bf16.msra.mxu0 0
  %170 = vmatprep.mubr.bf16.mxu0 0
  %171 = vmatmul.mubr.bf16.gmra.mxu0 %v66
  %v172 = vpop.f32.mrf.mxu0
  %v173 = vadd.f32 %v88, %v172
  %v174 = vpop.f32.mrf.mxu0
  %v175 = vpop.f32.mrf.mxu0
  %v176 = vadd.f32 %v88, %v175
  %v177 = vpop.f32.mrf.mxu0
  %178 = vdwg.mxu0
  %179 = vst [vmem:[%s5] sm:$0xff] %v173
  %180 = vst [vmem:[%s5 + $0x8] sm:$0xff] %v176
  // Predicated region
  $region22: #{custom_transformer_forward.11} parent=0 // pred_check
    _
  $region23: #{custom_transformer_forward.11} parent=0 // pred_check_branch
    %182 = sbr.rel (0) target = $region25
  $region24: #{custom_transformer_forward.11} parent=0 // pred_region
    _
  $region25: #{custom_transformer_forward.11} parent=0 // pred_fallthru
    _
  // Predicated region
  $region26: #{custom_transformer_forward.11} parent=0 // pred_check
    _
  $region27: #{custom_transformer_forward.11} parent=0 // pred_check_branch
    %184 = sbr.rel (0) target = $region29
  $region28: #{custom_transformer_forward.11} parent=0 // pred_region
    _
  $region29: #{custom_transformer_forward.11} parent=0 // pred_fallthru
    _

// kernel: custom_transformer_forward.10
$region0: #{custom_transformer_forward.10}
  #allocation0 [shape = 'u32[]', space=smem, size = 0x4, offset = 0x4, fixed_abs, tag = 'smem constant byte address 0x4 - core index']
  #allocation1 [shape = 'u32[144,128]{1,0:T(1,128)}', space=vmem, size = 0x12000, scoped, tag = 'internal scratch']
  %s0 = inlined_call_operand.vmem [shape: bf16[16,128], index: 0, kind: input, shape index: {}]
  %s1 = inlined_call_operand.vmem [shape: bf16[128,2048], index: 1, kind: input, shape index: {}]
  %s2 = inlined_call_operand.vmem [shape: f32[1,2048], index: 2, kind: input, shape index: {}]
  %s3 = inlined_call_operand.vmem [shape: bf16[2048,128], index: 3, kind: input, shape index: {}]
  %s4 = inlined_call_operand.vmem [shape: f32[1,128], index: 4, kind: input, shape index: {}]
  %s5 = inlined_call_operand.vmem [shape: f32[1,128], index: 5, kind: input, shape index: {}]
  %s6 = inlined_call_operand.vmem [shape: f32[1,128], index: 6, kind: input, shape index: {}]
  %s7 = inlined_call_operand.vmem [shape: bf16[16,128], index: 7, kind: output, shape index: {}]
  %s8 = sld [smem:[#allocation0]]
  $region38: #{custom_transformer_forward.10} parent=0
    _
  %s10 = ssub.s32 1, %s8
  %s11 = scalar_select 0, %s10, %s8
  // Predicated region
  $region2: #{custom_transformer_forward.10} parent=0 // pred_check
    _
  $region3: #{custom_transformer_forward.10} parent=0 // pred_check_branch
    %13 = sbr.rel (0) target = $region5
  $region4: #{custom_transformer_forward.10} parent=0 // pred_region
    _
  $region5: #{custom_transformer_forward.10} parent=0 // pred_fallthru
    _
  // Predicated region
  $region6: #{custom_transformer_forward.10} parent=0 // pred_check
    _
  $region7: #{custom_transformer_forward.10} parent=0 // pred_check_branch
    %15 = sbr.rel (0) target = $region9
  $region8: #{custom_transformer_forward.10} parent=0 // pred_region
    _
  $region9: #{custom_transformer_forward.10} parent=0 // pred_fallthru
    _
  // Predicated region
  $region10: #{custom_transformer_forward.10} parent=0 // pred_check
    _
  $region11: #{custom_transformer_forward.10} parent=0 // pred_check_branch
    %17 = sbr.rel (0) target = $region13
  $region12: #{custom_transformer_forward.10} parent=0 // pred_region
    _
  $region13: #{custom_transformer_forward.10} parent=0 // pred_fallthru
    _
  // Predicated region
  $region14: #{custom_transformer_forward.10} parent=0 // pred_check
    _
  $region15: #{custom_transformer_forward.10} parent=0 // pred_check_branch
    %19 = sbr.rel (0) target = $region17
  $region16: #{custom_transformer_forward.10} parent=0 // pred_region
    _
  $region17: #{custom_transformer_forward.10} parent=0 // pred_fallthru
    _
  // Predicated region
  $region18: #{custom_transformer_forward.10} parent=0 // pred_check
    _
  $region19: #{custom_transformer_forward.10} parent=0 // pred_check_branch
    %21 = sbr.rel (0) target = $region21
  $region20: #{custom_transformer_forward.10} parent=0 // pred_region
    _
  $region21: #{custom_transformer_forward.10} parent=0 // pred_fallthru
    _
  // Predicated region
  $region22: #{custom_transformer_forward.10} parent=0 // pred_check
    _
  $region23: #{custom_transformer_forward.10} parent=0 // pred_check_branch
    %23 = sbr.rel (0) target = $region25
  $region24: #{custom_transformer_forward.10} parent=0 // pred_region
    _
  $region25: #{custom_transformer_forward.10} parent=0 // pred_fallthru
    _
  // Predicated region
  $region26: #{custom_transformer_forward.10} parent=0 // pred_check
    _
  $region27: #{custom_transformer_forward.10} parent=0 // pred_check_branch
    %25 = sbr.rel (0) target = $region29
  $region28: #{custom_transformer_forward.10} parent=0 // pred_region
    _
  $region29: #{custom_transformer_forward.10} parent=0 // pred_fallthru
    _
  %v27 = vld [vmem:[%s0] sm:$0xf]
  %v28 = vld [vmem:[%s0 + $0x4] sm:$0xf]
  %v29 = vld [vmem:[%s1] sm:$0xff]
  %v30 = vld [vmem:[%s1 + $0x8] sm:$0xff]
  %v31 = vld [vmem:[%s1 + $0x10] sm:$0xff]
  %v32 = vld [vmem:[%s1 + $0x18] sm:$0xff]
  %v33 = vld [vmem:[%s1 + $0x20] sm:$0xff]
  %v34 = vld [vmem:[%s1 + $0x28] sm:$0xff]
  %v35 = vld [vmem:[%s1 + $0x30] sm:$0xff]
  %v36 = vld [vmem:[%s1 + $0x38] sm:$0xff]
  %v37 = vld [vmem:[%s1 + $0x40] sm:$0xff]
  %v38 = vld [vmem:[%s1 + $0x48] sm:$0xff]
  %v39 = vld [vmem:[%s1 + $0x50] sm:$0xff]
  %v40 = vld [vmem:[%s1 + $0x58] sm:$0xff]
  %v41 = vld [vmem:[%s1 + $0x60] sm:$0xff]
  %v42 = vld [vmem:[%s1 + $0x68] sm:$0xff]
  %v43 = vld [vmem:[%s1 + $0x70] sm:$0xff]
  %v44 = vld [vmem:[%s1 + $0x78] sm:$0xff]
  %v45 = vld [vmem:[%s1 + $0x80] sm:$0xff]
  %v46 = vld [vmem:[%s1 + $0x88] sm:$0xff]
  %v47 = vld [vmem:[%s1 + $0x90] sm:$0xff]
  %v48 = vld [vmem:[%s1 + $0x98] sm:$0xff]
  %v49 = vld [vmem:[%s1 + $0xa0] sm:$0xff]
  %v50 = vld [vmem:[%s1 + $0xa8] sm:$0xff]
  %v51 = vld [vmem:[%s1 + $0xb0] sm:$0xff]
  %v52 = vld [vmem:[%s1 + $0xb8] sm:$0xff]
  %v53 = vld [vmem:[%s1 + $0xc0] sm:$0xff]
  %v54 = vld [vmem:[%s1 + $0xc8] sm:$0xff]
  %v55 = vld [vmem:[%s1 + $0xd0] sm:$0xff]
  %v56 = vld [vmem:[%s1 + $0xd8] sm:$0xff]
  %v57 = vld [vmem:[%s1 + $0xe0] sm:$0xff]
  %v58 = vld [vmem:[%s1 + $0xe8] sm:$0xff]
  %v59 = vld [vmem:[%s1 + $0xf0] sm:$0xff]
  %v60 = vld [vmem:[%s1 + $0xf8] sm:$0xff]
  %v61 = vld [vmem:[%s1 + $0x100] sm:$0xff]
  %v62 = vld [vmem:[%s1 + $0x108] sm:$0xff]
  %v63 = vld [vmem:[%s1 + $0x110] sm:$0xff]
  %v64 = vld [vmem:[%s1 + $0x118] sm:$0xff]
  %v65 = vld [vmem:[%s1 + $0x120] sm:$0xff]
  %v66 = vld [vmem:[%s1 + $0x128] sm:$0xff]
  %v67 = vld [vmem:[%s1 + $0x130] sm:$0xff]
  %v68 = vld [vmem:[%s1 + $0x138] sm:$0xff]
  %v69 = vld [vmem:[%s1 + $0x140] sm:$0xff]
  %v70 = vld [vmem:[%s1 + $0x148] sm:$0xff]
  %v71 = vld [vmem:[%s1 + $0x150] sm:$0xff]
  %v72 = vld [vmem:[%s1 + $0x158] sm:$0xff]
  %v73 = vld [vmem:[%s1 + $0x160] sm:$0xff]
  %v74 = vld [vmem:[%s1 + $0x168] sm:$0xff]
  %v75 = vld [vmem:[%s1 + $0x170] sm:$0xff]
  %v76 = vld [vmem:[%s1 + $0x178] sm:$0xff]
  %v77 = vld [vmem:[%s1 + $0x180] sm:$0xff]
  %v78 = vld [vmem:[%s1 + $0x188] sm:$0xff]
  %v79 = vld [vmem:[%s1 + $0x190] sm:$0xff]
  %v80 = vld [vmem:[%s1 + $0x198] sm:$0xff]
  %v81 = vld [vmem:[%s1 + $0x1a0] sm:$0xff]
  %v82 = vld [vmem:[%s1 + $0x1a8] sm:$0xff]
  %v83 = vld [vmem:[%s1 + $0x1b0] sm:$0xff]
  %v84 = vld [vmem:[%s1 + $0x1b8] sm:$0xff]
  %v85 = vld [vmem:[%s1 + $0x1c0] sm:$0xff]
  %v86 = vld [vmem:[%s1 + $0x1c8] sm:$0xff]
  %v87 = vld [vmem:[%s1 + $0x1d0] sm:$0xff]
  %v88 = vld [vmem:[%s1 + $0x1d8] sm:$0xff]
  %v89 = vld [vmem:[%s1 + $0x1e0] sm:$0xff]
  %v90 = vld [vmem:[%s1 + $0x1e8] sm:$0xff]
  %v91 = vld [vmem:[%s1 + $0x1f0] sm:$0xff]
  %v92 = vld [vmem:[%s1 + $0x1f8] sm:$0xff]
  %v93 = vld [vmem:[%s1 + $0x200] sm:$0xff]
  %v94 = vld [vmem:[%s1 + $0x208] sm:$0xff]
  %v95 = vld [vmem:[%s1 + $0x210] sm:$0xff]
  %v96 = vld [vmem:[%s1 + $0x218] sm:$0xff]
  %v97 = vld [vmem:[%s1 + $0x220] sm:$0xff]
  %v98 = vld [vmem:[%s1 + $0x228] sm:$0xff]
  %v99 = vld [vmem:[%s1 + $0x230] sm:$0xff]
  %v100 = vld [vmem:[%s1 + $0x238] sm:$0xff]
  %v101 = vld [vmem:[%s1 + $0x240] sm:$0xff]
  %v102 = vld [vmem:[%s1 + $0x248] sm:$0xff]
  %v103 = vld [vmem:[%s1 + $0x250] sm:$0xff]
  %v104 = vld [vmem:[%s1 + $0x258] sm:$0xff]
  %v105 = vld [vmem:[%s1 + $0x260] sm:$0xff]
  %v106 = vld [vmem:[%s1 + $0x268] sm:$0xff]
  %v107 = vld [vmem:[%s1 + $0x270] sm:$0xff]
  %v108 = vld [vmem:[%s1 + $0x278] sm:$0xff]
  %v109 = vld [vmem:[%s1 + $0x280] sm:$0xff]
  %v110 = vld [vmem:[%s1 + $0x288] sm:$0xff]
  %v111 = vld [vmem:[%s1 + $0x290] sm:$0xff]
  %v112 = vld [vmem:[%s1 + $0x298] sm:$0xff]
  %v113 = vld [vmem:[%s1 + $0x2a0] sm:$0xff]
  %v114 = vld [vmem:[%s1 + $0x2a8] sm:$0xff]
  %v115 = vld [vmem:[%s1 + $0x2b0] sm:$0xff]
  %v116 = vld [vmem:[%s1 + $0x2b8] sm:$0xff]
  %v117 = vld [vmem:[%s1 + $0x2c0] sm:$0xff]
  %v118 = vld [vmem:[%s1 + $0x2c8] sm:$0xff]
  %v119 = vld [vmem:[%s1 + $0x2d0] sm:$0xff]
  %v120 = vld [vmem:[%s1 + $0x2d8] sm:$0xff]
  %v121 = vld [vmem:[%s1 + $0x2e0] sm:$0xff]
  %v122 = vld [vmem:[%s1 + $0x2e8] sm:$0xff]
  %v123 = vld [vmem:[%s1 + $0x2f0] sm:$0xff]
  %v124 = vld [vmem:[%s1 + $0x2f8] sm:$0xff]
  %v125 = vld [vmem:[%s1 + $0x300] sm:$0xff]
  %v126 = vld [vmem:[%s1 + $0x308] sm:$0xff]
  %v127 = vld [vmem:[%s1 + $0x310] sm:$0xff]
  %v128 = vld [vmem:[%s1 + $0x318] sm:$0xff]
  %v129 = vld [vmem:[%s1 + $0x320] sm:$0xff]
  %v130 = vld [vmem:[%s1 + $0x328] sm:$0xff]
  %v131 = vld [vmem:[%s1 + $0x330] sm:$0xff]
  %v132 = vld [vmem:[%s1 + $0x338] sm:$0xff]
  %v133 = vld [vmem:[%s1 + $0x340] sm:$0xff]
  %v134 = vld [vmem:[%s1 + $0x348] sm:$0xff]
  %v135 = vld [vmem:[%s1 + $0x350] sm:$0xff]
  %v136 = vld [vmem:[%s1 + $0x358] sm:$0xff]
  %v137 = vld [vmem:[%s1 + $0x360] sm:$0xff]
  %v138 = vld [vmem:[%s1 + $0x368] sm:$0xff]
  %v139 = vld [vmem:[%s1 + $0x370] sm:$0xff]
  %v140 = vld [vmem:[%s1 + $0x378] sm:$0xff]
  %v141 = vld [vmem:[%s1 + $0x380] sm:$0xff]
  %v142 = vld [vmem:[%s1 + $0x388] sm:$0xff]
  %v143 = vld [vmem:[%s1 + $0x390] sm:$0xff]
  %v144 = vld [vmem:[%s1 + $0x398] sm:$0xff]
  %v145 = vld [vmem:[%s1 + $0x3a0] sm:$0xff]
  %v146 = vld [vmem:[%s1 + $0x3a8] sm:$0xff]
  %v147 = vld [vmem:[%s1 + $0x3b0] sm:$0xff]
  %v148 = vld [vmem:[%s1 + $0x3b8] sm:$0xff]
  %v149 = vld [vmem:[%s1 + $0x3c0] sm:$0xff]
  %v150 = vld [vmem:[%s1 + $0x3c8] sm:$0xff]
  %v151 = vld [vmem:[%s1 + $0x3d0] sm:$0xff]
  %v152 = vld [vmem:[%s1 + $0x3d8] sm:$0xff]
  %v153 = vld [vmem:[%s1 + $0x3e0] sm:$0xff]
  %v154 = vld [vmem:[%s1 + $0x3e8] sm:$0xff]
  %v155 = vld [vmem:[%s1 + $0x3f0] sm:$0xff]
  %v156 = vld [vmem:[%s1 + $0x3f8] sm:$0xff]
  %v157 = vld [vmem:[%s2] sm:$0xff]
  %v158 = vld [vmem:[%s2 + $0x8] sm:$0xff]
  %v161 = vlaneseq
  %v162 = vshrl.u32 %v161, 7
  %v163 = vsub.s32 0, %v162
  %v164 = vrot.slane %v157, %v163
  %v165 = vlaneseq
  %v166 = vshrl.u32 %v165, 7
  %v167 = vsub.s32 1, %v166
  %v168 = vrot.slane %v157, %v167
  %v169 = vlaneseq
  %v170 = vshrl.u32 %v169, 7
  %v171 = vsub.s32 2, %v170
  %v172 = vrot.slane %v157, %v171
  %v173 = vlaneseq
  %v174 = vshrl.u32 %v173, 7
  %v175 = vsub.s32 3, %v174
  %v176 = vrot.slane %v157, %v175
  %v177 = vlaneseq
  %v178 = vshrl.u32 %v177, 7
  %v179 = vsub.s32 4, %v178
  %v180 = vrot.slane %v157, %v179
  %v181 = vlaneseq
  %v182 = vshrl.u32 %v181, 7
  %v183 = vsub.s32 5, %v182
  %v184 = vrot.slane %v157, %v183
  %v185 = vlaneseq
  %v186 = vshrl.u32 %v185, 7
  %v187 = vsub.s32 6, %v186
  %v188 = vrot.slane %v157, %v187
  %v189 = vlaneseq
  %v190 = vshrl.u32 %v189, 7
  %v191 = vsub.s32 7, %v190
  %v192 = vrot.slane %v157, %v191
  %v193 = vlaneseq
  %v194 = vshrl.u32 %v193, 7
  %v195 = vsub.s32 0, %v194
  %v196 = vrot.slane %v158, %v195
  %v197 = vlaneseq
  %v198 = vshrl.u32 %v197, 7
  %v199 = vsub.s32 1, %v198
  %v200 = vrot.slane %v158, %v199
  %v201 = vlaneseq
  %v202 = vshrl.u32 %v201, 7
  %v203 = vsub.s32 2, %v202
  %v204 = vrot.slane %v158, %v203
  %v205 = vlaneseq
  %v206 = vshrl.u32 %v205, 7
  %v207 = vsub.s32 3, %v206
  %v208 = vrot.slane %v158, %v207
  %v209 = vlaneseq
  %v210 = vshrl.u32 %v209, 7
  %v211 = vsub.s32 4, %v210
  %v212 = vrot.slane %v158, %v211
  %v213 = vlaneseq
  %v214 = vshrl.u32 %v213, 7
  %v215 = vsub.s32 5, %v214
  %v216 = vrot.slane %v158, %v215
  %v217 = vlaneseq
  %v218 = vshrl.u32 %v217, 7
  %v219 = vsub.s32 6, %v218
  %v220 = vrot.slane %v158, %v219
  %v221 = vlaneseq
  %v222 = vshrl.u32 %v221, 7
  %v223 = vsub.s32 7, %v222
  %v224 = vrot.slane %v158, %v223
  %v243 = vunpack.c.l.b16 %v27
  %v244 = vunpack.c.l.b16 %v28
  %v245 = vpack.c.b16 %v244, %v243
  %v375 = vunpack.c.l.b16 %v29
  %v376 = vunpack.c.h.b16 %v29
  %v377 = vunpack.c.l.b16 %v30
  %v378 = vunpack.c.h.b16 %v30
  %v379 = vunpack.c.l.b16 %v31
  %v380 = vunpack.c.h.b16 %v31
  %v381 = vunpack.c.l.b16 %v32
  %v382 = vunpack.c.h.b16 %v32
  %v383 = vunpack.c.l.b16 %v33
  %v384 = vunpack.c.h.b16 %v33
  %v385 = vunpack.c.l.b16 %v34
  %v386 = vunpack.c.h.b16 %v34
  %v387 = vunpack.c.l.b16 %v35
  %v388 = vunpack.c.h.b16 %v35
  %v389 = vunpack.c.l.b16 %v36
  %v390 = vunpack.c.h.b16 %v36
  %v391 = vunpack.c.l.b16 %v37
  %v392 = vunpack.c.h.b16 %v37
  %v393 = vunpack.c.l.b16 %v38
  %v394 = vunpack.c.h.b16 %v38
  %v395 = vunpack.c.l.b16 %v39
  %v396 = vunpack.c.h.b16 %v39
  %v397 = vunpack.c.l.b16 %v40
  %v398 = vunpack.c.h.b16 %v40
  %v399 = vunpack.c.l.b16 %v41
  %v400 = vunpack.c.h.b16 %v41
  %v401 = vunpack.c.l.b16 %v42
  %v402 = vunpack.c.h.b16 %v42
  %v403 = vunpack.c.l.b16 %v43
  %v404 = vunpack.c.h.b16 %v43
  %v405 = vunpack.c.l.b16 %v44
  %v406 = vunpack.c.h.b16 %v44
  %v407 = vunpack.c.l.b16 %v45
  %v408 = vunpack.c.h.b16 %v45
  %v409 = vunpack.c.l.b16 %v46
  %v410 = vunpack.c.h.b16 %v46
  %v411 = vunpack.c.l.b16 %v47
  %v412 = vunpack.c.h.b16 %v47
  %v413 = vunpack.c.l.b16 %v48
  %v414 = vunpack.c.h.b16 %v48
  %v415 = vunpack.c.l.b16 %v49
  %v416 = vunpack.c.h.b16 %v49
  %v417 = vunpack.c.l.b16 %v50
  %v418 = vunpack.c.h.b16 %v50
  %v419 = vunpack.c.l.b16 %v51
  %v420 = vunpack.c.h.b16 %v51
  %v421 = vunpack.c.l.b16 %v52
  %v422 = vunpack.c.h.b16 %v52
  %v423 = vunpack.c.l.b16 %v53
  %v424 = vunpack.c.h.b16 %v53
  %v425 = vunpack.c.l.b16 %v54
  %v426 = vunpack.c.h.b16 %v54
  %v427 = vunpack.c.l.b16 %v55
  %v428 = vunpack.c.h.b16 %v55
  %v429 = vunpack.c.l.b16 %v56
  %v430 = vunpack.c.h.b16 %v56
  %v431 = vunpack.c.l.b16 %v57
  %v432 = vunpack.c.h.b16 %v57
  %v433 = vunpack.c.l.b16 %v58
  %v434 = vunpack.c.h.b16 %v58
  %v435 = vunpack.c.l.b16 %v59
  %v436 = vunpack.c.h.b16 %v59
  %v437 = vunpack.c.l.b16 %v60
  %v438 = vunpack.c.h.b16 %v60
  %v439 = vunpack.c.l.b16 %v61
  %v440 = vunpack.c.h.b16 %v61
  %v441 = vunpack.c.l.b16 %v62
  %v442 = vunpack.c.h.b16 %v62
  %v443 = vunpack.c.l.b16 %v63
  %v444 = vunpack.c.h.b16 %v63
  %v445 = vunpack.c.l.b16 %v64
  %v446 = vunpack.c.h.b16 %v64
  %v447 = vunpack.c.l.b16 %v65
  %v448 = vunpack.c.h.b16 %v65
  %v449 = vunpack.c.l.b16 %v66
  %v450 = vunpack.c.h.b16 %v66
  %v451 = vunpack.c.l.b16 %v67
  %v452 = vunpack.c.h.b16 %v67
  %v453 = vunpack.c.l.b16 %v68
  %v454 = vunpack.c.h.b16 %v68
  %v455 = vunpack.c.l.b16 %v69
  %v456 = vunpack.c.h.b16 %v69
  %v457 = vunpack.c.l.b16 %v70
  %v458 = vunpack.c.h.b16 %v70
  %v459 = vunpack.c.l.b16 %v71
  %v460 = vunpack.c.h.b16 %v71
  %v461 = vunpack.c.l.b16 %v72
  %v462 = vunpack.c.h.b16 %v72
  %v463 = vunpack.c.l.b16 %v73
  %v464 = vunpack.c.h.b16 %v73
  %v465 = vunpack.c.l.b16 %v74
  %v466 = vunpack.c.h.b16 %v74
  %v467 = vunpack.c.l.b16 %v75
  %v468 = vunpack.c.h.b16 %v75
  %v469 = vunpack.c.l.b16 %v76
  %v470 = vunpack.c.h.b16 %v76
  %v471 = vunpack.c.l.b16 %v77
  %v472 = vunpack.c.h.b16 %v77
  %v473 = vunpack.c.l.b16 %v78
  %v474 = vunpack.c.h.b16 %v78
  %v475 = vunpack.c.l.b16 %v79
  %v476 = vunpack.c.h.b16 %v79
  %v477 = vunpack.c.l.b16 %v80
  %v478 = vunpack.c.h.b16 %v80
  %v479 = vunpack.c.l.b16 %v81
  %v480 = vunpack.c.h.b16 %v81
  %v481 = vunpack.c.l.b16 %v82
  %v482 = vunpack.c.h.b16 %v82
  %v483 = vunpack.c.l.b16 %v83
  %v484 = vunpack.c.h.b16 %v83
  %v485 = vunpack.c.l.b16 %v84
  %v486 = vunpack.c.h.b16 %v84
  %v487 = vunpack.c.l.b16 %v85
  %v488 = vunpack.c.h.b16 %v85
  %v489 = vunpack.c.l.b16 %v86
  %v490 = vunpack.c.h.b16 %v86
  %v491 = vunpack.c.l.b16 %v87
  %v492 = vunpack.c.h.b16 %v87
  %v493 = vunpack.c.l.b16 %v88
  %v494 = vunpack.c.h.b16 %v88
  %v495 = vunpack.c.l.b16 %v89
  %v496 = vunpack.c.h.b16 %v89
  %v497 = vunpack.c.l.b16 %v90
  %v498 = vunpack.c.h.b16 %v90
  %v499 = vunpack.c.l.b16 %v91
  %v500 = vunpack.c.h.b16 %v91
  %v501 = vunpack.c.l.b16 %v92
  %v502 = vunpack.c.h.b16 %v92
  %v503 = vunpack.c.l.b16 %v93
  %v504 = vunpack.c.h.b16 %v93
  %v505 = vunpack.c.l.b16 %v94
  %v506 = vunpack.c.h.b16 %v94
  %v507 = vunpack.c.l.b16 %v95
  %v508 = vunpack.c.h.b16 %v95
  %v509 = vunpack.c.l.b16 %v96
  %v510 = vunpack.c.h.b16 %v96
  %v511 = vunpack.c.l.b16 %v97
  %v512 = vunpack.c.h.b16 %v97
  %v513 = vunpack.c.l.b16 %v98
  %v514 = vunpack.c.h.b16 %v98
  %v515 = vunpack.c.l.b16 %v99
  %v516 = vunpack.c.h.b16 %v99
  %v517 = vunpack.c.l.b16 %v100
  %v518 = vunpack.c.h.b16 %v100
  %v519 = vunpack.c.l.b16 %v101
  %v520 = vunpack.c.h.b16 %v101
  %v521 = vunpack.c.l.b16 %v102
  %v522 = vunpack.c.h.b16 %v102
  %v523 = vunpack.c.l.b16 %v103
  %v524 = vunpack.c.h.b16 %v103
  %v525 = vunpack.c.l.b16 %v104
  %v526 = vunpack.c.h.b16 %v104
  %v527 = vunpack.c.l.b16 %v105
  %v528 = vunpack.c.h.b16 %v105
  %v529 = vunpack.c.l.b16 %v106
  %v530 = vunpack.c.h.b16 %v106
  %v531 = vunpack.c.l.b16 %v107
  %v532 = vunpack.c.h.b16 %v107
  %v533 = vunpack.c.l.b16 %v108
  %v534 = vunpack.c.h.b16 %v108
  %v535 = vunpack.c.l.b16 %v109
  %v536 = vunpack.c.h.b16 %v109
  %v537 = vunpack.c.l.b16 %v110
  %v538 = vunpack.c.h.b16 %v110
  %v539 = vunpack.c.l.b16 %v111
  %v540 = vunpack.c.h.b16 %v111
  %v541 = vunpack.c.l.b16 %v112
  %v542 = vunpack.c.h.b16 %v112
  %v543 = vunpack.c.l.b16 %v113
  %v544 = vunpack.c.h.b16 %v113
  %v545 = vunpack.c.l.b16 %v114
  %v546 = vunpack.c.h.b16 %v114
  %v547 = vunpack.c.l.b16 %v115
  %v548 = vunpack.c.h.b16 %v115
  %v549 = vunpack.c.l.b16 %v116
  %v550 = vunpack.c.h.b16 %v116
  %v551 = vunpack.c.l.b16 %v117
  %v552 = vunpack.c.h.b16 %v117
  %v553 = vunpack.c.l.b16 %v118
  %v554 = vunpack.c.h.b16 %v118
  %v555 = vunpack.c.l.b16 %v119
  %v556 = vunpack.c.h.b16 %v119
  %v557 = vunpack.c.l.b16 %v120
  %v558 = vunpack.c.h.b16 %v120
  %v559 = vunpack.c.l.b16 %v121
  %v560 = vunpack.c.h.b16 %v121
  %v561 = vunpack.c.l.b16 %v122
  %v562 = vunpack.c.h.b16 %v122
  %v563 = vunpack.c.l.b16 %v123
  %v564 = vunpack.c.h.b16 %v123
  %v565 = vunpack.c.l.b16 %v124
  %v566 = vunpack.c.h.b16 %v124
  %v567 = vunpack.c.l.b16 %v125
  %v568 = vunpack.c.h.b16 %v125
  %v569 = vunpack.c.l.b16 %v126
  %v570 = vunpack.c.h.b16 %v126
  %v571 = vunpack.c.l.b16 %v127
  %v572 = vunpack.c.h.b16 %v127
  %v573 = vunpack.c.l.b16 %v128
  %v574 = vunpack.c.h.b16 %v128
  %v575 = vunpack.c.l.b16 %v129
  %v576 = vunpack.c.h.b16 %v129
  %v577 = vunpack.c.l.b16 %v130
  %v578 = vunpack.c.h.b16 %v130
  %v579 = vunpack.c.l.b16 %v131
  %v580 = vunpack.c.h.b16 %v131
  %v581 = vunpack.c.l.b16 %v132
  %v582 = vunpack.c.h.b16 %v132
  %v583 = vunpack.c.l.b16 %v133
  %v584 = vunpack.c.h.b16 %v133
  %v585 = vunpack.c.l.b16 %v134
  %v586 = vunpack.c.h.b16 %v134
  %v587 = vunpack.c.l.b16 %v135
  %v588 = vunpack.c.h.b16 %v135
  %v589 = vunpack.c.l.b16 %v136
  %v590 = vunpack.c.h.b16 %v136
  %v591 = vunpack.c.l.b16 %v137
  %v592 = vunpack.c.h.b16 %v137
  %v593 = vunpack.c.l.b16 %v138
  %v594 = vunpack.c.h.b16 %v138
  %v595 = vunpack.c.l.b16 %v139
  %v596 = vunpack.c.h.b16 %v139
  %v597 = vunpack.c.l.b16 %v140
  %v598 = vunpack.c.h.b16 %v140
  %v599 = vunpack.c.l.b16 %v141
  %v600 = vunpack.c.h.b16 %v141
  %v601 = vunpack.c.l.b16 %v142
  %v602 = vunpack.c.h.b16 %v142
  %v603 = vunpack.c.l.b16 %v143
  %v604 = vunpack.c.h.b16 %v143
  %v605 = vunpack.c.l.b16 %v144
  %v606 = vunpack.c.h.b16 %v144
  %v607 = vunpack.c.l.b16 %v145
  %v608 = vunpack.c.h.b16 %v145
  %v609 = vunpack.c.l.b16 %v146
  %v610 = vunpack.c.h.b16 %v146
  %v611 = vunpack.c.l.b16 %v147
  %v612 = vunpack.c.h.b16 %v147
  %v613 = vunpack.c.l.b16 %v148
  %v614 = vunpack.c.h.b16 %v148
  %v615 = vunpack.c.l.b16 %v149
  %v616 = vunpack.c.h.b16 %v149
  %v617 = vunpack.c.l.b16 %v150
  %v618 = vunpack.c.h.b16 %v150
  %v619 = vunpack.c.l.b16 %v151
  %v620 = vunpack.c.h.b16 %v151
  %v621 = vunpack.c.l.b16 %v152
  %v622 = vunpack.c.h.b16 %v152
  %v623 = vunpack.c.l.b16 %v153
  %v624 = vunpack.c.h.b16 %v153
  %v625 = vunpack.c.l.b16 %v154
  %v626 = vunpack.c.h.b16 %v154
  %v627 = vunpack.c.l.b16 %v155
  %v628 = vunpack.c.h.b16 %v155
  %v629 = vunpack.c.l.b16 %v156
  %v630 = vunpack.c.h.b16 %v156
  %v631 = vpack.c.b16 %v391, %v375
  %v632 = vpack.c.b16 %v392, %v376
  %v633 = vpack.c.b16 %v393, %v377
  %v634 = vpack.c.b16 %v394, %v378
  %v635 = vpack.c.b16 %v395, %v379
  %v636 = vpack.c.b16 %v396, %v380
  %v637 = vpack.c.b16 %v397, %v381
  %v638 = vpack.c.b16 %v398, %v382
  %v639 = vpack.c.b16 %v399, %v383
  %v640 = vpack.c.b16 %v400, %v384
  %v641 = vpack.c.b16 %v401, %v385
  %v642 = vpack.c.b16 %v402, %v386
  %v643 = vpack.c.b16 %v403, %v387
  %v644 = vpack.c.b16 %v404, %v388
  %v645 = vpack.c.b16 %v405, %v389
  %v646 = vpack.c.b16 %v406, %v390
  %v647 = vpack.c.b16 %v423, %v407
  %v648 = vpack.c.b16 %v424, %v408
  %v649 = vpack.c.b16 %v425, %v409
  %v650 = vpack.c.b16 %v426, %v410
  %v651 = vpack.c.b16 %v427, %v411
  %v652 = vpack.c.b16 %v428, %v412
  %v653 = vpack.c.b16 %v429, %v413
  %v654 = vpack.c.b16 %v430, %v414
  %v655 = vpack.c.b16 %v431, %v415
  %v656 = vpack.c.b16 %v432, %v416
  %v657 = vpack.c.b16 %v433, %v417
  %v658 = vpack.c.b16 %v434, %v418
  %v659 = vpack.c.b16 %v435, %v419
  %v660 = vpack.c.b16 %v436, %v420
  %v661 = vpack.c.b16 %v437, %v421
  %v662 = vpack.c.b16 %v438, %v422
  %v663 = vpack.c.b16 %v455, %v439
  %v664 = vpack.c.b16 %v456, %v440
  %v665 = vpack.c.b16 %v457, %v441
  %v666 = vpack.c.b16 %v458, %v442
  %v667 = vpack.c.b16 %v459, %v443
  %v668 = vpack.c.b16 %v460, %v444
  %v669 = vpack.c.b16 %v461, %v445
  %v670 = vpack.c.b16 %v462, %v446
  %v671 = vpack.c.b16 %v463, %v447
  %v672 = vpack.c.b16 %v464, %v448
  %v673 = vpack.c.b16 %v465, %v449
  %v674 = vpack.c.b16 %v466, %v450
  %v675 = vpack.c.b16 %v467, %v451
  %v676 = vpack.c.b16 %v468, %v452
  %v677 = vpack.c.b16 %v469, %v453
  %v678 = vpack.c.b16 %v470, %v454
  %v679 = vpack.c.b16 %v487, %v471
  %v680 = vpack.c.b16 %v488, %v472
  %v681 = vpack.c.b16 %v489, %v473
  %v682 = vpack.c.b16 %v490, %v474
  %v683 = vpack.c.b16 %v491, %v475
  %v684 = vpack.c.b16 %v492, %v476
  %v685 = vpack.c.b16 %v493, %v477
  %v686 = vpack.c.b16 %v494, %v478
  %v687 = vpack.c.b16 %v495, %v479
  %v688 = vpack.c.b16 %v496, %v480
  %v689 = vpack.c.b16 %v497, %v481
  %v690 = vpack.c.b16 %v498, %v482
  %v691 = vpack.c.b16 %v499, %v483
  %v692 = vpack.c.b16 %v500, %v484
  %v693 = vpack.c.b16 %v501, %v485
  %v694 = vpack.c.b16 %v502, %v486
  %v695 = vpack.c.b16 %v519, %v503
  %v696 = vpack.c.b16 %v520, %v504
  %v697 = vpack.c.b16 %v521, %v505
  %v698 = vpack.c.b16 %v522, %v506
  %v699 = vpack.c.b16 %v523, %v507
  %v700 = vpack.c.b16 %v524, %v508
  %v701 = vpack.c.b16 %v525, %v509
  %v702 = vpack.c.b16 %v526, %v510
  %v703 = vpack.c.b16 %v527, %v511
  %v704 = vpack.c.b16 %v528, %v512
  %v705 = vpack.c.b16 %v529, %v513
  %v706 = vpack.c.b16 %v530, %v514
  %v707 = vpack.c.b16 %v531, %v515
  %v708 = vpack.c.b16 %v532, %v516
  %v709 = vpack.c.b16 %v533, %v517
  %v710 = vpack.c.b16 %v534, %v518
  %v711 = vpack.c.b16 %v551, %v535
  %v712 = vpack.c.b16 %v552, %v536
  %v713 = vpack.c.b16 %v553, %v537
  %v714 = vpack.c.b16 %v554, %v538
  %v715 = vpack.c.b16 %v555, %v539
  %v716 = vpack.c.b16 %v556, %v540
  %v717 = vpack.c.b16 %v557, %v541
  %v718 = vpack.c.b16 %v558, %v542
  %v719 = vpack.c.b16 %v559, %v543
  %v720 = vpack.c.b16 %v560, %v544
  %v721 = vpack.c.b16 %v561, %v545
  %v722 = vpack.c.b16 %v562, %v546
  %v723 = vpack.c.b16 %v563, %v547
  %v724 = vpack.c.b16 %v564, %v548
  %v725 = vpack.c.b16 %v565, %v549
  %v726 = vpack.c.b16 %v566, %v550
  %v727 = vpack.c.b16 %v583, %v567
  %v728 = vpack.c.b16 %v584, %v568
  %v729 = vpack.c.b16 %v585, %v569
  %v730 = vpack.c.b16 %v586, %v570
  %v731 = vpack.c.b16 %v587, %v571
  %v732 = vpack.c.b16 %v588, %v572
  %v733 = vpack.c.b16 %v589, %v573
  %v734 = vpack.c.b16 %v590, %v574
  %v735 = vpack.c.b16 %v591, %v575
  %v736 = vpack.c.b16 %v592, %v576
  %v737 = vpack.c.b16 %v593, %v577
  %v738 = vpack.c.b16 %v594, %v578
  %v739 = vpack.c.b16 %v595, %v579
  %v740 = vpack.c.b16 %v596, %v580
  %v741 = vpack.c.b16 %v597, %v581
  %v742 = vpack.c.b16 %v598, %v582
  %v743 = vpack.c.b16 %v615, %v599
  %v744 = vpack.c.b16 %v616, %v600
  %v745 = vpack.c.b16 %v617, %v601
  %v746 = vpack.c.b16 %v618, %v602
  %v747 = vpack.c.b16 %v619, %v603
  %v748 = vpack.c.b16 %v620, %v604
  %v749 = vpack.c.b16 %v621, %v605
  %v750 = vpack.c.b16 %v622, %v606
  %v751 = vpack.c.b16 %v623, %v607
  %v752 = vpack.c.b16 %v624, %v608
  %v753 = vpack.c.b16 %v625, %v609
  %v754 = vpack.c.b16 %v626, %v610
  %v755 = vpack.c.b16 %v627, %v611
  %v756 = vpack.c.b16 %v628, %v612
  %v757 = vpack.c.b16 %v629, %v613
  %v758 = vpack.c.b16 %v630, %v614
  %887 = vmatprep.subr.bf16.mxu0 %v744
  %888 = vmatpush1.bf16.msra.mxu0 %v743
  %889 = vmatprep.subr.bf16.mxu0 %v728
  %890 = vmatpush1.bf16.msra.mxu0 %v727
  %891 = vmatprep.subr.bf16.mxu0 %v712
  %892 = vmatpush1.bf16.msra.mxu0 %v711
  %893 = vmatprep.subr.bf16.mxu0 %v696
  %894 = vmatpush1.bf16.msra.mxu0 %v695
  %895 = vmatprep.subr.bf16.mxu0 %v680
  %896 = vmatpush1.bf16.msra.mxu0 %v679
  %897 = vmatprep.subr.bf16.mxu0 %v664
  %898 = vmatpush1.bf16.msra.mxu0 %v663
  %899 = vmatprep.subr.bf16.mxu0 %v648
  %900 = vmatpush1.bf16.msra.mxu0 %v647
  %901 = vmatprep.subr.bf16.mxu0 %v632
  %902 = vmatpush1.bf16.msra.mxu0 %v631
  %903 = vmatprep.subr.bf16.mxu0 0
  %904 = vmatpush2.bf16.msra.mxu0 0
  %905 = vmatprep.subr.bf16.mxu0 0
  %906 = vmatpush2.bf16.msra.mxu0 0
  %907 = vmatprep.subr.bf16.mxu0 0
  %908 = vmatpush2.bf16.msra.mxu0 0
  %909 = vmatprep.subr.bf16.mxu0 0
  %910 = vmatpush2.bf16.msra.mxu0 0
  %911 = vmatprep.subr.bf16.mxu0 0
  %912 = vmatpush2.bf16.msra.mxu0 0
  %913 = vmatprep.subr.bf16.mxu0 0
  %914 = vmatpush2.bf16.msra.mxu0 0
  %915 = vmatprep.subr.bf16.mxu0 0
  %916 = vmatpush2.bf16.msra.mxu0 0
  %917 = vmatprep.subr.bf16.mxu0 0
  %918 = vmatpush2.bf16.msra.mxu0 0
  %919 = vmatprep.mubr.bf16.mxu0 0
  %920 = vmatmul.mubr.bf16.gmra.mxu0 %v245
  %v921 = vpop.f32.mrf.mxu0
  %v922 = vadd.f32 %v164, %v921
  %v923 = vpop.f32.mrf.mxu0
  %v924 = vadd.f32 %v168, %v923
  %v925 = vpop.f32.mrf.mxu0
  %v926 = vadd.f32 %v164, %v925
  %v927 = vpop.f32.mrf.mxu0
  %v928 = vadd.f32 %v168, %v927
  %929 = vdwg.mxu0
  %930 = vmatprep.subr.bf16.mxu0 %v746
  %931 = vmatpush1.bf16.msra.mxu0 %v745
  %932 = vmatprep.subr.bf16.mxu0 %v730
  %933 = vmatpush1.bf16.msra.mxu0 %v729
  %934 = vmatprep.subr.bf16.mxu0 %v714
  %935 = vmatpush1.bf16.msra.mxu0 %v713
  %936 = vmatprep.subr.bf16.mxu0 %v698
  %937 = vmatpush1.bf16.msra.mxu0 %v697
  %938 = vmatprep.subr.bf16.mxu0 %v682
  %939 = vmatpush1.bf16.msra.mxu0 %v681
  %940 = vmatprep.subr.bf16.mxu0 %v666
  %941 = vmatpush1.bf16.msra.mxu0 %v665
  %942 = vmatprep.subr.bf16.mxu0 %v650
  %943 = vmatpush1.bf16.msra.mxu0 %v649
  %944 = vmatprep.subr.bf16.mxu0 %v634
  %945 = vmatpush1.bf16.msra.mxu0 %v633
  %946 = vmatprep.subr.bf16.mxu0 0
  %947 = vmatpush2.bf16.msra.mxu0 0
  %948 = vmatprep.subr.bf16.mxu0 0
  %949 = vmatpush2.bf16.msra.mxu0 0
  %950 = vmatprep.subr.bf16.mxu0 0
  %951 = vmatpush2.bf16.msra.mxu0 0
  %952 = vmatprep.subr.bf16.mxu0 0
  %953 = vmatpush2.bf16.msra.mxu0 0
  %954 = vmatprep.subr.bf16.mxu0 0
  %955 = vmatpush2.bf16.msra.mxu0 0
  %956 = vmatprep.subr.bf16.mxu0 0
  %957 = vmatpush2.bf16.msra.mxu0 0
  %958 = vmatprep.subr.bf16.mxu0 0
  %959 = vmatpush2.bf16.msra.mxu0 0
  %960 = vmatprep.subr.bf16.mxu0 0
  %961 = vmatpush2.bf16.msra.mxu0 0
  %962 = vmatprep.mubr.bf16.mxu0 0
  %963 = vmatmul.mubr.bf16.gmra.mxu0 %v245
  %v964 = vpop.f32.mrf.mxu0
  %v965 = vadd.f32 %v172, %v964
  %v966 = vpop.f32.mrf.mxu0
  %v967 = vadd.f32 %v176, %v966
  %v968 = vpop.f32.mrf.mxu0
  %v969 = vadd.f32 %v172, %v968
  %v970 = vpop.f32.mrf.mxu0
  %v971 = vadd.f32 %v176, %v970
  %972 = vdwg.mxu0
  %973 = vmatprep.subr.bf16.mxu0 %v748
  %974 = vmatpush1.bf16.msra.mxu0 %v747
  %975 = vmatprep.subr.bf16.mxu0 %v732
  %976 = vmatpush1.bf16.msra.mxu0 %v731
  %977 = vmatprep.subr.bf16.mxu0 %v716
  %978 = vmatpush1.bf16.msra.mxu0 %v715
  %979 = vmatprep.subr.bf16.mxu0 %v700
  %980 = vmatpush1.bf16.msra.mxu0 %v699
  %981 = vmatprep.subr.bf16.mxu0 %v684
  %982 = vmatpush1.bf16.msra.mxu0 %v683
  %983 = vmatprep.subr.bf16.mxu0 %v668
  %984 = vmatpush1.bf16.msra.mxu0 %v667
  %985 = vmatprep.subr.bf16.mxu0 %v652
  %986 = vmatpush1.bf16.msra.mxu0 %v651
  %987 = vmatprep.subr.bf16.mxu0 %v636
  %988 = vmatpush1.bf16.msra.mxu0 %v635
  %989 = vmatprep.subr.bf16.mxu0 0
  %990 = vmatpush2.bf16.msra.mxu0 0
  %991 = vmatprep.subr.bf16.mxu0 0
  %992 = vmatpush2.bf16.msra.mxu0 0
  %993 = vmatprep.subr.bf16.mxu0 0
  %994 = vmatpush2.bf16.msra.mxu0 0
  %995 = vmatprep.subr.bf16.mxu0 0
  %996 = vmatpush2.bf16.msra.mxu0 0
  %997 = vmatprep.subr.bf16.mxu0 0
  %998 = vmatpush2.bf16.msra.mxu0 0
  %999 = vmatprep.subr.bf16.mxu0 0
  %1000 = vmatpush2.bf16.msra.mxu0 0
  %1001 = vmatprep.subr.bf16.mxu0 0
  %1002 = vmatpush2.bf16.msra.mxu0 0
  %1003 = vmatprep.subr.bf16.mxu0 0
  %1004 = vmatpush2.bf16.msra.mxu0 0
  %1005 = vmatprep.mubr.bf16.mxu0 0
  %1006 = vmatmul.mubr.bf16.gmra.mxu0 %v245
  %v1007 = vpop.f32.mrf.mxu0
  %v1008 = vadd.f32 %v180, %v1007
  %v1009 = vpop.f32.mrf.mxu0
  %v1010 = vadd.f32 %v184, %v1009
  %v1011 = vpop.f32.mrf.mxu0
  %v1012 = vadd.f32 %v180, %v1011
  %v1013 = vpop.f32.mrf.mxu0
  %v1014 = vadd.f32 %v184, %v1013
  %1015 = vdwg.mxu0
  %1016 = vmatprep.subr.bf16.mxu0 %v750
  %1017 = vmatpush1.bf16.msra.mxu0 %v749
  %1018 = vmatprep.subr.bf16.mxu0 %v734
  %1019 = vmatpush1.bf16.msra.mxu0 %v733
  %1020 = vmatprep.subr.bf16.mxu0 %v718
  %1021 = vmatpush1.bf16.msra.mxu0 %v717
  %1022 = vmatprep.subr.bf16.mxu0 %v702
  %1023 = vmatpush1.bf16.msra.mxu0 %v701
  %1024 = vmatprep.subr.bf16.mxu0 %v686
  %1025 = vmatpush1.bf16.msra.mxu0 %v685
  %1026 = vmatprep.subr.bf16.mxu0 %v670
  %1027 = vmatpush1.bf16.msra.mxu0 %v669
  %1028 = vmatprep.subr.bf16.mxu0 %v654
  %1029 = vmatpush1.bf16.msra.mxu0 %v653
  %1030 = vmatprep.subr.bf16.mxu0 %v638
  %1031 = vmatpush1.bf16.msra.mxu0 %v637
  %1032 = vmatprep.subr.bf16.mxu0 0
  %1033 = vmatpush2.bf16.msra.mxu0 0
  %1034 = vmatprep.subr.bf16.mxu0 0
  %1035 = vmatpush2.bf16.msra.mxu0 0
  %1036 = vmatprep.subr.bf16.mxu0 0
  %1037 = vmatpush2.bf16.msra.mxu0 0
  %1038 = vmatprep.subr.bf16.mxu0 0
  %1039 = vmatpush2.bf16.msra.mxu0 0
  %1040 = vmatprep.subr.bf16.mxu0 0
  %1041 = vmatpush2.bf16.msra.mxu0 0
  %1042 = vmatprep.subr.bf16.mxu0 0
  %1043 = vmatpush2.bf16.msra.mxu0 0
  %1044 = vmatprep.subr.bf16.mxu0 0
  %1045 = vmatpush2.bf16.msra.mxu0 0
  %1046 = vmatprep.subr.bf16.mxu0 0
  %1047 = vmatpush2.bf16.msra.mxu0 0
  %1048 = vmatprep.mubr.bf16.mxu0 0
  %1049 = vmatmul.mubr.bf16.gmra.mxu0 %v245
  %v1050 = vpop.f32.mrf.mxu0
  %v1051 = vadd.f32 %v188, %v1050
  %v1052 = vpop.f32.mrf.mxu0
  %v1053 = vadd.f32 %v192, %v1052
  %v1054 = vpop.f32.mrf.mxu0
  %v1055 = vadd.f32 %v188, %v1054
  %v1056 = vpop.f32.mrf.mxu0
  %v1057 = vadd.f32 %v192, %v1056
  %1058 = vdwg.mxu0
  %1059 = vmatprep.subr.bf16.mxu0 %v752
  %1060 = vmatpush1.bf16.msra.mxu0 %v751
  %1061 = vmatprep.subr.bf16.mxu0 %v736
  %1062 = vmatpush1.bf16.msra.mxu0 %v735
  %1063 = vmatprep.subr.bf16.mxu0 %v720
  %1064 = vmatpush1.bf16.msra.mxu0 %v719
  %1065 = vmatprep.subr.bf16.mxu0 %v704
  %1066 = vmatpush1.bf16.msra.mxu0 %v703
  %1067 = vmatprep.subr.bf16.mxu0 %v688
  %1068 = vmatpush1.bf16.msra.mxu0 %v687
  %1069 = vmatprep.subr.bf16.mxu0 %v672
  %1070 = vmatpush1.bf16.msra.mxu0 %v671
  %1071 = vmatprep.subr.bf16.mxu0 %v656
  %1072 = vmatpush1.bf16.msra.mxu0 %v655
  %1073 = vmatprep.subr.bf16.mxu0 %v640
  %1074 = vmatpush1.bf16.msra.mxu0 %v639
  %1075 = vmatprep.subr.bf16.mxu0 0
  %1076 = vmatpush2.bf16.msra.mxu0 0
  %1077 = vmatprep.subr.bf16.mxu0 0
  %1078 = vmatpush2.bf16.msra.mxu0 0
  %1079 = vmatprep.subr.bf16.mxu0 0
  %1080 = vmatpush2.bf16.msra.mxu0 0
  %1081 = vmatprep.subr.bf16.mxu0 0
  %1082 = vmatpush2.bf16.msra.mxu0 0
  %1083 = vmatprep.subr.bf16.mxu0 0
  %1084 = vmatpush2.bf16.msra.mxu0 0
  %1085 = vmatprep.subr.bf16.mxu0 0
  %1086 = vmatpush2.bf16.msra.mxu0 0
  %1087 = vmatprep.subr.bf16.mxu0 0
  %1088 = vmatpush2.bf16.msra.mxu0 0
  %1089 = vmatprep.subr.bf16.mxu0 0
  %1090 = vmatpush2.bf16.msra.mxu0 0
  %1091 = vmatprep.mubr.bf16.mxu0 0
  %1092 = vmatmul.mubr.bf16.gmra.mxu0 %v245
  %v1093 = vpop.f32.mrf.mxu0
  %v1094 = vadd.f32 %v196, %v1093
  %v1095 = vpop.f32.mrf.mxu0
  %v1096 = vadd.f32 %v200, %v1095
  %v1097 = vpop.f32.mrf.mxu0
  %v1098 = vadd.f32 %v196, %v1097
  %v1099 = vpop.f32.mrf.mxu0
  %v1100 = vadd.f32 %v200, %v1099
  %1101 = vdwg.mxu0
  %1102 = vmatprep.subr.bf16.mxu0 %v754
  %1103 = vmatpush1.bf16.msra.mxu0 %v753
  %1104 = vmatprep.subr.bf16.mxu0 %v738
  %1105 = vmatpush1.bf16.msra.mxu0 %v737
  %1106 = vmatprep.subr.bf16.mxu0 %v722
  %1107 = vmatpush1.bf16.msra.mxu0 %v721
  %1108 = vmatprep.subr.bf16.mxu0 %v706
  %1109 = vmatpush1.bf16.msra.mxu0 %v705
  %1110 = vmatprep.subr.bf16.mxu0 %v690
  %1111 = vmatpush1.bf16.msra.mxu0 %v689
  %1112 = vmatprep.subr.bf16.mxu0 %v674
  %1113 = vmatpush1.bf16.msra.mxu0 %v673
  %1114 = vmatprep.subr.bf16.mxu0 %v658
  %1115 = vmatpush1.bf16.msra.mxu0 %v657
  %1116 = vmatprep.subr.bf16.mxu0 %v642
  %1117 = vmatpush1.bf16.msra.mxu0 %v641
  %1118 = vmatprep.subr.bf16.mxu0 0
  %1119 = vmatpush2.bf16.msra.mxu0 0
  %1120 = vmatprep.subr.bf16.mxu0 0
  %1121 = vmatpush2.bf16.msra.mxu0 0
  %1122 = vmatprep.subr.bf16.mxu0 0
  %1123 = vmatpush2.bf16.msra.mxu0 0
  %1124 = vmatprep.subr.bf16.mxu0 0
  %1125 = vmatpush2.bf16.msra.mxu0 0
  %1126 = vmatprep.subr.bf16.mxu0 0
  %1127 = vmatpush2.bf16.msra.mxu0 0
  %1128 = vmatprep.subr.bf16.mxu0 0
  %1129 = vmatpush2.bf16.msra.mxu0 0
  %1130 = vmatprep.subr.bf16.mxu0 0
  %1131 = vmatpush2.bf16.msra.mxu0 0
  %1132 = vmatprep.subr.bf16.mxu0 0
  %1133 = vmatpush2.bf16.msra.mxu0 0
  %1134 = vmatprep.mubr.bf16.mxu0 0
  %1135 = vmatmul.mubr.bf16.gmra.mxu0 %v245
  %v1136 = vpop.f32.mrf.mxu0
  %v1137 = vadd.f32 %v204, %v1136
  %v1138 = vpop.f32.mrf.mxu0
  %v1139 = vadd.f32 %v208, %v1138
  %v1140 = vpop.f32.mrf.mxu0
  %v1141 = vadd.f32 %v204, %v1140
  %v1142 = vpop.f32.mrf.mxu0
  %v1143 = vadd.f32 %v208, %v1142
  %1144 = vdwg.mxu0
  %1145 = vmatprep.subr.bf16.mxu0 %v756
  %1146 = vmatpush1.bf16.msra.mxu0 %v755
  %1147 = vmatprep.subr.bf16.mxu0 %v740
  %1148 = vmatpush1.bf16.msra.mxu0 %v739
  %1149 = vmatprep.subr.bf16.mxu0 %v724
  %1150 = vmatpush1.bf16.msra.mxu0 %v723
  %1151 = vmatprep.subr.bf16.mxu0 %v708
  %1152 = vmatpush1.bf16.msra.mxu0 %v707
  %1153 = vmatprep.subr.bf16.mxu0 %v692
  %1154 = vmatpush1.bf16.msra.mxu0 %v691
  %1155 = vmatprep.subr.bf16.mxu0 %v676
  %1156 = vmatpush1.bf16.msra.mxu0 %v675
  %1157 = vmatprep.subr.bf16.mxu0 %v660
  %1158 = vmatpush1.bf16.msra.mxu0 %v659
  %1159 = vmatprep.subr.bf16.mxu0 %v644
  %1160 = vmatpush1.bf16.msra.mxu0 %v643
  %1161 = vmatprep.subr.bf16.mxu0 0
  %1162 = vmatpush2.bf16.msra.mxu0 0
  %1163 = vmatprep.subr.bf16.mxu0 0
  %1164 = vmatpush2.bf16.msra.mxu0 0
  %1165 = vmatprep.subr.bf16.mxu0 0
  %1166 = vmatpush2.bf16.msra.mxu0 0
  %1167 = vmatprep.subr.bf16.mxu0 0
  %1168 = vmatpush2.bf16.msra.mxu0 0
  %1169 = vmatprep.subr.bf16.mxu0 0
  %1170 = vmatpush2.bf16.msra.mxu0 0
  %1171 = vmatprep.subr.bf16.mxu0 0
  %1172 = vmatpush2.bf16.msra.mxu0 0
  %1173 = vmatprep.subr.bf16.mxu0 0
  %1174 = vmatpush2.bf16.msra.mxu0 0
  %1175 = vmatprep.subr.bf16.mxu0 0
  %1176 = vmatpush2.bf16.msra.mxu0 0
  %1177 = vmatprep.mubr.bf16.mxu0 0
  %1178 = vmatmul.mubr.bf16.gmra.mxu0 %v245
  %v1179 = vpop.f32.mrf.mxu0
  %v1180 = vadd.f32 %v212, %v1179
  %v1181 = vpop.f32.mrf.mxu0
  %v1182 = vadd.f32 %v216, %v1181
  %v1183 = vpop.f32.mrf.mxu0
  %v1184 = vadd.f32 %v212, %v1183
  %v1185 = vpop.f32.mrf.mxu0
  %v1186 = vadd.f32 %v216, %v1185
  %1187 = vdwg.mxu0
  %1188 = vmatprep.subr.bf16.mxu0 %v758
  %1189 = vmatpush1.bf16.msra.mxu0 %v757
  %1190 = vmatprep.subr.bf16.mxu0 %v742
  %1191 = vmatpush1.bf16.msra.mxu0 %v741
  %1192 = vmatprep.subr.bf16.mxu0 %v726
  %1193 = vmatpush1.bf16.msra.mxu0 %v725
  %1194 = vmatprep.subr.bf16.mxu0 %v710
  %1195 = vmatpush1.bf16.msra.mxu0 %v709
  %1196 = vmatprep.subr.bf16.mxu0 %v694
  %1197 = vmatpush1.bf16.msra.mxu0 %v693
  %1198 = vmatprep.subr.bf16.mxu0 %v678
  %1199 = vmatpush1.bf16.msra.mxu0 %v677
  %1200 = vmatprep.subr.bf16.mxu0 %v662
  %1201 = vmatpush1.bf16.msra.mxu0 %v661
  %1202 = vmatprep.subr.bf16.mxu0 %v646
  %1203 = vmatpush1.bf16.msra.mxu0 %v645
  %1204 = vmatprep.subr.bf16.mxu0 0
  %1205 = vmatpush2.bf16.msra.mxu0 0
  %1206 = vmatprep.subr.bf16.mxu0 0
  %1207 = vmatpush2.bf16.msra.mxu0 0
  %1208 = vmatprep.subr.bf16.mxu0 0
  %1209 = vmatpush2.bf16.msra.mxu0 0
  %1210 = vmatprep.subr.bf16.mxu0 0
  %1211 = vmatpush2.bf16.msra.mxu0 0
  %1212 = vmatprep.subr.bf16.mxu0 0
  %1213 = vmatpush2.bf16.msra.mxu0 0
  %1214 = vmatprep.subr.bf16.mxu0 0
  %1215 = vmatpush2.bf16.msra.mxu0 0
  %1216 = vmatprep.subr.bf16.mxu0 0
  %1217 = vmatpush2.bf16.msra.mxu0 0
  %1218 = vmatprep.subr.bf16.mxu0 0
  %1219 = vmatpush2.bf16.msra.mxu0 0
  %1220 = vmatprep.mubr.bf16.mxu0 0
  %1221 = vmatmul.mubr.bf16.gmra.mxu0 %v245
  %v1222 = vpop.f32.mrf.mxu0
  %v1223 = vadd.f32 %v220, %v1222
  %v1224 = vpop.f32.mrf.mxu0
  %v1225 = vadd.f32 %v224, %v1224
  %v1226 = vpop.f32.mrf.mxu0
  %v1227 = vadd.f32 %v220, %v1226
  %v1228 = vpop.f32.mrf.mxu0
  %v1229 = vadd.f32 %v224, %v1228
  %1230 = vdwg.mxu0
  %v1231 = vmul.f32 %v922, 0.5
  %v1232 = vmul.f32 %v924, 0.5
  %v1233 = vmul.f32 %v965, 0.5
  %v1234 = vmul.f32 %v967, 0.5
  %v1235 = vmul.f32 %v1008, 0.5
  %v1236 = vmul.f32 %v1010, 0.5
  %v1237 = vmul.f32 %v1051, 0.5
  %v1238 = vmul.f32 %v1053, 0.5
  %v1239 = vmul.f32 %v1094, 0.5
  %v1240 = vmul.f32 %v1096, 0.5
  %v1241 = vmul.f32 %v1137, 0.5
  %v1242 = vmul.f32 %v1139, 0.5
  %v1243 = vmul.f32 %v1180, 0.5
  %v1244 = vmul.f32 %v1182, 0.5
  %v1245 = vmul.f32 %v1223, 0.5
  %v1246 = vmul.f32 %v1225, 0.5
  %v1247 = vmul.f32 %v926, 0.5
  %v1248 = vmul.f32 %v928, 0.5
  %v1249 = vmul.f32 %v969, 0.5
  %v1250 = vmul.f32 %v971, 0.5
  %v1251 = vmul.f32 %v1012, 0.5
  %v1252 = vmul.f32 %v1014, 0.5
  %v1253 = vmul.f32 %v1055, 0.5
  %v1254 = vmul.f32 %v1057, 0.5
  %v1255 = vmul.f32 %v1098, 0.5
  %v1256 = vmul.f32 %v1100, 0.5
  %v1257 = vmul.f32 %v1141, 0.5
  %v1258 = vmul.f32 %v1143, 0.5
  %v1259 = vmul.f32 %v1184, 0.5
  %v1260 = vmul.f32 %v1186, 0.5
  %v1261 = vmul.f32 %v1227, 0.5
  %v1262 = vmul.f32 %v1229, 0.5
  %v1263 = vmul.f32 %v922, 0.70710677
  %v1264 = vmul.f32 %v924, 0.70710677
  %v1265 = vmul.f32 %v965, 0.70710677
  %v1266 = vmul.f32 %v967, 0.70710677
  %v1267 = vmul.f32 %v1008, 0.70710677
  %v1268 = vmul.f32 %v1010, 0.70710677
  %v1269 = vmul.f32 %v1051, 0.70710677
  %v1270 = vmul.f32 %v1053, 0.70710677
  %v1271 = vmul.f32 %v1094, 0.70710677
  %v1272 = vmul.f32 %v1096, 0.70710677
  %v1273 = vmul.f32 %v1137, 0.70710677
  %v1274 = vmul.f32 %v1139, 0.70710677
  %v1275 = vmul.f32 %v1180, 0.70710677
  %v1276 = vmul.f32 %v1182, 0.70710677
  %v1277 = vmul.f32 %v1223, 0.70710677
  %v1278 = vmul.f32 %v1225, 0.70710677
  %v1279 = vmul.f32 %v926, 0.70710677
  %v1280 = vmul.f32 %v928, 0.70710677
  %v1281 = vmul.f32 %v969, 0.70710677
  %v1282 = vmul.f32 %v971, 0.70710677
  %v1283 = vmul.f32 %v1012, 0.70710677
  %v1284 = vmul.f32 %v1014, 0.70710677
  %v1285 = vmul.f32 %v1055, 0.70710677
  %v1286 = vmul.f32 %v1057, 0.70710677
  %v1287 = vmul.f32 %v1098, 0.70710677
  %v1288 = vmul.f32 %v1100, 0.70710677
  %v1289 = vmul.f32 %v1141, 0.70710677
  %v1290 = vmul.f32 %v1143, 0.70710677
  %v1291 = vmul.f32 %v1184, 0.70710677
  %v1292 = vmul.f32 %v1186, 0.70710677
  %v1293 = vmul.f32 %v1227, 0.70710677
  %v1294 = vmul.f32 %v1229, 0.70710677
  %v1295 = verf.f32.pop %v1263
  %v1296 = verf.f32.pop %v1264
  %v1297 = verf.f32.pop %v1265
  %v1298 = verf.f32.pop %v1266
  %v1299 = verf.f32.pop %v1267
  %v1300 = verf.f32.pop %v1268
  %v1301 = verf.f32.pop %v1269
  %v1302 = verf.f32.pop %v1270
  %v1303 = verf.f32.pop %v1271
  %v1304 = verf.f32.pop %v1272
  %v1305 = verf.f32.pop %v1273
  %v1306 = verf.f32.pop %v1274
  %v1307 = verf.f32.pop %v1275
  %v1308 = verf.f32.pop %v1276
  %v1309 = verf.f32.pop %v1277
  %v1310 = verf.f32.pop %v1278
  %v1311 = verf.f32.pop %v1279
  %v1312 = verf.f32.pop %v1280
  %v1313 = verf.f32.pop %v1281
  %v1314 = verf.f32.pop %v1282
  %v1315 = verf.f32.pop %v1283
  %v1316 = verf.f32.pop %v1284
  %v1317 = verf.f32.pop %v1285
  %v1318 = verf.f32.pop %v1286
  %v1319 = verf.f32.pop %v1287
  %v1320 = verf.f32.pop %v1288
  %v1321 = verf.f32.pop %v1289
  %v1322 = verf.f32.pop %v1290
  %v1323 = verf.f32.pop %v1291
  %v1324 = verf.f32.pop %v1292
  %v1325 = verf.f32.pop %v1293
  %v1326 = verf.f32.pop %v1294
  %v1327 = vadd.f32 %v1295, 1.0
  %v1328 = vadd.f32 %v1296, 1.0
  %v1329 = vadd.f32 %v1297, 1.0
  %v1330 = vadd.f32 %v1298, 1.0
  %v1331 = vadd.f32 %v1299, 1.0
  %v1332 = vadd.f32 %v1300, 1.0
  %v1333 = vadd.f32 %v1301, 1.0
  %v1334 = vadd.f32 %v1302, 1.0
  %v1335 = vadd.f32 %v1303, 1.0
  %v1336 = vadd.f32 %v1304, 1.0
  %v1337 = vadd.f32 %v1305, 1.0
  %v1338 = vadd.f32 %v1306, 1.0
  %v1339 = vadd.f32 %v1307, 1.0
  %v1340 = vadd.f32 %v1308, 1.0
  %v1341 = vadd.f32 %v1309, 1.0
  %v1342 = vadd.f32 %v1310, 1.0
  %v1343 = vadd.f32 %v1311, 1.0
  %v1344 = vadd.f32 %v1312, 1.0
  %v1345 = vadd.f32 %v1313, 1.0
  %v1346 = vadd.f32 %v1314, 1.0
  %v1347 = vadd.f32 %v1315, 1.0
  %v1348 = vadd.f32 %v1316, 1.0
  %v1349 = vadd.f32 %v1317, 1.0
  %v1350 = vadd.f32 %v1318, 1.0
  %v1351 = vadd.f32 %v1319, 1.0
  %v1352 = vadd.f32 %v1320, 1.0
  %v1353 = vadd.f32 %v1321, 1.0
  %v1354 = vadd.f32 %v1322, 1.0
  %v1355 = vadd.f32 %v1323, 1.0
  %v1356 = vadd.f32 %v1324, 1.0
  %v1357 = vadd.f32 %v1325, 1.0
  %v1358 = vadd.f32 %v1326, 1.0
  %v1359 = vmul.f32 %v1231, %v1327
  %v1360 = vmul.f32 %v1232, %v1328
  %v1361 = vmul.f32 %v1233, %v1329
  %v1362 = vmul.f32 %v1234, %v1330
  %v1363 = vmul.f32 %v1235, %v1331
  %v1364 = vmul.f32 %v1236, %v1332
  %v1365 = vmul.f32 %v1237, %v1333
  %v1366 = vmul.f32 %v1238, %v1334
  %v1367 = vmul.f32 %v1239, %v1335
  %v1368 = vmul.f32 %v1240, %v1336
  %v1369 = vmul.f32 %v1241, %v1337
  %v1370 = vmul.f32 %v1242, %v1338
  %v1371 = vmul.f32 %v1243, %v1339
  %v1372 = vmul.f32 %v1244, %v1340
  %v1373 = vmul.f32 %v1245, %v1341
  %v1374 = vmul.f32 %v1246, %v1342
  %v1375 = vmul.f32 %v1247, %v1343
  %v1376 = vmul.f32 %v1248, %v1344
  %v1377 = vmul.f32 %v1249, %v1345
  %v1378 = vmul.f32 %v1250, %v1346
  %v1379 = vmul.f32 %v1251, %v1347
  %v1380 = vmul.f32 %v1252, %v1348
  %v1381 = vmul.f32 %v1253, %v1349
  %v1382 = vmul.f32 %v1254, %v1350
  %v1383 = vmul.f32 %v1255, %v1351
  %v1384 = vmul.f32 %v1256, %v1352
  %v1385 = vmul.f32 %v1257, %v1353
  %v1386 = vmul.f32 %v1258, %v1354
  %v1387 = vmul.f32 %v1259, %v1355
  %v1388 = vmul.f32 %v1260, %v1356
  %v1389 = vmul.f32 %v1261, %v1357
  %v1390 = vmul.f32 %v1262, %v1358
  %v1391 = vpack.c.bf16 %v1375, %v1359
  %v1392 = vpack.c.bf16 %v1376, %v1360
  %v1393 = vpack.c.bf16 %v1377, %v1361
  %v1394 = vpack.c.bf16 %v1378, %v1362
  %v1395 = vpack.c.bf16 %v1379, %v1363
  %v1396 = vpack.c.bf16 %v1380, %v1364
  %v1397 = vpack.c.bf16 %v1381, %v1365
  %v1398 = vpack.c.bf16 %v1382, %v1366
  %v1399 = vpack.c.bf16 %v1383, %v1367
  %v1400 = vpack.c.bf16 %v1384, %v1368
  %v1401 = vpack.c.bf16 %v1385, %v1369
  %v1402 = vpack.c.bf16 %v1386, %v1370
  %v1403 = vpack.c.bf16 %v1387, %v1371
  %v1404 = vpack.c.bf16 %v1388, %v1372
  %v1405 = vpack.c.bf16 %v1389, %v1373
  %v1406 = vpack.c.bf16 %v1390, %v1374
  %v1407 = vld [vmem:[%s3] sm:$0xf]
  %v1408 = vld [vmem:[%s3 + $0x4] sm:$0xf]
  %v1409 = vld [vmem:[%s3 + $0x8] sm:$0xf]
  %v1410 = vld [vmem:[%s3 + $0xc] sm:$0xf]
  %v1411 = vld [vmem:[%s3 + $0x10] sm:$0xf]
  %v1412 = vld [vmem:[%s3 + $0x14] sm:$0xf]
  %v1413 = vld [vmem:[%s3 + $0x18] sm:$0xf]
  %v1414 = vld [vmem:[%s3 + $0x1c] sm:$0xf]
  %v1415 = vld [vmem:[%s3 + $0x20] sm:$0xf]
  %v1416 = vld [vmem:[%s3 + $0x24] sm:$0xf]
  %v1417 = vld [vmem:[%s3 + $0x28] sm:$0xf]
  %v1418 = vld [vmem:[%s3 + $0x2c] sm:$0xf]
  %v1419 = vld [vmem:[%s3 + $0x30] sm:$0xf]
  %v1420 = vld [vmem:[%s3 + $0x34] sm:$0xf]
  %v1421 = vld [vmem:[%s3 + $0x38] sm:$0xf]
  %v1422 = vld [vmem:[%s3 + $0x3c] sm:$0xf]
  %v1423 = vld [vmem:[%s3 + $0x40] sm:$0xf]
  %v1424 = vld [vmem:[%s3 + $0x44] sm:$0xf]
  %v1425 = vld [vmem:[%s3 + $0x48] sm:$0xf]
  %v1426 = vld [vmem:[%s3 + $0x4c] sm:$0xf]
  %v1427 = vld [vmem:[%s3 + $0x50] sm:$0xf]
  %v1428 = vld [vmem:[%s3 + $0x54] sm:$0xf]
  %v1429 = vld [vmem:[%s3 + $0x58] sm:$0xf]
  %v1430 = vld [vmem:[%s3 + $0x5c] sm:$0xf]
  %v1431 = vld [vmem:[%s3 + $0x60] sm:$0xf]
  %v1432 = vld [vmem:[%s3 + $0x64] sm:$0xf]
  %v1433 = vld [vmem:[%s3 + $0x68] sm:$0xf]
  %v1434 = vld [vmem:[%s3 + $0x6c] sm:$0xf]
  %v1435 = vld [vmem:[%s3 + $0x70] sm:$0xf]
  %v1436 = vld [vmem:[%s3 + $0x74] sm:$0xf]
  %v1437 = vld [vmem:[%s3 + $0x78] sm:$0xf]
  %v1438 = vld [vmem:[%s3 + $0x7c] sm:$0xf]
  %v1439 = vld [vmem:[%s3 + $0x80] sm:$0xf]
  %v1440 = vld [vmem:[%s3 + $0x84] sm:$0xf]
  %v1441 = vld [vmem:[%s3 + $0x88] sm:$0xf]
  %v1442 = vld [vmem:[%s3 + $0x8c] sm:$0xf]
  %v1443 = vld [vmem:[%s3 + $0x90] sm:$0xf]
  %v1444 = vld [vmem:[%s3 + $0x94] sm:$0xf]
  %v1445 = vld [vmem:[%s3 + $0x98] sm:$0xf]
  %v1446 = vld [vmem:[%s3 + $0x9c] sm:$0xf]
  %v1447 = vld [vmem:[%s3 + $0xa0] sm:$0xf]
  %v1448 = vld [vmem:[%s3 + $0xa4] sm:$0xf]
  %v1449 = vld [vmem:[%s3 + $0xa8] sm:$0xf]
  %v1450 = vld [vmem:[%s3 + $0xac] sm:$0xf]
  %v1451 = vld [vmem:[%s3 + $0xb0] sm:$0xf]
  %v1452 = vld [vmem:[%s3 + $0xb4] sm:$0xf]
  %v1453 = vld [vmem:[%s3 + $0xb8] sm:$0xf]
  %v1454 = vld [vmem:[%s3 + $0xbc] sm:$0xf]
  %v1455 = vld [vmem:[%s3 + $0xc0] sm:$0xf]
  %v1456 = vld [vmem:[%s3 + $0xc4] sm:$0xf]
  %v1457 = vld [vmem:[%s3 + $0xc8] sm:$0xf]
  %v1458 = vld [vmem:[%s3 + $0xcc] sm:$0xf]
  %v1459 = vld [vmem:[%s3 + $0xd0] sm:$0xf]
  %v1460 = vld [vmem:[%s3 + $0xd4] sm:$0xf]
  %v1461 = vld [vmem:[%s3 + $0xd8] sm:$0xf]
  %v1462 = vld [vmem:[%s3 + $0xdc] sm:$0xf]
  %v1463 = vld [vmem:[%s3 + $0xe0] sm:$0xf]
  %v1464 = vld [vmem:[%s3 + $0xe4] sm:$0xf]
  %v1465 = vld [vmem:[%s3 + $0xe8] sm:$0xf]
  %v1466 = vld [vmem:[%s3 + $0xec] sm:$0xf]
  %v1467 = vld [vmem:[%s3 + $0xf0] sm:$0xf]
  %v1468 = vld [vmem:[%s3 + $0xf4] sm:$0xf]
  %v1469 = vld [vmem:[%s3 + $0xf8] sm:$0xf]
  %v1470 = vld [vmem:[%s3 + $0xfc] sm:$0xf]
  %v1471 = vld [vmem:[%s3 + $0x100] sm:$0xf]
  %v1472 = vld [vmem:[%s3 + $0x104] sm:$0xf]
  %v1473 = vld [vmem:[%s3 + $0x108] sm:$0xf]
  %v1474 = vld [vmem:[%s3 + $0x10c] sm:$0xf]
  %v1475 = vld [vmem:[%s3 + $0x110] sm:$0xf]
  %v1476 = vld [vmem:[%s3 + $0x114] sm:$0xf]
  %v1477 = vld [vmem:[%s3 + $0x118] sm:$0xf]
  %v1478 = vld [vmem:[%s3 + $0x11c] sm:$0xf]
  %v1479 = vld [vmem:[%s3 + $0x120] sm:$0xf]
  %v1480 = vld [vmem:[%s3 + $0x124] sm:$0xf]
  %v1481 = vld [vmem:[%s3 + $0x128] sm:$0xf]
  %v1482 = vld [vmem:[%s3 + $0x12c] sm:$0xf]
  %v1483 = vld [vmem:[%s3 + $0x130] sm:$0xf]
  %v1484 = vld [vmem:[%s3 + $0x134] sm:$0xf]
  %v1485 = vld [vmem:[%s3 + $0x138] sm:$0xf]
  %v1486 = vld [vmem:[%s3 + $0x13c] sm:$0xf]
  %v1487 = vld [vmem:[%s3 + $0x140] sm:$0xf]
  %v1488 = vld [vmem:[%s3 + $0x144] sm:$0xf]
  %v1489 = vld [vmem:[%s3 + $0x148] sm:$0xf]
  %v1490 = vld [vmem:[%s3 + $0x14c] sm:$0xf]
  %v1491 = vld [vmem:[%s3 + $0x150] sm:$0xf]
  %v1492 = vld [vmem:[%s3 + $0x154] sm:$0xf]
  %v1493 = vld [vmem:[%s3 + $0x158] sm:$0xf]
  %v1494 = vld [vmem:[%s3 + $0x15c] sm:$0xf]
  %v1495 = vld [vmem:[%s3 + $0x160] sm:$0xf]
  %v1496 = vld [vmem:[%s3 + $0x164] sm:$0xf]
  %v1497 = vld [vmem:[%s3 + $0x168] sm:$0xf]
  %v1498 = vld [vmem:[%s3 + $0x16c] sm:$0xf]
  %v1499 = vld [vmem:[%s3 + $0x170] sm:$0xf]
  %v1500 = vld [vmem:[%s3 + $0x174] sm:$0xf]
  %v1501 = vld [vmem:[%s3 + $0x178] sm:$0xf]
  %v1502 = vld [vmem:[%s3 + $0x17c] sm:$0xf]
  %v1503 = vld [vmem:[%s3 + $0x180] sm:$0xf]
  %v1504 = vld [vmem:[%s3 + $0x184] sm:$0xf]
  %v1505 = vld [vmem:[%s3 + $0x188] sm:$0xf]
  %v1506 = vld [vmem:[%s3 + $0x18c] sm:$0xf]
  %v1507 = vld [vmem:[%s3 + $0x190] sm:$0xf]
  %v1508 = vld [vmem:[%s3 + $0x194] sm:$0xf]
  %v1509 = vld [vmem:[%s3 + $0x198] sm:$0xf]
  %v1510 = vld [vmem:[%s3 + $0x19c] sm:$0xf]
  %v1511 = vld [vmem:[%s3 + $0x1a0] sm:$0xf]
  %v1512 = vld [vmem:[%s3 + $0x1a4] sm:$0xf]
  %v1513 = vld [vmem:[%s3 + $0x1a8] sm:$0xf]
  %v1514 = vld [vmem:[%s3 + $0x1ac] sm:$0xf]
  %v1515 = vld [vmem:[%s3 + $0x1b0] sm:$0xf]
  %v1516 = vld [vmem:[%s3 + $0x1b4] sm:$0xf]
  %v1517 = vld [vmem:[%s3 + $0x1b8] sm:$0xf]
  %v1518 = vld [vmem:[%s3 + $0x1bc] sm:$0xf]
  %v1519 = vld [vmem:[%s3 + $0x1c0] sm:$0xf]
  %v1520 = vld [vmem:[%s3 + $0x1c4] sm:$0xf]
  %v1521 = vld [vmem:[%s3 + $0x1c8] sm:$0xf]
  %v1522 = vld [vmem:[%s3 + $0x1cc] sm:$0xf]
  %v1523 = vld [vmem:[%s3 + $0x1d0] sm:$0xf]
  %v1524 = vld [vmem:[%s3 + $0x1d4] sm:$0xf]
  %v1525 = vld [vmem:[%s3 + $0x1d8] sm:$0xf]
  %v1526 = vld [vmem:[%s3 + $0x1dc] sm:$0xf]
  %v1527 = vld [vmem:[%s3 + $0x1e0] sm:$0xf]
  %v1528 = vld [vmem:[%s3 + $0x1e4] sm:$0xf]
  %v1529 = vld [vmem:[%s3 + $0x1e8] sm:$0xf]
  %v1530 = vld [vmem:[%s3 + $0x1ec] sm:$0xf]
  %v1531 = vld [vmem:[%s3 + $0x1f0] sm:$0xf]
  %v1532 = vld [vmem:[%s3 + $0x1f4] sm:$0xf]
  %v1533 = vld [vmem:[%s3 + $0x1f8] sm:$0xf]
  %v1534 = vld [vmem:[%s3 + $0x1fc] sm:$0xf]
  %v1535 = vld [vmem:[%s3 + $0x200] sm:$0xf]
  %v1536 = vld [vmem:[%s3 + $0x204] sm:$0xf]
  %v1537 = vld [vmem:[%s3 + $0x208] sm:$0xf]
  %v1538 = vld [vmem:[%s3 + $0x20c] sm:$0xf]
  %v1539 = vld [vmem:[%s3 + $0x210] sm:$0xf]
  %v1540 = vld [vmem:[%s3 + $0x214] sm:$0xf]
  %v1541 = vld [vmem:[%s3 + $0x218] sm:$0xf]
  %v1542 = vld [vmem:[%s3 + $0x21c] sm:$0xf]
  %v1543 = vld [vmem:[%s3 + $0x220] sm:$0xf]
  %v1544 = vld [vmem:[%s3 + $0x224] sm:$0xf]
  %v1545 = vld [vmem:[%s3 + $0x228] sm:$0xf]
  %v1546 = vld [vmem:[%s3 + $0x22c] sm:$0xf]
  %v1547 = vld [vmem:[%s3 + $0x230] sm:$0xf]
  %v1548 = vld [vmem:[%s3 + $0x234] sm:$0xf]
  %v1549 = vld [vmem:[%s3 + $0x238] sm:$0xf]
  %v1550 = vld [vmem:[%s3 + $0x23c] sm:$0xf]
  %v1551 = vld [vmem:[%s3 + $0x240] sm:$0xf]
  %v1552 = vld [vmem:[%s3 + $0x244] sm:$0xf]
  %v1553 = vld [vmem:[%s3 + $0x248] sm:$0xf]
  %v1554 = vld [vmem:[%s3 + $0x24c] sm:$0xf]
  %v1555 = vld [vmem:[%s3 + $0x250] sm:$0xf]
  %v1556 = vld [vmem:[%s3 + $0x254] sm:$0xf]
  %v1557 = vld [vmem:[%s3 + $0x258] sm:$0xf]
  %v1558 = vld [vmem:[%s3 + $0x25c] sm:$0xf]
  %v1559 = vld [vmem:[%s3 + $0x260] sm:$0xf]
  %v1560 = vld [vmem:[%s3 + $0x264] sm:$0xf]
  %v1561 = vld [vmem:[%s3 + $0x268] sm:$0xf]
  %v1562 = vld [vmem:[%s3 + $0x26c] sm:$0xf]
  %v1563 = vld [vmem:[%s3 + $0x270] sm:$0xf]
  %v1564 = vld [vmem:[%s3 + $0x274] sm:$0xf]
  %v1565 = vld [vmem:[%s3 + $0x278] sm:$0xf]
  %v1566 = vld [vmem:[%s3 + $0x27c] sm:$0xf]
  %v1567 = vld [vmem:[%s3 + $0x280] sm:$0xf]
  %v1568 = vld [vmem:[%s3 + $0x284] sm:$0xf]
  %v1569 = vld [vmem:[%s3 + $0x288] sm:$0xf]
  %v1570 = vld [vmem:[%s3 + $0x28c] sm:$0xf]
  %v1571 = vld [vmem:[%s3 + $0x290] sm:$0xf]
  %v1572 = vld [vmem:[%s3 + $0x294] sm:$0xf]
  %v1573 = vld [vmem:[%s3 + $0x298] sm:$0xf]
  %v1574 = vld [vmem:[%s3 + $0x29c] sm:$0xf]
  %v1575 = vld [vmem:[%s3 + $0x2a0] sm:$0xf]
  %v1576 = vld [vmem:[%s3 + $0x2a4] sm:$0xf]
  %v1577 = vld [vmem:[%s3 + $0x2a8] sm:$0xf]
  %v1578 = vld [vmem:[%s3 + $0x2ac] sm:$0xf]
  %v1579 = vld [vmem:[%s3 + $0x2b0] sm:$0xf]
  %v1580 = vld [vmem:[%s3 + $0x2b4] sm:$0xf]
  %v1581 = vld [vmem:[%s3 + $0x2b8] sm:$0xf]
  %v1582 = vld [vmem:[%s3 + $0x2bc] sm:$0xf]
  %v1583 = vld [vmem:[%s3 + $0x2c0] sm:$0xf]
  %v1584 = vld [vmem:[%s3 + $0x2c4] sm:$0xf]
  %v1585 = vld [vmem:[%s3 + $0x2c8] sm:$0xf]
  %v1586 = vld [vmem:[%s3 + $0x2cc] sm:$0xf]
  %v1587 = vld [vmem:[%s3 + $0x2d0] sm:$0xf]
  %v1588 = vld [vmem:[%s3 + $0x2d4] sm:$0xf]
  %v1589 = vld [vmem:[%s3 + $0x2d8] sm:$0xf]
  %v1590 = vld [vmem:[%s3 + $0x2dc] sm:$0xf]
  %v1591 = vld [vmem:[%s3 + $0x2e0] sm:$0xf]
  %v1592 = vld [vmem:[%s3 + $0x2e4] sm:$0xf]
  %v1593 = vld [vmem:[%s3 + $0x2e8] sm:$0xf]
  %v1594 = vld [vmem:[%s3 + $0x2ec] sm:$0xf]
  %v1595 = vld [vmem:[%s3 + $0x2f0] sm:$0xf]
  %v1596 = vld [vmem:[%s3 + $0x2f4] sm:$0xf]
  %v1597 = vld [vmem:[%s3 + $0x2f8] sm:$0xf]
  %v1598 = vld [vmem:[%s3 + $0x2fc] sm:$0xf]
  %v1599 = vld [vmem:[%s3 + $0x300] sm:$0xf]
  %v1600 = vld [vmem:[%s3 + $0x304] sm:$0xf]
  %v1601 = vld [vmem:[%s3 + $0x308] sm:$0xf]
  %v1602 = vld [vmem:[%s3 + $0x30c] sm:$0xf]
  %v1603 = vld [vmem:[%s3 + $0x310] sm:$0xf]
  %v1604 = vld [vmem:[%s3 + $0x314] sm:$0xf]
  %v1605 = vld [vmem:[%s3 + $0x318] sm:$0xf]
  %v1606 = vld [vmem:[%s3 + $0x31c] sm:$0xf]
  %v1607 = vld [vmem:[%s3 + $0x320] sm:$0xf]
  %v1608 = vld [vmem:[%s3 + $0x324] sm:$0xf]
  %v1609 = vld [vmem:[%s3 + $0x328] sm:$0xf]
  %v1610 = vld [vmem:[%s3 + $0x32c] sm:$0xf]
  %v1611 = vld [vmem:[%s3 + $0x330] sm:$0xf]
  %v1612 = vld [vmem:[%s3 + $0x334] sm:$0xf]
  %v1613 = vld [vmem:[%s3 + $0x338] sm:$0xf]
  %v1614 = vld [vmem:[%s3 + $0x33c] sm:$0xf]
  %v1615 = vld [vmem:[%s3 + $0x340] sm:$0xf]
  %v1616 = vld [vmem:[%s3 + $0x344] sm:$0xf]
  %v1617 = vld [vmem:[%s3 + $0x348] sm:$0xf]
  %v1618 = vld [vmem:[%s3 + $0x34c] sm:$0xf]
  %v1619 = vld [vmem:[%s3 + $0x350] sm:$0xf]
  %v1620 = vld [vmem:[%s3 + $0x354] sm:$0xf]
  %v1621 = vld [vmem:[%s3 + $0x358] sm:$0xf]
  %v1622 = vld [vmem:[%s3 + $0x35c] sm:$0xf]
  %v1623 = vld [vmem:[%s3 + $0x360] sm:$0xf]
  %v1624 = vld [vmem:[%s3 + $0x364] sm:$0xf]
  %v1625 = vld [vmem:[%s3 + $0x368] sm:$0xf]
  %v1626 = vld [vmem:[%s3 + $0x36c] sm:$0xf]
  %v1627 = vld [vmem:[%s3 + $0x370] sm:$0xf]
  %v1628 = vld [vmem:[%s3 + $0x374] sm:$0xf]
  %v1629 = vld [vmem:[%s3 + $0x378] sm:$0xf]
  %v1630 = vld [vmem:[%s3 + $0x37c] sm:$0xf]
  %v1631 = vld [vmem:[%s3 + $0x380] sm:$0xf]
  %v1632 = vld [vmem:[%s3 + $0x384] sm:$0xf]
  %v1633 = vld [vmem:[%s3 + $0x388] sm:$0xf]
  %v1634 = vld [vmem:[%s3 + $0x38c] sm:$0xf]
  %v1635 = vld [vmem:[%s3 + $0x390] sm:$0xf]
  %v1636 = vld [vmem:[%s3 + $0x394] sm:$0xf]
  %v1637 = vld [vmem:[%s3 + $0x398] sm:$0xf]
  %v1638 = vld [vmem:[%s3 + $0x39c] sm:$0xf]
  %v1639 = vld [vmem:[%s3 + $0x3a0] sm:$0xf]
  %v1640 = vld [vmem:[%s3 + $0x3a4] sm:$0xf]
  %v1641 = vld [vmem:[%s3 + $0x3a8] sm:$0xf]
  %v1642 = vld [vmem:[%s3 + $0x3ac] sm:$0xf]
  %v1643 = vld [vmem:[%s3 + $0x3b0] sm:$0xf]
  %v1644 = vld [vmem:[%s3 + $0x3b4] sm:$0xf]
  %v1645 = vld [vmem:[%s3 + $0x3b8] sm:$0xf]
  %v1646 = vld [vmem:[%s3 + $0x3bc] sm:$0xf]
  %v1647 = vld [vmem:[%s3 + $0x3c0] sm:$0xf]
  %v1648 = vld [vmem:[%s3 + $0x3c4] sm:$0xf]
  %v1649 = vld [vmem:[%s3 + $0x3c8] sm:$0xf]
  %v1650 = vld [vmem:[%s3 + $0x3cc] sm:$0xf]
  %v1651 = vld [vmem:[%s3 + $0x3d0] sm:$0xf]
  %v1652 = vld [vmem:[%s3 + $0x3d4] sm:$0xf]
  %v1653 = vld [vmem:[%s3 + $0x3d8] sm:$0xf]
  %v1654 = vld [vmem:[%s3 + $0x3dc] sm:$0xf]
  %v1655 = vld [vmem:[%s3 + $0x3e0] sm:$0xf]
  %v1656 = vld [vmem:[%s3 + $0x3e4] sm:$0xf]
  %v1657 = vld [vmem:[%s3 + $0x3e8] sm:$0xf]
  %v1658 = vld [vmem:[%s3 + $0x3ec] sm:$0xf]
  %v1659 = vld [vmem:[%s3 + $0x3f0] sm:$0xf]
  %v1660 = vld [vmem:[%s3 + $0x3f4] sm:$0xf]
  %v1661 = vld [vmem:[%s3 + $0x3f8] sm:$0xf]
  %v1662 = vld [vmem:[%s3 + $0x3fc] sm:$0xf]
  %v1663 = vld [vmem:[%s4] sm:$0x1]
  %v1665 = vlaneseq
  %v1666 = vshrl.u32 %v1665, 7
  %v1667 = vsub.s32 0, %v1666
  %v1668 = vrot.slane %v1663, %v1667
  %v1926 = vunpack.c.l.b16 %v1407
  %v1927 = vunpack.c.l.b16 %v1408
  %v1928 = vunpack.c.l.b16 %v1409
  %v1929 = vunpack.c.l.b16 %v1410
  %v1930 = vunpack.c.l.b16 %v1411
  %v1931 = vunpack.c.l.b16 %v1412
  %v1932 = vunpack.c.l.b16 %v1413
  %v1933 = vunpack.c.l.b16 %v1414
  %v1934 = vunpack.c.l.b16 %v1415
  %v1935 = vunpack.c.l.b16 %v1416
  %v1936 = vunpack.c.l.b16 %v1417
  %v1937 = vunpack.c.l.b16 %v1418
  %v1938 = vunpack.c.l.b16 %v1419
  %v1939 = vunpack.c.l.b16 %v1420
  %v1940 = vunpack.c.l.b16 %v1421
  %v1941 = vunpack.c.l.b16 %v1422
  %v1942 = vunpack.c.l.b16 %v1423
  %v1943 = vunpack.c.l.b16 %v1424
  %v1944 = vunpack.c.l.b16 %v1425
  %v1945 = vunpack.c.l.b16 %v1426
  %v1946 = vunpack.c.l.b16 %v1427
  %v1947 = vunpack.c.l.b16 %v1428
  %v1948 = vunpack.c.l.b16 %v1429
  %v1949 = vunpack.c.l.b16 %v1430
  %v1950 = vunpack.c.l.b16 %v1431
  %v1951 = vunpack.c.l.b16 %v1432
  %v1952 = vunpack.c.l.b16 %v1433
  %v1953 = vunpack.c.l.b16 %v1434
  %v1954 = vunpack.c.l.b16 %v1435
  %v1955 = vunpack.c.l.b16 %v1436
  %v1956 = vunpack.c.l.b16 %v1437
  %v1957 = vunpack.c.l.b16 %v1438
  %v1958 = vunpack.c.l.b16 %v1439
  %v1959 = vunpack.c.l.b16 %v1440
  %v1960 = vunpack.c.l.b16 %v1441
  %v1961 = vunpack.c.l.b16 %v1442
  %v1962 = vunpack.c.l.b16 %v1443
  %v1963 = vunpack.c.l.b16 %v1444
  %v1964 = vunpack.c.l.b16 %v1445
  %v1965 = vunpack.c.l.b16 %v1446
  %v1966 = vunpack.c.l.b16 %v1447
  %v1967 = vunpack.c.l.b16 %v1448
  %v1968 = vunpack.c.l.b16 %v1449
  %v1969 = vunpack.c.l.b16 %v1450
  %v1970 = vunpack.c.l.b16 %v1451
  %v1971 = vunpack.c.l.b16 %v1452
  %v1972 = vunpack.c.l.b16 %v1453
  %v1973 = vunpack.c.l.b16 %v1454
  %v1974 = vunpack.c.l.b16 %v1455
  %v1975 = vunpack.c.l.b16 %v1456
  %v1976 = vunpack.c.l.b16 %v1457
  %v1977 = vunpack.c.l.b16 %v1458
  %v1978 = vunpack.c.l.b16 %v1459
  %v1979 = vunpack.c.l.b16 %v1460
  %v1980 = vunpack.c.l.b16 %v1461
  %v1981 = vunpack.c.l.b16 %v1462
  %v1982 = vunpack.c.l.b16 %v1463
  %v1983 = vunpack.c.l.b16 %v1464
  %v1984 = vunpack.c.l.b16 %v1465
  %v1985 = vunpack.c.l.b16 %v1466
  %v1986 = vunpack.c.l.b16 %v1467
  %v1987 = vunpack.c.l.b16 %v1468
  %v1988 = vunpack.c.l.b16 %v1469
  %v1989 = vunpack.c.l.b16 %v1470
  %v1990 = vunpack.c.l.b16 %v1471
  %v1991 = vunpack.c.l.b16 %v1472
  %v1992 = vunpack.c.l.b16 %v1473
  %v1993 = vunpack.c.l.b16 %v1474
  %v1994 = vunpack.c.l.b16 %v1475
  %v1995 = vunpack.c.l.b16 %v1476
  %v1996 = vunpack.c.l.b16 %v1477
  %v1997 = vunpack.c.l.b16 %v1478
  %v1998 = vunpack.c.l.b16 %v1479
  %v1999 = vunpack.c.l.b16 %v1480
  %v2000 = vunpack.c.l.b16 %v1481
  %v2001 = vunpack.c.l.b16 %v1482
  %v2002 = vunpack.c.l.b16 %v1483
  %v2003 = vunpack.c.l.b16 %v1484
  %v2004 = vunpack.c.l.b16 %v1485
  %v2005 = vunpack.c.l.b16 %v1486
  %v2006 = vunpack.c.l.b16 %v1487
  %v2007 = vunpack.c.l.b16 %v1488
  %v2008 = vunpack.c.l.b16 %v1489
  %v2009 = vunpack.c.l.b16 %v1490
  %v2010 = vunpack.c.l.b16 %v1491
  %v2011 = vunpack.c.l.b16 %v1492
  %v2012 = vunpack.c.l.b16 %v1493
  %v2013 = vunpack.c.l.b16 %v1494
  %v2014 = vunpack.c.l.b16 %v1495
  %v2015 = vunpack.c.l.b16 %v1496
  %v2016 = vunpack.c.l.b16 %v1497
  %v2017 = vunpack.c.l.b16 %v1498
  %v2018 = vunpack.c.l.b16 %v1499
  %v2019 = vunpack.c.l.b16 %v1500
  %v2020 = vunpack.c.l.b16 %v1501
  %v2021 = vunpack.c.l.b16 %v1502
  %v2022 = vunpack.c.l.b16 %v1503
  %v2023 = vunpack.c.l.b16 %v1504
  %v2024 = vunpack.c.l.b16 %v1505
  %v2025 = vunpack.c.l.b16 %v1506
  %v2026 = vunpack.c.l.b16 %v1507
  %v2027 = vunpack.c.l.b16 %v1508
  %v2028 = vunpack.c.l.b16 %v1509
  %v2029 = vunpack.c.l.b16 %v1510
  %v2030 = vunpack.c.l.b16 %v1511
  %v2031 = vunpack.c.l.b16 %v1512
  %v2032 = vunpack.c.l.b16 %v1513
  %v2033 = vunpack.c.l.b16 %v1514
  %v2034 = vunpack.c.l.b16 %v1515
  %v2035 = vunpack.c.l.b16 %v1516
  %v2036 = vunpack.c.l.b16 %v1517
  %v2037 = vunpack.c.l.b16 %v1518
  %v2038 = vunpack.c.l.b16 %v1519
  %v2039 = vunpack.c.l.b16 %v1520
  %v2040 = vunpack.c.l.b16 %v1521
  %v2041 = vunpack.c.l.b16 %v1522
  %v2042 = vunpack.c.l.b16 %v1523
  %v2043 = vunpack.c.l.b16 %v1524
  %v2044 = vunpack.c.l.b16 %v1525
  %v2045 = vunpack.c.l.b16 %v1526
  %v2046 = vunpack.c.l.b16 %v1527
  %v2047 = vunpack.c.l.b16 %v1528
  %v2048 = vunpack.c.l.b16 %v1529
  %v2049 = vunpack.c.l.b16 %v1530
  %v2050 = vunpack.c.l.b16 %v1531
  %v2051 = vunpack.c.l.b16 %v1532
  %v2052 = vunpack.c.l.b16 %v1533
  %v2053 = vunpack.c.l.b16 %v1534
  %v2054 = vunpack.c.l.b16 %v1535
  %v2055 = vunpack.c.l.b16 %v1536
  %v2056 = vunpack.c.l.b16 %v1537
  %v2057 = vunpack.c.l.b16 %v1538
  %v2058 = vunpack.c.l.b16 %v1539
  %v2059 = vunpack.c.l.b16 %v1540
  %v2060 = vunpack.c.l.b16 %v1541
  %v2061 = vunpack.c.l.b16 %v1542
  %v2062 = vunpack.c.l.b16 %v1543
  %v2063 = vunpack.c.l.b16 %v1544
  %v2064 = vunpack.c.l.b16 %v1545
  %v2065 = vunpack.c.l.b16 %v1546
  %v2066 = vunpack.c.l.b16 %v1547
  %v2067 = vunpack.c.l.b16 %v1548
  %v2068 = vunpack.c.l.b16 %v1549
  %v2069 = vunpack.c.l.b16 %v1550
  %v2070 = vunpack.c.l.b16 %v1551
  %v2071 = vunpack.c.l.b16 %v1552
  %v2072 = vunpack.c.l.b16 %v1553
  %v2073 = vunpack.c.l.b16 %v1554
  %v2074 = vunpack.c.l.b16 %v1555
  %v2075 = vunpack.c.l.b16 %v1556
  %v2076 = vunpack.c.l.b16 %v1557
  %v2077 = vunpack.c.l.b16 %v1558
  %v2078 = vunpack.c.l.b16 %v1559
  %v2079 = vunpack.c.l.b16 %v1560
  %v2080 = vunpack.c.l.b16 %v1561
  %v2081 = vunpack.c.l.b16 %v1562
  %v2082 = vunpack.c.l.b16 %v1563
  %v2083 = vunpack.c.l.b16 %v1564
  %v2084 = vunpack.c.l.b16 %v1565
  %v2085 = vunpack.c.l.b16 %v1566
  %v2086 = vunpack.c.l.b16 %v1567
  %v2087 = vunpack.c.l.b16 %v1568
  %v2088 = vunpack.c.l.b16 %v1569
  %v2089 = vunpack.c.l.b16 %v1570
  %v2090 = vunpack.c.l.b16 %v1571
  %v2091 = vunpack.c.l.b16 %v1572
  %v2092 = vunpack.c.l.b16 %v1573
  %v2093 = vunpack.c.l.b16 %v1574
  %v2094 = vunpack.c.l.b16 %v1575
  %v2095 = vunpack.c.l.b16 %v1576
  %v2096 = vunpack.c.l.b16 %v1577
  %v2097 = vunpack.c.l.b16 %v1578
  %v2098 = vunpack.c.l.b16 %v1579
  %v2099 = vunpack.c.l.b16 %v1580
  %v2100 = vunpack.c.l.b16 %v1581
  %v2101 = vunpack.c.l.b16 %v1582
  %v2102 = vunpack.c.l.b16 %v1583
  %v2103 = vunpack.c.l.b16 %v1584
  %v2104 = vunpack.c.l.b16 %v1585
  %v2105 = vunpack.c.l.b16 %v1586
  %v2106 = vunpack.c.l.b16 %v1587
  %v2107 = vunpack.c.l.b16 %v1588
  %v2108 = vunpack.c.l.b16 %v1589
  %v2109 = vunpack.c.l.b16 %v1590
  %v2110 = vunpack.c.l.b16 %v1591
  %v2111 = vunpack.c.l.b16 %v1592
  %v2112 = vunpack.c.l.b16 %v1593
  %v2113 = vunpack.c.l.b16 %v1594
  %v2114 = vunpack.c.l.b16 %v1595
  %v2115 = vunpack.c.l.b16 %v1596
  %v2116 = vunpack.c.l.b16 %v1597
  %v2117 = vunpack.c.l.b16 %v1598
  %v2118 = vunpack.c.l.b16 %v1599
  %v2119 = vunpack.c.l.b16 %v1600
  %v2120 = vunpack.c.l.b16 %v1601
  %v2121 = vunpack.c.l.b16 %v1602
  %v2122 = vunpack.c.l.b16 %v1603
  %v2123 = vunpack.c.l.b16 %v1604
  %v2124 = vunpack.c.l.b16 %v1605
  %v2125 = vunpack.c.l.b16 %v1606
  %v2126 = vunpack.c.l.b16 %v1607
  %v2127 = vunpack.c.l.b16 %v1608
  %v2128 = vunpack.c.l.b16 %v1609
  %v2129 = vunpack.c.l.b16 %v1610
  %v2130 = vunpack.c.l.b16 %v1611
  %v2131 = vunpack.c.l.b16 %v1612
  %v2132 = vunpack.c.l.b16 %v1613
  %v2133 = vunpack.c.l.b16 %v1614
  %v2134 = vunpack.c.l.b16 %v1615
  %v2135 = vunpack.c.l.b16 %v1616
  %v2136 = vunpack.c.l.b16 %v1617
  %v2137 = vunpack.c.l.b16 %v1618
  %v2138 = vunpack.c.l.b16 %v1619
  %v2139 = vunpack.c.l.b16 %v1620
  %v2140 = vunpack.c.l.b16 %v1621
  %v2141 = vunpack.c.l.b16 %v1622
  %v2142 = vunpack.c.l.b16 %v1623
  %v2143 = vunpack.c.l.b16 %v1624
  %v2144 = vunpack.c.l.b16 %v1625
  %v2145 = vunpack.c.l.b16 %v1626
  %v2146 = vunpack.c.l.b16 %v1627
  %v2147 = vunpack.c.l.b16 %v1628
  %v2148 = vunpack.c.l.b16 %v1629
  %v2149 = vunpack.c.l.b16 %v1630
  %v2150 = vunpack.c.l.b16 %v1631
  %v2151 = vunpack.c.l.b16 %v1632
  %v2152 = vunpack.c.l.b16 %v1633
  %v2153 = vunpack.c.l.b16 %v1634
  %v2154 = vunpack.c.l.b16 %v1635
  %v2155 = vunpack.c.l.b16 %v1636
  %v2156 = vunpack.c.l.b16 %v1637
  %v2157 = vunpack.c.l.b16 %v1638
  %v2158 = vunpack.c.l.b16 %v1639
  %v2159 = vunpack.c.l.b16 %v1640
  %v2160 = vunpack.c.l.b16 %v1641
  %v2161 = vunpack.c.l.b16 %v1642
  %v2162 = vunpack.c.l.b16 %v1643
  %v2163 = vunpack.c.l.b16 %v1644
  %v2164 = vunpack.c.l.b16 %v1645
  %v2165 = vunpack.c.l.b16 %v1646
  %v2166 = vunpack.c.l.b16 %v1647
  %v2167 = vunpack.c.l.b16 %v1648
  %v2168 = vunpack.c.l.b16 %v1649
  %v2169 = vunpack.c.l.b16 %v1650
  %v2170 = vunpack.c.l.b16 %v1651
  %v2171 = vunpack.c.l.b16 %v1652
  %v2172 = vunpack.c.l.b16 %v1653
  %v2173 = vunpack.c.l.b16 %v1654
  %v2174 = vunpack.c.l.b16 %v1655
  %v2175 = vunpack.c.l.b16 %v1656
  %v2176 = vunpack.c.l.b16 %v1657
  %v2177 = vunpack.c.l.b16 %v1658
  %v2178 = vunpack.c.l.b16 %v1659
  %v2179 = vunpack.c.l.b16 %v1660
  %v2180 = vunpack.c.l.b16 %v1661
  %v2181 = vunpack.c.l.b16 %v1662
  %v2182 = vpack.c.b16 %v1927, %v1926
  %v2183 = vpack.c.b16 %v1929, %v1928
  %v2184 = vpack.c.b16 %v1931, %v1930
  %v2185 = vpack.c.b16 %v1933, %v1932
  %v2186 = vpack.c.b16 %v1935, %v1934
  %v2187 = vpack.c.b16 %v1937, %v1936
  %v2188 = vpack.c.b16 %v1939, %v1938
  %v2189 = vpack.c.b16 %v1941, %v1940
  %v2190 = vpack.c.b16 %v1943, %v1942
  %v2191 = vpack.c.b16 %v1945, %v1944
  %v2192 = vpack.c.b16 %v1947, %v1946
  %v2193 = vpack.c.b16 %v1949, %v1948
  %v2194 = vpack.c.b16 %v1951, %v1950
  %v2195 = vpack.c.b16 %v1953, %v1952
  %v2196 = vpack.c.b16 %v1955, %v1954
  %v2197 = vpack.c.b16 %v1957, %v1956
  %v2198 = vpack.c.b16 %v1959, %v1958
  %v2199 = vpack.c.b16 %v1961, %v1960
  %v2200 = vpack.c.b16 %v1963, %v1962
  %v2201 = vpack.c.b16 %v1965, %v1964
  %v2202 = vpack.c.b16 %v1967, %v1966
  %v2203 = vpack.c.b16 %v1969, %v1968
  %v2204 = vpack.c.b16 %v1971, %v1970
  %v2205 = vpack.c.b16 %v1973, %v1972
  %v2206 = vpack.c.b16 %v1975, %v1974
  %v2207 = vpack.c.b16 %v1977, %v1976
  %v2208 = vpack.c.b16 %v1979, %v1978
  %v2209 = vpack.c.b16 %v1981, %v1980
  %v2210 = vpack.c.b16 %v1983, %v1982
  %v2211 = vpack.c.b16 %v1985, %v1984
  %v2212 = vpack.c.b16 %v1987, %v1986
  %v2213 = vpack.c.b16 %v1989, %v1988
  %v2214 = vpack.c.b16 %v1991, %v1990
  %v2215 = vpack.c.b16 %v1993, %v1992
  %v2216 = vpack.c.b16 %v1995, %v1994
  %v2217 = vpack.c.b16 %v1997, %v1996
  %v2218 = vpack.c.b16 %v1999, %v1998
  %v2219 = vpack.c.b16 %v2001, %v2000
  %v2220 = vpack.c.b16 %v2003, %v2002
  %v2221 = vpack.c.b16 %v2005, %v2004
  %v2222 = vpack.c.b16 %v2007, %v2006
  %v2223 = vpack.c.b16 %v2009, %v2008
  %v2224 = vpack.c.b16 %v2011, %v2010
  %v2225 = vpack.c.b16 %v2013, %v2012
  %v2226 = vpack.c.b16 %v2015, %v2014
  %v2227 = vpack.c.b16 %v2017, %v2016
  %v2228 = vpack.c.b16 %v2019, %v2018
  %v2229 = vpack.c.b16 %v2021, %v2020
  %v2230 = vpack.c.b16 %v2023, %v2022
  %v2231 = vpack.c.b16 %v2025, %v2024
  %v2232 = vpack.c.b16 %v2027, %v2026
  %v2233 = vpack.c.b16 %v2029, %v2028
  %v2234 = vpack.c.b16 %v2031, %v2030
  %v2235 = vpack.c.b16 %v2033, %v2032
  %v2236 = vpack.c.b16 %v2035, %v2034
  %v2237 = vpack.c.b16 %v2037, %v2036
  %v2238 = vpack.c.b16 %v2039, %v2038
  %v2239 = vpack.c.b16 %v2041, %v2040
  %v2240 = vpack.c.b16 %v2043, %v2042
  %v2241 = vpack.c.b16 %v2045, %v2044
  %v2242 = vpack.c.b16 %v2047, %v2046
  %v2243 = vpack.c.b16 %v2049, %v2048
  %v2244 = vpack.c.b16 %v2051, %v2050
  %v2245 = vpack.c.b16 %v2053, %v2052
  %v2246 = vpack.c.b16 %v2055, %v2054
  %v2247 = vpack.c.b16 %v2057, %v2056
  %v2248 = vpack.c.b16 %v2059, %v2058
  %v2249 = vpack.c.b16 %v2061, %v2060
  %v2250 = vpack.c.b16 %v2063, %v2062
  %v2251 = vpack.c.b16 %v2065, %v2064
  %v2252 = vpack.c.b16 %v2067, %v2066
  %v2253 = vpack.c.b16 %v2069, %v2068
  %v2254 = vpack.c.b16 %v2071, %v2070
  %v2255 = vpack.c.b16 %v2073, %v2072
  %v2256 = vpack.c.b16 %v2075, %v2074
  %v2257 = vpack.c.b16 %v2077, %v2076
  %v2258 = vpack.c.b16 %v2079, %v2078
  %v2259 = vpack.c.b16 %v2081, %v2080
  %v2260 = vpack.c.b16 %v2083, %v2082
  %v2261 = vpack.c.b16 %v2085, %v2084
  %v2262 = vpack.c.b16 %v2087, %v2086
  %v2263 = vpack.c.b16 %v2089, %v2088
  %v2264 = vpack.c.b16 %v2091, %v2090
  %v2265 = vpack.c.b16 %v2093, %v2092
  %v2266 = vpack.c.b16 %v2095, %v2094
  %v2267 = vpack.c.b16 %v2097, %v2096
  %v2268 = vpack.c.b16 %v2099, %v2098
  %v2269 = vpack.c.b16 %v2101, %v2100
  %v2270 = vpack.c.b16 %v2103, %v2102
  %v2271 = vpack.c.b16 %v2105, %v2104
  %v2272 = vpack.c.b16 %v2107, %v2106
  %v2273 = vpack.c.b16 %v2109, %v2108
  %v2274 = vpack.c.b16 %v2111, %v2110
  %v2275 = vpack.c.b16 %v2113, %v2112
  %v2276 = vpack.c.b16 %v2115, %v2114
  %v2277 = vpack.c.b16 %v2117, %v2116
  %v2278 = vpack.c.b16 %v2119, %v2118
  %v2279 = vpack.c.b16 %v2121, %v2120
  %v2280 = vpack.c.b16 %v2123, %v2122
  %v2281 = vpack.c.b16 %v2125, %v2124
  %v2282 = vpack.c.b16 %v2127, %v2126
  %v2283 = vpack.c.b16 %v2129, %v2128
  %v2284 = vpack.c.b16 %v2131, %v2130
  %v2285 = vpack.c.b16 %v2133, %v2132
  %v2286 = vpack.c.b16 %v2135, %v2134
  %v2287 = vpack.c.b16 %v2137, %v2136
  %v2288 = vpack.c.b16 %v2139, %v2138
  %v2289 = vpack.c.b16 %v2141, %v2140
  %v2290 = vpack.c.b16 %v2143, %v2142
  %v2291 = vpack.c.b16 %v2145, %v2144
  %v2292 = vpack.c.b16 %v2147, %v2146
  %v2293 = vpack.c.b16 %v2149, %v2148
  %v2294 = vpack.c.b16 %v2151, %v2150
  %v2295 = vpack.c.b16 %v2153, %v2152
  %v2296 = vpack.c.b16 %v2155, %v2154
  %v2297 = vpack.c.b16 %v2157, %v2156
  %v2298 = vpack.c.b16 %v2159, %v2158
  %v2299 = vpack.c.b16 %v2161, %v2160
  %v2300 = vpack.c.b16 %v2163, %v2162
  %v2301 = vpack.c.b16 %v2165, %v2164
  %v2302 = vpack.c.b16 %v2167, %v2166
  %v2303 = vpack.c.b16 %v2169, %v2168
  %v2304 = vpack.c.b16 %v2171, %v2170
  %v2305 = vpack.c.b16 %v2173, %v2172
  %v2306 = vpack.c.b16 %v2175, %v2174
  %v2307 = vpack.c.b16 %v2177, %v2176
  %v2308 = vpack.c.b16 %v2179, %v2178
  %v2309 = vpack.c.b16 %v2181, %v2180
  %2438 = vmatprep.subr.bf16.mxu0 0
  %2439 = vmatpush1.bf16.msra.mxu0 %v2189
  %2440 = vmatprep.subr.bf16.mxu0 0
  %2441 = vmatpush1.bf16.msra.mxu0 %v2188
  %2442 = vmatprep.subr.bf16.mxu0 0
  %2443 = vmatpush1.bf16.msra.mxu0 %v2187
  %2444 = vmatprep.subr.bf16.mxu0 0
  %2445 = vmatpush1.bf16.msra.mxu0 %v2186
  %2446 = vmatprep.subr.bf16.mxu0 0
  %2447 = vmatpush1.bf16.msra.mxu0 %v2185
  %2448 = vmatprep.subr.bf16.mxu0 0
  %2449 = vmatpush1.bf16.msra.mxu0 %v2184
  %2450 = vmatprep.subr.bf16.mxu0 0
  %2451 = vmatpush1.bf16.msra.mxu0 %v2183
  %2452 = vmatprep.subr.bf16.mxu0 0
  %2453 = vmatpush1.bf16.msra.mxu0 %v2182
  %2454 = vmatprep.subr.bf16.mxu0 0
  %2455 = vmatpush2.bf16.msra.mxu0 %v2197
  %2456 = vmatprep.subr.bf16.mxu0 0
  %2457 = vmatpush2.bf16.msra.mxu0 %v2196
  %2458 = vmatprep.subr.bf16.mxu0 0
  %2459 = vmatpush2.bf16.msra.mxu0 %v2195
  %2460 = vmatprep.subr.bf16.mxu0 0
  %2461 = vmatpush2.bf16.msra.mxu0 %v2194
  %2462 = vmatprep.subr.bf16.mxu0 0
  %2463 = vmatpush2.bf16.msra.mxu0 %v2193
  %2464 = vmatprep.subr.bf16.mxu0 0
  %2465 = vmatpush2.bf16.msra.mxu0 %v2192
  %2466 = vmatprep.subr.bf16.mxu0 0
  %2467 = vmatpush2.bf16.msra.mxu0 %v2191
  %2468 = vmatprep.subr.bf16.mxu0 0
  %2469 = vmatpush2.bf16.msra.mxu0 %v2190
  %2470 = vmatprep.mubr.bf16.mxu0 %v1392
  %2471 = vmatmul.mubr.bf16.gmra.mxu0 %v1391
  %v2472 = vpop.f32.mrf.mxu0
  %v2473 = vadd.f32 %v1668, %v2472
  %v2474 = vpop.f32.mrf.mxu0
  %v2475 = vpop.f32.mrf.mxu0
  %v2476 = vadd.f32 %v1668, %v2475
  %v2477 = vpop.f32.mrf.mxu0
  %2478 = vdwg.mxu0
  %2479 = vmatprep.subr.bf16.mxu0 0
  %2480 = vmatpush1.bf16.msra.mxu0 %v2205
  %2481 = vmatprep.subr.bf16.mxu0 0
  %2482 = vmatpush1.bf16.msra.mxu0 %v2204
  %2483 = vmatprep.subr.bf16.mxu0 0
  %2484 = vmatpush1.bf16.msra.mxu0 %v2203
  %2485 = vmatprep.subr.bf16.mxu0 0
  %2486 = vmatpush1.bf16.msra.mxu0 %v2202
  %2487 = vmatprep.subr.bf16.mxu0 0
  %2488 = vmatpush1.bf16.msra.mxu0 %v2201
  %2489 = vmatprep.subr.bf16.mxu0 0
  %2490 = vmatpush1.bf16.msra.mxu0 %v2200
  %2491 = vmatprep.subr.bf16.mxu0 0
  %2492 = vmatpush1.bf16.msra.mxu0 %v2199
  %2493 = vmatprep.subr.bf16.mxu0 0
  %2494 = vmatpush1.bf16.msra.mxu0 %v2198
  %2495 = vmatprep.subr.bf16.mxu0 0
  %2496 = vmatpush2.bf16.msra.mxu0 %v2213
  %2497 = vmatprep.subr.bf16.mxu0 0
  %2498 = vmatpush2.bf16.msra.mxu0 %v2212
  %2499 = vmatprep.subr.bf16.mxu0 0
  %2500 = vmatpush2.bf16.msra.mxu0 %v2211
  %2501 = vmatprep.subr.bf16.mxu0 0
  %2502 = vmatpush2.bf16.msra.mxu0 %v2210
  %2503 = vmatprep.subr.bf16.mxu0 0
  %2504 = vmatpush2.bf16.msra.mxu0 %v2209
  %2505 = vmatprep.subr.bf16.mxu0 0
  %2506 = vmatpush2.bf16.msra.mxu0 %v2208
  %2507 = vmatprep.subr.bf16.mxu0 0
  %2508 = vmatpush2.bf16.msra.mxu0 %v2207
  %2509 = vmatprep.subr.bf16.mxu0 0
  %2510 = vmatpush2.bf16.msra.mxu0 %v2206
  %2511 = vmatprep.mubr.bf16.mxu0 %v1394
  %2512 = vmatmul.mubr.bf16.gmra.mxu0 %v1393
  %v2513 = vpop.f32.mrf.mxu0
  %v2514 = vadd.f32 %v2473, %v2513
  %v2515 = vpop.f32.mrf.mxu0
  %v2516 = vpop.f32.mrf.mxu0
  %v2517 = vadd.f32 %v2476, %v2516
  %v2518 = vpop.f32.mrf.mxu0
  %2519 = vdwg.mxu0
  %2520 = vmatprep.subr.bf16.mxu0 0
  %2521 = vmatpush1.bf16.msra.mxu0 %v2221
  %2522 = vmatprep.subr.bf16.mxu0 0
  %2523 = vmatpush1.bf16.msra.mxu0 %v2220
  %2524 = vmatprep.subr.bf16.mxu0 0
  %2525 = vmatpush1.bf16.msra.mxu0 %v2219
  %2526 = vmatprep.subr.bf16.mxu0 0
  %2527 = vmatpush1.bf16.msra.mxu0 %v2218
  %2528 = vmatprep.subr.bf16.mxu0 0
  %2529 = vmatpush1.bf16.msra.mxu0 %v2217
  %2530 = vmatprep.subr.bf16.mxu0 0
  %2531 = vmatpush1.bf16.msra.mxu0 %v2216
  %2532 = vmatprep.subr.bf16.mxu0 0
  %2533 = vmatpush1.bf16.msra.mxu0 %v2215
  %2534 = vmatprep.subr.bf16.mxu0 0
  %2535 = vmatpush1.bf16.msra.mxu0 %v2214
  %2536 = vmatprep.subr.bf16.mxu0 0
  %2537 = vmatpush2.bf16.msra.mxu0 %v2229
  %2538 = vmatprep.subr.bf16.mxu0 0
  %2539 = vmatpush2.bf16.msra.mxu0 %v2228
  %2540 = vmatprep.subr.bf16.mxu0 0
  %2541 = vmatpush2.bf16.msra.mxu0 %v2227
  %2542 = vmatprep.subr.bf16.mxu0 0
  %2543 = vmatpush2.bf16.msra.mxu0 %v2226
  %2544 = vmatprep.subr.bf16.mxu0 0
  %2545 = vmatpush2.bf16.msra.mxu0 %v2225
  %2546 = vmatprep.subr.bf16.mxu0 0
  %2547 = vmatpush2.bf16.msra.mxu0 %v2224
  %2548 = vmatprep.subr.bf16.mxu0 0
  %2549 = vmatpush2.bf16.msra.mxu0 %v2223
  %2550 = vmatprep.subr.bf16.mxu0 0
  %2551 = vmatpush2.bf16.msra.mxu0 %v2222
  %2552 = vmatprep.mubr.bf16.mxu0 %v1396
  %2553 = vmatmul.mubr.bf16.gmra.mxu0 %v1395
  %v2554 = vpop.f32.mrf.mxu0
  %v2555 = vadd.f32 %v2514, %v2554
  %v2556 = vpop.f32.mrf.mxu0
  %v2557 = vpop.f32.mrf.mxu0
  %v2558 = vadd.f32 %v2517, %v2557
  %v2559 = vpop.f32.mrf.mxu0
  %2560 = vdwg.mxu0
  %2561 = vmatprep.subr.bf16.mxu0 0
  %2562 = vmatpush1.bf16.msra.mxu0 %v2237
  %2563 = vmatprep.subr.bf16.mxu0 0
  %2564 = vmatpush1.bf16.msra.mxu0 %v2236
  %2565 = vmatprep.subr.bf16.mxu0 0
  %2566 = vmatpush1.bf16.msra.mxu0 %v2235
  %2567 = vmatprep.subr.bf16.mxu0 0
  %2568 = vmatpush1.bf16.msra.mxu0 %v2234
  %2569 = vmatprep.subr.bf16.mxu0 0
  %2570 = vmatpush1.bf16.msra.mxu0 %v2233
  %2571 = vmatprep.subr.bf16.mxu0 0
  %2572 = vmatpush1.bf16.msra.mxu0 %v2232
  %2573 = vmatprep.subr.bf16.mxu0 0
  %2574 = vmatpush1.bf16.msra.mxu0 %v2231
  %2575 = vmatprep.subr.bf16.mxu0 0
  %2576 = vmatpush1.bf16.msra.mxu0 %v2230
  %2577 = vmatprep.subr.bf16.mxu0 0
  %2578 = vmatpush2.bf16.msra.mxu0 %v2245
  %2579 = vmatprep.subr.bf16.mxu0 0
  %2580 = vmatpush2.bf16.msra.mxu0 %v2244
  %2581 = vmatprep.subr.bf16.mxu0 0
  %2582 = vmatpush2.bf16.msra.mxu0 %v2243
  %2583 = vmatprep.subr.bf16.mxu0 0
  %2584 = vmatpush2.bf16.msra.mxu0 %v2242
  %2585 = vmatprep.subr.bf16.mxu0 0
  %2586 = vmatpush2.bf16.msra.mxu0 %v2241
  %2587 = vmatprep.subr.bf16.mxu0 0
  %2588 = vmatpush2.bf16.msra.mxu0 %v2240
  %2589 = vmatprep.subr.bf16.mxu0 0
  %2590 = vmatpush2.bf16.msra.mxu0 %v2239
  %2591 = vmatprep.subr.bf16.mxu0 0
  %2592 = vmatpush2.bf16.msra.mxu0 %v2238
  %2593 = vmatprep.mubr.bf16.mxu0 %v1398
  %2594 = vmatmul.mubr.bf16.gmra.mxu0 %v1397
  %v2595 = vpop.f32.mrf.mxu0
  %v2596 = vadd.f32 %v2555, %v2595
  %v2597 = vpop.f32.mrf.mxu0
  %v2598 = vpop.f32.mrf.mxu0
  %v2599 = vadd.f32 %v2558, %v2598
  %v2600 = vpop.f32.mrf.mxu0
  %2601 = vdwg.mxu0
  %2602 = vmatprep.subr.bf16.mxu0 0
  %2603 = vmatpush1.bf16.msra.mxu0 %v2253
  %2604 = vmatprep.subr.bf16.mxu0 0
  %2605 = vmatpush1.bf16.msra.mxu0 %v2252
  %2606 = vmatprep.subr.bf16.mxu0 0
  %2607 = vmatpush1.bf16.msra.mxu0 %v2251
  %2608 = vmatprep.subr.bf16.mxu0 0
  %2609 = vmatpush1.bf16.msra.mxu0 %v2250
  %2610 = vmatprep.subr.bf16.mxu0 0
  %2611 = vmatpush1.bf16.msra.mxu0 %v2249
  %2612 = vmatprep.subr.bf16.mxu0 0
  %2613 = vmatpush1.bf16.msra.mxu0 %v2248
  %2614 = vmatprep.subr.bf16.mxu0 0
  %2615 = vmatpush1.bf16.msra.mxu0 %v2247
  %2616 = vmatprep.subr.bf16.mxu0 0
  %2617 = vmatpush1.bf16.msra.mxu0 %v2246
  %2618 = vmatprep.subr.bf16.mxu0 0
  %2619 = vmatpush2.bf16.msra.mxu0 %v2261
  %2620 = vmatprep.subr.bf16.mxu0 0
  %2621 = vmatpush2.bf16.msra.mxu0 %v2260
  %2622 = vmatprep.subr.bf16.mxu0 0
  %2623 = vmatpush2.bf16.msra.mxu0 %v2259
  %2624 = vmatprep.subr.bf16.mxu0 0
  %2625 = vmatpush2.bf16.msra.mxu0 %v2258
  %2626 = vmatprep.subr.bf16.mxu0 0
  %2627 = vmatpush2.bf16.msra.mxu0 %v2257
  %2628 = vmatprep.subr.bf16.mxu0 0
  %2629 = vmatpush2.bf16.msra.mxu0 %v2256
  %2630 = vmatprep.subr.bf16.mxu0 0
  %2631 = vmatpush2.bf16.msra.mxu0 %v2255
  %2632 = vmatprep.subr.bf16.mxu0 0
  %2633 = vmatpush2.bf16.msra.mxu0 %v2254
  %2634 = vmatprep.mubr.bf16.mxu0 %v1400
  %2635 = vmatmul.mubr.bf16.gmra.mxu0 %v1399
  %v2636 = vpop.f32.mrf.mxu0
  %v2637 = vadd.f32 %v2596, %v2636
  %v2638 = vpop.f32.mrf.mxu0
  %v2639 = vpop.f32.mrf.mxu0
  %v2640 = vadd.f32 %v2599, %v2639
  %v2641 = vpop.f32.mrf.mxu0
  %2642 = vdwg.mxu0
  %2643 = vmatprep.subr.bf16.mxu0 0
  %2644 = vmatpush1.bf16.msra.mxu0 %v2269
  %2645 = vmatprep.subr.bf16.mxu0 0
  %2646 = vmatpush1.bf16.msra.mxu0 %v2268
  %2647 = vmatprep.subr.bf16.mxu0 0
  %2648 = vmatpush1.bf16.msra.mxu0 %v2267
  %2649 = vmatprep.subr.bf16.mxu0 0
  %2650 = vmatpush1.bf16.msra.mxu0 %v2266
  %2651 = vmatprep.subr.bf16.mxu0 0
  %2652 = vmatpush1.bf16.msra.mxu0 %v2265
  %2653 = vmatprep.subr.bf16.mxu0 0
  %2654 = vmatpush1.bf16.msra.mxu0 %v2264
  %2655 = vmatprep.subr.bf16.mxu0 0
  %2656 = vmatpush1.bf16.msra.mxu0 %v2263
  %2657 = vmatprep.subr.bf16.mxu0 0
  %2658 = vmatpush1.bf16.msra.mxu0 %v2262
  %2659 = vmatprep.subr.bf16.mxu0 0
  %2660 = vmatpush2.bf16.msra.mxu0 %v2277
  %2661 = vmatprep.subr.bf16.mxu0 0
  %2662 = vmatpush2.bf16.msra.mxu0 %v2276
  %2663 = vmatprep.subr.bf16.mxu0 0
  %2664 = vmatpush2.bf16.msra.mxu0 %v2275
  %2665 = vmatprep.subr.bf16.mxu0 0
  %2666 = vmatpush2.bf16.msra.mxu0 %v2274
  %2667 = vmatprep.subr.bf16.mxu0 0
  %2668 = vmatpush2.bf16.msra.mxu0 %v2273
  %2669 = vmatprep.subr.bf16.mxu0 0
  %2670 = vmatpush2.bf16.msra.mxu0 %v2272
  %2671 = vmatprep.subr.bf16.mxu0 0
  %2672 = vmatpush2.bf16.msra.mxu0 %v2271
  %2673 = vmatprep.subr.bf16.mxu0 0
  %2674 = vmatpush2.bf16.msra.mxu0 %v2270
  %2675 = vmatprep.mubr.bf16.mxu0 %v1402
  %2676 = vmatmul.mubr.bf16.gmra.mxu0 %v1401
  %v2677 = vpop.f32.mrf.mxu0
  %v2678 = vadd.f32 %v2637, %v2677
  %v2679 = vpop.f32.mrf.mxu0
  %v2680 = vpop.f32.mrf.mxu0
  %v2681 = vadd.f32 %v2640, %v2680
  %v2682 = vpop.f32.mrf.mxu0
  %2683 = vdwg.mxu0
  %2684 = vmatprep.subr.bf16.mxu0 0
  %2685 = vmatpush1.bf16.msra.mxu0 %v2285
  %2686 = vmatprep.subr.bf16.mxu0 0
  %2687 = vmatpush1.bf16.msra.mxu0 %v2284
  %2688 = vmatprep.subr.bf16.mxu0 0
  %2689 = vmatpush1.bf16.msra.mxu0 %v2283
  %2690 = vmatprep.subr.bf16.mxu0 0
  %2691 = vmatpush1.bf16.msra.mxu0 %v2282
  %2692 = vmatprep.subr.bf16.mxu0 0
  %2693 = vmatpush1.bf16.msra.mxu0 %v2281
  %2694 = vmatprep.subr.bf16.mxu0 0
  %2695 = vmatpush1.bf16.msra.mxu0 %v2280
  %2696 = vmatprep.subr.bf16.mxu0 0
  %2697 = vmatpush1.bf16.msra.mxu0 %v2279
  %2698 = vmatprep.subr.bf16.mxu0 0
  %2699 = vmatpush1.bf16.msra.mxu0 %v2278
  %2700 = vmatprep.subr.bf16.mxu0 0
  %2701 = vmatpush2.bf16.msra.mxu0 %v2293
  %2702 = vmatprep.subr.bf16.mxu0 0
  %2703 = vmatpush2.bf16.msra.mxu0 %v2292
  %2704 = vmatprep.subr.bf16.mxu0 0
  %2705 = vmatpush2.bf16.msra.mxu0 %v2291
  %2706 = vmatprep.subr.bf16.mxu0 0
  %2707 = vmatpush2.bf16.msra.mxu0 %v2290
  %2708 = vmatprep.subr.bf16.mxu0 0
  %2709 = vmatpush2.bf16.msra.mxu0 %v2289
  %2710 = vmatprep.subr.bf16.mxu0 0
  %2711 = vmatpush2.bf16.msra.mxu0 %v2288
  %2712 = vmatprep.subr.bf16.mxu0 0
  %2713 = vmatpush2.bf16.msra.mxu0 %v2287
  %2714 = vmatprep.subr.bf16.mxu0 0
  %2715 = vmatpush2.bf16.msra.mxu0 %v2286
  %2716 = vmatprep.mubr.bf16.mxu0 %v1404
  %2717 = vmatmul.mubr.bf16.gmra.mxu0 %v1403
  %v2718 = vpop.f32.mrf.mxu0
  %v2719 = vadd.f32 %v2678, %v2718
  %v2720 = vpop.f32.mrf.mxu0
  %v2721 = vpop.f32.mrf.mxu0
  %v2722 = vadd.f32 %v2681, %v2721
  %v2723 = vpop.f32.mrf.mxu0
  %2724 = vdwg.mxu0
  %2725 = vmatprep.subr.bf16.mxu0 0
  %2726 = vmatpush1.bf16.msra.mxu0 %v2301
  %2727 = vmatprep.subr.bf16.mxu0 0
  %2728 = vmatpush1.bf16.msra.mxu0 %v2300
  %2729 = vmatprep.subr.bf16.mxu0 0
  %2730 = vmatpush1.bf16.msra.mxu0 %v2299
  %2731 = vmatprep.subr.bf16.mxu0 0
  %2732 = vmatpush1.bf16.msra.mxu0 %v2298
  %2733 = vmatprep.subr.bf16.mxu0 0
  %2734 = vmatpush1.bf16.msra.mxu0 %v2297
  %2735 = vmatprep.subr.bf16.mxu0 0
  %2736 = vmatpush1.bf16.msra.mxu0 %v2296
  %2737 = vmatprep.subr.bf16.mxu0 0
  %2738 = vmatpush1.bf16.msra.mxu0 %v2295
  %2739 = vmatprep.subr.bf16.mxu0 0
  %2740 = vmatpush1.bf16.msra.mxu0 %v2294
  %2741 = vmatprep.subr.bf16.mxu0 0
  %2742 = vmatpush2.bf16.msra.mxu0 %v2309
  %2743 = vmatprep.subr.bf16.mxu0 0
  %2744 = vmatpush2.bf16.msra.mxu0 %v2308
  %2745 = vmatprep.subr.bf16.mxu0 0
  %2746 = vmatpush2.bf16.msra.mxu0 %v2307
  %2747 = vmatprep.subr.bf16.mxu0 0
  %2748 = vmatpush2.bf16.msra.mxu0 %v2306
  %2749 = vmatprep.subr.bf16.mxu0 0
  %2750 = vmatpush2.bf16.msra.mxu0 %v2305
  %2751 = vmatprep.subr.bf16.mxu0 0
  %2752 = vmatpush2.bf16.msra.mxu0 %v2304
  %2753 = vmatprep.subr.bf16.mxu0 0
  %2754 = vmatpush2.bf16.msra.mxu0 %v2303
  %2755 = vmatprep.subr.bf16.mxu0 0
  %2756 = vmatpush2.bf16.msra.mxu0 %v2302
  %2757 = vmatprep.mubr.bf16.mxu0 %v1406
  %2758 = vmatmul.mubr.bf16.gmra.mxu0 %v1405
  %v2759 = vpop.f32.mrf.mxu0
  %v2760 = vadd.f32 %v2719, %v2759
  %v2761 = vpop.f32.mrf.mxu0
  %v2762 = vpop.f32.mrf.mxu0
  %v2763 = vadd.f32 %v2722, %v2762
  %v2764 = vpop.f32.mrf.mxu0
  %2765 = vdwg.mxu0
  %v2766 = vunpack.c.l.bf16 %v27
  %v2767 = vunpack.c.l.bf16 %v28
  %v2768 = vadd.f32 %v2760, %v2766
  %v2769 = vadd.f32 %v2763, %v2767
  %v2770 = vld [vmem:[%s5] sm:$0x1]
  %v2771 = vld [vmem:[%s6] sm:$0x1]
  %2772 = vadd.xlane.f32.xlu0 %v2768
  %v2773 = vpop.xlane.xlu0 %2772
  %2774 = vadd.xlane.f32.xlu0 %v2769
  %v2775 = vpop.xlane.xlu0 %2774
  %v2776 = vrcp.pop 128.0
  %v2777 = vmul.f32 %v2773, %v2776
  %v2778 = vmul.f32 %v2775, %v2776
  %v2779 = vsub.f32 %v2768, %v2777
  %v2780 = vsub.f32 %v2769, %v2778
  %v2781 = vmul.f32 %v2779, %v2779
  %v2782 = vmul.f32 %v2780, %v2780
  %2783 = vadd.xlane.f32.xlu0 %v2781
  %v2784 = vpop.xlane.xlu0 %2783
  %2785 = vadd.xlane.f32.xlu0 %v2782
  %v2786 = vpop.xlane.xlu0 %2785
  %v2787 = vmul.f32 %v2784, %v2776
  %v2788 = vmul.f32 %v2786, %v2776
  %v2789 = vadd.f32 %v2787, 1e-05
  %v2790 = vadd.f32 %v2788, 1e-05
  %v2791 = vrsqrt.pop %v2789
  %v2792 = vrsqrt.pop %v2790
  %v2793 = vmul.f32 %v2779, %v2791
  %v2794 = vmul.f32 %v2780, %v2792
  %v2796 = vlaneseq
  %v2797 = vshrl.u32 %v2796, 7
  %v2798 = vsub.s32 0, %v2797
  %v2799 = vrot.slane %v2770, %v2798
  %v2801 = vmul.f32 %v2793, %v2799
  %v2802 = vmul.f32 %v2794, %v2799
  %v2804 = vlaneseq
  %v2805 = vshrl.u32 %v2804, 7
  %v2806 = vsub.s32 0, %v2805
  %v2807 = vrot.slane %v2771, %v2806
  %v2809 = vadd.f32 %v2801, %v2807
  %v2810 = vadd.f32 %v2802, %v2807
  %v2811 = vpack.c.bf16 %v2810, %v2809
  %v2813 = vunpack.c.l.b16 %v2811
  %v2814 = vunpack.c.h.b16 %v2811
  %v2815 = vpack.c.b16 %v2813, %v2813
  %v2816 = vpack.c.b16 %v2814, %v2814
  %2819 = vst [vmem:[%s7] sm:$0xf] %v2815
  %2820 = vst [vmem:[%s7 + $0x4] sm:$0xf] %v2816
  // Predicated region
  $region30: #{custom_transformer_forward.10} parent=0 // pred_check
    _
  $region31: #{custom_transformer_forward.10} parent=0 // pred_check_branch
    %2822 = sbr.rel (0) target = $region33
  $region32: #{custom_transformer_forward.10} parent=0 // pred_region
    _
  $region33: #{custom_transformer_forward.10} parent=0 // pred_fallthru
    _
  // Predicated region
  $region34: #{custom_transformer_forward.10} parent=0 // pred_check
    _
  $region35: #{custom_transformer_forward.10} parent=0 // pred_check_branch
    %2824 = sbr.rel (0) target = $region37
  $region36: #{custom_transformer_forward.10} parent=0 // pred_region
    _
  $region37: #{custom_transformer_forward.10} parent=0 // pred_fallthru
    _

</llo_original>
